<compile_context>
chip_gen: v7x
topology: tpu7x:2x2x1
jax: 0.10.0
libtpu: 0.0.40
codegen_flags: <defaults>
</compile_context>

<pallas_src>
import functools

import numpy as np
import jax
import jax.numpy as jnp
from jax.experimental import pallas as pl
from jax.experimental.pallas import tpu as pltpu

BN_EPS = 1e-5
FP = 128    # lane-padded filter/channel width (hidden layers & output)
C1P = 8     # lane padding for the 3 input channels of layer 1


# ----------------------------------------------------------------------------
# Fused kernel: num_layers x (conv 3x3 s2 p1 -> ReLU -> BatchNorm)
# ----------------------------------------------------------------------------
def make_fused_kernel(num_layers, m_list):
    """m_list[l] = number of output rows (N*Ho*Wo) of layer l."""

    def kernel(*refs):
        x_ref = refs[0]                                   # (M0, C1P) bf16
        g_refs = refs[1:1 + num_layers]                   # (9, M_l, M_{l-1}) bf16
        w_refs = refs[1 + num_layers:1 + 2 * num_layers]  # (9, C_in_l, FP) bf16
        b_ref = refs[1 + 2 * num_layers]                  # (L, 1, FP) f32
        o_ref = refs[2 + 2 * num_layers]                  # (M_last, FP) f32

        x = x_ref[...]                                    # bf16 activations
        y = None
        for l in range(num_layers):
            m = m_list[l]
            acc = jnp.zeros((m, FP), jnp.float32)
            for t in range(9):                            # 9 conv taps, unrolled
                g_t = g_refs[l][t]                        # (m, m_prev) 0/1 gather
                w_t = w_refs[l][t]                        # (c_in, FP) tap weights
                x_tap = jnp.dot(g_t, x,
                                preferred_element_type=jnp.float32)
                x_tap = x_tap.astype(jnp.bfloat16)        # exact (0/1 selection)
                acc = acc + jnp.dot(x_tap, w_t,
                                    preferred_element_type=jnp.float32)
            y = jnp.maximum(acc + b_ref[l], 0.0)          # bias + ReLU (f32)
            # BatchNorm (training-mode batch stats), one-pass sum / sum-of-squares.
            inv_m = 1.0 / m
            mean = jnp.sum(y, axis=0, keepdims=True) * inv_m
            ex2 = jnp.sum(y * y, axis=0, keepdims=True) * inv_m
            var = ex2 - mean * mean                       # biased variance
            y = (y - mean) * jax.lax.rsqrt(var + BN_EPS)
            x = y.astype(jnp.bfloat16)                    # next layer's input
        o_ref[...] = y                                    # single lane-dense store

    return kernel


def run_fused(x1, g_list, w_list, b_all, m_list):
    num_layers = len(g_list)
    m_last = m_list[-1]
    operands = [x1] + g_list + w_list + [b_all]

    in_specs = [pl.BlockSpec(x1.shape, lambda i: (0, 0))]
    for a in g_list + w_list:
        in_specs.append(pl.BlockSpec(a.shape, lambda i: (0, 0, 0)))
    in_specs.append(pl.BlockSpec(b_all.shape, lambda i: (0, 0, 0)))

    return pl.pallas_call(
        make_fused_kernel(num_layers, tuple(m_list)),
        out_shape=jax.ShapeDtypeStruct((m_last, FP), jnp.float32),
        grid=(1,),
        in_specs=in_specs,
        out_specs=pl.BlockSpec((m_last, FP), lambda i: (0, 0)),
        compiler_params=pltpu.CompilerParams(
            dimension_semantics=("arbitrary",)),
    )(*operands)


# ----------------------------------------------------------------------------
# Host-side one-time packing (constant gather matrices, weight layout, padding)
# ----------------------------------------------------------------------------
def build_gather(N, H, W):
    """0/1 selection matrices G[t, m, s] for conv 3x3, stride 2, pad 1."""
    Ho, Wo = (H + 1) // 2, (W + 1) // 2
    M, S = N * Ho * Wo, N * H * W
    G = np.zeros((9, M, S), np.float32)
    for n in range(N):
        for ho in range(Ho):
            for wo in range(Wo):
                m = n * Ho * Wo + ho * Wo + wo
                for kh in range(3):
                    for kw in range(3):
                        h, w = 2 * ho + kh - 1, 2 * wo + kw - 1
                        if 0 <= h < H and 0 <= w < W:
                            G[kh * 3 + kw, m, n * H * W + h * W + w] = 1.0
    return G, Ho, Wo


def pack_inputs(img, params, group_size):
    N, C, H, W = img.shape
    num_layers = 3 if group_size in (4, 8) else 4

    # Layer-1 input: NHWC-flat (rows = (n,h,w), lanes = channels), bf16.
    x = jnp.transpose(img, (0, 2, 3, 1)).reshape(N * H * W, C)
    x = jnp.pad(x, ((0, 0), (0, C1P - C))).astype(jnp.bfloat16)

    g_list, w_list, b_rows, m_list = [], [], [], []
    h, w_sp, c_in_pad = H, W, C1P
    for l in range(num_layers):
        wt, bt = params[l]                       # (F, C_in, 3, 3), (F,)
        F, C_in = wt.shape[0], wt.shape[1]
        G_np, ho, wo = build_gather(N, h, w_sp)
        g_list.append(jnp.asarray(G_np, jnp.bfloat16))
        # (F, C, 3, 3) -> (9, C, F) with tap t = kh*3 + kw, then zero-pad lanes.
        wm = jnp.transpose(wt, (2, 3, 1, 0)).reshape(9, C_in, F)
        wm = jnp.pad(wm, ((0, 0), (0, c_in_pad - C_in), (0, FP - F)))
        w_list.append(wm.astype(jnp.bfloat16))
        b_rows.append(jnp.pad(bt, (0, FP - F)))
        m_list.append(N * ho * wo)
        h, w_sp, c_in_pad = ho, wo, FP
    b_all = jnp.stack(b_rows).reshape(num_layers, 1, FP).astype(jnp.float32)
    return x, g_list, w_list, b_all, m_list, (h, w_sp)


@functools.partial(jax.jit, static_argnames=("group_size",))
def conv_input_model(img, params, group_size):
    """Forward pass matching ConvInputModel.forward (training-mode BatchNorm)."""
    N = img.shape[0]
    F = params[0][0].shape[0]
    x1, g_list, w_list, b_all, m_list, (ho, wo) = pack_inputs(
        img, params, group_size)
    out = run_fused(x1, g_list, w_list, b_all, m_list)    # (N*ho*wo, FP) f32
    out = out[:, :F].reshape(N, ho, wo, F)
    return jnp.transpose(out, (0, 3, 1, 2))               # back to NCHW


def init_params(key, filter_size):
    """Deterministic synthetic weights, PyTorch shapes: (F, C_in, 3, 3) + (F,)."""
    keys = jax.random.split(key, 8)
    params, c_in = [], 3
    for li in range(4):
        fan_in = c_in * 9
        w = jax.random.normal(keys[2 * li], (filter_size, c_in, 3, 3),
                              jnp.float32) * (1.0 / jnp.sqrt(fan_in))
        b = jax.random.normal(keys[2 * li + 1], (filter_size,),
                              jnp.float32) * 0.01
        params.append((w, b))
        c_in = filter_size
    return params


if __name__ == "__main__":
    filter_size = 32
    group_size = 2          # != 4 and != 8, so all four conv layers run
    key = jax.random.PRNGKey(0)
    k_img, k_par = jax.random.split(key)

    img = jax.random.normal(k_img, (2, 3, 16, 16), jnp.float32)   # NCHW
    params = init_params(k_par, filter_size)

    out = conv_input_model(img, params, group_size)
    out = jax.block_until_ready(out)
    assert out.shape == (2, filter_size, 1, 1), out.shape
    assert bool(jnp.all(jnp.isfinite(out)))
    print("KERNEL_OK")
</pallas_src>

<mosaic_0001>
module attributes {stable_mosaic.version = 11 : i64} {
  func.func @kernel(%arg0: i32, %arg1: memref<512x8xbf16, #tpu.memory_space<vmem>>, %arg2: memref<9x128x512xbf16, #tpu.memory_space<vmem>>, %arg3: memref<9x32x128xbf16, #tpu.memory_space<vmem>>, %arg4: memref<9x8x32xbf16, #tpu.memory_space<vmem>>, %arg5: memref<9x2x8xbf16, #tpu.memory_space<vmem>>, %arg6: memref<9x8x128xbf16, #tpu.memory_space<vmem>>, %arg7: memref<9x128x128xbf16, #tpu.memory_space<vmem>>, %arg8: memref<9x128x128xbf16, #tpu.memory_space<vmem>>, %arg9: memref<9x128x128xbf16, #tpu.memory_space<vmem>>, %arg10: memref<4x1x128xf32, #tpu.memory_space<vmem>>, %arg11: memref<2x128xf32, #tpu.memory_space<vmem>>) attributes {dimension_semantics = [#tpu.dimension_semantics<arbitrary>], iteration_bounds = array<i64: 1>, scalar_prefetch = 0 : i64, scratch_operands = 0 : i64, tpu.core_type = #tpu.core_type<tc>, window_params = [{pipeline_mode = #tpu.pipeline_mode<synchronous>, transform_indices = @transform_0, window_bounds = array<i64: 512, 8>}, {pipeline_mode = #tpu.pipeline_mode<synchronous>, transform_indices = @transform_1, window_bounds = array<i64: 9, 128, 512>}, {pipeline_mode = #tpu.pipeline_mode<synchronous>, transform_indices = @transform_2, window_bounds = array<i64: 9, 32, 128>}, {pipeline_mode = #tpu.pipeline_mode<synchronous>, transform_indices = @transform_3, window_bounds = array<i64: 9, 8, 32>}, {pipeline_mode = #tpu.pipeline_mode<synchronous>, transform_indices = @transform_4, window_bounds = array<i64: 9, 2, 8>}, {pipeline_mode = #tpu.pipeline_mode<synchronous>, transform_indices = @transform_5, window_bounds = array<i64: 9, 8, 128>}, {pipeline_mode = #tpu.pipeline_mode<synchronous>, transform_indices = @transform_6, window_bounds = array<i64: 9, 128, 128>}, {pipeline_mode = #tpu.pipeline_mode<synchronous>, transform_indices = @transform_7, window_bounds = array<i64: 9, 128, 128>}, {pipeline_mode = #tpu.pipeline_mode<synchronous>, transform_indices = @transform_8, window_bounds = array<i64: 9, 128, 128>}, {pipeline_mode = #tpu.pipeline_mode<synchronous>, transform_indices = @transform_9, window_bounds = array<i64: 4, 1, 128>}, {pipeline_mode = #tpu.pipeline_mode<synchronous>, transform_indices = @transform_10, window_bounds = array<i64: 2, 128>}]} {
    %c0 = arith.constant 0 : index
    %c0_0 = arith.constant 0 : index
    %0 = vector.load %arg1[%c0, %c0_0] : memref<512x8xbf16, #tpu.memory_space<vmem>>, vector<512x8xbf16>
    %cst = arith.constant 0.000000e+00 : f32
    %1 = vector.broadcast %cst : f32 to vector<128x128xf32>
    %c0_1 = arith.constant 0 : index
    %c0_2 = arith.constant 0 : index
    %c0_3 = arith.constant 0 : index
    %2 = vector.load %arg2[%c0_1, %c0_2, %c0_3] : memref<9x128x512xbf16, #tpu.memory_space<vmem>>, vector<1x128x512xbf16>
    %3 = vector.shape_cast %2 : vector<1x128x512xbf16> to vector<128x512xbf16>
    %c0_4 = arith.constant 0 : index
    %c0_5 = arith.constant 0 : index
    %c0_6 = arith.constant 0 : index
    %4 = vector.load %arg6[%c0_4, %c0_5, %c0_6] : memref<9x8x128xbf16, #tpu.memory_space<vmem>>, vector<1x8x128xbf16>
    %5 = vector.shape_cast %4 : vector<1x8x128xbf16> to vector<8x128xbf16>
    %cst_7 = arith.constant dense<0.000000e+00> : vector<128x8xf32>
    %6 = tpu.matmul %3, %0, %cst_7 {dimension_numbers = #tpu.dot_dimension_numbers<[1], [0], [0], [1], [0, 0, 1, 1], [], []>} : vector<128x512xbf16>, vector<512x8xbf16>, vector<128x8xf32> -> vector<128x8xf32>
    %7 = arith.truncf %6 : vector<128x8xf32> to vector<128x8xbf16>
    %cst_8 = arith.constant dense<0.000000e+00> : vector<128x128xf32>
    %8 = tpu.matmul %7, %5, %cst_8 {dimension_numbers = #tpu.dot_dimension_numbers<[1], [0], [0], [1], [0, 0, 1, 1], [], []>} : vector<128x8xbf16>, vector<8x128xbf16>, vector<128x128xf32> -> vector<128x128xf32>
    %9 = arith.addf %1, %8 : vector<128x128xf32>
    %c1 = arith.constant 1 : index
    %c0_9 = arith.constant 0 : index
    %c0_10 = arith.constant 0 : index
    %10 = vector.load %arg2[%c1, %c0_9, %c0_10] : memref<9x128x512xbf16, #tpu.memory_space<vmem>>, vector<1x128x512xbf16>
    %11 = vector.shape_cast %10 : vector<1x128x512xbf16> to vector<128x512xbf16>
    %c1_11 = arith.constant 1 : index
    %c0_12 = arith.constant 0 : index
    %c0_13 = arith.constant 0 : index
    %12 = vector.load %arg6[%c1_11, %c0_12, %c0_13] : memref<9x8x128xbf16, #tpu.memory_space<vmem>>, vector<1x8x128xbf16>
    %13 = vector.shape_cast %12 : vector<1x8x128xbf16> to vector<8x128xbf16>
    %cst_14 = arith.constant dense<0.000000e+00> : vector<128x8xf32>
    %14 = tpu.matmul %11, %0, %cst_14 {dimension_numbers = #tpu.dot_dimension_numbers<[1], [0], [0], [1], [0, 0, 1, 1], [], []>} : vector<128x512xbf16>, vector<512x8xbf16>, vector<128x8xf32> -> vector<128x8xf32>
    %15 = arith.truncf %14 : vector<128x8xf32> to vector<128x8xbf16>
    %cst_15 = arith.constant dense<0.000000e+00> : vector<128x128xf32>
    %16 = tpu.matmul %15, %13, %cst_15 {dimension_numbers = #tpu.dot_dimension_numbers<[1], [0], [0], [1], [0, 0, 1, 1], [], []>} : vector<128x8xbf16>, vector<8x128xbf16>, vector<128x128xf32> -> vector<128x128xf32>
    %17 = arith.addf %9, %16 : vector<128x128xf32>
    %c2 = arith.constant 2 : index
    %c0_16 = arith.constant 0 : index
    %c0_17 = arith.constant 0 : index
    %18 = vector.load %arg2[%c2, %c0_16, %c0_17] : memref<9x128x512xbf16, #tpu.memory_space<vmem>>, vector<1x128x512xbf16>
    %19 = vector.shape_cast %18 : vector<1x128x512xbf16> to vector<128x512xbf16>
    %c2_18 = arith.constant 2 : index
    %c0_19 = arith.constant 0 : index
    %c0_20 = arith.constant 0 : index
    %20 = vector.load %arg6[%c2_18, %c0_19, %c0_20] : memref<9x8x128xbf16, #tpu.memory_space<vmem>>, vector<1x8x128xbf16>
    %21 = vector.shape_cast %20 : vector<1x8x128xbf16> to vector<8x128xbf16>
    %cst_21 = arith.constant dense<0.000000e+00> : vector<128x8xf32>
    %22 = tpu.matmul %19, %0, %cst_21 {dimension_numbers = #tpu.dot_dimension_numbers<[1], [0], [0], [1], [0, 0, 1, 1], [], []>} : vector<128x512xbf16>, vector<512x8xbf16>, vector<128x8xf32> -> vector<128x8xf32>
    %23 = arith.truncf %22 : vector<128x8xf32> to vector<128x8xbf16>
    %cst_22 = arith.constant dense<0.000000e+00> : vector<128x128xf32>
    %24 = tpu.matmul %23, %21, %cst_22 {dimension_numbers = #tpu.dot_dimension_numbers<[1], [0], [0], [1], [0, 0, 1, 1], [], []>} : vector<128x8xbf16>, vector<8x128xbf16>, vector<128x128xf32> -> vector<128x128xf32>
    %25 = arith.addf %17, %24 : vector<128x128xf32>
    %c3 = arith.constant 3 : index
    %c0_23 = arith.constant 0 : index
    %c0_24 = arith.constant 0 : index
    %26 = vector.load %arg2[%c3, %c0_23, %c0_24] : memref<9x128x512xbf16, #tpu.memory_space<vmem>>, vector<1x128x512xbf16>
    %27 = vector.shape_cast %26 : vector<1x128x512xbf16> to vector<128x512xbf16>
    %c3_25 = arith.constant 3 : index
    %c0_26 = arith.constant 0 : index
    %c0_27 = arith.constant 0 : index
    %28 = vector.load %arg6[%c3_25, %c0_26, %c0_27] : memref<9x8x128xbf16, #tpu.memory_space<vmem>>, vector<1x8x128xbf16>
    %29 = vector.shape_cast %28 : vector<1x8x128xbf16> to vector<8x128xbf16>
    %cst_28 = arith.constant dense<0.000000e+00> : vector<128x8xf32>
    %30 = tpu.matmul %27, %0, %cst_28 {dimension_numbers = #tpu.dot_dimension_numbers<[1], [0], [0], [1], [0, 0, 1, 1], [], []>} : vector<128x512xbf16>, vector<512x8xbf16>, vector<128x8xf32> -> vector<128x8xf32>
    %31 = arith.truncf %30 : vector<128x8xf32> to vector<128x8xbf16>
    %cst_29 = arith.constant dense<0.000000e+00> : vector<128x128xf32>
    %32 = tpu.matmul %31, %29, %cst_29 {dimension_numbers = #tpu.dot_dimension_numbers<[1], [0], [0], [1], [0, 0, 1, 1], [], []>} : vector<128x8xbf16>, vector<8x128xbf16>, vector<128x128xf32> -> vector<128x128xf32>
    %33 = arith.addf %25, %32 : vector<128x128xf32>
    %c4 = arith.constant 4 : index
    %c0_30 = arith.constant 0 : index
    %c0_31 = arith.constant 0 : index
    %34 = vector.load %arg2[%c4, %c0_30, %c0_31] : memref<9x128x512xbf16, #tpu.memory_space<vmem>>, vector<1x128x512xbf16>
    %35 = vector.shape_cast %34 : vector<1x128x512xbf16> to vector<128x512xbf16>
    %c4_32 = arith.constant 4 : index
    %c0_33 = arith.constant 0 : index
    %c0_34 = arith.constant 0 : index
    %36 = vector.load %arg6[%c4_32, %c0_33, %c0_34] : memref<9x8x128xbf16, #tpu.memory_space<vmem>>, vector<1x8x128xbf16>
    %37 = vector.shape_cast %36 : vector<1x8x128xbf16> to vector<8x128xbf16>
    %cst_35 = arith.constant dense<0.000000e+00> : vector<128x8xf32>
    %38 = tpu.matmul %35, %0, %cst_35 {dimension_numbers = #tpu.dot_dimension_numbers<[1], [0], [0], [1], [0, 0, 1, 1], [], []>} : vector<128x512xbf16>, vector<512x8xbf16>, vector<128x8xf32> -> vector<128x8xf32>
    %39 = arith.truncf %38 : vector<128x8xf32> to vector<128x8xbf16>
    %cst_36 = arith.constant dense<0.000000e+00> : vector<128x128xf32>
    %40 = tpu.matmul %39, %37, %cst_36 {dimension_numbers = #tpu.dot_dimension_numbers<[1], [0], [0], [1], [0, 0, 1, 1], [], []>} : vector<128x8xbf16>, vector<8x128xbf16>, vector<128x128xf32> -> vector<128x128xf32>
    %41 = arith.addf %33, %40 : vector<128x128xf32>
    %c5 = arith.constant 5 : index
    %c0_37 = arith.constant 0 : index
    %c0_38 = arith.constant 0 : index
    %42 = vector.load %arg2[%c5, %c0_37, %c0_38] : memref<9x128x512xbf16, #tpu.memory_space<vmem>>, vector<1x128x512xbf16>
    %43 = vector.shape_cast %42 : vector<1x128x512xbf16> to vector<128x512xbf16>
    %c5_39 = arith.constant 5 : index
    %c0_40 = arith.constant 0 : index
    %c0_41 = arith.constant 0 : index
    %44 = vector.load %arg6[%c5_39, %c0_40, %c0_41] : memref<9x8x128xbf16, #tpu.memory_space<vmem>>, vector<1x8x128xbf16>
    %45 = vector.shape_cast %44 : vector<1x8x128xbf16> to vector<8x128xbf16>
    %cst_42 = arith.constant dense<0.000000e+00> : vector<128x8xf32>
    %46 = tpu.matmul %43, %0, %cst_42 {dimension_numbers = #tpu.dot_dimension_numbers<[1], [0], [0], [1], [0, 0, 1, 1], [], []>} : vector<128x512xbf16>, vector<512x8xbf16>, vector<128x8xf32> -> vector<128x8xf32>
    %47 = arith.truncf %46 : vector<128x8xf32> to vector<128x8xbf16>
    %cst_43 = arith.constant dense<0.000000e+00> : vector<128x128xf32>
    %48 = tpu.matmul %47, %45, %cst_43 {dimension_numbers = #tpu.dot_dimension_numbers<[1], [0], [0], [1], [0, 0, 1, 1], [], []>} : vector<128x8xbf16>, vector<8x128xbf16>, vector<128x128xf32> -> vector<128x128xf32>
    %49 = arith.addf %41, %48 : vector<128x128xf32>
    %c6 = arith.constant 6 : index
    %c0_44 = arith.constant 0 : index
    %c0_45 = arith.constant 0 : index
    %50 = vector.load %arg2[%c6, %c0_44, %c0_45] : memref<9x128x512xbf16, #tpu.memory_space<vmem>>, vector<1x128x512xbf16>
    %51 = vector.shape_cast %50 : vector<1x128x512xbf16> to vector<128x512xbf16>
    %c6_46 = arith.constant 6 : index
    %c0_47 = arith.constant 0 : index
    %c0_48 = arith.constant 0 : index
    %52 = vector.load %arg6[%c6_46, %c0_47, %c0_48] : memref<9x8x128xbf16, #tpu.memory_space<vmem>>, vector<1x8x128xbf16>
    %53 = vector.shape_cast %52 : vector<1x8x128xbf16> to vector<8x128xbf16>
    %cst_49 = arith.constant dense<0.000000e+00> : vector<128x8xf32>
    %54 = tpu.matmul %51, %0, %cst_49 {dimension_numbers = #tpu.dot_dimension_numbers<[1], [0], [0], [1], [0, 0, 1, 1], [], []>} : vector<128x512xbf16>, vector<512x8xbf16>, vector<128x8xf32> -> vector<128x8xf32>
    %55 = arith.truncf %54 : vector<128x8xf32> to vector<128x8xbf16>
    %cst_50 = arith.constant dense<0.000000e+00> : vector<128x128xf32>
    %56 = tpu.matmul %55, %53, %cst_50 {dimension_numbers = #tpu.dot_dimension_numbers<[1], [0], [0], [1], [0, 0, 1, 1], [], []>} : vector<128x8xbf16>, vector<8x128xbf16>, vector<128x128xf32> -> vector<128x128xf32>
    %57 = arith.addf %49, %56 : vector<128x128xf32>
    %c7 = arith.constant 7 : index
    %c0_51 = arith.constant 0 : index
    %c0_52 = arith.constant 0 : index
    %58 = vector.load %arg2[%c7, %c0_51, %c0_52] : memref<9x128x512xbf16, #tpu.memory_space<vmem>>, vector<1x128x512xbf16>
    %59 = vector.shape_cast %58 : vector<1x128x512xbf16> to vector<128x512xbf16>
    %c7_53 = arith.constant 7 : index
    %c0_54 = arith.constant 0 : index
    %c0_55 = arith.constant 0 : index
    %60 = vector.load %arg6[%c7_53, %c0_54, %c0_55] : memref<9x8x128xbf16, #tpu.memory_space<vmem>>, vector<1x8x128xbf16>
    %61 = vector.shape_cast %60 : vector<1x8x128xbf16> to vector<8x128xbf16>
    %cst_56 = arith.constant dense<0.000000e+00> : vector<128x8xf32>
    %62 = tpu.matmul %59, %0, %cst_56 {dimension_numbers = #tpu.dot_dimension_numbers<[1], [0], [0], [1], [0, 0, 1, 1], [], []>} : vector<128x512xbf16>, vector<512x8xbf16>, vector<128x8xf32> -> vector<128x8xf32>
    %63 = arith.truncf %62 : vector<128x8xf32> to vector<128x8xbf16>
    %cst_57 = arith.constant dense<0.000000e+00> : vector<128x128xf32>
    %64 = tpu.matmul %63, %61, %cst_57 {dimension_numbers = #tpu.dot_dimension_numbers<[1], [0], [0], [1], [0, 0, 1, 1], [], []>} : vector<128x8xbf16>, vector<8x128xbf16>, vector<128x128xf32> -> vector<128x128xf32>
    %65 = arith.addf %57, %64 : vector<128x128xf32>
    %c8 = arith.constant 8 : index
    %c0_58 = arith.constant 0 : index
    %c0_59 = arith.constant 0 : index
    %66 = vector.load %arg2[%c8, %c0_58, %c0_59] : memref<9x128x512xbf16, #tpu.memory_space<vmem>>, vector<1x128x512xbf16>
    %67 = vector.shape_cast %66 : vector<1x128x512xbf16> to vector<128x512xbf16>
    %c8_60 = arith.constant 8 : index
    %c0_61 = arith.constant 0 : index
    %c0_62 = arith.constant 0 : index
    %68 = vector.load %arg6[%c8_60, %c0_61, %c0_62] : memref<9x8x128xbf16, #tpu.memory_space<vmem>>, vector<1x8x128xbf16>
    %69 = vector.shape_cast %68 : vector<1x8x128xbf16> to vector<8x128xbf16>
    %cst_63 = arith.constant dense<0.000000e+00> : vector<128x8xf32>
    %70 = tpu.matmul %67, %0, %cst_63 {dimension_numbers = #tpu.dot_dimension_numbers<[1], [0], [0], [1], [0, 0, 1, 1], [], []>} : vector<128x512xbf16>, vector<512x8xbf16>, vector<128x8xf32> -> vector<128x8xf32>
    %71 = arith.truncf %70 : vector<128x8xf32> to vector<128x8xbf16>
    %cst_64 = arith.constant dense<0.000000e+00> : vector<128x128xf32>
    %72 = tpu.matmul %71, %69, %cst_64 {dimension_numbers = #tpu.dot_dimension_numbers<[1], [0], [0], [1], [0, 0, 1, 1], [], []>} : vector<128x8xbf16>, vector<8x128xbf16>, vector<128x128xf32> -> vector<128x128xf32>
    %73 = arith.addf %65, %72 : vector<128x128xf32>
    %c0_65 = arith.constant 0 : index
    %c0_66 = arith.constant 0 : index
    %c0_67 = arith.constant 0 : index
    %74 = vector.load %arg10[%c0_65, %c0_66, %c0_67] : memref<4x1x128xf32, #tpu.memory_space<vmem>>, vector<1x1x128xf32>
    %75 = vector.shape_cast %74 : vector<1x1x128xf32> to vector<1x128xf32>
    %76 = vector.broadcast %75 : vector<1x128xf32> to vector<128x128xf32>
    %77 = arith.addf %73, %76 : vector<128x128xf32>
    %cst_68 = arith.constant 0.000000e+00 : f32
    %78 = vector.broadcast %cst_68 : f32 to vector<128x128xf32>
    %79 = arith.maximumf %77, %78 : vector<128x128xf32>
    %cst_69 = arith.constant dense<0.000000e+00> : vector<128xf32>
    %80 = vector.multi_reduction <add>, %79, %cst_69 [0] : vector<128x128xf32> to vector<128xf32>
    %81 = vector.shape_cast %80 : vector<128xf32> to vector<1x128xf32>
    %cst_70 = arith.constant 7.812500e-03 : f32
    %82 = vector.broadcast %cst_70 : f32 to vector<1x128xf32>
    %83 = arith.mulf %81, %82 : vector<1x128xf32>
    %84 = arith.mulf %79, %79 : vector<128x128xf32>
    %cst_71 = arith.constant dense<0.000000e+00> : vector<128xf32>
    %85 = vector.multi_reduction <add>, %84, %cst_71 [0] : vector<128x128xf32> to vector<128xf32>
    %86 = vector.shape_cast %85 : vector<128xf32> to vector<1x128xf32>
    %cst_72 = arith.constant 7.812500e-03 : f32
    %87 = vector.broadcast %cst_72 : f32 to vector<1x128xf32>
    %88 = arith.mulf %86, %87 : vector<1x128xf32>
    %89 = arith.mulf %83, %83 : vector<1x128xf32>
    %90 = arith.subf %88, %89 : vector<1x128xf32>
    %91 = vector.broadcast %83 : vector<1x128xf32> to vector<128x128xf32>
    %92 = arith.subf %79, %91 : vector<128x128xf32>
    %cst_73 = arith.constant 9.99999974E-6 : f32
    %93 = vector.broadcast %cst_73 : f32 to vector<1x128xf32>
    %94 = arith.addf %90, %93 : vector<1x128xf32>
    %95 = math.rsqrt %94 : vector<1x128xf32>
    %96 = vector.broadcast %95 : vector<1x128xf32> to vector<128x128xf32>
    %97 = arith.mulf %92, %96 : vector<128x128xf32>
    %98 = arith.truncf %97 : vector<128x128xf32> to vector<128x128xbf16>
    %cst_74 = arith.constant 0.000000e+00 : f32
    %99 = vector.broadcast %cst_74 : f32 to vector<32x128xf32>
    %c0_75 = arith.constant 0 : index
    %c0_76 = arith.constant 0 : index
    %c0_77 = arith.constant 0 : index
    %100 = vector.load %arg3[%c0_75, %c0_76, %c0_77] : memref<9x32x128xbf16, #tpu.memory_space<vmem>>, vector<1x32x128xbf16>
    %101 = vector.shape_cast %100 : vector<1x32x128xbf16> to vector<32x128xbf16>
    %c0_78 = arith.constant 0 : index
    %c0_79 = arith.constant 0 : index
    %c0_80 = arith.constant 0 : index
    %102 = vector.load %arg7[%c0_78, %c0_79, %c0_80] : memref<9x128x128xbf16, #tpu.memory_space<vmem>>, vector<1x128x128xbf16>
    %103 = vector.shape_cast %102 : vector<1x128x128xbf16> to vector<128x128xbf16>
    %cst_81 = arith.constant dense<0.000000e+00> : vector<32x128xf32>
    %104 = tpu.matmul %101, %98, %cst_81 {dimension_numbers = #tpu.dot_dimension_numbers<[1], [0], [0], [1], [0, 0, 1, 1], [], []>} : vector<32x128xbf16>, vector<128x128xbf16>, vector<32x128xf32> -> vector<32x128xf32>
    %105 = arith.truncf %104 : vector<32x128xf32> to vector<32x128xbf16>
    %cst_82 = arith.constant dense<0.000000e+00> : vector<32x128xf32>
    %106 = tpu.matmul %105, %103, %cst_82 {dimension_numbers = #tpu.dot_dimension_numbers<[1], [0], [0], [1], [0, 0, 1, 1], [], []>} : vector<32x128xbf16>, vector<128x128xbf16>, vector<32x128xf32> -> vector<32x128xf32>
    %107 = arith.addf %99, %106 : vector<32x128xf32>
    %c1_83 = arith.constant 1 : index
    %c0_84 = arith.constant 0 : index
    %c0_85 = arith.constant 0 : index
    %108 = vector.load %arg3[%c1_83, %c0_84, %c0_85] : memref<9x32x128xbf16, #tpu.memory_space<vmem>>, vector<1x32x128xbf16>
    %109 = vector.shape_cast %108 : vector<1x32x128xbf16> to vector<32x128xbf16>
    %c1_86 = arith.constant 1 : index
    %c0_87 = arith.constant 0 : index
    %c0_88 = arith.constant 0 : index
    %110 = vector.load %arg7[%c1_86, %c0_87, %c0_88] : memref<9x128x128xbf16, #tpu.memory_space<vmem>>, vector<1x128x128xbf16>
    %111 = vector.shape_cast %110 : vector<1x128x128xbf16> to vector<128x128xbf16>
    %cst_89 = arith.constant dense<0.000000e+00> : vector<32x128xf32>
    %112 = tpu.matmul %109, %98, %cst_89 {dimension_numbers = #tpu.dot_dimension_numbers<[1], [0], [0], [1], [0, 0, 1, 1], [], []>} : vector<32x128xbf16>, vector<128x128xbf16>, vector<32x128xf32> -> vector<32x128xf32>
    %113 = arith.truncf %112 : vector<32x128xf32> to vector<32x128xbf16>
    %cst_90 = arith.constant dense<0.000000e+00> : vector<32x128xf32>
    %114 = tpu.matmul %113, %111, %cst_90 {dimension_numbers = #tpu.dot_dimension_numbers<[1], [0], [0], [1], [0, 0, 1, 1], [], []>} : vector<32x128xbf16>, vector<128x128xbf16>, vector<32x128xf32> -> vector<32x128xf32>
    %115 = arith.addf %107, %114 : vector<32x128xf32>
    %c2_91 = arith.constant 2 : index
    %c0_92 = arith.constant 0 : index
    %c0_93 = arith.constant 0 : index
    %116 = vector.load %arg3[%c2_91, %c0_92, %c0_93] : memref<9x32x128xbf16, #tpu.memory_space<vmem>>, vector<1x32x128xbf16>
    %117 = vector.shape_cast %116 : vector<1x32x128xbf16> to vector<32x128xbf16>
    %c2_94 = arith.constant 2 : index
    %c0_95 = arith.constant 0 : index
    %c0_96 = arith.constant 0 : index
    %118 = vector.load %arg7[%c2_94, %c0_95, %c0_96] : memref<9x128x128xbf16, #tpu.memory_space<vmem>>, vector<1x128x128xbf16>
    %119 = vector.shape_cast %118 : vector<1x128x128xbf16> to vector<128x128xbf16>
    %cst_97 = arith.constant dense<0.000000e+00> : vector<32x128xf32>
    %120 = tpu.matmul %117, %98, %cst_97 {dimension_numbers = #tpu.dot_dimension_numbers<[1], [0], [0], [1], [0, 0, 1, 1], [], []>} : vector<32x128xbf16>, vector<128x128xbf16>, vector<32x128xf32> -> vector<32x128xf32>
    %121 = arith.truncf %120 : vector<32x128xf32> to vector<32x128xbf16>
    %cst_98 = arith.constant dense<0.000000e+00> : vector<32x128xf32>
    %122 = tpu.matmul %121, %119, %cst_98 {dimension_numbers = #tpu.dot_dimension_numbers<[1], [0], [0], [1], [0, 0, 1, 1], [], []>} : vector<32x128xbf16>, vector<128x128xbf16>, vector<32x128xf32> -> vector<32x128xf32>
    %123 = arith.addf %115, %122 : vector<32x128xf32>
    %c3_99 = arith.constant 3 : index
    %c0_100 = arith.constant 0 : index
    %c0_101 = arith.constant 0 : index
    %124 = vector.load %arg3[%c3_99, %c0_100, %c0_101] : memref<9x32x128xbf16, #tpu.memory_space<vmem>>, vector<1x32x128xbf16>
    %125 = vector.shape_cast %124 : vector<1x32x128xbf16> to vector<32x128xbf16>
    %c3_102 = arith.constant 3 : index
    %c0_103 = arith.constant 0 : index
    %c0_104 = arith.constant 0 : index
    %126 = vector.load %arg7[%c3_102, %c0_103, %c0_104] : memref<9x128x128xbf16, #tpu.memory_space<vmem>>, vector<1x128x128xbf16>
    %127 = vector.shape_cast %126 : vector<1x128x128xbf16> to vector<128x128xbf16>
    %cst_105 = arith.constant dense<0.000000e+00> : vector<32x128xf32>
    %128 = tpu.matmul %125, %98, %cst_105 {dimension_numbers = #tpu.dot_dimension_numbers<[1], [0], [0], [1], [0, 0, 1, 1], [], []>} : vector<32x128xbf16>, vector<128x128xbf16>, vector<32x128xf32> -> vector<32x128xf32>
    %129 = arith.truncf %128 : vector<32x128xf32> to vector<32x128xbf16>
    %cst_106 = arith.constant dense<0.000000e+00> : vector<32x128xf32>
    %130 = tpu.matmul %129, %127, %cst_106 {dimension_numbers = #tpu.dot_dimension_numbers<[1], [0], [0], [1], [0, 0, 1, 1], [], []>} : vector<32x128xbf16>, vector<128x128xbf16>, vector<32x128xf32> -> vector<32x128xf32>
    %131 = arith.addf %123, %130 : vector<32x128xf32>
    %c4_107 = arith.constant 4 : index
    %c0_108 = arith.constant 0 : index
    %c0_109 = arith.constant 0 : index
    %132 = vector.load %arg3[%c4_107, %c0_108, %c0_109] : memref<9x32x128xbf16, #tpu.memory_space<vmem>>, vector<1x32x128xbf16>
    %133 = vector.shape_cast %132 : vector<1x32x128xbf16> to vector<32x128xbf16>
    %c4_110 = arith.constant 4 : index
    %c0_111 = arith.constant 0 : index
    %c0_112 = arith.constant 0 : index
    %134 = vector.load %arg7[%c4_110, %c0_111, %c0_112] : memref<9x128x128xbf16, #tpu.memory_space<vmem>>, vector<1x128x128xbf16>
    %135 = vector.shape_cast %134 : vector<1x128x128xbf16> to vector<128x128xbf16>
    %cst_113 = arith.constant dense<0.000000e+00> : vector<32x128xf32>
    %136 = tpu.matmul %133, %98, %cst_113 {dimension_numbers = #tpu.dot_dimension_numbers<[1], [0], [0], [1], [0, 0, 1, 1], [], []>} : vector<32x128xbf16>, vector<128x128xbf16>, vector<32x128xf32> -> vector<32x128xf32>
    %137 = arith.truncf %136 : vector<32x128xf32> to vector<32x128xbf16>
    %cst_114 = arith.constant dense<0.000000e+00> : vector<32x128xf32>
    %138 = tpu.matmul %137, %135, %cst_114 {dimension_numbers = #tpu.dot_dimension_numbers<[1], [0], [0], [1], [0, 0, 1, 1], [], []>} : vector<32x128xbf16>, vector<128x128xbf16>, vector<32x128xf32> -> vector<32x128xf32>
    %139 = arith.addf %131, %138 : vector<32x128xf32>
    %c5_115 = arith.constant 5 : index
    %c0_116 = arith.constant 0 : index
    %c0_117 = arith.constant 0 : index
    %140 = vector.load %arg3[%c5_115, %c0_116, %c0_117] : memref<9x32x128xbf16, #tpu.memory_space<vmem>>, vector<1x32x128xbf16>
    %141 = vector.shape_cast %140 : vector<1x32x128xbf16> to vector<32x128xbf16>
    %c5_118 = arith.constant 5 : index
    %c0_119 = arith.constant 0 : index
    %c0_120 = arith.constant 0 : index
    %142 = vector.load %arg7[%c5_118, %c0_119, %c0_120] : memref<9x128x128xbf16, #tpu.memory_space<vmem>>, vector<1x128x128xbf16>
    %143 = vector.shape_cast %142 : vector<1x128x128xbf16> to vector<128x128xbf16>
    %cst_121 = arith.constant dense<0.000000e+00> : vector<32x128xf32>
    %144 = tpu.matmul %141, %98, %cst_121 {dimension_numbers = #tpu.dot_dimension_numbers<[1], [0], [0], [1], [0, 0, 1, 1], [], []>} : vector<32x128xbf16>, vector<128x128xbf16>, vector<32x128xf32> -> vector<32x128xf32>
    %145 = arith.truncf %144 : vector<32x128xf32> to vector<32x128xbf16>
    %cst_122 = arith.constant dense<0.000000e+00> : vector<32x128xf32>
    %146 = tpu.matmul %145, %143, %cst_122 {dimension_numbers = #tpu.dot_dimension_numbers<[1], [0], [0], [1], [0, 0, 1, 1], [], []>} : vector<32x128xbf16>, vector<128x128xbf16>, vector<32x128xf32> -> vector<32x128xf32>
    %147 = arith.addf %139, %146 : vector<32x128xf32>
    %c6_123 = arith.constant 6 : index
    %c0_124 = arith.constant 0 : index
    %c0_125 = arith.constant 0 : index
    %148 = vector.load %arg3[%c6_123, %c0_124, %c0_125] : memref<9x32x128xbf16, #tpu.memory_space<vmem>>, vector<1x32x128xbf16>
    %149 = vector.shape_cast %148 : vector<1x32x128xbf16> to vector<32x128xbf16>
    %c6_126 = arith.constant 6 : index
    %c0_127 = arith.constant 0 : index
    %c0_128 = arith.constant 0 : index
    %150 = vector.load %arg7[%c6_126, %c0_127, %c0_128] : memref<9x128x128xbf16, #tpu.memory_space<vmem>>, vector<1x128x128xbf16>
    %151 = vector.shape_cast %150 : vector<1x128x128xbf16> to vector<128x128xbf16>
    %cst_129 = arith.constant dense<0.000000e+00> : vector<32x128xf32>
    %152 = tpu.matmul %149, %98, %cst_129 {dimension_numbers = #tpu.dot_dimension_numbers<[1], [0], [0], [1], [0, 0, 1, 1], [], []>} : vector<32x128xbf16>, vector<128x128xbf16>, vector<32x128xf32> -> vector<32x128xf32>
    %153 = arith.truncf %152 : vector<32x128xf32> to vector<32x128xbf16>
    %cst_130 = arith.constant dense<0.000000e+00> : vector<32x128xf32>
    %154 = tpu.matmul %153, %151, %cst_130 {dimension_numbers = #tpu.dot_dimension_numbers<[1], [0], [0], [1], [0, 0, 1, 1], [], []>} : vector<32x128xbf16>, vector<128x128xbf16>, vector<32x128xf32> -> vector<32x128xf32>
    %155 = arith.addf %147, %154 : vector<32x128xf32>
    %c7_131 = arith.constant 7 : index
    %c0_132 = arith.constant 0 : index
    %c0_133 = arith.constant 0 : index
    %156 = vector.load %arg3[%c7_131, %c0_132, %c0_133] : memref<9x32x128xbf16, #tpu.memory_space<vmem>>, vector<1x32x128xbf16>
    %157 = vector.shape_cast %156 : vector<1x32x128xbf16> to vector<32x128xbf16>
    %c7_134 = arith.constant 7 : index
    %c0_135 = arith.constant 0 : index
    %c0_136 = arith.constant 0 : index
    %158 = vector.load %arg7[%c7_134, %c0_135, %c0_136] : memref<9x128x128xbf16, #tpu.memory_space<vmem>>, vector<1x128x128xbf16>
    %159 = vector.shape_cast %158 : vector<1x128x128xbf16> to vector<128x128xbf16>
    %cst_137 = arith.constant dense<0.000000e+00> : vector<32x128xf32>
    %160 = tpu.matmul %157, %98, %cst_137 {dimension_numbers = #tpu.dot_dimension_numbers<[1], [0], [0], [1], [0, 0, 1, 1], [], []>} : vector<32x128xbf16>, vector<128x128xbf16>, vector<32x128xf32> -> vector<32x128xf32>
    %161 = arith.truncf %160 : vector<32x128xf32> to vector<32x128xbf16>
    %cst_138 = arith.constant dense<0.000000e+00> : vector<32x128xf32>
    %162 = tpu.matmul %161, %159, %cst_138 {dimension_numbers = #tpu.dot_dimension_numbers<[1], [0], [0], [1], [0, 0, 1, 1], [], []>} : vector<32x128xbf16>, vector<128x128xbf16>, vector<32x128xf32> -> vector<32x128xf32>
    %163 = arith.addf %155, %162 : vector<32x128xf32>
    %c8_139 = arith.constant 8 : index
    %c0_140 = arith.constant 0 : index
    %c0_141 = arith.constant 0 : index
    %164 = vector.load %arg3[%c8_139, %c0_140, %c0_141] : memref<9x32x128xbf16, #tpu.memory_space<vmem>>, vector<1x32x128xbf16>
    %165 = vector.shape_cast %164 : vector<1x32x128xbf16> to vector<32x128xbf16>
    %c8_142 = arith.constant 8 : index
    %c0_143 = arith.constant 0 : index
    %c0_144 = arith.constant 0 : index
    %166 = vector.load %arg7[%c8_142, %c0_143, %c0_144] : memref<9x128x128xbf16, #tpu.memory_space<vmem>>, vector<1x128x128xbf16>
    %167 = vector.shape_cast %166 : vector<1x128x128xbf16> to vector<128x128xbf16>
    %cst_145 = arith.constant dense<0.000000e+00> : vector<32x128xf32>
    %168 = tpu.matmul %165, %98, %cst_145 {dimension_numbers = #tpu.dot_dimension_numbers<[1], [0], [0], [1], [0, 0, 1, 1], [], []>} : vector<32x128xbf16>, vector<128x128xbf16>, vector<32x128xf32> -> vector<32x128xf32>
    %169 = arith.truncf %168 : vector<32x128xf32> to vector<32x128xbf16>
    %cst_146 = arith.constant dense<0.000000e+00> : vector<32x128xf32>
    %170 = tpu.matmul %169, %167, %cst_146 {dimension_numbers = #tpu.dot_dimension_numbers<[1], [0], [0], [1], [0, 0, 1, 1], [], []>} : vector<32x128xbf16>, vector<128x128xbf16>, vector<32x128xf32> -> vector<32x128xf32>
    %171 = arith.addf %163, %170 : vector<32x128xf32>
    %c1_147 = arith.constant 1 : index
    %c0_148 = arith.constant 0 : index
    %c0_149 = arith.constant 0 : index
    %172 = vector.load %arg10[%c1_147, %c0_148, %c0_149] : memref<4x1x128xf32, #tpu.memory_space<vmem>>, vector<1x1x128xf32>
    %173 = vector.shape_cast %172 : vector<1x1x128xf32> to vector<1x128xf32>
    %174 = vector.broadcast %173 : vector<1x128xf32> to vector<32x128xf32>
    %175 = arith.addf %171, %174 : vector<32x128xf32>
    %cst_150 = arith.constant 0.000000e+00 : f32
    %176 = vector.broadcast %cst_150 : f32 to vector<32x128xf32>
    %177 = arith.maximumf %175, %176 : vector<32x128xf32>
    %cst_151 = arith.constant dense<0.000000e+00> : vector<128xf32>
    %178 = vector.multi_reduction <add>, %177, %cst_151 [0] : vector<32x128xf32> to vector<128xf32>
    %179 = vector.shape_cast %178 : vector<128xf32> to vector<1x128xf32>
    %cst_152 = arith.constant 3.125000e-02 : f32
    %180 = vector.broadcast %cst_152 : f32 to vector<1x128xf32>
    %181 = arith.mulf %179, %180 : vector<1x128xf32>
    %182 = arith.mulf %177, %177 : vector<32x128xf32>
    %cst_153 = arith.constant dense<0.000000e+00> : vector<128xf32>
    %183 = vector.multi_reduction <add>, %182, %cst_153 [0] : vector<32x128xf32> to vector<128xf32>
    %184 = vector.shape_cast %183 : vector<128xf32> to vector<1x128xf32>
    %cst_154 = arith.constant 3.125000e-02 : f32
    %185 = vector.broadcast %cst_154 : f32 to vector<1x128xf32>
    %186 = arith.mulf %184, %185 : vector<1x128xf32>
    %187 = arith.mulf %181, %181 : vector<1x128xf32>
    %188 = arith.subf %186, %187 : vector<1x128xf32>
    %189 = vector.broadcast %181 : vector<1x128xf32> to vector<32x128xf32>
    %190 = arith.subf %177, %189 : vector<32x128xf32>
    %cst_155 = arith.constant 9.99999974E-6 : f32
    %191 = vector.broadcast %cst_155 : f32 to vector<1x128xf32>
    %192 = arith.addf %188, %191 : vector<1x128xf32>
    %193 = math.rsqrt %192 : vector<1x128xf32>
    %194 = vector.broadcast %193 : vector<1x128xf32> to vector<32x128xf32>
    %195 = arith.mulf %190, %194 : vector<32x128xf32>
    %196 = arith.truncf %195 : vector<32x128xf32> to vector<32x128xbf16>
    %cst_156 = arith.constant 0.000000e+00 : f32
    %197 = vector.broadcast %cst_156 : f32 to vector<8x128xf32>
    %c0_157 = arith.constant 0 : index
    %c0_158 = arith.constant 0 : index
    %c0_159 = arith.constant 0 : index
    %198 = vector.load %arg4[%c0_157, %c0_158, %c0_159] : memref<9x8x32xbf16, #tpu.memory_space<vmem>>, vector<1x8x32xbf16>
    %199 = vector.shape_cast %198 : vector<1x8x32xbf16> to vector<8x32xbf16>
    %c0_160 = arith.constant 0 : index
    %c0_161 = arith.constant 0 : index
    %c0_162 = arith.constant 0 : index
    %200 = vector.load %arg8[%c0_160, %c0_161, %c0_162] : memref<9x128x128xbf16, #tpu.memory_space<vmem>>, vector<1x128x128xbf16>
    %201 = vector.shape_cast %200 : vector<1x128x128xbf16> to vector<128x128xbf16>
    %cst_163 = arith.constant dense<0.000000e+00> : vector<8x128xf32>
    %202 = tpu.matmul %199, %196, %cst_163 {dimension_numbers = #tpu.dot_dimension_numbers<[1], [0], [0], [1], [0, 0, 1, 1], [], []>} : vector<8x32xbf16>, vector<32x128xbf16>, vector<8x128xf32> -> vector<8x128xf32>
    %203 = arith.truncf %202 : vector<8x128xf32> to vector<8x128xbf16>
    %cst_164 = arith.constant dense<0.000000e+00> : vector<8x128xf32>
    %204 = tpu.matmul %203, %201, %cst_164 {dimension_numbers = #tpu.dot_dimension_numbers<[1], [0], [0], [1], [0, 0, 1, 1], [], []>} : vector<8x128xbf16>, vector<128x128xbf16>, vector<8x128xf32> -> vector<8x128xf32>
    %205 = arith.addf %197, %204 : vector<8x128xf32>
    %c1_165 = arith.constant 1 : index
    %c0_166 = arith.constant 0 : index
    %c0_167 = arith.constant 0 : index
    %206 = vector.load %arg4[%c1_165, %c0_166, %c0_167] : memref<9x8x32xbf16, #tpu.memory_space<vmem>>, vector<1x8x32xbf16>
    %207 = vector.shape_cast %206 : vector<1x8x32xbf16> to vector<8x32xbf16>
    %c1_168 = arith.constant 1 : index
    %c0_169 = arith.constant 0 : index
    %c0_170 = arith.constant 0 : index
    %208 = vector.load %arg8[%c1_168, %c0_169, %c0_170] : memref<9x128x128xbf16, #tpu.memory_space<vmem>>, vector<1x128x128xbf16>
    %209 = vector.shape_cast %208 : vector<1x128x128xbf16> to vector<128x128xbf16>
    %cst_171 = arith.constant dense<0.000000e+00> : vector<8x128xf32>
    %210 = tpu.matmul %207, %196, %cst_171 {dimension_numbers = #tpu.dot_dimension_numbers<[1], [0], [0], [1], [0, 0, 1, 1], [], []>} : vector<8x32xbf16>, vector<32x128xbf16>, vector<8x128xf32> -> vector<8x128xf32>
    %211 = arith.truncf %210 : vector<8x128xf32> to vector<8x128xbf16>
    %cst_172 = arith.constant dense<0.000000e+00> : vector<8x128xf32>
    %212 = tpu.matmul %211, %209, %cst_172 {dimension_numbers = #tpu.dot_dimension_numbers<[1], [0], [0], [1], [0, 0, 1, 1], [], []>} : vector<8x128xbf16>, vector<128x128xbf16>, vector<8x128xf32> -> vector<8x128xf32>
    %213 = arith.addf %205, %212 : vector<8x128xf32>
    %c2_173 = arith.constant 2 : index
    %c0_174 = arith.constant 0 : index
    %c0_175 = arith.constant 0 : index
    %214 = vector.load %arg4[%c2_173, %c0_174, %c0_175] : memref<9x8x32xbf16, #tpu.memory_space<vmem>>, vector<1x8x32xbf16>
    %215 = vector.shape_cast %214 : vector<1x8x32xbf16> to vector<8x32xbf16>
    %c2_176 = arith.constant 2 : index
    %c0_177 = arith.constant 0 : index
    %c0_178 = arith.constant 0 : index
    %216 = vector.load %arg8[%c2_176, %c0_177, %c0_178] : memref<9x128x128xbf16, #tpu.memory_space<vmem>>, vector<1x128x128xbf16>
    %217 = vector.shape_cast %216 : vector<1x128x128xbf16> to vector<128x128xbf16>
    %cst_179 = arith.constant dense<0.000000e+00> : vector<8x128xf32>
    %218 = tpu.matmul %215, %196, %cst_179 {dimension_numbers = #tpu.dot_dimension_numbers<[1], [0], [0], [1], [0, 0, 1, 1], [], []>} : vector<8x32xbf16>, vector<32x128xbf16>, vector<8x128xf32> -> vector<8x128xf32>
    %219 = arith.truncf %218 : vector<8x128xf32> to vector<8x128xbf16>
    %cst_180 = arith.constant dense<0.000000e+00> : vector<8x128xf32>
    %220 = tpu.matmul %219, %217, %cst_180 {dimension_numbers = #tpu.dot_dimension_numbers<[1], [0], [0], [1], [0, 0, 1, 1], [], []>} : vector<8x128xbf16>, vector<128x128xbf16>, vector<8x128xf32> -> vector<8x128xf32>
    %221 = arith.addf %213, %220 : vector<8x128xf32>
    %c3_181 = arith.constant 3 : index
    %c0_182 = arith.constant 0 : index
    %c0_183 = arith.constant 0 : index
    %222 = vector.load %arg4[%c3_181, %c0_182, %c0_183] : memref<9x8x32xbf16, #tpu.memory_space<vmem>>, vector<1x8x32xbf16>
    %223 = vector.shape_cast %222 : vector<1x8x32xbf16> to vector<8x32xbf16>
    %c3_184 = arith.constant 3 : index
    %c0_185 = arith.constant 0 : index
    %c0_186 = arith.constant 0 : index
    %224 = vector.load %arg8[%c3_184, %c0_185, %c0_186] : memref<9x128x128xbf16, #tpu.memory_space<vmem>>, vector<1x128x128xbf16>
    %225 = vector.shape_cast %224 : vector<1x128x128xbf16> to vector<128x128xbf16>
    %cst_187 = arith.constant dense<0.000000e+00> : vector<8x128xf32>
    %226 = tpu.matmul %223, %196, %cst_187 {dimension_numbers = #tpu.dot_dimension_numbers<[1], [0], [0], [1], [0, 0, 1, 1], [], []>} : vector<8x32xbf16>, vector<32x128xbf16>, vector<8x128xf32> -> vector<8x128xf32>
    %227 = arith.truncf %226 : vector<8x128xf32> to vector<8x128xbf16>
    %cst_188 = arith.constant dense<0.000000e+00> : vector<8x128xf32>
    %228 = tpu.matmul %227, %225, %cst_188 {dimension_numbers = #tpu.dot_dimension_numbers<[1], [0], [0], [1], [0, 0, 1, 1], [], []>} : vector<8x128xbf16>, vector<128x128xbf16>, vector<8x128xf32> -> vector<8x128xf32>
    %229 = arith.addf %221, %228 : vector<8x128xf32>
    %c4_189 = arith.constant 4 : index
    %c0_190 = arith.constant 0 : index
    %c0_191 = arith.constant 0 : index
    %230 = vector.load %arg4[%c4_189, %c0_190, %c0_191] : memref<9x8x32xbf16, #tpu.memory_space<vmem>>, vector<1x8x32xbf16>
    %231 = vector.shape_cast %230 : vector<1x8x32xbf16> to vector<8x32xbf16>
    %c4_192 = arith.constant 4 : index
    %c0_193 = arith.constant 0 : index
    %c0_194 = arith.constant 0 : index
    %232 = vector.load %arg8[%c4_192, %c0_193, %c0_194] : memref<9x128x128xbf16, #tpu.memory_space<vmem>>, vector<1x128x128xbf16>
    %233 = vector.shape_cast %232 : vector<1x128x128xbf16> to vector<128x128xbf16>
    %cst_195 = arith.constant dense<0.000000e+00> : vector<8x128xf32>
    %234 = tpu.matmul %231, %196, %cst_195 {dimension_numbers = #tpu.dot_dimension_numbers<[1], [0], [0], [1], [0, 0, 1, 1], [], []>} : vector<8x32xbf16>, vector<32x128xbf16>, vector<8x128xf32> -> vector<8x128xf32>
    %235 = arith.truncf %234 : vector<8x128xf32> to vector<8x128xbf16>
    %cst_196 = arith.constant dense<0.000000e+00> : vector<8x128xf32>
    %236 = tpu.matmul %235, %233, %cst_196 {dimension_numbers = #tpu.dot_dimension_numbers<[1], [0], [0], [1], [0, 0, 1, 1], [], []>} : vector<8x128xbf16>, vector<128x128xbf16>, vector<8x128xf32> -> vector<8x128xf32>
    %237 = arith.addf %229, %236 : vector<8x128xf32>
    %c5_197 = arith.constant 5 : index
    %c0_198 = arith.constant 0 : index
    %c0_199 = arith.constant 0 : index
    %238 = vector.load %arg4[%c5_197, %c0_198, %c0_199] : memref<9x8x32xbf16, #tpu.memory_space<vmem>>, vector<1x8x32xbf16>
    %239 = vector.shape_cast %238 : vector<1x8x32xbf16> to vector<8x32xbf16>
    %c5_200 = arith.constant 5 : index
    %c0_201 = arith.constant 0 : index
    %c0_202 = arith.constant 0 : index
    %240 = vector.load %arg8[%c5_200, %c0_201, %c0_202] : memref<9x128x128xbf16, #tpu.memory_space<vmem>>, vector<1x128x128xbf16>
    %241 = vector.shape_cast %240 : vector<1x128x128xbf16> to vector<128x128xbf16>
    %cst_203 = arith.constant dense<0.000000e+00> : vector<8x128xf32>
    %242 = tpu.matmul %239, %196, %cst_203 {dimension_numbers = #tpu.dot_dimension_numbers<[1], [0], [0], [1], [0, 0, 1, 1], [], []>} : vector<8x32xbf16>, vector<32x128xbf16>, vector<8x128xf32> -> vector<8x128xf32>
    %243 = arith.truncf %242 : vector<8x128xf32> to vector<8x128xbf16>
    %cst_204 = arith.constant dense<0.000000e+00> : vector<8x128xf32>
    %244 = tpu.matmul %243, %241, %cst_204 {dimension_numbers = #tpu.dot_dimension_numbers<[1], [0], [0], [1], [0, 0, 1, 1], [], []>} : vector<8x128xbf16>, vector<128x128xbf16>, vector<8x128xf32> -> vector<8x128xf32>
    %245 = arith.addf %237, %244 : vector<8x128xf32>
    %c6_205 = arith.constant 6 : index
    %c0_206 = arith.constant 0 : index
    %c0_207 = arith.constant 0 : index
    %246 = vector.load %arg4[%c6_205, %c0_206, %c0_207] : memref<9x8x32xbf16, #tpu.memory_space<vmem>>, vector<1x8x32xbf16>
    %247 = vector.shape_cast %246 : vector<1x8x32xbf16> to vector<8x32xbf16>
    %c6_208 = arith.constant 6 : index
    %c0_209 = arith.constant 0 : index
    %c0_210 = arith.constant 0 : index
    %248 = vector.load %arg8[%c6_208, %c0_209, %c0_210] : memref<9x128x128xbf16, #tpu.memory_space<vmem>>, vector<1x128x128xbf16>
    %249 = vector.shape_cast %248 : vector<1x128x128xbf16> to vector<128x128xbf16>
    %cst_211 = arith.constant dense<0.000000e+00> : vector<8x128xf32>
    %250 = tpu.matmul %247, %196, %cst_211 {dimension_numbers = #tpu.dot_dimension_numbers<[1], [0], [0], [1], [0, 0, 1, 1], [], []>} : vector<8x32xbf16>, vector<32x128xbf16>, vector<8x128xf32> -> vector<8x128xf32>
    %251 = arith.truncf %250 : vector<8x128xf32> to vector<8x128xbf16>
    %cst_212 = arith.constant dense<0.000000e+00> : vector<8x128xf32>
    %252 = tpu.matmul %251, %249, %cst_212 {dimension_numbers = #tpu.dot_dimension_numbers<[1], [0], [0], [1], [0, 0, 1, 1], [], []>} : vector<8x128xbf16>, vector<128x128xbf16>, vector<8x128xf32> -> vector<8x128xf32>
    %253 = arith.addf %245, %252 : vector<8x128xf32>
    %c7_213 = arith.constant 7 : index
    %c0_214 = arith.constant 0 : index
    %c0_215 = arith.constant 0 : index
    %254 = vector.load %arg4[%c7_213, %c0_214, %c0_215] : memref<9x8x32xbf16, #tpu.memory_space<vmem>>, vector<1x8x32xbf16>
    %255 = vector.shape_cast %254 : vector<1x8x32xbf16> to vector<8x32xbf16>
    %c7_216 = arith.constant 7 : index
    %c0_217 = arith.constant 0 : index
    %c0_218 = arith.constant 0 : index
    %256 = vector.load %arg8[%c7_216, %c0_217, %c0_218] : memref<9x128x128xbf16, #tpu.memory_space<vmem>>, vector<1x128x128xbf16>
    %257 = vector.shape_cast %256 : vector<1x128x128xbf16> to vector<128x128xbf16>
    %cst_219 = arith.constant dense<0.000000e+00> : vector<8x128xf32>
    %258 = tpu.matmul %255, %196, %cst_219 {dimension_numbers = #tpu.dot_dimension_numbers<[1], [0], [0], [1], [0, 0, 1, 1], [], []>} : vector<8x32xbf16>, vector<32x128xbf16>, vector<8x128xf32> -> vector<8x128xf32>
    %259 = arith.truncf %258 : vector<8x128xf32> to vector<8x128xbf16>
    %cst_220 = arith.constant dense<0.000000e+00> : vector<8x128xf32>
    %260 = tpu.matmul %259, %257, %cst_220 {dimension_numbers = #tpu.dot_dimension_numbers<[1], [0], [0], [1], [0, 0, 1, 1], [], []>} : vector<8x128xbf16>, vector<128x128xbf16>, vector<8x128xf32> -> vector<8x128xf32>
    %261 = arith.addf %253, %260 : vector<8x128xf32>
    %c8_221 = arith.constant 8 : index
    %c0_222 = arith.constant 0 : index
    %c0_223 = arith.constant 0 : index
    %262 = vector.load %arg4[%c8_221, %c0_222, %c0_223] : memref<9x8x32xbf16, #tpu.memory_space<vmem>>, vector<1x8x32xbf16>
    %263 = vector.shape_cast %262 : vector<1x8x32xbf16> to vector<8x32xbf16>
    %c8_224 = arith.constant 8 : index
    %c0_225 = arith.constant 0 : index
    %c0_226 = arith.constant 0 : index
    %264 = vector.load %arg8[%c8_224, %c0_225, %c0_226] : memref<9x128x128xbf16, #tpu.memory_space<vmem>>, vector<1x128x128xbf16>
    %265 = vector.shape_cast %264 : vector<1x128x128xbf16> to vector<128x128xbf16>
    %cst_227 = arith.constant dense<0.000000e+00> : vector<8x128xf32>
    %266 = tpu.matmul %263, %196, %cst_227 {dimension_numbers = #tpu.dot_dimension_numbers<[1], [0], [0], [1], [0, 0, 1, 1], [], []>} : vector<8x32xbf16>, vector<32x128xbf16>, vector<8x128xf32> -> vector<8x128xf32>
    %267 = arith.truncf %266 : vector<8x128xf32> to vector<8x128xbf16>
    %cst_228 = arith.constant dense<0.000000e+00> : vector<8x128xf32>
    %268 = tpu.matmul %267, %265, %cst_228 {dimension_numbers = #tpu.dot_dimension_numbers<[1], [0], [0], [1], [0, 0, 1, 1], [], []>} : vector<8x128xbf16>, vector<128x128xbf16>, vector<8x128xf32> -> vector<8x128xf32>
    %269 = arith.addf %261, %268 : vector<8x128xf32>
    %c2_229 = arith.constant 2 : index
    %c0_230 = arith.constant 0 : index
    %c0_231 = arith.constant 0 : index
    %270 = vector.load %arg10[%c2_229, %c0_230, %c0_231] : memref<4x1x128xf32, #tpu.memory_space<vmem>>, vector<1x1x128xf32>
    %271 = vector.shape_cast %270 : vector<1x1x128xf32> to vector<1x128xf32>
    %272 = vector.broadcast %271 : vector<1x128xf32> to vector<8x128xf32>
    %273 = arith.addf %269, %272 : vector<8x128xf32>
    %cst_232 = arith.constant 0.000000e+00 : f32
    %274 = vector.broadcast %cst_232 : f32 to vector<8x128xf32>
    %275 = arith.maximumf %273, %274 : vector<8x128xf32>
    %cst_233 = arith.constant dense<0.000000e+00> : vector<128xf32>
    %276 = vector.multi_reduction <add>, %275, %cst_233 [0] : vector<8x128xf32> to vector<128xf32>
    %277 = vector.shape_cast %276 : vector<128xf32> to vector<1x128xf32>
    %cst_234 = arith.constant 1.250000e-01 : f32
    %278 = vector.broadcast %cst_234 : f32 to vector<1x128xf32>
    %279 = arith.mulf %277, %278 : vector<1x128xf32>
    %280 = arith.mulf %275, %275 : vector<8x128xf32>
    %cst_235 = arith.constant dense<0.000000e+00> : vector<128xf32>
    %281 = vector.multi_reduction <add>, %280, %cst_235 [0] : vector<8x128xf32> to vector<128xf32>
    %282 = vector.shape_cast %281 : vector<128xf32> to vector<1x128xf32>
    %cst_236 = arith.constant 1.250000e-01 : f32
    %283 = vector.broadcast %cst_236 : f32 to vector<1x128xf32>
    %284 = arith.mulf %282, %283 : vector<1x128xf32>
    %285 = arith.mulf %279, %279 : vector<1x128xf32>
    %286 = arith.subf %284, %285 : vector<1x128xf32>
    %287 = vector.broadcast %279 : vector<1x128xf32> to vector<8x128xf32>
    %288 = arith.subf %275, %287 : vector<8x128xf32>
    %cst_237 = arith.constant 9.99999974E-6 : f32
    %289 = vector.broadcast %cst_237 : f32 to vector<1x128xf32>
    %290 = arith.addf %286, %289 : vector<1x128xf32>
    %291 = math.rsqrt %290 : vector<1x128xf32>
    %292 = vector.broadcast %291 : vector<1x128xf32> to vector<8x128xf32>
    %293 = arith.mulf %288, %292 : vector<8x128xf32>
    %294 = arith.truncf %293 : vector<8x128xf32> to vector<8x128xbf16>
    %cst_238 = arith.constant 0.000000e+00 : f32
    %295 = vector.broadcast %cst_238 : f32 to vector<2x128xf32>
    %c0_239 = arith.constant 0 : index
    %c0_240 = arith.constant 0 : index
    %c0_241 = arith.constant 0 : index
    %296 = vector.load %arg5[%c0_239, %c0_240, %c0_241] : memref<9x2x8xbf16, #tpu.memory_space<vmem>>, vector<1x2x8xbf16>
    %297 = vector.shape_cast %296 : vector<1x2x8xbf16> to vector<2x8xbf16>
    %c0_242 = arith.constant 0 : index
    %c0_243 = arith.constant 0 : index
    %c0_244 = arith.constant 0 : index
    %298 = vector.load %arg9[%c0_242, %c0_243, %c0_244] : memref<9x128x128xbf16, #tpu.memory_space<vmem>>, vector<1x128x128xbf16>
    %299 = vector.shape_cast %298 : vector<1x128x128xbf16> to vector<128x128xbf16>
    %cst_245 = arith.constant dense<0.000000e+00> : vector<2x128xf32>
    %300 = tpu.matmul %297, %294, %cst_245 {dimension_numbers = #tpu.dot_dimension_numbers<[1], [0], [0], [1], [0, 0, 1, 1], [], []>} : vector<2x8xbf16>, vector<8x128xbf16>, vector<2x128xf32> -> vector<2x128xf32>
    %301 = arith.truncf %300 : vector<2x128xf32> to vector<2x128xbf16>
    %cst_246 = arith.constant dense<0.000000e+00> : vector<2x128xf32>
    %302 = tpu.matmul %301, %299, %cst_246 {dimension_numbers = #tpu.dot_dimension_numbers<[1], [0], [0], [1], [0, 0, 1, 1], [], []>} : vector<2x128xbf16>, vector<128x128xbf16>, vector<2x128xf32> -> vector<2x128xf32>
    %303 = arith.addf %295, %302 : vector<2x128xf32>
    %c1_247 = arith.constant 1 : index
    %c0_248 = arith.constant 0 : index
    %c0_249 = arith.constant 0 : index
    %304 = vector.load %arg5[%c1_247, %c0_248, %c0_249] : memref<9x2x8xbf16, #tpu.memory_space<vmem>>, vector<1x2x8xbf16>
    %305 = vector.shape_cast %304 : vector<1x2x8xbf16> to vector<2x8xbf16>
    %c1_250 = arith.constant 1 : index
    %c0_251 = arith.constant 0 : index
    %c0_252 = arith.constant 0 : index
    %306 = vector.load %arg9[%c1_250, %c0_251, %c0_252] : memref<9x128x128xbf16, #tpu.memory_space<vmem>>, vector<1x128x128xbf16>
    %307 = vector.shape_cast %306 : vector<1x128x128xbf16> to vector<128x128xbf16>
    %cst_253 = arith.constant dense<0.000000e+00> : vector<2x128xf32>
    %308 = tpu.matmul %305, %294, %cst_253 {dimension_numbers = #tpu.dot_dimension_numbers<[1], [0], [0], [1], [0, 0, 1, 1], [], []>} : vector<2x8xbf16>, vector<8x128xbf16>, vector<2x128xf32> -> vector<2x128xf32>
    %309 = arith.truncf %308 : vector<2x128xf32> to vector<2x128xbf16>
    %cst_254 = arith.constant dense<0.000000e+00> : vector<2x128xf32>
    %310 = tpu.matmul %309, %307, %cst_254 {dimension_numbers = #tpu.dot_dimension_numbers<[1], [0], [0], [1], [0, 0, 1, 1], [], []>} : vector<2x128xbf16>, vector<128x128xbf16>, vector<2x128xf32> -> vector<2x128xf32>
    %311 = arith.addf %303, %310 : vector<2x128xf32>
    %c2_255 = arith.constant 2 : index
    %c0_256 = arith.constant 0 : index
    %c0_257 = arith.constant 0 : index
    %312 = vector.load %arg5[%c2_255, %c0_256, %c0_257] : memref<9x2x8xbf16, #tpu.memory_space<vmem>>, vector<1x2x8xbf16>
    %313 = vector.shape_cast %312 : vector<1x2x8xbf16> to vector<2x8xbf16>
    %c2_258 = arith.constant 2 : index
    %c0_259 = arith.constant 0 : index
    %c0_260 = arith.constant 0 : index
    %314 = vector.load %arg9[%c2_258, %c0_259, %c0_260] : memref<9x128x128xbf16, #tpu.memory_space<vmem>>, vector<1x128x128xbf16>
    %315 = vector.shape_cast %314 : vector<1x128x128xbf16> to vector<128x128xbf16>
    %cst_261 = arith.constant dense<0.000000e+00> : vector<2x128xf32>
    %316 = tpu.matmul %313, %294, %cst_261 {dimension_numbers = #tpu.dot_dimension_numbers<[1], [0], [0], [1], [0, 0, 1, 1], [], []>} : vector<2x8xbf16>, vector<8x128xbf16>, vector<2x128xf32> -> vector<2x128xf32>
    %317 = arith.truncf %316 : vector<2x128xf32> to vector<2x128xbf16>
    %cst_262 = arith.constant dense<0.000000e+00> : vector<2x128xf32>
    %318 = tpu.matmul %317, %315, %cst_262 {dimension_numbers = #tpu.dot_dimension_numbers<[1], [0], [0], [1], [0, 0, 1, 1], [], []>} : vector<2x128xbf16>, vector<128x128xbf16>, vector<2x128xf32> -> vector<2x128xf32>
    %319 = arith.addf %311, %318 : vector<2x128xf32>
    %c3_263 = arith.constant 3 : index
    %c0_264 = arith.constant 0 : index
    %c0_265 = arith.constant 0 : index
    %320 = vector.load %arg5[%c3_263, %c0_264, %c0_265] : memref<9x2x8xbf16, #tpu.memory_space<vmem>>, vector<1x2x8xbf16>
    %321 = vector.shape_cast %320 : vector<1x2x8xbf16> to vector<2x8xbf16>
    %c3_266 = arith.constant 3 : index
    %c0_267 = arith.constant 0 : index
    %c0_268 = arith.constant 0 : index
    %322 = vector.load %arg9[%c3_266, %c0_267, %c0_268] : memref<9x128x128xbf16, #tpu.memory_space<vmem>>, vector<1x128x128xbf16>
    %323 = vector.shape_cast %322 : vector<1x128x128xbf16> to vector<128x128xbf16>
    %cst_269 = arith.constant dense<0.000000e+00> : vector<2x128xf32>
    %324 = tpu.matmul %321, %294, %cst_269 {dimension_numbers = #tpu.dot_dimension_numbers<[1], [0], [0], [1], [0, 0, 1, 1], [], []>} : vector<2x8xbf16>, vector<8x128xbf16>, vector<2x128xf32> -> vector<2x128xf32>
    %325 = arith.truncf %324 : vector<2x128xf32> to vector<2x128xbf16>
    %cst_270 = arith.constant dense<0.000000e+00> : vector<2x128xf32>
    %326 = tpu.matmul %325, %323, %cst_270 {dimension_numbers = #tpu.dot_dimension_numbers<[1], [0], [0], [1], [0, 0, 1, 1], [], []>} : vector<2x128xbf16>, vector<128x128xbf16>, vector<2x128xf32> -> vector<2x128xf32>
    %327 = arith.addf %319, %326 : vector<2x128xf32>
    %c4_271 = arith.constant 4 : index
    %c0_272 = arith.constant 0 : index
    %c0_273 = arith.constant 0 : index
    %328 = vector.load %arg5[%c4_271, %c0_272, %c0_273] : memref<9x2x8xbf16, #tpu.memory_space<vmem>>, vector<1x2x8xbf16>
    %329 = vector.shape_cast %328 : vector<1x2x8xbf16> to vector<2x8xbf16>
    %c4_274 = arith.constant 4 : index
    %c0_275 = arith.constant 0 : index
    %c0_276 = arith.constant 0 : index
    %330 = vector.load %arg9[%c4_274, %c0_275, %c0_276] : memref<9x128x128xbf16, #tpu.memory_space<vmem>>, vector<1x128x128xbf16>
    %331 = vector.shape_cast %330 : vector<1x128x128xbf16> to vector<128x128xbf16>
    %cst_277 = arith.constant dense<0.000000e+00> : vector<2x128xf32>
    %332 = tpu.matmul %329, %294, %cst_277 {dimension_numbers = #tpu.dot_dimension_numbers<[1], [0], [0], [1], [0, 0, 1, 1], [], []>} : vector<2x8xbf16>, vector<8x128xbf16>, vector<2x128xf32> -> vector<2x128xf32>
    %333 = arith.truncf %332 : vector<2x128xf32> to vector<2x128xbf16>
    %cst_278 = arith.constant dense<0.000000e+00> : vector<2x128xf32>
    %334 = tpu.matmul %333, %331, %cst_278 {dimension_numbers = #tpu.dot_dimension_numbers<[1], [0], [0], [1], [0, 0, 1, 1], [], []>} : vector<2x128xbf16>, vector<128x128xbf16>, vector<2x128xf32> -> vector<2x128xf32>
    %335 = arith.addf %327, %334 : vector<2x128xf32>
    %c5_279 = arith.constant 5 : index
    %c0_280 = arith.constant 0 : index
    %c0_281 = arith.constant 0 : index
    %336 = vector.load %arg5[%c5_279, %c0_280, %c0_281] : memref<9x2x8xbf16, #tpu.memory_space<vmem>>, vector<1x2x8xbf16>
    %337 = vector.shape_cast %336 : vector<1x2x8xbf16> to vector<2x8xbf16>
    %c5_282 = arith.constant 5 : index
    %c0_283 = arith.constant 0 : index
    %c0_284 = arith.constant 0 : index
    %338 = vector.load %arg9[%c5_282, %c0_283, %c0_284] : memref<9x128x128xbf16, #tpu.memory_space<vmem>>, vector<1x128x128xbf16>
    %339 = vector.shape_cast %338 : vector<1x128x128xbf16> to vector<128x128xbf16>
    %cst_285 = arith.constant dense<0.000000e+00> : vector<2x128xf32>
    %340 = tpu.matmul %337, %294, %cst_285 {dimension_numbers = #tpu.dot_dimension_numbers<[1], [0], [0], [1], [0, 0, 1, 1], [], []>} : vector<2x8xbf16>, vector<8x128xbf16>, vector<2x128xf32> -> vector<2x128xf32>
    %341 = arith.truncf %340 : vector<2x128xf32> to vector<2x128xbf16>
    %cst_286 = arith.constant dense<0.000000e+00> : vector<2x128xf32>
    %342 = tpu.matmul %341, %339, %cst_286 {dimension_numbers = #tpu.dot_dimension_numbers<[1], [0], [0], [1], [0, 0, 1, 1], [], []>} : vector<2x128xbf16>, vector<128x128xbf16>, vector<2x128xf32> -> vector<2x128xf32>
    %343 = arith.addf %335, %342 : vector<2x128xf32>
    %c6_287 = arith.constant 6 : index
    %c0_288 = arith.constant 0 : index
    %c0_289 = arith.constant 0 : index
    %344 = vector.load %arg5[%c6_287, %c0_288, %c0_289] : memref<9x2x8xbf16, #tpu.memory_space<vmem>>, vector<1x2x8xbf16>
    %345 = vector.shape_cast %344 : vector<1x2x8xbf16> to vector<2x8xbf16>
    %c6_290 = arith.constant 6 : index
    %c0_291 = arith.constant 0 : index
    %c0_292 = arith.constant 0 : index
    %346 = vector.load %arg9[%c6_290, %c0_291, %c0_292] : memref<9x128x128xbf16, #tpu.memory_space<vmem>>, vector<1x128x128xbf16>
    %347 = vector.shape_cast %346 : vector<1x128x128xbf16> to vector<128x128xbf16>
    %cst_293 = arith.constant dense<0.000000e+00> : vector<2x128xf32>
    %348 = tpu.matmul %345, %294, %cst_293 {dimension_numbers = #tpu.dot_dimension_numbers<[1], [0], [0], [1], [0, 0, 1, 1], [], []>} : vector<2x8xbf16>, vector<8x128xbf16>, vector<2x128xf32> -> vector<2x128xf32>
    %349 = arith.truncf %348 : vector<2x128xf32> to vector<2x128xbf16>
    %cst_294 = arith.constant dense<0.000000e+00> : vector<2x128xf32>
    %350 = tpu.matmul %349, %347, %cst_294 {dimension_numbers = #tpu.dot_dimension_numbers<[1], [0], [0], [1], [0, 0, 1, 1], [], []>} : vector<2x128xbf16>, vector<128x128xbf16>, vector<2x128xf32> -> vector<2x128xf32>
    %351 = arith.addf %343, %350 : vector<2x128xf32>
    %c7_295 = arith.constant 7 : index
    %c0_296 = arith.constant 0 : index
    %c0_297 = arith.constant 0 : index
    %352 = vector.load %arg5[%c7_295, %c0_296, %c0_297] : memref<9x2x8xbf16, #tpu.memory_space<vmem>>, vector<1x2x8xbf16>
    %353 = vector.shape_cast %352 : vector<1x2x8xbf16> to vector<2x8xbf16>
    %c7_298 = arith.constant 7 : index
    %c0_299 = arith.constant 0 : index
    %c0_300 = arith.constant 0 : index
    %354 = vector.load %arg9[%c7_298, %c0_299, %c0_300] : memref<9x128x128xbf16, #tpu.memory_space<vmem>>, vector<1x128x128xbf16>
    %355 = vector.shape_cast %354 : vector<1x128x128xbf16> to vector<128x128xbf16>
    %cst_301 = arith.constant dense<0.000000e+00> : vector<2x128xf32>
    %356 = tpu.matmul %353, %294, %cst_301 {dimension_numbers = #tpu.dot_dimension_numbers<[1], [0], [0], [1], [0, 0, 1, 1], [], []>} : vector<2x8xbf16>, vector<8x128xbf16>, vector<2x128xf32> -> vector<2x128xf32>
    %357 = arith.truncf %356 : vector<2x128xf32> to vector<2x128xbf16>
    %cst_302 = arith.constant dense<0.000000e+00> : vector<2x128xf32>
    %358 = tpu.matmul %357, %355, %cst_302 {dimension_numbers = #tpu.dot_dimension_numbers<[1], [0], [0], [1], [0, 0, 1, 1], [], []>} : vector<2x128xbf16>, vector<128x128xbf16>, vector<2x128xf32> -> vector<2x128xf32>
    %359 = arith.addf %351, %358 : vector<2x128xf32>
    %c8_303 = arith.constant 8 : index
    %c0_304 = arith.constant 0 : index
    %c0_305 = arith.constant 0 : index
    %360 = vector.load %arg5[%c8_303, %c0_304, %c0_305] : memref<9x2x8xbf16, #tpu.memory_space<vmem>>, vector<1x2x8xbf16>
    %361 = vector.shape_cast %360 : vector<1x2x8xbf16> to vector<2x8xbf16>
    %c8_306 = arith.constant 8 : index
    %c0_307 = arith.constant 0 : index
    %c0_308 = arith.constant 0 : index
    %362 = vector.load %arg9[%c8_306, %c0_307, %c0_308] : memref<9x128x128xbf16, #tpu.memory_space<vmem>>, vector<1x128x128xbf16>
    %363 = vector.shape_cast %362 : vector<1x128x128xbf16> to vector<128x128xbf16>
    %cst_309 = arith.constant dense<0.000000e+00> : vector<2x128xf32>
    %364 = tpu.matmul %361, %294, %cst_309 {dimension_numbers = #tpu.dot_dimension_numbers<[1], [0], [0], [1], [0, 0, 1, 1], [], []>} : vector<2x8xbf16>, vector<8x128xbf16>, vector<2x128xf32> -> vector<2x128xf32>
    %365 = arith.truncf %364 : vector<2x128xf32> to vector<2x128xbf16>
    %cst_310 = arith.constant dense<0.000000e+00> : vector<2x128xf32>
    %366 = tpu.matmul %365, %363, %cst_310 {dimension_numbers = #tpu.dot_dimension_numbers<[1], [0], [0], [1], [0, 0, 1, 1], [], []>} : vector<2x128xbf16>, vector<128x128xbf16>, vector<2x128xf32> -> vector<2x128xf32>
    %367 = arith.addf %359, %366 : vector<2x128xf32>
    %c3_311 = arith.constant 3 : index
    %c0_312 = arith.constant 0 : index
    %c0_313 = arith.constant 0 : index
    %368 = vector.load %arg10[%c3_311, %c0_312, %c0_313] : memref<4x1x128xf32, #tpu.memory_space<vmem>>, vector<1x1x128xf32>
    %369 = vector.shape_cast %368 : vector<1x1x128xf32> to vector<1x128xf32>
    %370 = vector.broadcast %369 : vector<1x128xf32> to vector<2x128xf32>
    %371 = arith.addf %367, %370 : vector<2x128xf32>
    %cst_314 = arith.constant 0.000000e+00 : f32
    %372 = vector.broadcast %cst_314 : f32 to vector<2x128xf32>
    %373 = arith.maximumf %371, %372 : vector<2x128xf32>
    %cst_315 = arith.constant dense<0.000000e+00> : vector<128xf32>
    %374 = vector.multi_reduction <add>, %373, %cst_315 [0] : vector<2x128xf32> to vector<128xf32>
    %375 = vector.shape_cast %374 : vector<128xf32> to vector<1x128xf32>
    %cst_316 = arith.constant 5.000000e-01 : f32
    %376 = vector.broadcast %cst_316 : f32 to vector<1x128xf32>
    %377 = arith.mulf %375, %376 : vector<1x128xf32>
    %378 = arith.mulf %373, %373 : vector<2x128xf32>
    %cst_317 = arith.constant dense<0.000000e+00> : vector<128xf32>
    %379 = vector.multi_reduction <add>, %378, %cst_317 [0] : vector<2x128xf32> to vector<128xf32>
    %380 = vector.shape_cast %379 : vector<128xf32> to vector<1x128xf32>
    %cst_318 = arith.constant 5.000000e-01 : f32
    %381 = vector.broadcast %cst_318 : f32 to vector<1x128xf32>
    %382 = arith.mulf %380, %381 : vector<1x128xf32>
    %383 = arith.mulf %377, %377 : vector<1x128xf32>
    %384 = arith.subf %382, %383 : vector<1x128xf32>
    %385 = vector.broadcast %377 : vector<1x128xf32> to vector<2x128xf32>
    %386 = arith.subf %373, %385 : vector<2x128xf32>
    %cst_319 = arith.constant 9.99999974E-6 : f32
    %387 = vector.broadcast %cst_319 : f32 to vector<1x128xf32>
    %388 = arith.addf %384, %387 : vector<1x128xf32>
    %389 = math.rsqrt %388 : vector<1x128xf32>
    %390 = vector.broadcast %389 : vector<1x128xf32> to vector<2x128xf32>
    %391 = arith.mulf %386, %390 : vector<2x128xf32>
    %c0_320 = arith.constant 0 : index
    %c0_321 = arith.constant 0 : index
    %392 = vector.load %arg11[%c0_320, %c0_321] : memref<2x128xf32, #tpu.memory_space<vmem>>, vector<2x128xf32>
    tpu.vector_store %arg11[%c0_320, %c0_321], %391 {strides = array<i32>} : memref<2x128xf32, #tpu.memory_space<vmem>>, vector<2x128xf32>,
    return
  }
  func.func @transform_0(%arg0: i32) -> (i32, i32) {
    %c0_i32 = arith.constant 0 : i32
    %c0_i32_0 = arith.constant 0 : i32
    %c0_i32_1 = arith.constant 0 : i32
    return %c0_i32, %c0_i32_0 : i32, i32
  }
  func.func @transform_1(%arg0: i32) -> (i32, i32, i32) {
    %c0_i32 = arith.constant 0 : i32
    %c0_i32_0 = arith.constant 0 : i32
    %c0_i32_1 = arith.constant 0 : i32
    %c0_i32_2 = arith.constant 0 : i32
    return %c0_i32, %c0_i32_0, %c0_i32_1 : i32, i32, i32
  }
  func.func @transform_2(%arg0: i32) -> (i32, i32, i32) {
    %c0_i32 = arith.constant 0 : i32
    %c0_i32_0 = arith.constant 0 : i32
    %c0_i32_1 = arith.constant 0 : i32
    %c0_i32_2 = arith.constant 0 : i32
    return %c0_i32, %c0_i32_0, %c0_i32_1 : i32, i32, i32
  }
  func.func @transform_3(%arg0: i32) -> (i32, i32, i32) {
    %c0_i32 = arith.constant 0 : i32
    %c0_i32_0 = arith.constant 0 : i32
    %c0_i32_1 = arith.constant 0 : i32
    %c0_i32_2 = arith.constant 0 : i32
    return %c0_i32, %c0_i32_0, %c0_i32_1 : i32, i32, i32
  }
  func.func @transform_4(%arg0: i32) -> (i32, i32, i32) {
    %c0_i32 = arith.constant 0 : i32
    %c0_i32_0 = arith.constant 0 : i32
    %c0_i32_1 = arith.constant 0 : i32
    %c0_i32_2 = arith.constant 0 : i32
    return %c0_i32, %c0_i32_0, %c0_i32_1 : i32, i32, i32
  }
  func.func @transform_5(%arg0: i32) -> (i32, i32, i32) {
    %c0_i32 = arith.constant 0 : i32
    %c0_i32_0 = arith.constant 0 : i32
    %c0_i32_1 = arith.constant 0 : i32
    %c0_i32_2 = arith.constant 0 : i32
    return %c0_i32, %c0_i32_0, %c0_i32_1 : i32, i32, i32
  }
  func.func @transform_6(%arg0: i32) -> (i32, i32, i32) {
    %c0_i32 = arith.constant 0 : i32
    %c0_i32_0 = arith.constant 0 : i32
    %c0_i32_1 = arith.constant 0 : i32
    %c0_i32_2 = arith.constant 0 : i32
    return %c0_i32, %c0_i32_0, %c0_i32_1 : i32, i32, i32
  }
  func.func @transform_7(%arg0: i32) -> (i32, i32, i32) {
    %c0_i32 = arith.constant 0 : i32
    %c0_i32_0 = arith.constant 0 : i32
    %c0_i32_1 = arith.constant 0 : i32
    %c0_i32_2 = arith.constant 0 : i32
    return %c0_i32, %c0_i32_0, %c0_i32_1 : i32, i32, i32
  }
  func.func @transform_8(%arg0: i32) -> (i32, i32, i32) {
    %c0_i32 = arith.constant 0 : i32
    %c0_i32_0 = arith.constant 0 : i32
    %c0_i32_1 = arith.constant 0 : i32
    %c0_i32_2 = arith.constant 0 : i32
    return %c0_i32, %c0_i32_0, %c0_i32_1 : i32, i32, i32
  }
  func.func @transform_9(%arg0: i32) -> (i32, i32, i32) {
    %c0_i32 = arith.constant 0 : i32
    %c0_i32_0 = arith.constant 0 : i32
    %c0_i32_1 = arith.constant 0 : i32
    %c0_i32_2 = arith.constant 0 : i32
    return %c0_i32, %c0_i32_0, %c0_i32_1 : i32, i32, i32
  }
  func.func @transform_10(%arg0: i32) -> (i32, i32) {
    %c0_i32 = arith.constant 0 : i32
    %c0_i32_0 = arith.constant 0 : i32
    %c0_i32_1 = arith.constant 0 : i32
    return %c0_i32, %c0_i32_0 : i32, i32
  }
}

</mosaic_0001>

<llo_original>
// kernel: conv_input_model.1
$region0: #{conv_input_model.1}
  #allocation0 [shape = 'u32[]', space=smem, size = 0x4, offset = 0x4, fixed_abs, tag = 'smem constant byte address 0x4 - core index']
  #allocation1 [shape = 'u32[144,128]{1,0:T(1,128)}', space=vmem, size = 0x12000, scoped, tag = 'internal scratch']
  %s0 = inlined_call_operand.vmem [shape: bf16[512,8], index: 0, kind: input, shape index: {}]
  %s1 = inlined_call_operand.vmem [shape: bf16[9,128,512], index: 1, kind: input, shape index: {}]
  %s2 = inlined_call_operand.vmem [shape: bf16[9,32,128], index: 2, kind: input, shape index: {}]
  %s3 = inlined_call_operand.vmem [shape: bf16[9,8,32], index: 3, kind: input, shape index: {}]
  %s4 = inlined_call_operand.vmem [shape: bf16[9,2,8], index: 4, kind: input, shape index: {}]
  %s5 = inlined_call_operand.vmem [shape: bf16[9,8,128], index: 5, kind: input, shape index: {}]
  %s6 = inlined_call_operand.vmem [shape: bf16[9,128,128], index: 6, kind: input, shape index: {}]
  %s7 = inlined_call_operand.vmem [shape: bf16[9,128,128], index: 7, kind: input, shape index: {}]
  %s8 = inlined_call_operand.vmem [shape: bf16[9,128,128], index: 8, kind: input, shape index: {}]
  %s9 = inlined_call_operand.vmem [shape: f32[4,1,128], index: 9, kind: input, shape index: {}]
  %s10 = inlined_call_operand.hbm [shape: f32[2,128], index: 10, kind: output, shape index: {}]
  %s11 = sld [smem:[#allocation0]]
  $region50: #{conv_input_model.1} parent=0
    _
  %s13 = ssub.s32 1, %s11
  %s14 = scalar_select 0, %s13, %s11
  $region1: #{conv_input_model.1} parent=0
    #allocation2 [shape = 'u8[1024]{0}', space=vmem, size = 0x400, scoped, tag = 'output window, operand 0, single buffered']
    #allocation3 [shape = 's32[1]{0}', space=sflag, size = 0x4, scoped, tag = 'scoped memory for conv_input_model.1']
    %15 = vsyncpa [#allocation3], 0
    // Predicated region
    $region2: #{conv_input_model.1} parent=1 // pred_check
      _
    $region3: #{conv_input_model.1} parent=1 // pred_check_branch
      %17 = sbr.rel (0) target = $region5
    $region4: #{conv_input_model.1} parent=1 // pred_region
      _
    $region5: #{conv_input_model.1} parent=1 // pred_fallthru
      _
    // Predicated region
    $region6: #{conv_input_model.1} parent=1 // pred_check
      _
    $region7: #{conv_input_model.1} parent=1 // pred_check_branch
      %19 = sbr.rel (0) target = $region9
    $region8: #{conv_input_model.1} parent=1 // pred_region
      _
    $region9: #{conv_input_model.1} parent=1 // pred_fallthru
      _
    // Predicated region
    $region10: #{conv_input_model.1} parent=1 // pred_check
      _
    $region11: #{conv_input_model.1} parent=1 // pred_check_branch
      %21 = sbr.rel (0) target = $region13
    $region12: #{conv_input_model.1} parent=1 // pred_region
      _
    $region13: #{conv_input_model.1} parent=1 // pred_fallthru
      _
    // Predicated region
    $region14: #{conv_input_model.1} parent=1 // pred_check
      _
    $region15: #{conv_input_model.1} parent=1 // pred_check_branch
      %23 = sbr.rel (0) target = $region17
    $region16: #{conv_input_model.1} parent=1 // pred_region
      _
    $region17: #{conv_input_model.1} parent=1 // pred_fallthru
      _
    // Predicated region
    $region18: #{conv_input_model.1} parent=1 // pred_check
      _
    $region19: #{conv_input_model.1} parent=1 // pred_check_branch
      %25 = sbr.rel (0) target = $region21
    $region20: #{conv_input_model.1} parent=1 // pred_region
      _
    $region21: #{conv_input_model.1} parent=1 // pred_fallthru
      _
    // Predicated region
    $region22: #{conv_input_model.1} parent=1 // pred_check
      _
    $region23: #{conv_input_model.1} parent=1 // pred_check_branch
      %27 = sbr.rel (0) target = $region25
    $region24: #{conv_input_model.1} parent=1 // pred_region
      _
    $region25: #{conv_input_model.1} parent=1 // pred_fallthru
      _
    // Predicated region
    $region26: #{conv_input_model.1} parent=1 // pred_check
      _
    $region27: #{conv_input_model.1} parent=1 // pred_check_branch
      %29 = sbr.rel (0) target = $region29
    $region28: #{conv_input_model.1} parent=1 // pred_region
      _
    $region29: #{conv_input_model.1} parent=1 // pred_fallthru
      _
    // Predicated region
    $region30: #{conv_input_model.1} parent=1 // pred_check
      _
    $region31: #{conv_input_model.1} parent=1 // pred_check_branch
      %31 = sbr.rel (0) target = $region33
    $region32: #{conv_input_model.1} parent=1 // pred_region
      _
    $region33: #{conv_input_model.1} parent=1 // pred_fallthru
      _
    // Predicated region
    $region34: #{conv_input_model.1} parent=1 // pred_check
      _
    $region35: #{conv_input_model.1} parent=1 // pred_check_branch
      %33 = sbr.rel (0) target = $region37
    $region36: #{conv_input_model.1} parent=1 // pred_region
      _
    $region37: #{conv_input_model.1} parent=1 // pred_fallthru
      _
    // Predicated region
    $region38: #{conv_input_model.1} parent=1 // pred_check
      _
    $region39: #{conv_input_model.1} parent=1 // pred_check_branch
      %35 = sbr.rel (0) target = $region41
    $region40: #{conv_input_model.1} parent=1 // pred_region
      _
    $region41: #{conv_input_model.1} parent=1 // pred_fallthru
      _
    %v37 = vld [vmem:[%s0] sm:$0xf]
    %v38 = vld [vmem:[%s0 + $0x4] sm:$0xf]
    %v39 = vld [vmem:[%s0 + $0x8] sm:$0xf]
    %v40 = vld [vmem:[%s0 + $0xc] sm:$0xf]
    %v41 = vld [vmem:[%s0 + $0x10] sm:$0xf]
    %v42 = vld [vmem:[%s0 + $0x14] sm:$0xf]
    %v43 = vld [vmem:[%s0 + $0x18] sm:$0xf]
    %v44 = vld [vmem:[%s0 + $0x1c] sm:$0xf]
    %v45 = vld [vmem:[%s0 + $0x20] sm:$0xf]
    %v46 = vld [vmem:[%s0 + $0x24] sm:$0xf]
    %v47 = vld [vmem:[%s0 + $0x28] sm:$0xf]
    %v48 = vld [vmem:[%s0 + $0x2c] sm:$0xf]
    %v49 = vld [vmem:[%s0 + $0x30] sm:$0xf]
    %v50 = vld [vmem:[%s0 + $0x34] sm:$0xf]
    %v51 = vld [vmem:[%s0 + $0x38] sm:$0xf]
    %v52 = vld [vmem:[%s0 + $0x3c] sm:$0xf]
    %v53 = vld [vmem:[%s0 + $0x40] sm:$0xf]
    %v54 = vld [vmem:[%s0 + $0x44] sm:$0xf]
    %v55 = vld [vmem:[%s0 + $0x48] sm:$0xf]
    %v56 = vld [vmem:[%s0 + $0x4c] sm:$0xf]
    %v57 = vld [vmem:[%s0 + $0x50] sm:$0xf]
    %v58 = vld [vmem:[%s0 + $0x54] sm:$0xf]
    %v59 = vld [vmem:[%s0 + $0x58] sm:$0xf]
    %v60 = vld [vmem:[%s0 + $0x5c] sm:$0xf]
    %v61 = vld [vmem:[%s0 + $0x60] sm:$0xf]
    %v62 = vld [vmem:[%s0 + $0x64] sm:$0xf]
    %v63 = vld [vmem:[%s0 + $0x68] sm:$0xf]
    %v64 = vld [vmem:[%s0 + $0x6c] sm:$0xf]
    %v65 = vld [vmem:[%s0 + $0x70] sm:$0xf]
    %v66 = vld [vmem:[%s0 + $0x74] sm:$0xf]
    %v67 = vld [vmem:[%s0 + $0x78] sm:$0xf]
    %v68 = vld [vmem:[%s0 + $0x7c] sm:$0xf]
    %v69 = vld [vmem:[%s0 + $0x80] sm:$0xf]
    %v70 = vld [vmem:[%s0 + $0x84] sm:$0xf]
    %v71 = vld [vmem:[%s0 + $0x88] sm:$0xf]
    %v72 = vld [vmem:[%s0 + $0x8c] sm:$0xf]
    %v73 = vld [vmem:[%s0 + $0x90] sm:$0xf]
    %v74 = vld [vmem:[%s0 + $0x94] sm:$0xf]
    %v75 = vld [vmem:[%s0 + $0x98] sm:$0xf]
    %v76 = vld [vmem:[%s0 + $0x9c] sm:$0xf]
    %v77 = vld [vmem:[%s0 + $0xa0] sm:$0xf]
    %v78 = vld [vmem:[%s0 + $0xa4] sm:$0xf]
    %v79 = vld [vmem:[%s0 + $0xa8] sm:$0xf]
    %v80 = vld [vmem:[%s0 + $0xac] sm:$0xf]
    %v81 = vld [vmem:[%s0 + $0xb0] sm:$0xf]
    %v82 = vld [vmem:[%s0 + $0xb4] sm:$0xf]
    %v83 = vld [vmem:[%s0 + $0xb8] sm:$0xf]
    %v84 = vld [vmem:[%s0 + $0xbc] sm:$0xf]
    %v85 = vld [vmem:[%s0 + $0xc0] sm:$0xf]
    %v86 = vld [vmem:[%s0 + $0xc4] sm:$0xf]
    %v87 = vld [vmem:[%s0 + $0xc8] sm:$0xf]
    %v88 = vld [vmem:[%s0 + $0xcc] sm:$0xf]
    %v89 = vld [vmem:[%s0 + $0xd0] sm:$0xf]
    %v90 = vld [vmem:[%s0 + $0xd4] sm:$0xf]
    %v91 = vld [vmem:[%s0 + $0xd8] sm:$0xf]
    %v92 = vld [vmem:[%s0 + $0xdc] sm:$0xf]
    %v93 = vld [vmem:[%s0 + $0xe0] sm:$0xf]
    %v94 = vld [vmem:[%s0 + $0xe4] sm:$0xf]
    %v95 = vld [vmem:[%s0 + $0xe8] sm:$0xf]
    %v96 = vld [vmem:[%s0 + $0xec] sm:$0xf]
    %v97 = vld [vmem:[%s0 + $0xf0] sm:$0xf]
    %v98 = vld [vmem:[%s0 + $0xf4] sm:$0xf]
    %v99 = vld [vmem:[%s0 + $0xf8] sm:$0xf]
    %v100 = vld [vmem:[%s0 + $0xfc] sm:$0xf]
    %v101 = vld [vmem:[%s1] sm:$0xff]
    %v102 = vld [vmem:[%s1 + $0x8] sm:$0xff]
    %v103 = vld [vmem:[%s1 + $0x10] sm:$0xff]
    %v104 = vld [vmem:[%s1 + $0x18] sm:$0xff]
    %v105 = vld [vmem:[%s1 + $0x20] sm:$0xff]
    %v106 = vld [vmem:[%s1 + $0x28] sm:$0xff]
    %v107 = vld [vmem:[%s1 + $0x30] sm:$0xff]
    %v108 = vld [vmem:[%s1 + $0x38] sm:$0xff]
    %v109 = vld [vmem:[%s1 + $0x40] sm:$0xff]
    %v110 = vld [vmem:[%s1 + $0x48] sm:$0xff]
    %v111 = vld [vmem:[%s1 + $0x50] sm:$0xff]
    %v112 = vld [vmem:[%s1 + $0x58] sm:$0xff]
    %v113 = vld [vmem:[%s1 + $0x60] sm:$0xff]
    %v114 = vld [vmem:[%s1 + $0x68] sm:$0xff]
    %v115 = vld [vmem:[%s1 + $0x70] sm:$0xff]
    %v116 = vld [vmem:[%s1 + $0x78] sm:$0xff]
    %v117 = vld [vmem:[%s1 + $0x80] sm:$0xff]
    %v118 = vld [vmem:[%s1 + $0x88] sm:$0xff]
    %v119 = vld [vmem:[%s1 + $0x90] sm:$0xff]
    %v120 = vld [vmem:[%s1 + $0x98] sm:$0xff]
    %v121 = vld [vmem:[%s1 + $0xa0] sm:$0xff]
    %v122 = vld [vmem:[%s1 + $0xa8] sm:$0xff]
    %v123 = vld [vmem:[%s1 + $0xb0] sm:$0xff]
    %v124 = vld [vmem:[%s1 + $0xb8] sm:$0xff]
    %v125 = vld [vmem:[%s1 + $0xc0] sm:$0xff]
    %v126 = vld [vmem:[%s1 + $0xc8] sm:$0xff]
    %v127 = vld [vmem:[%s1 + $0xd0] sm:$0xff]
    %v128 = vld [vmem:[%s1 + $0xd8] sm:$0xff]
    %v129 = vld [vmem:[%s1 + $0xe0] sm:$0xff]
    %v130 = vld [vmem:[%s1 + $0xe8] sm:$0xff]
    %v131 = vld [vmem:[%s1 + $0xf0] sm:$0xff]
    %v132 = vld [vmem:[%s1 + $0xf8] sm:$0xff]
    %v133 = vld [vmem:[%s5] sm:$0xf]
    %v166 = vunpack.c.l.b16 %v101
    %v167 = vunpack.c.h.b16 %v101
    %v168 = vunpack.c.l.b16 %v102
    %v169 = vunpack.c.h.b16 %v102
    %v170 = vunpack.c.l.b16 %v103
    %v171 = vunpack.c.h.b16 %v103
    %v172 = vunpack.c.l.b16 %v104
    %v173 = vunpack.c.h.b16 %v104
    %v174 = vunpack.c.l.b16 %v105
    %v175 = vunpack.c.h.b16 %v105
    %v176 = vunpack.c.l.b16 %v106
    %v177 = vunpack.c.h.b16 %v106
    %v178 = vunpack.c.l.b16 %v107
    %v179 = vunpack.c.h.b16 %v107
    %v180 = vunpack.c.l.b16 %v108
    %v181 = vunpack.c.h.b16 %v108
    %v182 = vunpack.c.l.b16 %v109
    %v183 = vunpack.c.h.b16 %v109
    %v184 = vunpack.c.l.b16 %v110
    %v185 = vunpack.c.h.b16 %v110
    %v186 = vunpack.c.l.b16 %v111
    %v187 = vunpack.c.h.b16 %v111
    %v188 = vunpack.c.l.b16 %v112
    %v189 = vunpack.c.h.b16 %v112
    %v190 = vunpack.c.l.b16 %v113
    %v191 = vunpack.c.h.b16 %v113
    %v192 = vunpack.c.l.b16 %v114
    %v193 = vunpack.c.h.b16 %v114
    %v194 = vunpack.c.l.b16 %v115
    %v195 = vunpack.c.h.b16 %v115
    %v196 = vunpack.c.l.b16 %v116
    %v197 = vunpack.c.h.b16 %v116
    %v198 = vunpack.c.l.b16 %v117
    %v199 = vunpack.c.h.b16 %v117
    %v200 = vunpack.c.l.b16 %v118
    %v201 = vunpack.c.h.b16 %v118
    %v202 = vunpack.c.l.b16 %v119
    %v203 = vunpack.c.h.b16 %v119
    %v204 = vunpack.c.l.b16 %v120
    %v205 = vunpack.c.h.b16 %v120
    %v206 = vunpack.c.l.b16 %v121
    %v207 = vunpack.c.h.b16 %v121
    %v208 = vunpack.c.l.b16 %v122
    %v209 = vunpack.c.h.b16 %v122
    %v210 = vunpack.c.l.b16 %v123
    %v211 = vunpack.c.h.b16 %v123
    %v212 = vunpack.c.l.b16 %v124
    %v213 = vunpack.c.h.b16 %v124
    %v214 = vunpack.c.l.b16 %v125
    %v215 = vunpack.c.h.b16 %v125
    %v216 = vunpack.c.l.b16 %v126
    %v217 = vunpack.c.h.b16 %v126
    %v218 = vunpack.c.l.b16 %v127
    %v219 = vunpack.c.h.b16 %v127
    %v220 = vunpack.c.l.b16 %v128
    %v221 = vunpack.c.h.b16 %v128
    %v222 = vunpack.c.l.b16 %v129
    %v223 = vunpack.c.h.b16 %v129
    %v224 = vunpack.c.l.b16 %v130
    %v225 = vunpack.c.h.b16 %v130
    %v226 = vunpack.c.l.b16 %v131
    %v227 = vunpack.c.h.b16 %v131
    %v228 = vunpack.c.l.b16 %v132
    %v229 = vunpack.c.h.b16 %v132
    %v230 = vpack.c.b16 %v170, %v166
    %v231 = vpack.c.b16 %v171, %v167
    %v232 = vpack.c.b16 %v172, %v168
    %v233 = vpack.c.b16 %v173, %v169
    %v234 = vpack.c.b16 %v178, %v174
    %v235 = vpack.c.b16 %v179, %v175
    %v236 = vpack.c.b16 %v180, %v176
    %v237 = vpack.c.b16 %v181, %v177
    %v238 = vpack.c.b16 %v186, %v182
    %v239 = vpack.c.b16 %v187, %v183
    %v240 = vpack.c.b16 %v188, %v184
    %v241 = vpack.c.b16 %v189, %v185
    %v242 = vpack.c.b16 %v194, %v190
    %v243 = vpack.c.b16 %v195, %v191
    %v244 = vpack.c.b16 %v196, %v192
    %v245 = vpack.c.b16 %v197, %v193
    %v246 = vpack.c.b16 %v202, %v198
    %v247 = vpack.c.b16 %v203, %v199
    %v248 = vpack.c.b16 %v204, %v200
    %v249 = vpack.c.b16 %v205, %v201
    %v250 = vpack.c.b16 %v210, %v206
    %v251 = vpack.c.b16 %v211, %v207
    %v252 = vpack.c.b16 %v212, %v208
    %v253 = vpack.c.b16 %v213, %v209
    %v254 = vpack.c.b16 %v218, %v214
    %v255 = vpack.c.b16 %v219, %v215
    %v256 = vpack.c.b16 %v220, %v216
    %v257 = vpack.c.b16 %v221, %v217
    %v258 = vpack.c.b16 %v226, %v222
    %v259 = vpack.c.b16 %v227, %v223
    %v260 = vpack.c.b16 %v228, %v224
    %v261 = vpack.c.b16 %v229, %v225
    %v358 = vunpack.c.l.b16 %v37
    %v359 = vunpack.c.l.b16 %v38
    %v360 = vunpack.c.l.b16 %v39
    %v361 = vunpack.c.l.b16 %v40
    %v362 = vunpack.c.l.b16 %v41
    %v363 = vunpack.c.l.b16 %v42
    %v364 = vunpack.c.l.b16 %v43
    %v365 = vunpack.c.l.b16 %v44
    %v366 = vunpack.c.l.b16 %v45
    %v367 = vunpack.c.l.b16 %v46
    %v368 = vunpack.c.l.b16 %v47
    %v369 = vunpack.c.l.b16 %v48
    %v370 = vunpack.c.l.b16 %v49
    %v371 = vunpack.c.l.b16 %v50
    %v372 = vunpack.c.l.b16 %v51
    %v373 = vunpack.c.l.b16 %v52
    %v374 = vunpack.c.l.b16 %v53
    %v375 = vunpack.c.l.b16 %v54
    %v376 = vunpack.c.l.b16 %v55
    %v377 = vunpack.c.l.b16 %v56
    %v378 = vunpack.c.l.b16 %v57
    %v379 = vunpack.c.l.b16 %v58
    %v380 = vunpack.c.l.b16 %v59
    %v381 = vunpack.c.l.b16 %v60
    %v382 = vunpack.c.l.b16 %v61
    %v383 = vunpack.c.l.b16 %v62
    %v384 = vunpack.c.l.b16 %v63
    %v385 = vunpack.c.l.b16 %v64
    %v386 = vunpack.c.l.b16 %v65
    %v387 = vunpack.c.l.b16 %v66
    %v388 = vunpack.c.l.b16 %v67
    %v389 = vunpack.c.l.b16 %v68
    %v390 = vunpack.c.l.b16 %v69
    %v391 = vunpack.c.l.b16 %v70
    %v392 = vunpack.c.l.b16 %v71
    %v393 = vunpack.c.l.b16 %v72
    %v394 = vunpack.c.l.b16 %v73
    %v395 = vunpack.c.l.b16 %v74
    %v396 = vunpack.c.l.b16 %v75
    %v397 = vunpack.c.l.b16 %v76
    %v398 = vunpack.c.l.b16 %v77
    %v399 = vunpack.c.l.b16 %v78
    %v400 = vunpack.c.l.b16 %v79
    %v401 = vunpack.c.l.b16 %v80
    %v402 = vunpack.c.l.b16 %v81
    %v403 = vunpack.c.l.b16 %v82
    %v404 = vunpack.c.l.b16 %v83
    %v405 = vunpack.c.l.b16 %v84
    %v406 = vunpack.c.l.b16 %v85
    %v407 = vunpack.c.l.b16 %v86
    %v408 = vunpack.c.l.b16 %v87
    %v409 = vunpack.c.l.b16 %v88
    %v410 = vunpack.c.l.b16 %v89
    %v411 = vunpack.c.l.b16 %v90
    %v412 = vunpack.c.l.b16 %v91
    %v413 = vunpack.c.l.b16 %v92
    %v414 = vunpack.c.l.b16 %v93
    %v415 = vunpack.c.l.b16 %v94
    %v416 = vunpack.c.l.b16 %v95
    %v417 = vunpack.c.l.b16 %v96
    %v418 = vunpack.c.l.b16 %v97
    %v419 = vunpack.c.l.b16 %v98
    %v420 = vunpack.c.l.b16 %v99
    %v421 = vunpack.c.l.b16 %v100
    %v422 = vpack.c.b16 %v359, %v358
    %v423 = vpack.c.b16 %v361, %v360
    %v424 = vpack.c.b16 %v363, %v362
    %v425 = vpack.c.b16 %v365, %v364
    %v426 = vpack.c.b16 %v367, %v366
    %v427 = vpack.c.b16 %v369, %v368
    %v428 = vpack.c.b16 %v371, %v370
    %v429 = vpack.c.b16 %v373, %v372
    %v430 = vpack.c.b16 %v375, %v374
    %v431 = vpack.c.b16 %v377, %v376
    %v432 = vpack.c.b16 %v379, %v378
    %v433 = vpack.c.b16 %v381, %v380
    %v434 = vpack.c.b16 %v383, %v382
    %v435 = vpack.c.b16 %v385, %v384
    %v436 = vpack.c.b16 %v387, %v386
    %v437 = vpack.c.b16 %v389, %v388
    %v438 = vpack.c.b16 %v391, %v390
    %v439 = vpack.c.b16 %v393, %v392
    %v440 = vpack.c.b16 %v395, %v394
    %v441 = vpack.c.b16 %v397, %v396
    %v442 = vpack.c.b16 %v399, %v398
    %v443 = vpack.c.b16 %v401, %v400
    %v444 = vpack.c.b16 %v403, %v402
    %v445 = vpack.c.b16 %v405, %v404
    %v446 = vpack.c.b16 %v407, %v406
    %v447 = vpack.c.b16 %v409, %v408
    %v448 = vpack.c.b16 %v411, %v410
    %v449 = vpack.c.b16 %v413, %v412
    %v450 = vpack.c.b16 %v415, %v414
    %v451 = vpack.c.b16 %v417, %v416
    %v452 = vpack.c.b16 %v419, %v418
    %v453 = vpack.c.b16 %v421, %v420
    %486 = vmatprep.subr.bf16.mxu0 0
    %487 = vmatpush1.bf16.msra.mxu0 %v422
    %488 = vmatprep.subr.bf16.mxu0 0
    %489 = vmatpush1.bf16.msra.mxu0 %v423
    %490 = vmatprep.subr.bf16.mxu0 0
    %491 = vmatpush1.bf16.msra.mxu0 %v424
    %492 = vmatprep.subr.bf16.mxu0 0
    %493 = vmatpush1.bf16.msra.mxu0 %v425
    %494 = vmatprep.subr.bf16.mxu0 0
    %495 = vmatpush1.bf16.msra.mxu0 %v426
    %496 = vmatprep.subr.bf16.mxu0 0
    %497 = vmatpush1.bf16.msra.mxu0 %v427
    %498 = vmatprep.subr.bf16.mxu0 0
    %499 = vmatpush1.bf16.msra.mxu0 %v428
    %500 = vmatprep.subr.bf16.mxu0 0
    %501 = vmatpush1.bf16.msra.mxu0 %v429
    %502 = vmatprep.subr.bf16.mxu0 0
    %503 = vmatpush1.bf16.msra.mxu0 %v430
    %504 = vmatprep.subr.bf16.mxu0 0
    %505 = vmatpush1.bf16.msra.mxu0 %v431
    %506 = vmatprep.subr.bf16.mxu0 0
    %507 = vmatpush1.bf16.msra.mxu0 %v432
    %508 = vmatprep.subr.bf16.mxu0 0
    %509 = vmatpush1.bf16.msra.mxu0 %v433
    %510 = vmatprep.subr.bf16.mxu0 0
    %511 = vmatpush1.bf16.msra.mxu0 %v434
    %512 = vmatprep.subr.bf16.mxu0 0
    %513 = vmatpush1.bf16.msra.mxu0 %v435
    %514 = vmatprep.subr.bf16.mxu0 0
    %515 = vmatpush1.bf16.msra.mxu0 %v436
    %516 = vmatprep.subr.bf16.mxu0 0
    %517 = vmatpush1.bf16.msra.mxu0 %v437
    %518 = vmatprep.mubr.bf16.mxu0 %v231
    %519 = vmatmul.mubr.bf16.gmra.mrb[0].mxu0 %v230
    %v520 = vpop.f32.mrb[0].mxu0
    %v521 = vadd.f32 0.0, %v520
    %v522 = vpop.f32.mrb[0].mxu0
    %v523 = vpop.f32.mrb[0].mxu0
    %v524 = vadd.f32 0.0, %v523
    %v525 = vpop.f32.mrb[0].mxu0
    %526 = vmatprep.mubr.bf16.mxu0 %v235
    %527 = vmatmul.mubr.bf16.gmra.mrb[0].mxu0 %v234
    %v528 = vpop.f32.mrb[0].mxu0
    %v529 = vadd.f32 0.0, %v528
    %v530 = vpop.f32.mrb[0].mxu0
    %v531 = vpop.f32.mrb[0].mxu0
    %v532 = vadd.f32 0.0, %v531
    %v533 = vpop.f32.mrb[0].mxu0
    %534 = vmatprep.mubr.bf16.mxu0 %v239
    %535 = vmatmul.mubr.bf16.gmra.mrb[0].mxu0 %v238
    %v536 = vpop.f32.mrb[0].mxu0
    %v537 = vadd.f32 0.0, %v536
    %v538 = vpop.f32.mrb[0].mxu0
    %v539 = vpop.f32.mrb[0].mxu0
    %v540 = vadd.f32 0.0, %v539
    %v541 = vpop.f32.mrb[0].mxu0
    %542 = vmatprep.mubr.bf16.mxu0 %v243
    %543 = vmatmul.mubr.bf16.gmra.mrb[0].mxu0 %v242
    %v544 = vpop.f32.mrb[0].mxu0
    %v545 = vadd.f32 0.0, %v544
    %v546 = vpop.f32.mrb[0].mxu0
    %v547 = vpop.f32.mrb[0].mxu0
    %v548 = vadd.f32 0.0, %v547
    %v549 = vpop.f32.mrb[0].mxu0
    %550 = vmatprep.mubr.bf16.mxu0 %v247
    %551 = vmatmul.mubr.bf16.gmra.mrb[0].mxu0 %v246
    %v552 = vpop.f32.mrb[0].mxu0
    %v553 = vadd.f32 0.0, %v552
    %v554 = vpop.f32.mrb[0].mxu0
    %v555 = vpop.f32.mrb[0].mxu0
    %v556 = vadd.f32 0.0, %v555
    %v557 = vpop.f32.mrb[0].mxu0
    %558 = vmatprep.mubr.bf16.mxu0 %v251
    %559 = vmatmul.mubr.bf16.gmra.mrb[0].mxu0 %v250
    %v560 = vpop.f32.mrb[0].mxu0
    %v561 = vadd.f32 0.0, %v560
    %v562 = vpop.f32.mrb[0].mxu0
    %v563 = vpop.f32.mrb[0].mxu0
    %v564 = vadd.f32 0.0, %v563
    %v565 = vpop.f32.mrb[0].mxu0
    %566 = vmatprep.mubr.bf16.mxu0 %v255
    %567 = vmatmul.mubr.bf16.gmra.mrb[0].mxu0 %v254
    %v568 = vpop.f32.mrb[0].mxu0
    %v569 = vadd.f32 0.0, %v568
    %v570 = vpop.f32.mrb[0].mxu0
    %v571 = vpop.f32.mrb[0].mxu0
    %v572 = vadd.f32 0.0, %v571
    %v573 = vpop.f32.mrb[0].mxu0
    %574 = vmatprep.mubr.bf16.mxu0 %v259
    %575 = vmatmul.mubr.bf16.gmra.mrb[0].mxu0 %v258
    %v576 = vpop.f32.mrb[0].mxu0
    %v577 = vadd.f32 0.0, %v576
    %v578 = vpop.f32.mrb[0].mxu0
    %v579 = vpop.f32.mrb[0].mxu0
    %v580 = vadd.f32 0.0, %v579
    %v581 = vpop.f32.mrb[0].mxu0
    %582 = vdwg.mxu0
    %583 = vmatprep.subr.bf16.mxu0 0
    %584 = vmatpush1.bf16.msra.mxu0 %v438
    %585 = vmatprep.subr.bf16.mxu0 0
    %586 = vmatpush1.bf16.msra.mxu0 %v439
    %587 = vmatprep.subr.bf16.mxu0 0
    %588 = vmatpush1.bf16.msra.mxu0 %v440
    %589 = vmatprep.subr.bf16.mxu0 0
    %590 = vmatpush1.bf16.msra.mxu0 %v441
    %591 = vmatprep.subr.bf16.mxu0 0
    %592 = vmatpush1.bf16.msra.mxu0 %v442
    %593 = vmatprep.subr.bf16.mxu0 0
    %594 = vmatpush1.bf16.msra.mxu0 %v443
    %595 = vmatprep.subr.bf16.mxu0 0
    %596 = vmatpush1.bf16.msra.mxu0 %v444
    %597 = vmatprep.subr.bf16.mxu0 0
    %598 = vmatpush1.bf16.msra.mxu0 %v445
    %599 = vmatprep.subr.bf16.mxu0 0
    %600 = vmatpush1.bf16.msra.mxu0 %v446
    %601 = vmatprep.subr.bf16.mxu0 0
    %602 = vmatpush1.bf16.msra.mxu0 %v447
    %603 = vmatprep.subr.bf16.mxu0 0
    %604 = vmatpush1.bf16.msra.mxu0 %v448
    %605 = vmatprep.subr.bf16.mxu0 0
    %606 = vmatpush1.bf16.msra.mxu0 %v449
    %607 = vmatprep.subr.bf16.mxu0 0
    %608 = vmatpush1.bf16.msra.mxu0 %v450
    %609 = vmatprep.subr.bf16.mxu0 0
    %610 = vmatpush1.bf16.msra.mxu0 %v451
    %611 = vmatprep.subr.bf16.mxu0 0
    %612 = vmatpush1.bf16.msra.mxu0 %v452
    %613 = vmatprep.subr.bf16.mxu0 0
    %614 = vmatpush1.bf16.msra.mxu0 %v453
    %615 = vmatprep.mubr.bf16.mxu0 %v233
    %616 = vmatmul.mubr.bf16.gmra.mrb[0].mxu0 %v232
    %v617 = vpop.f32.mrb[0].mxu0
    %v618 = vadd.f32 %v521, %v617
    %v619 = vpop.f32.mrb[0].mxu0
    %v620 = vpop.f32.mrb[0].mxu0
    %v621 = vadd.f32 %v524, %v620
    %v622 = vpop.f32.mrb[0].mxu0
    %623 = vmatprep.mubr.bf16.mxu0 %v237
    %624 = vmatmul.mubr.bf16.gmra.mrb[0].mxu0 %v236
    %v625 = vpop.f32.mrb[0].mxu0
    %v626 = vadd.f32 %v529, %v625
    %v627 = vpop.f32.mrb[0].mxu0
    %v628 = vpop.f32.mrb[0].mxu0
    %v629 = vadd.f32 %v532, %v628
    %v630 = vpop.f32.mrb[0].mxu0
    %631 = vmatprep.mubr.bf16.mxu0 %v241
    %632 = vmatmul.mubr.bf16.gmra.mrb[0].mxu0 %v240
    %v633 = vpop.f32.mrb[0].mxu0
    %v634 = vadd.f32 %v537, %v633
    %v635 = vpop.f32.mrb[0].mxu0
    %v636 = vpop.f32.mrb[0].mxu0
    %v637 = vadd.f32 %v540, %v636
    %v638 = vpop.f32.mrb[0].mxu0
    %639 = vmatprep.mubr.bf16.mxu0 %v245
    %640 = vmatmul.mubr.bf16.gmra.mrb[0].mxu0 %v244
    %v641 = vpop.f32.mrb[0].mxu0
    %v642 = vadd.f32 %v545, %v641
    %v643 = vpop.f32.mrb[0].mxu0
    %v644 = vpop.f32.mrb[0].mxu0
    %v645 = vadd.f32 %v548, %v644
    %v646 = vpop.f32.mrb[0].mxu0
    %647 = vmatprep.mubr.bf16.mxu0 %v249
    %648 = vmatmul.mubr.bf16.gmra.mrb[0].mxu0 %v248
    %v649 = vpop.f32.mrb[0].mxu0
    %v650 = vadd.f32 %v553, %v649
    %v651 = vpop.f32.mrb[0].mxu0
    %v652 = vpop.f32.mrb[0].mxu0
    %v653 = vadd.f32 %v556, %v652
    %v654 = vpop.f32.mrb[0].mxu0
    %655 = vmatprep.mubr.bf16.mxu0 %v253
    %656 = vmatmul.mubr.bf16.gmra.mrb[0].mxu0 %v252
    %v657 = vpop.f32.mrb[0].mxu0
    %v658 = vadd.f32 %v561, %v657
    %v659 = vpop.f32.mrb[0].mxu0
    %v660 = vpop.f32.mrb[0].mxu0
    %v661 = vadd.f32 %v564, %v660
    %v662 = vpop.f32.mrb[0].mxu0
    %663 = vmatprep.mubr.bf16.mxu0 %v257
    %664 = vmatmul.mubr.bf16.gmra.mrb[0].mxu0 %v256
    %v665 = vpop.f32.mrb[0].mxu0
    %v666 = vadd.f32 %v569, %v665
    %v667 = vpop.f32.mrb[0].mxu0
    %v668 = vpop.f32.mrb[0].mxu0
    %v669 = vadd.f32 %v572, %v668
    %v670 = vpop.f32.mrb[0].mxu0
    %671 = vmatprep.mubr.bf16.mxu0 %v261
    %672 = vmatmul.mubr.bf16.gmra.mrb[0].mxu0 %v260
    %v673 = vpop.f32.mrb[0].mxu0
    %v674 = vadd.f32 %v577, %v673
    %v675 = vpop.f32.mrb[0].mxu0
    %v676 = vpop.f32.mrb[0].mxu0
    %v677 = vadd.f32 %v580, %v676
    %v678 = vpop.f32.mrb[0].mxu0
    %679 = vdwg.mxu0
    %v680 = vpack.c.bf16 %v621, %v618
    %v681 = vpack.c.bf16 %v629, %v626
    %v682 = vpack.c.bf16 %v637, %v634
    %v683 = vpack.c.bf16 %v645, %v642
    %v684 = vpack.c.bf16 %v653, %v650
    %v685 = vpack.c.bf16 %v661, %v658
    %v686 = vpack.c.bf16 %v669, %v666
    %v687 = vpack.c.bf16 %v677, %v674
    %s688 = scalar_lea.vmem %s1, 256
    %v689 = vld [vmem:[%s688] sm:$0xff]
    %v690 = vld [vmem:[%s688 + $0x8] sm:$0xff]
    %v691 = vld [vmem:[%s688 + $0x10] sm:$0xff]
    %v692 = vld [vmem:[%s688 + $0x18] sm:$0xff]
    %v693 = vld [vmem:[%s688 + $0x20] sm:$0xff]
    %v694 = vld [vmem:[%s688 + $0x28] sm:$0xff]
    %v695 = vld [vmem:[%s688 + $0x30] sm:$0xff]
    %v696 = vld [vmem:[%s688 + $0x38] sm:$0xff]
    %v697 = vld [vmem:[%s688 + $0x40] sm:$0xff]
    %v698 = vld [vmem:[%s688 + $0x48] sm:$0xff]
    %v699 = vld [vmem:[%s688 + $0x50] sm:$0xff]
    %v700 = vld [vmem:[%s688 + $0x58] sm:$0xff]
    %v701 = vld [vmem:[%s688 + $0x60] sm:$0xff]
    %v702 = vld [vmem:[%s688 + $0x68] sm:$0xff]
    %v703 = vld [vmem:[%s688 + $0x70] sm:$0xff]
    %v704 = vld [vmem:[%s688 + $0x78] sm:$0xff]
    %v705 = vld [vmem:[%s688 + $0x80] sm:$0xff]
    %v706 = vld [vmem:[%s688 + $0x88] sm:$0xff]
    %v707 = vld [vmem:[%s688 + $0x90] sm:$0xff]
    %v708 = vld [vmem:[%s688 + $0x98] sm:$0xff]
    %v709 = vld [vmem:[%s688 + $0xa0] sm:$0xff]
    %v710 = vld [vmem:[%s688 + $0xa8] sm:$0xff]
    %v711 = vld [vmem:[%s688 + $0xb0] sm:$0xff]
    %v712 = vld [vmem:[%s688 + $0xb8] sm:$0xff]
    %v713 = vld [vmem:[%s688 + $0xc0] sm:$0xff]
    %v714 = vld [vmem:[%s688 + $0xc8] sm:$0xff]
    %v715 = vld [vmem:[%s688 + $0xd0] sm:$0xff]
    %v716 = vld [vmem:[%s688 + $0xd8] sm:$0xff]
    %v717 = vld [vmem:[%s688 + $0xe0] sm:$0xff]
    %v718 = vld [vmem:[%s688 + $0xe8] sm:$0xff]
    %v719 = vld [vmem:[%s688 + $0xf0] sm:$0xff]
    %v720 = vld [vmem:[%s688 + $0xf8] sm:$0xff]
    %s721 = scalar_lea.vmem %s5, 4
    %v722 = vld [vmem:[%s721] sm:$0xf]
    %v755 = vunpack.c.l.b16 %v689
    %v756 = vunpack.c.h.b16 %v689
    %v757 = vunpack.c.l.b16 %v690
    %v758 = vunpack.c.h.b16 %v690
    %v759 = vunpack.c.l.b16 %v691
    %v760 = vunpack.c.h.b16 %v691
    %v761 = vunpack.c.l.b16 %v692
    %v762 = vunpack.c.h.b16 %v692
    %v763 = vunpack.c.l.b16 %v693
    %v764 = vunpack.c.h.b16 %v693
    %v765 = vunpack.c.l.b16 %v694
    %v766 = vunpack.c.h.b16 %v694
    %v767 = vunpack.c.l.b16 %v695
    %v768 = vunpack.c.h.b16 %v695
    %v769 = vunpack.c.l.b16 %v696
    %v770 = vunpack.c.h.b16 %v696
    %v771 = vunpack.c.l.b16 %v697
    %v772 = vunpack.c.h.b16 %v697
    %v773 = vunpack.c.l.b16 %v698
    %v774 = vunpack.c.h.b16 %v698
    %v775 = vunpack.c.l.b16 %v699
    %v776 = vunpack.c.h.b16 %v699
    %v777 = vunpack.c.l.b16 %v700
    %v778 = vunpack.c.h.b16 %v700
    %v779 = vunpack.c.l.b16 %v701
    %v780 = vunpack.c.h.b16 %v701
    %v781 = vunpack.c.l.b16 %v702
    %v782 = vunpack.c.h.b16 %v702
    %v783 = vunpack.c.l.b16 %v703
    %v784 = vunpack.c.h.b16 %v703
    %v785 = vunpack.c.l.b16 %v704
    %v786 = vunpack.c.h.b16 %v704
    %v787 = vunpack.c.l.b16 %v705
    %v788 = vunpack.c.h.b16 %v705
    %v789 = vunpack.c.l.b16 %v706
    %v790 = vunpack.c.h.b16 %v706
    %v791 = vunpack.c.l.b16 %v707
    %v792 = vunpack.c.h.b16 %v707
    %v793 = vunpack.c.l.b16 %v708
    %v794 = vunpack.c.h.b16 %v708
    %v795 = vunpack.c.l.b16 %v709
    %v796 = vunpack.c.h.b16 %v709
    %v797 = vunpack.c.l.b16 %v710
    %v798 = vunpack.c.h.b16 %v710
    %v799 = vunpack.c.l.b16 %v711
    %v800 = vunpack.c.h.b16 %v711
    %v801 = vunpack.c.l.b16 %v712
    %v802 = vunpack.c.h.b16 %v712
    %v803 = vunpack.c.l.b16 %v713
    %v804 = vunpack.c.h.b16 %v713
    %v805 = vunpack.c.l.b16 %v714
    %v806 = vunpack.c.h.b16 %v714
    %v807 = vunpack.c.l.b16 %v715
    %v808 = vunpack.c.h.b16 %v715
    %v809 = vunpack.c.l.b16 %v716
    %v810 = vunpack.c.h.b16 %v716
    %v811 = vunpack.c.l.b16 %v717
    %v812 = vunpack.c.h.b16 %v717
    %v813 = vunpack.c.l.b16 %v718
    %v814 = vunpack.c.h.b16 %v718
    %v815 = vunpack.c.l.b16 %v719
    %v816 = vunpack.c.h.b16 %v719
    %v817 = vunpack.c.l.b16 %v720
    %v818 = vunpack.c.h.b16 %v720
    %v819 = vpack.c.b16 %v759, %v755
    %v820 = vpack.c.b16 %v760, %v756
    %v821 = vpack.c.b16 %v761, %v757
    %v822 = vpack.c.b16 %v762, %v758
    %v823 = vpack.c.b16 %v767, %v763
    %v824 = vpack.c.b16 %v768, %v764
    %v825 = vpack.c.b16 %v769, %v765
    %v826 = vpack.c.b16 %v770, %v766
    %v827 = vpack.c.b16 %v775, %v771
    %v828 = vpack.c.b16 %v776, %v772
    %v829 = vpack.c.b16 %v777, %v773
    %v830 = vpack.c.b16 %v778, %v774
    %v831 = vpack.c.b16 %v783, %v779
    %v832 = vpack.c.b16 %v784, %v780
    %v833 = vpack.c.b16 %v785, %v781
    %v834 = vpack.c.b16 %v786, %v782
    %v835 = vpack.c.b16 %v791, %v787
    %v836 = vpack.c.b16 %v792, %v788
    %v837 = vpack.c.b16 %v793, %v789
    %v838 = vpack.c.b16 %v794, %v790
    %v839 = vpack.c.b16 %v799, %v795
    %v840 = vpack.c.b16 %v800, %v796
    %v841 = vpack.c.b16 %v801, %v797
    %v842 = vpack.c.b16 %v802, %v798
    %v843 = vpack.c.b16 %v807, %v803
    %v844 = vpack.c.b16 %v808, %v804
    %v845 = vpack.c.b16 %v809, %v805
    %v846 = vpack.c.b16 %v810, %v806
    %v847 = vpack.c.b16 %v815, %v811
    %v848 = vpack.c.b16 %v816, %v812
    %v849 = vpack.c.b16 %v817, %v813
    %v850 = vpack.c.b16 %v818, %v814
    %883 = vmatprep.subr.bf16.mxu0 0
    %884 = vmatpush1.bf16.msra.mxu0 %v422
    %885 = vmatprep.subr.bf16.mxu0 0
    %886 = vmatpush1.bf16.msra.mxu0 %v423
    %887 = vmatprep.subr.bf16.mxu0 0
    %888 = vmatpush1.bf16.msra.mxu0 %v424
    %889 = vmatprep.subr.bf16.mxu0 0
    %890 = vmatpush1.bf16.msra.mxu0 %v425
    %891 = vmatprep.subr.bf16.mxu0 0
    %892 = vmatpush1.bf16.msra.mxu0 %v426
    %893 = vmatprep.subr.bf16.mxu0 0
    %894 = vmatpush1.bf16.msra.mxu0 %v427
    %895 = vmatprep.subr.bf16.mxu0 0
    %896 = vmatpush1.bf16.msra.mxu0 %v428
    %897 = vmatprep.subr.bf16.mxu0 0
    %898 = vmatpush1.bf16.msra.mxu0 %v429
    %899 = vmatprep.subr.bf16.mxu0 0
    %900 = vmatpush1.bf16.msra.mxu0 %v430
    %901 = vmatprep.subr.bf16.mxu0 0
    %902 = vmatpush1.bf16.msra.mxu0 %v431
    %903 = vmatprep.subr.bf16.mxu0 0
    %904 = vmatpush1.bf16.msra.mxu0 %v432
    %905 = vmatprep.subr.bf16.mxu0 0
    %906 = vmatpush1.bf16.msra.mxu0 %v433
    %907 = vmatprep.subr.bf16.mxu0 0
    %908 = vmatpush1.bf16.msra.mxu0 %v434
    %909 = vmatprep.subr.bf16.mxu0 0
    %910 = vmatpush1.bf16.msra.mxu0 %v435
    %911 = vmatprep.subr.bf16.mxu0 0
    %912 = vmatpush1.bf16.msra.mxu0 %v436
    %913 = vmatprep.subr.bf16.mxu0 0
    %914 = vmatpush1.bf16.msra.mxu0 %v437
    %915 = vmatprep.mubr.bf16.mxu0 %v820
    %916 = vmatmul.mubr.bf16.gmra.mrb[0].mxu0 %v819
    %v917 = vpop.f32.mrb[0].mxu0
    %v918 = vadd.f32 0.0, %v917
    %v919 = vpop.f32.mrb[0].mxu0
    %v920 = vpop.f32.mrb[0].mxu0
    %v921 = vadd.f32 0.0, %v920
    %v922 = vpop.f32.mrb[0].mxu0
    %923 = vmatprep.mubr.bf16.mxu0 %v824
    %924 = vmatmul.mubr.bf16.gmra.mrb[0].mxu0 %v823
    %v925 = vpop.f32.mrb[0].mxu0
    %v926 = vadd.f32 0.0, %v925
    %v927 = vpop.f32.mrb[0].mxu0
    %v928 = vpop.f32.mrb[0].mxu0
    %v929 = vadd.f32 0.0, %v928
    %v930 = vpop.f32.mrb[0].mxu0
    %931 = vmatprep.mubr.bf16.mxu0 %v828
    %932 = vmatmul.mubr.bf16.gmra.mrb[0].mxu0 %v827
    %v933 = vpop.f32.mrb[0].mxu0
    %v934 = vadd.f32 0.0, %v933
    %v935 = vpop.f32.mrb[0].mxu0
    %v936 = vpop.f32.mrb[0].mxu0
    %v937 = vadd.f32 0.0, %v936
    %v938 = vpop.f32.mrb[0].mxu0
    %939 = vmatprep.mubr.bf16.mxu0 %v832
    %940 = vmatmul.mubr.bf16.gmra.mrb[0].mxu0 %v831
    %v941 = vpop.f32.mrb[0].mxu0
    %v942 = vadd.f32 0.0, %v941
    %v943 = vpop.f32.mrb[0].mxu0
    %v944 = vpop.f32.mrb[0].mxu0
    %v945 = vadd.f32 0.0, %v944
    %v946 = vpop.f32.mrb[0].mxu0
    %947 = vmatprep.mubr.bf16.mxu0 %v836
    %948 = vmatmul.mubr.bf16.gmra.mrb[0].mxu0 %v835
    %v949 = vpop.f32.mrb[0].mxu0
    %v950 = vadd.f32 0.0, %v949
    %v951 = vpop.f32.mrb[0].mxu0
    %v952 = vpop.f32.mrb[0].mxu0
    %v953 = vadd.f32 0.0, %v952
    %v954 = vpop.f32.mrb[0].mxu0
    %955 = vmatprep.mubr.bf16.mxu0 %v840
    %956 = vmatmul.mubr.bf16.gmra.mrb[0].mxu0 %v839
    %v957 = vpop.f32.mrb[0].mxu0
    %v958 = vadd.f32 0.0, %v957
    %v959 = vpop.f32.mrb[0].mxu0
    %v960 = vpop.f32.mrb[0].mxu0
    %v961 = vadd.f32 0.0, %v960
    %v962 = vpop.f32.mrb[0].mxu0
    %963 = vmatprep.mubr.bf16.mxu0 %v844
    %964 = vmatmul.mubr.bf16.gmra.mrb[0].mxu0 %v843
    %v965 = vpop.f32.mrb[0].mxu0
    %v966 = vadd.f32 0.0, %v965
    %v967 = vpop.f32.mrb[0].mxu0
    %v968 = vpop.f32.mrb[0].mxu0
    %v969 = vadd.f32 0.0, %v968
    %v970 = vpop.f32.mrb[0].mxu0
    %971 = vmatprep.mubr.bf16.mxu0 %v848
    %972 = vmatmul.mubr.bf16.gmra.mrb[0].mxu0 %v847
    %v973 = vpop.f32.mrb[0].mxu0
    %v974 = vadd.f32 0.0, %v973
    %v975 = vpop.f32.mrb[0].mxu0
    %v976 = vpop.f32.mrb[0].mxu0
    %v977 = vadd.f32 0.0, %v976
    %v978 = vpop.f32.mrb[0].mxu0
    %979 = vdwg.mxu0
    %980 = vmatprep.subr.bf16.mxu0 0
    %981 = vmatpush1.bf16.msra.mxu0 %v438
    %982 = vmatprep.subr.bf16.mxu0 0
    %983 = vmatpush1.bf16.msra.mxu0 %v439
    %984 = vmatprep.subr.bf16.mxu0 0
    %985 = vmatpush1.bf16.msra.mxu0 %v440
    %986 = vmatprep.subr.bf16.mxu0 0
    %987 = vmatpush1.bf16.msra.mxu0 %v441
    %988 = vmatprep.subr.bf16.mxu0 0
    %989 = vmatpush1.bf16.msra.mxu0 %v442
    %990 = vmatprep.subr.bf16.mxu0 0
    %991 = vmatpush1.bf16.msra.mxu0 %v443
    %992 = vmatprep.subr.bf16.mxu0 0
    %993 = vmatpush1.bf16.msra.mxu0 %v444
    %994 = vmatprep.subr.bf16.mxu0 0
    %995 = vmatpush1.bf16.msra.mxu0 %v445
    %996 = vmatprep.subr.bf16.mxu0 0
    %997 = vmatpush1.bf16.msra.mxu0 %v446
    %998 = vmatprep.subr.bf16.mxu0 0
    %999 = vmatpush1.bf16.msra.mxu0 %v447
    %1000 = vmatprep.subr.bf16.mxu0 0
    %1001 = vmatpush1.bf16.msra.mxu0 %v448
    %1002 = vmatprep.subr.bf16.mxu0 0
    %1003 = vmatpush1.bf16.msra.mxu0 %v449
    %1004 = vmatprep.subr.bf16.mxu0 0
    %1005 = vmatpush1.bf16.msra.mxu0 %v450
    %1006 = vmatprep.subr.bf16.mxu0 0
    %1007 = vmatpush1.bf16.msra.mxu0 %v451
    %1008 = vmatprep.subr.bf16.mxu0 0
    %1009 = vmatpush1.bf16.msra.mxu0 %v452
    %1010 = vmatprep.subr.bf16.mxu0 0
    %1011 = vmatpush1.bf16.msra.mxu0 %v453
    %1012 = vmatprep.mubr.bf16.mxu0 %v822
    %1013 = vmatmul.mubr.bf16.gmra.mrb[0].mxu0 %v821
    %v1014 = vpop.f32.mrb[0].mxu0
    %v1015 = vadd.f32 %v918, %v1014
    %v1016 = vpop.f32.mrb[0].mxu0
    %v1017 = vpop.f32.mrb[0].mxu0
    %v1018 = vadd.f32 %v921, %v1017
    %v1019 = vpop.f32.mrb[0].mxu0
    %1020 = vmatprep.mubr.bf16.mxu0 %v826
    %1021 = vmatmul.mubr.bf16.gmra.mrb[0].mxu0 %v825
    %v1022 = vpop.f32.mrb[0].mxu0
    %v1023 = vadd.f32 %v926, %v1022
    %v1024 = vpop.f32.mrb[0].mxu0
    %v1025 = vpop.f32.mrb[0].mxu0
    %v1026 = vadd.f32 %v929, %v1025
    %v1027 = vpop.f32.mrb[0].mxu0
    %1028 = vmatprep.mubr.bf16.mxu0 %v830
    %1029 = vmatmul.mubr.bf16.gmra.mrb[0].mxu0 %v829
    %v1030 = vpop.f32.mrb[0].mxu0
    %v1031 = vadd.f32 %v934, %v1030
    %v1032 = vpop.f32.mrb[0].mxu0
    %v1033 = vpop.f32.mrb[0].mxu0
    %v1034 = vadd.f32 %v937, %v1033
    %v1035 = vpop.f32.mrb[0].mxu0
    %1036 = vmatprep.mubr.bf16.mxu0 %v834
    %1037 = vmatmul.mubr.bf16.gmra.mrb[0].mxu0 %v833
    %v1038 = vpop.f32.mrb[0].mxu0
    %v1039 = vadd.f32 %v942, %v1038
    %v1040 = vpop.f32.mrb[0].mxu0
    %v1041 = vpop.f32.mrb[0].mxu0
    %v1042 = vadd.f32 %v945, %v1041
    %v1043 = vpop.f32.mrb[0].mxu0
    %1044 = vmatprep.mubr.bf16.mxu0 %v838
    %1045 = vmatmul.mubr.bf16.gmra.mrb[0].mxu0 %v837
    %v1046 = vpop.f32.mrb[0].mxu0
    %v1047 = vadd.f32 %v950, %v1046
    %v1048 = vpop.f32.mrb[0].mxu0
    %v1049 = vpop.f32.mrb[0].mxu0
    %v1050 = vadd.f32 %v953, %v1049
    %v1051 = vpop.f32.mrb[0].mxu0
    %1052 = vmatprep.mubr.bf16.mxu0 %v842
    %1053 = vmatmul.mubr.bf16.gmra.mrb[0].mxu0 %v841
    %v1054 = vpop.f32.mrb[0].mxu0
    %v1055 = vadd.f32 %v958, %v1054
    %v1056 = vpop.f32.mrb[0].mxu0
    %v1057 = vpop.f32.mrb[0].mxu0
    %v1058 = vadd.f32 %v961, %v1057
    %v1059 = vpop.f32.mrb[0].mxu0
    %1060 = vmatprep.mubr.bf16.mxu0 %v846
    %1061 = vmatmul.mubr.bf16.gmra.mrb[0].mxu0 %v845
    %v1062 = vpop.f32.mrb[0].mxu0
    %v1063 = vadd.f32 %v966, %v1062
    %v1064 = vpop.f32.mrb[0].mxu0
    %v1065 = vpop.f32.mrb[0].mxu0
    %v1066 = vadd.f32 %v969, %v1065
    %v1067 = vpop.f32.mrb[0].mxu0
    %1068 = vmatprep.mubr.bf16.mxu0 %v850
    %1069 = vmatmul.mubr.bf16.gmra.mrb[0].mxu0 %v849
    %v1070 = vpop.f32.mrb[0].mxu0
    %v1071 = vadd.f32 %v974, %v1070
    %v1072 = vpop.f32.mrb[0].mxu0
    %v1073 = vpop.f32.mrb[0].mxu0
    %v1074 = vadd.f32 %v977, %v1073
    %v1075 = vpop.f32.mrb[0].mxu0
    %1076 = vdwg.mxu0
    %v1077 = vpack.c.bf16 %v1018, %v1015
    %v1078 = vpack.c.bf16 %v1026, %v1023
    %v1079 = vpack.c.bf16 %v1034, %v1031
    %v1080 = vpack.c.bf16 %v1042, %v1039
    %v1081 = vpack.c.bf16 %v1050, %v1047
    %v1082 = vpack.c.bf16 %v1058, %v1055
    %v1083 = vpack.c.bf16 %v1066, %v1063
    %v1084 = vpack.c.bf16 %v1074, %v1071
    %vm1085 = vcmask 64512
    %v1087 = vsel %vm1085, %v1077, 0
    %v1090 = vsel %vm1085, %v1078, 0
    %v1093 = vsel %vm1085, %v1079, 0
    %v1096 = vsel %vm1085, %v1080, 0
    %v1099 = vsel %vm1085, %v1081, 0
    %v1102 = vsel %vm1085, %v1082, 0
    %v1105 = vsel %vm1085, %v1083, 0
    %v1108 = vsel %vm1085, %v1084, 0
    %vm1110 = vcmask 1043456
    %v1112 = vsel %vm1110, %v722, 0
    %1114 = vmatprep.subr.bf16.mxu0 0
    %1115 = vmatpush1.bf16.msra.mxu0 %v1112
    %1116 = vmatprep.subr.bf16.mxu0 0
    %1117 = vmatpush1.bf16.msra.mxu0 0
    %1118 = vmatprep.subr.bf16.mxu0 0
    %1119 = vmatpush1.bf16.msra.mxu0 0
    %1120 = vmatprep.subr.bf16.mxu0 0
    %1121 = vmatpush1.bf16.msra.mxu0 0
    %1122 = vmatprep.subr.bf16.mxu0 0
    %1123 = vmatpush1.bf16.msra.mxu0 0
    %1124 = vmatprep.subr.bf16.mxu0 0
    %1125 = vmatpush1.bf16.msra.mxu0 0
    %1126 = vmatprep.subr.bf16.mxu0 0
    %1127 = vmatpush1.bf16.msra.mxu0 0
    %1128 = vmatprep.subr.bf16.mxu0 0
    %1129 = vmatpush1.bf16.msra.mxu0 0
    %1130 = vmatprep.subr.bf16.mxu0 0
    %1131 = vmatpush1.bf16.msra.mxu0 0
    %1132 = vmatprep.subr.bf16.mxu0 0
    %1133 = vmatpush1.bf16.msra.mxu0 0
    %1134 = vmatprep.subr.bf16.mxu0 0
    %1135 = vmatpush1.bf16.msra.mxu0 0
    %1136 = vmatprep.subr.bf16.mxu0 0
    %1137 = vmatpush1.bf16.msra.mxu0 0
    %1138 = vmatprep.subr.bf16.mxu0 0
    %1139 = vmatpush1.bf16.msra.mxu0 0
    %1140 = vmatprep.subr.bf16.mxu0 0
    %1141 = vmatpush1.bf16.msra.mxu0 0
    %1142 = vmatprep.subr.bf16.mxu0 0
    %1143 = vmatpush1.bf16.msra.mxu0 0
    %1144 = vmatprep.subr.bf16.mxu0 0
    %1145 = vmatpush1.bf16.msra.mxu0 0
    %1146 = vmatprep.mubr.bf16.mxu0 0
    %1147 = vmatmul.mubr.bf16.gmra.mrb[0].mxu0 %v1087
    %v1148 = vpop.f32.mrb[0].mxu0
    %v1149 = vadd.f32 0.0, %v1148
    %v1150 = vpop.f32.mrb[0].mxu0
    %v1151 = vpop.f32.mrb[0].mxu0
    %v1152 = vadd.f32 0.0, %v1151
    %v1153 = vpop.f32.mrb[0].mxu0
    %1154 = vmatprep.mubr.bf16.mxu0 0
    %1155 = vmatmul.mubr.bf16.gmra.mrb[0].mxu0 %v1090
    %v1156 = vpop.f32.mrb[0].mxu0
    %v1157 = vadd.f32 0.0, %v1156
    %v1158 = vpop.f32.mrb[0].mxu0
    %v1159 = vpop.f32.mrb[0].mxu0
    %v1160 = vadd.f32 0.0, %v1159
    %v1161 = vpop.f32.mrb[0].mxu0
    %1162 = vmatprep.mubr.bf16.mxu0 0
    %1163 = vmatmul.mubr.bf16.gmra.mrb[0].mxu0 %v1093
    %v1164 = vpop.f32.mrb[0].mxu0
    %v1165 = vadd.f32 0.0, %v1164
    %v1166 = vpop.f32.mrb[0].mxu0
    %v1167 = vpop.f32.mrb[0].mxu0
    %v1168 = vadd.f32 0.0, %v1167
    %v1169 = vpop.f32.mrb[0].mxu0
    %1170 = vmatprep.mubr.bf16.mxu0 0
    %1171 = vmatmul.mubr.bf16.gmra.mrb[0].mxu0 %v1096
    %v1172 = vpop.f32.mrb[0].mxu0
    %v1173 = vadd.f32 0.0, %v1172
    %v1174 = vpop.f32.mrb[0].mxu0
    %v1175 = vpop.f32.mrb[0].mxu0
    %v1176 = vadd.f32 0.0, %v1175
    %v1177 = vpop.f32.mrb[0].mxu0
    %1178 = vmatprep.mubr.bf16.mxu0 0
    %1179 = vmatmul.mubr.bf16.gmra.mrb[0].mxu0 %v1099
    %v1180 = vpop.f32.mrb[0].mxu0
    %v1181 = vadd.f32 0.0, %v1180
    %v1182 = vpop.f32.mrb[0].mxu0
    %v1183 = vpop.f32.mrb[0].mxu0
    %v1184 = vadd.f32 0.0, %v1183
    %v1185 = vpop.f32.mrb[0].mxu0
    %1186 = vmatprep.mubr.bf16.mxu0 0
    %1187 = vmatmul.mubr.bf16.gmra.mrb[0].mxu0 %v1102
    %v1188 = vpop.f32.mrb[0].mxu0
    %v1189 = vadd.f32 0.0, %v1188
    %v1190 = vpop.f32.mrb[0].mxu0
    %v1191 = vpop.f32.mrb[0].mxu0
    %v1192 = vadd.f32 0.0, %v1191
    %v1193 = vpop.f32.mrb[0].mxu0
    %1194 = vmatprep.mubr.bf16.mxu0 0
    %1195 = vmatmul.mubr.bf16.gmra.mrb[0].mxu0 %v1105
    %v1196 = vpop.f32.mrb[0].mxu0
    %v1197 = vadd.f32 0.0, %v1196
    %v1198 = vpop.f32.mrb[0].mxu0
    %v1199 = vpop.f32.mrb[0].mxu0
    %v1200 = vadd.f32 0.0, %v1199
    %v1201 = vpop.f32.mrb[0].mxu0
    %1202 = vmatprep.mubr.bf16.mxu0 0
    %1203 = vmatmul.mubr.bf16.gmra.mrb[0].mxu0 %v1108
    %v1204 = vpop.f32.mrb[0].mxu0
    %v1205 = vadd.f32 0.0, %v1204
    %v1206 = vpop.f32.mrb[0].mxu0
    %v1207 = vpop.f32.mrb[0].mxu0
    %v1208 = vadd.f32 0.0, %v1207
    %v1209 = vpop.f32.mrb[0].mxu0
    %1210 = vdwg.mxu0
    %v1212 = vsel %vm1085, %v680, 0
    %v1215 = vsel %vm1085, %v681, 0
    %v1218 = vsel %vm1085, %v682, 0
    %v1221 = vsel %vm1085, %v683, 0
    %v1224 = vsel %vm1085, %v684, 0
    %v1227 = vsel %vm1085, %v685, 0
    %v1230 = vsel %vm1085, %v686, 0
    %v1233 = vsel %vm1085, %v687, 0
    %v1236 = vsel %vm1110, %v133, 0
    %1238 = vmatprep.subr.bf16.mxu0 0
    %1239 = vmatpush1.bf16.msra.mxu0 %v1236
    %1240 = vmatprep.subr.bf16.mxu0 0
    %1241 = vmatpush1.bf16.msra.mxu0 0
    %1242 = vmatprep.subr.bf16.mxu0 0
    %1243 = vmatpush1.bf16.msra.mxu0 0
    %1244 = vmatprep.subr.bf16.mxu0 0
    %1245 = vmatpush1.bf16.msra.mxu0 0
    %1246 = vmatprep.subr.bf16.mxu0 0
    %1247 = vmatpush1.bf16.msra.mxu0 0
    %1248 = vmatprep.subr.bf16.mxu0 0
    %1249 = vmatpush1.bf16.msra.mxu0 0
    %1250 = vmatprep.subr.bf16.mxu0 0
    %1251 = vmatpush1.bf16.msra.mxu0 0
    %1252 = vmatprep.subr.bf16.mxu0 0
    %1253 = vmatpush1.bf16.msra.mxu0 0
    %1254 = vmatprep.subr.bf16.mxu0 0
    %1255 = vmatpush1.bf16.msra.mxu0 0
    %1256 = vmatprep.subr.bf16.mxu0 0
    %1257 = vmatpush1.bf16.msra.mxu0 0
    %1258 = vmatprep.subr.bf16.mxu0 0
    %1259 = vmatpush1.bf16.msra.mxu0 0
    %1260 = vmatprep.subr.bf16.mxu0 0
    %1261 = vmatpush1.bf16.msra.mxu0 0
    %1262 = vmatprep.subr.bf16.mxu0 0
    %1263 = vmatpush1.bf16.msra.mxu0 0
    %1264 = vmatprep.subr.bf16.mxu0 0
    %1265 = vmatpush1.bf16.msra.mxu0 0
    %1266 = vmatprep.subr.bf16.mxu0 0
    %1267 = vmatpush1.bf16.msra.mxu0 0
    %1268 = vmatprep.subr.bf16.mxu0 0
    %1269 = vmatpush1.bf16.msra.mxu0 0
    %1270 = vmatprep.mubr.bf16.mxu0 0
    %1271 = vmatmul.mubr.bf16.gmra.mrb[0].mxu0 %v1212
    %v1272 = vpop.f32.mrb[0].mxu0
    %v1273 = vadd.f32 %v1149, %v1272
    %v1274 = vpop.f32.mrb[0].mxu0
    %v1275 = vpop.f32.mrb[0].mxu0
    %v1276 = vadd.f32 %v1152, %v1275
    %v1277 = vpop.f32.mrb[0].mxu0
    %1278 = vmatprep.mubr.bf16.mxu0 0
    %1279 = vmatmul.mubr.bf16.gmra.mrb[0].mxu0 %v1215
    %v1280 = vpop.f32.mrb[0].mxu0
    %v1281 = vadd.f32 %v1157, %v1280
    %v1282 = vpop.f32.mrb[0].mxu0
    %v1283 = vpop.f32.mrb[0].mxu0
    %v1284 = vadd.f32 %v1160, %v1283
    %v1285 = vpop.f32.mrb[0].mxu0
    %1286 = vmatprep.mubr.bf16.mxu0 0
    %1287 = vmatmul.mubr.bf16.gmra.mrb[0].mxu0 %v1218
    %v1288 = vpop.f32.mrb[0].mxu0
    %v1289 = vadd.f32 %v1165, %v1288
    %v1290 = vpop.f32.mrb[0].mxu0
    %v1291 = vpop.f32.mrb[0].mxu0
    %v1292 = vadd.f32 %v1168, %v1291
    %v1293 = vpop.f32.mrb[0].mxu0
    %1294 = vmatprep.mubr.bf16.mxu0 0
    %1295 = vmatmul.mubr.bf16.gmra.mrb[0].mxu0 %v1221
    %v1296 = vpop.f32.mrb[0].mxu0
    %v1297 = vadd.f32 %v1173, %v1296
    %v1298 = vpop.f32.mrb[0].mxu0
    %v1299 = vpop.f32.mrb[0].mxu0
    %v1300 = vadd.f32 %v1176, %v1299
    %v1301 = vpop.f32.mrb[0].mxu0
    %1302 = vmatprep.mubr.bf16.mxu0 0
    %1303 = vmatmul.mubr.bf16.gmra.mrb[0].mxu0 %v1224
    %v1304 = vpop.f32.mrb[0].mxu0
    %v1305 = vadd.f32 %v1181, %v1304
    %v1306 = vpop.f32.mrb[0].mxu0
    %v1307 = vpop.f32.mrb[0].mxu0
    %v1308 = vadd.f32 %v1184, %v1307
    %v1309 = vpop.f32.mrb[0].mxu0
    %1310 = vmatprep.mubr.bf16.mxu0 0
    %1311 = vmatmul.mubr.bf16.gmra.mrb[0].mxu0 %v1227
    %v1312 = vpop.f32.mrb[0].mxu0
    %v1313 = vadd.f32 %v1189, %v1312
    %v1314 = vpop.f32.mrb[0].mxu0
    %v1315 = vpop.f32.mrb[0].mxu0
    %v1316 = vadd.f32 %v1192, %v1315
    %v1317 = vpop.f32.mrb[0].mxu0
    %1318 = vmatprep.mubr.bf16.mxu0 0
    %1319 = vmatmul.mubr.bf16.gmra.mrb[0].mxu0 %v1230
    %v1320 = vpop.f32.mrb[0].mxu0
    %v1321 = vadd.f32 %v1197, %v1320
    %v1322 = vpop.f32.mrb[0].mxu0
    %v1323 = vpop.f32.mrb[0].mxu0
    %v1324 = vadd.f32 %v1200, %v1323
    %v1325 = vpop.f32.mrb[0].mxu0
    %1326 = vmatprep.mubr.bf16.mxu0 0
    %1327 = vmatmul.mubr.bf16.gmra.mrb[0].mxu0 %v1233
    %v1328 = vpop.f32.mrb[0].mxu0
    %v1329 = vadd.f32 %v1205, %v1328
    %v1330 = vpop.f32.mrb[0].mxu0
    %v1331 = vpop.f32.mrb[0].mxu0
    %v1332 = vadd.f32 %v1208, %v1331
    %v1333 = vpop.f32.mrb[0].mxu0
    %1334 = vdwg.mxu0
    %s1335 = scalar_lea.vmem %s1, 512
    %v1336 = vld [vmem:[%s1335] sm:$0xff]
    %v1337 = vld [vmem:[%s1335 + $0x8] sm:$0xff]
    %v1338 = vld [vmem:[%s1335 + $0x10] sm:$0xff]
    %v1339 = vld [vmem:[%s1335 + $0x18] sm:$0xff]
    %v1340 = vld [vmem:[%s1335 + $0x20] sm:$0xff]
    %v1341 = vld [vmem:[%s1335 + $0x28] sm:$0xff]
    %v1342 = vld [vmem:[%s1335 + $0x30] sm:$0xff]
    %v1343 = vld [vmem:[%s1335 + $0x38] sm:$0xff]
    %v1344 = vld [vmem:[%s1335 + $0x40] sm:$0xff]
    %v1345 = vld [vmem:[%s1335 + $0x48] sm:$0xff]
    %v1346 = vld [vmem:[%s1335 + $0x50] sm:$0xff]
    %v1347 = vld [vmem:[%s1335 + $0x58] sm:$0xff]
    %v1348 = vld [vmem:[%s1335 + $0x60] sm:$0xff]
    %v1349 = vld [vmem:[%s1335 + $0x68] sm:$0xff]
    %v1350 = vld [vmem:[%s1335 + $0x70] sm:$0xff]
    %v1351 = vld [vmem:[%s1335 + $0x78] sm:$0xff]
    %v1352 = vld [vmem:[%s1335 + $0x80] sm:$0xff]
    %v1353 = vld [vmem:[%s1335 + $0x88] sm:$0xff]
    %v1354 = vld [vmem:[%s1335 + $0x90] sm:$0xff]
    %v1355 = vld [vmem:[%s1335 + $0x98] sm:$0xff]
    %v1356 = vld [vmem:[%s1335 + $0xa0] sm:$0xff]
    %v1357 = vld [vmem:[%s1335 + $0xa8] sm:$0xff]
    %v1358 = vld [vmem:[%s1335 + $0xb0] sm:$0xff]
    %v1359 = vld [vmem:[%s1335 + $0xb8] sm:$0xff]
    %v1360 = vld [vmem:[%s1335 + $0xc0] sm:$0xff]
    %v1361 = vld [vmem:[%s1335 + $0xc8] sm:$0xff]
    %v1362 = vld [vmem:[%s1335 + $0xd0] sm:$0xff]
    %v1363 = vld [vmem:[%s1335 + $0xd8] sm:$0xff]
    %v1364 = vld [vmem:[%s1335 + $0xe0] sm:$0xff]
    %v1365 = vld [vmem:[%s1335 + $0xe8] sm:$0xff]
    %v1366 = vld [vmem:[%s1335 + $0xf0] sm:$0xff]
    %v1367 = vld [vmem:[%s1335 + $0xf8] sm:$0xff]
    %s1368 = scalar_lea.vmem %s5, 8
    %v1369 = vld [vmem:[%s1368] sm:$0xf]
    %v1402 = vunpack.c.l.b16 %v1336
    %v1403 = vunpack.c.h.b16 %v1336
    %v1404 = vunpack.c.l.b16 %v1337
    %v1405 = vunpack.c.h.b16 %v1337
    %v1406 = vunpack.c.l.b16 %v1338
    %v1407 = vunpack.c.h.b16 %v1338
    %v1408 = vunpack.c.l.b16 %v1339
    %v1409 = vunpack.c.h.b16 %v1339
    %v1410 = vunpack.c.l.b16 %v1340
    %v1411 = vunpack.c.h.b16 %v1340
    %v1412 = vunpack.c.l.b16 %v1341
    %v1413 = vunpack.c.h.b16 %v1341
    %v1414 = vunpack.c.l.b16 %v1342
    %v1415 = vunpack.c.h.b16 %v1342
    %v1416 = vunpack.c.l.b16 %v1343
    %v1417 = vunpack.c.h.b16 %v1343
    %v1418 = vunpack.c.l.b16 %v1344
    %v1419 = vunpack.c.h.b16 %v1344
    %v1420 = vunpack.c.l.b16 %v1345
    %v1421 = vunpack.c.h.b16 %v1345
    %v1422 = vunpack.c.l.b16 %v1346
    %v1423 = vunpack.c.h.b16 %v1346
    %v1424 = vunpack.c.l.b16 %v1347
    %v1425 = vunpack.c.h.b16 %v1347
    %v1426 = vunpack.c.l.b16 %v1348
    %v1427 = vunpack.c.h.b16 %v1348
    %v1428 = vunpack.c.l.b16 %v1349
    %v1429 = vunpack.c.h.b16 %v1349
    %v1430 = vunpack.c.l.b16 %v1350
    %v1431 = vunpack.c.h.b16 %v1350
    %v1432 = vunpack.c.l.b16 %v1351
    %v1433 = vunpack.c.h.b16 %v1351
    %v1434 = vunpack.c.l.b16 %v1352
    %v1435 = vunpack.c.h.b16 %v1352
    %v1436 = vunpack.c.l.b16 %v1353
    %v1437 = vunpack.c.h.b16 %v1353
    %v1438 = vunpack.c.l.b16 %v1354
    %v1439 = vunpack.c.h.b16 %v1354
    %v1440 = vunpack.c.l.b16 %v1355
    %v1441 = vunpack.c.h.b16 %v1355
    %v1442 = vunpack.c.l.b16 %v1356
    %v1443 = vunpack.c.h.b16 %v1356
    %v1444 = vunpack.c.l.b16 %v1357
    %v1445 = vunpack.c.h.b16 %v1357
    %v1446 = vunpack.c.l.b16 %v1358
    %v1447 = vunpack.c.h.b16 %v1358
    %v1448 = vunpack.c.l.b16 %v1359
    %v1449 = vunpack.c.h.b16 %v1359
    %v1450 = vunpack.c.l.b16 %v1360
    %v1451 = vunpack.c.h.b16 %v1360
    %v1452 = vunpack.c.l.b16 %v1361
    %v1453 = vunpack.c.h.b16 %v1361
    %v1454 = vunpack.c.l.b16 %v1362
    %v1455 = vunpack.c.h.b16 %v1362
    %v1456 = vunpack.c.l.b16 %v1363
    %v1457 = vunpack.c.h.b16 %v1363
    %v1458 = vunpack.c.l.b16 %v1364
    %v1459 = vunpack.c.h.b16 %v1364
    %v1460 = vunpack.c.l.b16 %v1365
    %v1461 = vunpack.c.h.b16 %v1365
    %v1462 = vunpack.c.l.b16 %v1366
    %v1463 = vunpack.c.h.b16 %v1366
    %v1464 = vunpack.c.l.b16 %v1367
    %v1465 = vunpack.c.h.b16 %v1367
    %v1466 = vpack.c.b16 %v1406, %v1402
    %v1467 = vpack.c.b16 %v1407, %v1403
    %v1468 = vpack.c.b16 %v1408, %v1404
    %v1469 = vpack.c.b16 %v1409, %v1405
    %v1470 = vpack.c.b16 %v1414, %v1410
    %v1471 = vpack.c.b16 %v1415, %v1411
    %v1472 = vpack.c.b16 %v1416, %v1412
    %v1473 = vpack.c.b16 %v1417, %v1413
    %v1474 = vpack.c.b16 %v1422, %v1418
    %v1475 = vpack.c.b16 %v1423, %v1419
    %v1476 = vpack.c.b16 %v1424, %v1420
    %v1477 = vpack.c.b16 %v1425, %v1421
    %v1478 = vpack.c.b16 %v1430, %v1426
    %v1479 = vpack.c.b16 %v1431, %v1427
    %v1480 = vpack.c.b16 %v1432, %v1428
    %v1481 = vpack.c.b16 %v1433, %v1429
    %v1482 = vpack.c.b16 %v1438, %v1434
    %v1483 = vpack.c.b16 %v1439, %v1435
    %v1484 = vpack.c.b16 %v1440, %v1436
    %v1485 = vpack.c.b16 %v1441, %v1437
    %v1486 = vpack.c.b16 %v1446, %v1442
    %v1487 = vpack.c.b16 %v1447, %v1443
    %v1488 = vpack.c.b16 %v1448, %v1444
    %v1489 = vpack.c.b16 %v1449, %v1445
    %v1490 = vpack.c.b16 %v1454, %v1450
    %v1491 = vpack.c.b16 %v1455, %v1451
    %v1492 = vpack.c.b16 %v1456, %v1452
    %v1493 = vpack.c.b16 %v1457, %v1453
    %v1494 = vpack.c.b16 %v1462, %v1458
    %v1495 = vpack.c.b16 %v1463, %v1459
    %v1496 = vpack.c.b16 %v1464, %v1460
    %v1497 = vpack.c.b16 %v1465, %v1461
    %1530 = vmatprep.subr.bf16.mxu0 0
    %1531 = vmatpush1.bf16.msra.mxu0 %v422
    %1532 = vmatprep.subr.bf16.mxu0 0
    %1533 = vmatpush1.bf16.msra.mxu0 %v423
    %1534 = vmatprep.subr.bf16.mxu0 0
    %1535 = vmatpush1.bf16.msra.mxu0 %v424
    %1536 = vmatprep.subr.bf16.mxu0 0
    %1537 = vmatpush1.bf16.msra.mxu0 %v425
    %1538 = vmatprep.subr.bf16.mxu0 0
    %1539 = vmatpush1.bf16.msra.mxu0 %v426
    %1540 = vmatprep.subr.bf16.mxu0 0
    %1541 = vmatpush1.bf16.msra.mxu0 %v427
    %1542 = vmatprep.subr.bf16.mxu0 0
    %1543 = vmatpush1.bf16.msra.mxu0 %v428
    %1544 = vmatprep.subr.bf16.mxu0 0
    %1545 = vmatpush1.bf16.msra.mxu0 %v429
    %1546 = vmatprep.subr.bf16.mxu0 0
    %1547 = vmatpush1.bf16.msra.mxu0 %v430
    %1548 = vmatprep.subr.bf16.mxu0 0
    %1549 = vmatpush1.bf16.msra.mxu0 %v431
    %1550 = vmatprep.subr.bf16.mxu0 0
    %1551 = vmatpush1.bf16.msra.mxu0 %v432
    %1552 = vmatprep.subr.bf16.mxu0 0
    %1553 = vmatpush1.bf16.msra.mxu0 %v433
    %1554 = vmatprep.subr.bf16.mxu0 0
    %1555 = vmatpush1.bf16.msra.mxu0 %v434
    %1556 = vmatprep.subr.bf16.mxu0 0
    %1557 = vmatpush1.bf16.msra.mxu0 %v435
    %1558 = vmatprep.subr.bf16.mxu0 0
    %1559 = vmatpush1.bf16.msra.mxu0 %v436
    %1560 = vmatprep.subr.bf16.mxu0 0
    %1561 = vmatpush1.bf16.msra.mxu0 %v437
    %1562 = vmatprep.mubr.bf16.mxu0 %v1467
    %1563 = vmatmul.mubr.bf16.gmra.mrb[0].mxu0 %v1466
    %v1564 = vpop.f32.mrb[0].mxu0
    %v1565 = vadd.f32 0.0, %v1564
    %v1566 = vpop.f32.mrb[0].mxu0
    %v1567 = vpop.f32.mrb[0].mxu0
    %v1568 = vadd.f32 0.0, %v1567
    %v1569 = vpop.f32.mrb[0].mxu0
    %1570 = vmatprep.mubr.bf16.mxu0 %v1471
    %1571 = vmatmul.mubr.bf16.gmra.mrb[0].mxu0 %v1470
    %v1572 = vpop.f32.mrb[0].mxu0
    %v1573 = vadd.f32 0.0, %v1572
    %v1574 = vpop.f32.mrb[0].mxu0
    %v1575 = vpop.f32.mrb[0].mxu0
    %v1576 = vadd.f32 0.0, %v1575
    %v1577 = vpop.f32.mrb[0].mxu0
    %1578 = vmatprep.mubr.bf16.mxu0 %v1475
    %1579 = vmatmul.mubr.bf16.gmra.mrb[0].mxu0 %v1474
    %v1580 = vpop.f32.mrb[0].mxu0
    %v1581 = vadd.f32 0.0, %v1580
    %v1582 = vpop.f32.mrb[0].mxu0
    %v1583 = vpop.f32.mrb[0].mxu0
    %v1584 = vadd.f32 0.0, %v1583
    %v1585 = vpop.f32.mrb[0].mxu0
    %1586 = vmatprep.mubr.bf16.mxu0 %v1479
    %1587 = vmatmul.mubr.bf16.gmra.mrb[0].mxu0 %v1478
    %v1588 = vpop.f32.mrb[0].mxu0
    %v1589 = vadd.f32 0.0, %v1588
    %v1590 = vpop.f32.mrb[0].mxu0
    %v1591 = vpop.f32.mrb[0].mxu0
    %v1592 = vadd.f32 0.0, %v1591
    %v1593 = vpop.f32.mrb[0].mxu0
    %1594 = vmatprep.mubr.bf16.mxu0 %v1483
    %1595 = vmatmul.mubr.bf16.gmra.mrb[0].mxu0 %v1482
    %v1596 = vpop.f32.mrb[0].mxu0
    %v1597 = vadd.f32 0.0, %v1596
    %v1598 = vpop.f32.mrb[0].mxu0
    %v1599 = vpop.f32.mrb[0].mxu0
    %v1600 = vadd.f32 0.0, %v1599
    %v1601 = vpop.f32.mrb[0].mxu0
    %1602 = vmatprep.mubr.bf16.mxu0 %v1487
    %1603 = vmatmul.mubr.bf16.gmra.mrb[0].mxu0 %v1486
    %v1604 = vpop.f32.mrb[0].mxu0
    %v1605 = vadd.f32 0.0, %v1604
    %v1606 = vpop.f32.mrb[0].mxu0
    %v1607 = vpop.f32.mrb[0].mxu0
    %v1608 = vadd.f32 0.0, %v1607
    %v1609 = vpop.f32.mrb[0].mxu0
    %1610 = vmatprep.mubr.bf16.mxu0 %v1491
    %1611 = vmatmul.mubr.bf16.gmra.mrb[0].mxu0 %v1490
    %v1612 = vpop.f32.mrb[0].mxu0
    %v1613 = vadd.f32 0.0, %v1612
    %v1614 = vpop.f32.mrb[0].mxu0
    %v1615 = vpop.f32.mrb[0].mxu0
    %v1616 = vadd.f32 0.0, %v1615
    %v1617 = vpop.f32.mrb[0].mxu0
    %1618 = vmatprep.mubr.bf16.mxu0 %v1495
    %1619 = vmatmul.mubr.bf16.gmra.mrb[0].mxu0 %v1494
    %v1620 = vpop.f32.mrb[0].mxu0
    %v1621 = vadd.f32 0.0, %v1620
    %v1622 = vpop.f32.mrb[0].mxu0
    %v1623 = vpop.f32.mrb[0].mxu0
    %v1624 = vadd.f32 0.0, %v1623
    %v1625 = vpop.f32.mrb[0].mxu0
    %1626 = vdwg.mxu0
    %1627 = vmatprep.subr.bf16.mxu0 0
    %1628 = vmatpush1.bf16.msra.mxu0 %v438
    %1629 = vmatprep.subr.bf16.mxu0 0
    %1630 = vmatpush1.bf16.msra.mxu0 %v439
    %1631 = vmatprep.subr.bf16.mxu0 0
    %1632 = vmatpush1.bf16.msra.mxu0 %v440
    %1633 = vmatprep.subr.bf16.mxu0 0
    %1634 = vmatpush1.bf16.msra.mxu0 %v441
    %1635 = vmatprep.subr.bf16.mxu0 0
    %1636 = vmatpush1.bf16.msra.mxu0 %v442
    %1637 = vmatprep.subr.bf16.mxu0 0
    %1638 = vmatpush1.bf16.msra.mxu0 %v443
    %1639 = vmatprep.subr.bf16.mxu0 0
    %1640 = vmatpush1.bf16.msra.mxu0 %v444
    %1641 = vmatprep.subr.bf16.mxu0 0
    %1642 = vmatpush1.bf16.msra.mxu0 %v445
    %1643 = vmatprep.subr.bf16.mxu0 0
    %1644 = vmatpush1.bf16.msra.mxu0 %v446
    %1645 = vmatprep.subr.bf16.mxu0 0
    %1646 = vmatpush1.bf16.msra.mxu0 %v447
    %1647 = vmatprep.subr.bf16.mxu0 0
    %1648 = vmatpush1.bf16.msra.mxu0 %v448
    %1649 = vmatprep.subr.bf16.mxu0 0
    %1650 = vmatpush1.bf16.msra.mxu0 %v449
    %1651 = vmatprep.subr.bf16.mxu0 0
    %1652 = vmatpush1.bf16.msra.mxu0 %v450
    %1653 = vmatprep.subr.bf16.mxu0 0
    %1654 = vmatpush1.bf16.msra.mxu0 %v451
    %1655 = vmatprep.subr.bf16.mxu0 0
    %1656 = vmatpush1.bf16.msra.mxu0 %v452
    %1657 = vmatprep.subr.bf16.mxu0 0
    %1658 = vmatpush1.bf16.msra.mxu0 %v453
    %1659 = vmatprep.mubr.bf16.mxu0 %v1469
    %1660 = vmatmul.mubr.bf16.gmra.mrb[0].mxu0 %v1468
    %v1661 = vpop.f32.mrb[0].mxu0
    %v1662 = vadd.f32 %v1565, %v1661
    %v1663 = vpop.f32.mrb[0].mxu0
    %v1664 = vpop.f32.mrb[0].mxu0
    %v1665 = vadd.f32 %v1568, %v1664
    %v1666 = vpop.f32.mrb[0].mxu0
    %1667 = vmatprep.mubr.bf16.mxu0 %v1473
    %1668 = vmatmul.mubr.bf16.gmra.mrb[0].mxu0 %v1472
    %v1669 = vpop.f32.mrb[0].mxu0
    %v1670 = vadd.f32 %v1573, %v1669
    %v1671 = vpop.f32.mrb[0].mxu0
    %v1672 = vpop.f32.mrb[0].mxu0
    %v1673 = vadd.f32 %v1576, %v1672
    %v1674 = vpop.f32.mrb[0].mxu0
    %1675 = vmatprep.mubr.bf16.mxu0 %v1477
    %1676 = vmatmul.mubr.bf16.gmra.mrb[0].mxu0 %v1476
    %v1677 = vpop.f32.mrb[0].mxu0
    %v1678 = vadd.f32 %v1581, %v1677
    %v1679 = vpop.f32.mrb[0].mxu0
    %v1680 = vpop.f32.mrb[0].mxu0
    %v1681 = vadd.f32 %v1584, %v1680
    %v1682 = vpop.f32.mrb[0].mxu0
    %1683 = vmatprep.mubr.bf16.mxu0 %v1481
    %1684 = vmatmul.mubr.bf16.gmra.mrb[0].mxu0 %v1480
    %v1685 = vpop.f32.mrb[0].mxu0
    %v1686 = vadd.f32 %v1589, %v1685
    %v1687 = vpop.f32.mrb[0].mxu0
    %v1688 = vpop.f32.mrb[0].mxu0
    %v1689 = vadd.f32 %v1592, %v1688
    %v1690 = vpop.f32.mrb[0].mxu0
    %1691 = vmatprep.mubr.bf16.mxu0 %v1485
    %1692 = vmatmul.mubr.bf16.gmra.mrb[0].mxu0 %v1484
    %v1693 = vpop.f32.mrb[0].mxu0
    %v1694 = vadd.f32 %v1597, %v1693
    %v1695 = vpop.f32.mrb[0].mxu0
    %v1696 = vpop.f32.mrb[0].mxu0
    %v1697 = vadd.f32 %v1600, %v1696
    %v1698 = vpop.f32.mrb[0].mxu0
    %1699 = vmatprep.mubr.bf16.mxu0 %v1489
    %1700 = vmatmul.mubr.bf16.gmra.mrb[0].mxu0 %v1488
    %v1701 = vpop.f32.mrb[0].mxu0
    %v1702 = vadd.f32 %v1605, %v1701
    %v1703 = vpop.f32.mrb[0].mxu0
    %v1704 = vpop.f32.mrb[0].mxu0
    %v1705 = vadd.f32 %v1608, %v1704
    %v1706 = vpop.f32.mrb[0].mxu0
    %1707 = vmatprep.mubr.bf16.mxu0 %v1493
    %1708 = vmatmul.mubr.bf16.gmra.mrb[0].mxu0 %v1492
    %v1709 = vpop.f32.mrb[0].mxu0
    %v1710 = vadd.f32 %v1613, %v1709
    %v1711 = vpop.f32.mrb[0].mxu0
    %v1712 = vpop.f32.mrb[0].mxu0
    %v1713 = vadd.f32 %v1616, %v1712
    %v1714 = vpop.f32.mrb[0].mxu0
    %1715 = vmatprep.mubr.bf16.mxu0 %v1497
    %1716 = vmatmul.mubr.bf16.gmra.mrb[0].mxu0 %v1496
    %v1717 = vpop.f32.mrb[0].mxu0
    %v1718 = vadd.f32 %v1621, %v1717
    %v1719 = vpop.f32.mrb[0].mxu0
    %v1720 = vpop.f32.mrb[0].mxu0
    %v1721 = vadd.f32 %v1624, %v1720
    %v1722 = vpop.f32.mrb[0].mxu0
    %1723 = vdwg.mxu0
    %v1724 = vpack.c.bf16 %v1665, %v1662
    %v1725 = vpack.c.bf16 %v1673, %v1670
    %v1726 = vpack.c.bf16 %v1681, %v1678
    %v1727 = vpack.c.bf16 %v1689, %v1686
    %v1728 = vpack.c.bf16 %v1697, %v1694
    %v1729 = vpack.c.bf16 %v1705, %v1702
    %v1730 = vpack.c.bf16 %v1713, %v1710
    %v1731 = vpack.c.bf16 %v1721, %v1718
    %v1733 = vsel %vm1085, %v1724, 0
    %v1736 = vsel %vm1085, %v1725, 0
    %v1739 = vsel %vm1085, %v1726, 0
    %v1742 = vsel %vm1085, %v1727, 0
    %v1745 = vsel %vm1085, %v1728, 0
    %v1748 = vsel %vm1085, %v1729, 0
    %v1751 = vsel %vm1085, %v1730, 0
    %v1754 = vsel %vm1085, %v1731, 0
    %v1757 = vsel %vm1110, %v1369, 0
    %1759 = vmatprep.subr.bf16.mxu0 0
    %1760 = vmatpush1.bf16.msra.mxu0 %v1757
    %1761 = vmatprep.subr.bf16.mxu0 0
    %1762 = vmatpush1.bf16.msra.mxu0 0
    %1763 = vmatprep.subr.bf16.mxu0 0
    %1764 = vmatpush1.bf16.msra.mxu0 0
    %1765 = vmatprep.subr.bf16.mxu0 0
    %1766 = vmatpush1.bf16.msra.mxu0 0
    %1767 = vmatprep.subr.bf16.mxu0 0
    %1768 = vmatpush1.bf16.msra.mxu0 0
    %1769 = vmatprep.subr.bf16.mxu0 0
    %1770 = vmatpush1.bf16.msra.mxu0 0
    %1771 = vmatprep.subr.bf16.mxu0 0
    %1772 = vmatpush1.bf16.msra.mxu0 0
    %1773 = vmatprep.subr.bf16.mxu0 0
    %1774 = vmatpush1.bf16.msra.mxu0 0
    %1775 = vmatprep.subr.bf16.mxu0 0
    %1776 = vmatpush1.bf16.msra.mxu0 0
    %1777 = vmatprep.subr.bf16.mxu0 0
    %1778 = vmatpush1.bf16.msra.mxu0 0
    %1779 = vmatprep.subr.bf16.mxu0 0
    %1780 = vmatpush1.bf16.msra.mxu0 0
    %1781 = vmatprep.subr.bf16.mxu0 0
    %1782 = vmatpush1.bf16.msra.mxu0 0
    %1783 = vmatprep.subr.bf16.mxu0 0
    %1784 = vmatpush1.bf16.msra.mxu0 0
    %1785 = vmatprep.subr.bf16.mxu0 0
    %1786 = vmatpush1.bf16.msra.mxu0 0
    %1787 = vmatprep.subr.bf16.mxu0 0
    %1788 = vmatpush1.bf16.msra.mxu0 0
    %1789 = vmatprep.subr.bf16.mxu0 0
    %1790 = vmatpush1.bf16.msra.mxu0 0
    %1791 = vmatprep.mubr.bf16.mxu0 0
    %1792 = vmatmul.mubr.bf16.gmra.mrb[0].mxu0 %v1733
    %v1793 = vpop.f32.mrb[0].mxu0
    %v1794 = vadd.f32 0.0, %v1793
    %v1795 = vpop.f32.mrb[0].mxu0
    %v1796 = vpop.f32.mrb[0].mxu0
    %v1797 = vadd.f32 0.0, %v1796
    %v1798 = vpop.f32.mrb[0].mxu0
    %1799 = vmatprep.mubr.bf16.mxu0 0
    %1800 = vmatmul.mubr.bf16.gmra.mrb[0].mxu0 %v1736
    %v1801 = vpop.f32.mrb[0].mxu0
    %v1802 = vadd.f32 0.0, %v1801
    %v1803 = vpop.f32.mrb[0].mxu0
    %v1804 = vpop.f32.mrb[0].mxu0
    %v1805 = vadd.f32 0.0, %v1804
    %v1806 = vpop.f32.mrb[0].mxu0
    %1807 = vmatprep.mubr.bf16.mxu0 0
    %1808 = vmatmul.mubr.bf16.gmra.mrb[0].mxu0 %v1739
    %v1809 = vpop.f32.mrb[0].mxu0
    %v1810 = vadd.f32 0.0, %v1809
    %v1811 = vpop.f32.mrb[0].mxu0
    %v1812 = vpop.f32.mrb[0].mxu0
    %v1813 = vadd.f32 0.0, %v1812
    %v1814 = vpop.f32.mrb[0].mxu0
    %1815 = vmatprep.mubr.bf16.mxu0 0
    %1816 = vmatmul.mubr.bf16.gmra.mrb[0].mxu0 %v1742
    %v1817 = vpop.f32.mrb[0].mxu0
    %v1818 = vadd.f32 0.0, %v1817
    %v1819 = vpop.f32.mrb[0].mxu0
    %v1820 = vpop.f32.mrb[0].mxu0
    %v1821 = vadd.f32 0.0, %v1820
    %v1822 = vpop.f32.mrb[0].mxu0
    %1823 = vmatprep.mubr.bf16.mxu0 0
    %1824 = vmatmul.mubr.bf16.gmra.mrb[0].mxu0 %v1745
    %v1825 = vpop.f32.mrb[0].mxu0
    %v1826 = vadd.f32 0.0, %v1825
    %v1827 = vpop.f32.mrb[0].mxu0
    %v1828 = vpop.f32.mrb[0].mxu0
    %v1829 = vadd.f32 0.0, %v1828
    %v1830 = vpop.f32.mrb[0].mxu0
    %1831 = vmatprep.mubr.bf16.mxu0 0
    %1832 = vmatmul.mubr.bf16.gmra.mrb[0].mxu0 %v1748
    %v1833 = vpop.f32.mrb[0].mxu0
    %v1834 = vadd.f32 0.0, %v1833
    %v1835 = vpop.f32.mrb[0].mxu0
    %v1836 = vpop.f32.mrb[0].mxu0
    %v1837 = vadd.f32 0.0, %v1836
    %v1838 = vpop.f32.mrb[0].mxu0
    %1839 = vmatprep.mubr.bf16.mxu0 0
    %1840 = vmatmul.mubr.bf16.gmra.mrb[0].mxu0 %v1751
    %v1841 = vpop.f32.mrb[0].mxu0
    %v1842 = vadd.f32 0.0, %v1841
    %v1843 = vpop.f32.mrb[0].mxu0
    %v1844 = vpop.f32.mrb[0].mxu0
    %v1845 = vadd.f32 0.0, %v1844
    %v1846 = vpop.f32.mrb[0].mxu0
    %1847 = vmatprep.mubr.bf16.mxu0 0
    %1848 = vmatmul.mubr.bf16.gmra.mrb[0].mxu0 %v1754
    %v1849 = vpop.f32.mrb[0].mxu0
    %v1850 = vadd.f32 0.0, %v1849
    %v1851 = vpop.f32.mrb[0].mxu0
    %v1852 = vpop.f32.mrb[0].mxu0
    %v1853 = vadd.f32 0.0, %v1852
    %v1854 = vpop.f32.mrb[0].mxu0
    %1855 = vdwg.mxu0
    %v1856 = vadd.f32 %v1273, %v1794
    %v1857 = vadd.f32 %v1276, %v1797
    %v1858 = vadd.f32 %v1281, %v1802
    %v1859 = vadd.f32 %v1284, %v1805
    %v1860 = vadd.f32 %v1289, %v1810
    %v1861 = vadd.f32 %v1292, %v1813
    %v1862 = vadd.f32 %v1297, %v1818
    %v1863 = vadd.f32 %v1300, %v1821
    %v1864 = vadd.f32 %v1305, %v1826
    %v1865 = vadd.f32 %v1308, %v1829
    %v1866 = vadd.f32 %v1313, %v1834
    %v1867 = vadd.f32 %v1316, %v1837
    %v1868 = vadd.f32 %v1321, %v1842
    %v1869 = vadd.f32 %v1324, %v1845
    %v1870 = vadd.f32 %v1329, %v1850
    %v1871 = vadd.f32 %v1332, %v1853
    %s1872 = scalar_lea.vmem %s1, 768
    %v1873 = vld [vmem:[%s1872] sm:$0xff]
    %v1874 = vld [vmem:[%s1872 + $0x8] sm:$0xff]
    %v1875 = vld [vmem:[%s1872 + $0x10] sm:$0xff]
    %v1876 = vld [vmem:[%s1872 + $0x18] sm:$0xff]
    %v1877 = vld [vmem:[%s1872 + $0x20] sm:$0xff]
    %v1878 = vld [vmem:[%s1872 + $0x28] sm:$0xff]
    %v1879 = vld [vmem:[%s1872 + $0x30] sm:$0xff]
    %v1880 = vld [vmem:[%s1872 + $0x38] sm:$0xff]
    %v1881 = vld [vmem:[%s1872 + $0x40] sm:$0xff]
    %v1882 = vld [vmem:[%s1872 + $0x48] sm:$0xff]
    %v1883 = vld [vmem:[%s1872 + $0x50] sm:$0xff]
    %v1884 = vld [vmem:[%s1872 + $0x58] sm:$0xff]
    %v1885 = vld [vmem:[%s1872 + $0x60] sm:$0xff]
    %v1886 = vld [vmem:[%s1872 + $0x68] sm:$0xff]
    %v1887 = vld [vmem:[%s1872 + $0x70] sm:$0xff]
    %v1888 = vld [vmem:[%s1872 + $0x78] sm:$0xff]
    %v1889 = vld [vmem:[%s1872 + $0x80] sm:$0xff]
    %v1890 = vld [vmem:[%s1872 + $0x88] sm:$0xff]
    %v1891 = vld [vmem:[%s1872 + $0x90] sm:$0xff]
    %v1892 = vld [vmem:[%s1872 + $0x98] sm:$0xff]
    %v1893 = vld [vmem:[%s1872 + $0xa0] sm:$0xff]
    %v1894 = vld [vmem:[%s1872 + $0xa8] sm:$0xff]
    %v1895 = vld [vmem:[%s1872 + $0xb0] sm:$0xff]
    %v1896 = vld [vmem:[%s1872 + $0xb8] sm:$0xff]
    %v1897 = vld [vmem:[%s1872 + $0xc0] sm:$0xff]
    %v1898 = vld [vmem:[%s1872 + $0xc8] sm:$0xff]
    %v1899 = vld [vmem:[%s1872 + $0xd0] sm:$0xff]
    %v1900 = vld [vmem:[%s1872 + $0xd8] sm:$0xff]
    %v1901 = vld [vmem:[%s1872 + $0xe0] sm:$0xff]
    %v1902 = vld [vmem:[%s1872 + $0xe8] sm:$0xff]
    %v1903 = vld [vmem:[%s1872 + $0xf0] sm:$0xff]
    %v1904 = vld [vmem:[%s1872 + $0xf8] sm:$0xff]
    %s1905 = scalar_lea.vmem %s5, 12
    %v1906 = vld [vmem:[%s1905] sm:$0xf]
    %v1939 = vunpack.c.l.b16 %v1873
    %v1940 = vunpack.c.h.b16 %v1873
    %v1941 = vunpack.c.l.b16 %v1874
    %v1942 = vunpack.c.h.b16 %v1874
    %v1943 = vunpack.c.l.b16 %v1875
    %v1944 = vunpack.c.h.b16 %v1875
    %v1945 = vunpack.c.l.b16 %v1876
    %v1946 = vunpack.c.h.b16 %v1876
    %v1947 = vunpack.c.l.b16 %v1877
    %v1948 = vunpack.c.h.b16 %v1877
    %v1949 = vunpack.c.l.b16 %v1878
    %v1950 = vunpack.c.h.b16 %v1878
    %v1951 = vunpack.c.l.b16 %v1879
    %v1952 = vunpack.c.h.b16 %v1879
    %v1953 = vunpack.c.l.b16 %v1880
    %v1954 = vunpack.c.h.b16 %v1880
    %v1955 = vunpack.c.l.b16 %v1881
    %v1956 = vunpack.c.h.b16 %v1881
    %v1957 = vunpack.c.l.b16 %v1882
    %v1958 = vunpack.c.h.b16 %v1882
    %v1959 = vunpack.c.l.b16 %v1883
    %v1960 = vunpack.c.h.b16 %v1883
    %v1961 = vunpack.c.l.b16 %v1884
    %v1962 = vunpack.c.h.b16 %v1884
    %v1963 = vunpack.c.l.b16 %v1885
    %v1964 = vunpack.c.h.b16 %v1885
    %v1965 = vunpack.c.l.b16 %v1886
    %v1966 = vunpack.c.h.b16 %v1886
    %v1967 = vunpack.c.l.b16 %v1887
    %v1968 = vunpack.c.h.b16 %v1887
    %v1969 = vunpack.c.l.b16 %v1888
    %v1970 = vunpack.c.h.b16 %v1888
    %v1971 = vunpack.c.l.b16 %v1889
    %v1972 = vunpack.c.h.b16 %v1889
    %v1973 = vunpack.c.l.b16 %v1890
    %v1974 = vunpack.c.h.b16 %v1890
    %v1975 = vunpack.c.l.b16 %v1891
    %v1976 = vunpack.c.h.b16 %v1891
    %v1977 = vunpack.c.l.b16 %v1892
    %v1978 = vunpack.c.h.b16 %v1892
    %v1979 = vunpack.c.l.b16 %v1893
    %v1980 = vunpack.c.h.b16 %v1893
    %v1981 = vunpack.c.l.b16 %v1894
    %v1982 = vunpack.c.h.b16 %v1894
    %v1983 = vunpack.c.l.b16 %v1895
    %v1984 = vunpack.c.h.b16 %v1895
    %v1985 = vunpack.c.l.b16 %v1896
    %v1986 = vunpack.c.h.b16 %v1896
    %v1987 = vunpack.c.l.b16 %v1897
    %v1988 = vunpack.c.h.b16 %v1897
    %v1989 = vunpack.c.l.b16 %v1898
    %v1990 = vunpack.c.h.b16 %v1898
    %v1991 = vunpack.c.l.b16 %v1899
    %v1992 = vunpack.c.h.b16 %v1899
    %v1993 = vunpack.c.l.b16 %v1900
    %v1994 = vunpack.c.h.b16 %v1900
    %v1995 = vunpack.c.l.b16 %v1901
    %v1996 = vunpack.c.h.b16 %v1901
    %v1997 = vunpack.c.l.b16 %v1902
    %v1998 = vunpack.c.h.b16 %v1902
    %v1999 = vunpack.c.l.b16 %v1903
    %v2000 = vunpack.c.h.b16 %v1903
    %v2001 = vunpack.c.l.b16 %v1904
    %v2002 = vunpack.c.h.b16 %v1904
    %v2003 = vpack.c.b16 %v1943, %v1939
    %v2004 = vpack.c.b16 %v1944, %v1940
    %v2005 = vpack.c.b16 %v1945, %v1941
    %v2006 = vpack.c.b16 %v1946, %v1942
    %v2007 = vpack.c.b16 %v1951, %v1947
    %v2008 = vpack.c.b16 %v1952, %v1948
    %v2009 = vpack.c.b16 %v1953, %v1949
    %v2010 = vpack.c.b16 %v1954, %v1950
    %v2011 = vpack.c.b16 %v1959, %v1955
    %v2012 = vpack.c.b16 %v1960, %v1956
    %v2013 = vpack.c.b16 %v1961, %v1957
    %v2014 = vpack.c.b16 %v1962, %v1958
    %v2015 = vpack.c.b16 %v1967, %v1963
    %v2016 = vpack.c.b16 %v1968, %v1964
    %v2017 = vpack.c.b16 %v1969, %v1965
    %v2018 = vpack.c.b16 %v1970, %v1966
    %v2019 = vpack.c.b16 %v1975, %v1971
    %v2020 = vpack.c.b16 %v1976, %v1972
    %v2021 = vpack.c.b16 %v1977, %v1973
    %v2022 = vpack.c.b16 %v1978, %v1974
    %v2023 = vpack.c.b16 %v1983, %v1979
    %v2024 = vpack.c.b16 %v1984, %v1980
    %v2025 = vpack.c.b16 %v1985, %v1981
    %v2026 = vpack.c.b16 %v1986, %v1982
    %v2027 = vpack.c.b16 %v1991, %v1987
    %v2028 = vpack.c.b16 %v1992, %v1988
    %v2029 = vpack.c.b16 %v1993, %v1989
    %v2030 = vpack.c.b16 %v1994, %v1990
    %v2031 = vpack.c.b16 %v1999, %v1995
    %v2032 = vpack.c.b16 %v2000, %v1996
    %v2033 = vpack.c.b16 %v2001, %v1997
    %v2034 = vpack.c.b16 %v2002, %v1998
    %2067 = vmatprep.subr.bf16.mxu0 0
    %2068 = vmatpush1.bf16.msra.mxu0 %v422
    %2069 = vmatprep.subr.bf16.mxu0 0
    %2070 = vmatpush1.bf16.msra.mxu0 %v423
    %2071 = vmatprep.subr.bf16.mxu0 0
    %2072 = vmatpush1.bf16.msra.mxu0 %v424
    %2073 = vmatprep.subr.bf16.mxu0 0
    %2074 = vmatpush1.bf16.msra.mxu0 %v425
    %2075 = vmatprep.subr.bf16.mxu0 0
    %2076 = vmatpush1.bf16.msra.mxu0 %v426
    %2077 = vmatprep.subr.bf16.mxu0 0
    %2078 = vmatpush1.bf16.msra.mxu0 %v427
    %2079 = vmatprep.subr.bf16.mxu0 0
    %2080 = vmatpush1.bf16.msra.mxu0 %v428
    %2081 = vmatprep.subr.bf16.mxu0 0
    %2082 = vmatpush1.bf16.msra.mxu0 %v429
    %2083 = vmatprep.subr.bf16.mxu0 0
    %2084 = vmatpush1.bf16.msra.mxu0 %v430
    %2085 = vmatprep.subr.bf16.mxu0 0
    %2086 = vmatpush1.bf16.msra.mxu0 %v431
    %2087 = vmatprep.subr.bf16.mxu0 0
    %2088 = vmatpush1.bf16.msra.mxu0 %v432
    %2089 = vmatprep.subr.bf16.mxu0 0
    %2090 = vmatpush1.bf16.msra.mxu0 %v433
    %2091 = vmatprep.subr.bf16.mxu0 0
    %2092 = vmatpush1.bf16.msra.mxu0 %v434
    %2093 = vmatprep.subr.bf16.mxu0 0
    %2094 = vmatpush1.bf16.msra.mxu0 %v435
    %2095 = vmatprep.subr.bf16.mxu0 0
    %2096 = vmatpush1.bf16.msra.mxu0 %v436
    %2097 = vmatprep.subr.bf16.mxu0 0
    %2098 = vmatpush1.bf16.msra.mxu0 %v437
    %2099 = vmatprep.mubr.bf16.mxu0 %v2004
    %2100 = vmatmul.mubr.bf16.gmra.mrb[0].mxu0 %v2003
    %v2101 = vpop.f32.mrb[0].mxu0
    %v2102 = vadd.f32 0.0, %v2101
    %v2103 = vpop.f32.mrb[0].mxu0
    %v2104 = vpop.f32.mrb[0].mxu0
    %v2105 = vadd.f32 0.0, %v2104
    %v2106 = vpop.f32.mrb[0].mxu0
    %2107 = vmatprep.mubr.bf16.mxu0 %v2008
    %2108 = vmatmul.mubr.bf16.gmra.mrb[0].mxu0 %v2007
    %v2109 = vpop.f32.mrb[0].mxu0
    %v2110 = vadd.f32 0.0, %v2109
    %v2111 = vpop.f32.mrb[0].mxu0
    %v2112 = vpop.f32.mrb[0].mxu0
    %v2113 = vadd.f32 0.0, %v2112
    %v2114 = vpop.f32.mrb[0].mxu0
    %2115 = vmatprep.mubr.bf16.mxu0 %v2012
    %2116 = vmatmul.mubr.bf16.gmra.mrb[0].mxu0 %v2011
    %v2117 = vpop.f32.mrb[0].mxu0
    %v2118 = vadd.f32 0.0, %v2117
    %v2119 = vpop.f32.mrb[0].mxu0
    %v2120 = vpop.f32.mrb[0].mxu0
    %v2121 = vadd.f32 0.0, %v2120
    %v2122 = vpop.f32.mrb[0].mxu0
    %2123 = vmatprep.mubr.bf16.mxu0 %v2016
    %2124 = vmatmul.mubr.bf16.gmra.mrb[0].mxu0 %v2015
    %v2125 = vpop.f32.mrb[0].mxu0
    %v2126 = vadd.f32 0.0, %v2125
    %v2127 = vpop.f32.mrb[0].mxu0
    %v2128 = vpop.f32.mrb[0].mxu0
    %v2129 = vadd.f32 0.0, %v2128
    %v2130 = vpop.f32.mrb[0].mxu0
    %2131 = vmatprep.mubr.bf16.mxu0 %v2020
    %2132 = vmatmul.mubr.bf16.gmra.mrb[0].mxu0 %v2019
    %v2133 = vpop.f32.mrb[0].mxu0
    %v2134 = vadd.f32 0.0, %v2133
    %v2135 = vpop.f32.mrb[0].mxu0
    %v2136 = vpop.f32.mrb[0].mxu0
    %v2137 = vadd.f32 0.0, %v2136
    %v2138 = vpop.f32.mrb[0].mxu0
    %2139 = vmatprep.mubr.bf16.mxu0 %v2024
    %2140 = vmatmul.mubr.bf16.gmra.mrb[0].mxu0 %v2023
    %v2141 = vpop.f32.mrb[0].mxu0
    %v2142 = vadd.f32 0.0, %v2141
    %v2143 = vpop.f32.mrb[0].mxu0
    %v2144 = vpop.f32.mrb[0].mxu0
    %v2145 = vadd.f32 0.0, %v2144
    %v2146 = vpop.f32.mrb[0].mxu0
    %2147 = vmatprep.mubr.bf16.mxu0 %v2028
    %2148 = vmatmul.mubr.bf16.gmra.mrb[0].mxu0 %v2027
    %v2149 = vpop.f32.mrb[0].mxu0
    %v2150 = vadd.f32 0.0, %v2149
    %v2151 = vpop.f32.mrb[0].mxu0
    %v2152 = vpop.f32.mrb[0].mxu0
    %v2153 = vadd.f32 0.0, %v2152
    %v2154 = vpop.f32.mrb[0].mxu0
    %2155 = vmatprep.mubr.bf16.mxu0 %v2032
    %2156 = vmatmul.mubr.bf16.gmra.mrb[0].mxu0 %v2031
    %v2157 = vpop.f32.mrb[0].mxu0
    %v2158 = vadd.f32 0.0, %v2157
    %v2159 = vpop.f32.mrb[0].mxu0
    %v2160 = vpop.f32.mrb[0].mxu0
    %v2161 = vadd.f32 0.0, %v2160
    %v2162 = vpop.f32.mrb[0].mxu0
    %2163 = vdwg.mxu0
    %2164 = vmatprep.subr.bf16.mxu0 0
    %2165 = vmatpush1.bf16.msra.mxu0 %v438
    %2166 = vmatprep.subr.bf16.mxu0 0
    %2167 = vmatpush1.bf16.msra.mxu0 %v439
    %2168 = vmatprep.subr.bf16.mxu0 0
    %2169 = vmatpush1.bf16.msra.mxu0 %v440
    %2170 = vmatprep.subr.bf16.mxu0 0
    %2171 = vmatpush1.bf16.msra.mxu0 %v441
    %2172 = vmatprep.subr.bf16.mxu0 0
    %2173 = vmatpush1.bf16.msra.mxu0 %v442
    %2174 = vmatprep.subr.bf16.mxu0 0
    %2175 = vmatpush1.bf16.msra.mxu0 %v443
    %2176 = vmatprep.subr.bf16.mxu0 0
    %2177 = vmatpush1.bf16.msra.mxu0 %v444
    %2178 = vmatprep.subr.bf16.mxu0 0
    %2179 = vmatpush1.bf16.msra.mxu0 %v445
    %2180 = vmatprep.subr.bf16.mxu0 0
    %2181 = vmatpush1.bf16.msra.mxu0 %v446
    %2182 = vmatprep.subr.bf16.mxu0 0
    %2183 = vmatpush1.bf16.msra.mxu0 %v447
    %2184 = vmatprep.subr.bf16.mxu0 0
    %2185 = vmatpush1.bf16.msra.mxu0 %v448
    %2186 = vmatprep.subr.bf16.mxu0 0
    %2187 = vmatpush1.bf16.msra.mxu0 %v449
    %2188 = vmatprep.subr.bf16.mxu0 0
    %2189 = vmatpush1.bf16.msra.mxu0 %v450
    %2190 = vmatprep.subr.bf16.mxu0 0
    %2191 = vmatpush1.bf16.msra.mxu0 %v451
    %2192 = vmatprep.subr.bf16.mxu0 0
    %2193 = vmatpush1.bf16.msra.mxu0 %v452
    %2194 = vmatprep.subr.bf16.mxu0 0
    %2195 = vmatpush1.bf16.msra.mxu0 %v453
    %2196 = vmatprep.mubr.bf16.mxu0 %v2006
    %2197 = vmatmul.mubr.bf16.gmra.mrb[0].mxu0 %v2005
    %v2198 = vpop.f32.mrb[0].mxu0
    %v2199 = vadd.f32 %v2102, %v2198
    %v2200 = vpop.f32.mrb[0].mxu0
    %v2201 = vpop.f32.mrb[0].mxu0
    %v2202 = vadd.f32 %v2105, %v2201
    %v2203 = vpop.f32.mrb[0].mxu0
    %2204 = vmatprep.mubr.bf16.mxu0 %v2010
    %2205 = vmatmul.mubr.bf16.gmra.mrb[0].mxu0 %v2009
    %v2206 = vpop.f32.mrb[0].mxu0
    %v2207 = vadd.f32 %v2110, %v2206
    %v2208 = vpop.f32.mrb[0].mxu0
    %v2209 = vpop.f32.mrb[0].mxu0
    %v2210 = vadd.f32 %v2113, %v2209
    %v2211 = vpop.f32.mrb[0].mxu0
    %2212 = vmatprep.mubr.bf16.mxu0 %v2014
    %2213 = vmatmul.mubr.bf16.gmra.mrb[0].mxu0 %v2013
    %v2214 = vpop.f32.mrb[0].mxu0
    %v2215 = vadd.f32 %v2118, %v2214
    %v2216 = vpop.f32.mrb[0].mxu0
    %v2217 = vpop.f32.mrb[0].mxu0
    %v2218 = vadd.f32 %v2121, %v2217
    %v2219 = vpop.f32.mrb[0].mxu0
    %2220 = vmatprep.mubr.bf16.mxu0 %v2018
    %2221 = vmatmul.mubr.bf16.gmra.mrb[0].mxu0 %v2017
    %v2222 = vpop.f32.mrb[0].mxu0
    %v2223 = vadd.f32 %v2126, %v2222
    %v2224 = vpop.f32.mrb[0].mxu0
    %v2225 = vpop.f32.mrb[0].mxu0
    %v2226 = vadd.f32 %v2129, %v2225
    %v2227 = vpop.f32.mrb[0].mxu0
    %2228 = vmatprep.mubr.bf16.mxu0 %v2022
    %2229 = vmatmul.mubr.bf16.gmra.mrb[0].mxu0 %v2021
    %v2230 = vpop.f32.mrb[0].mxu0
    %v2231 = vadd.f32 %v2134, %v2230
    %v2232 = vpop.f32.mrb[0].mxu0
    %v2233 = vpop.f32.mrb[0].mxu0
    %v2234 = vadd.f32 %v2137, %v2233
    %v2235 = vpop.f32.mrb[0].mxu0
    %2236 = vmatprep.mubr.bf16.mxu0 %v2026
    %2237 = vmatmul.mubr.bf16.gmra.mrb[0].mxu0 %v2025
    %v2238 = vpop.f32.mrb[0].mxu0
    %v2239 = vadd.f32 %v2142, %v2238
    %v2240 = vpop.f32.mrb[0].mxu0
    %v2241 = vpop.f32.mrb[0].mxu0
    %v2242 = vadd.f32 %v2145, %v2241
    %v2243 = vpop.f32.mrb[0].mxu0
    %2244 = vmatprep.mubr.bf16.mxu0 %v2030
    %2245 = vmatmul.mubr.bf16.gmra.mrb[0].mxu0 %v2029
    %v2246 = vpop.f32.mrb[0].mxu0
    %v2247 = vadd.f32 %v2150, %v2246
    %v2248 = vpop.f32.mrb[0].mxu0
    %v2249 = vpop.f32.mrb[0].mxu0
    %v2250 = vadd.f32 %v2153, %v2249
    %v2251 = vpop.f32.mrb[0].mxu0
    %2252 = vmatprep.mubr.bf16.mxu0 %v2034
    %2253 = vmatmul.mubr.bf16.gmra.mrb[0].mxu0 %v2033
    %v2254 = vpop.f32.mrb[0].mxu0
    %v2255 = vadd.f32 %v2158, %v2254
    %v2256 = vpop.f32.mrb[0].mxu0
    %v2257 = vpop.f32.mrb[0].mxu0
    %v2258 = vadd.f32 %v2161, %v2257
    %v2259 = vpop.f32.mrb[0].mxu0
    %2260 = vdwg.mxu0
    %v2261 = vpack.c.bf16 %v2202, %v2199
    %v2262 = vpack.c.bf16 %v2210, %v2207
    %v2263 = vpack.c.bf16 %v2218, %v2215
    %v2264 = vpack.c.bf16 %v2226, %v2223
    %v2265 = vpack.c.bf16 %v2234, %v2231
    %v2266 = vpack.c.bf16 %v2242, %v2239
    %v2267 = vpack.c.bf16 %v2250, %v2247
    %v2268 = vpack.c.bf16 %v2258, %v2255
    %v2270 = vsel %vm1085, %v2261, 0
    %v2273 = vsel %vm1085, %v2262, 0
    %v2276 = vsel %vm1085, %v2263, 0
    %v2279 = vsel %vm1085, %v2264, 0
    %v2282 = vsel %vm1085, %v2265, 0
    %v2285 = vsel %vm1085, %v2266, 0
    %v2288 = vsel %vm1085, %v2267, 0
    %v2291 = vsel %vm1085, %v2268, 0
    %v2294 = vsel %vm1110, %v1906, 0
    %2296 = vmatprep.subr.bf16.mxu0 0
    %2297 = vmatpush1.bf16.msra.mxu0 %v2294
    %2298 = vmatprep.subr.bf16.mxu0 0
    %2299 = vmatpush1.bf16.msra.mxu0 0
    %2300 = vmatprep.subr.bf16.mxu0 0
    %2301 = vmatpush1.bf16.msra.mxu0 0
    %2302 = vmatprep.subr.bf16.mxu0 0
    %2303 = vmatpush1.bf16.msra.mxu0 0
    %2304 = vmatprep.subr.bf16.mxu0 0
    %2305 = vmatpush1.bf16.msra.mxu0 0
    %2306 = vmatprep.subr.bf16.mxu0 0
    %2307 = vmatpush1.bf16.msra.mxu0 0
    %2308 = vmatprep.subr.bf16.mxu0 0
    %2309 = vmatpush1.bf16.msra.mxu0 0
    %2310 = vmatprep.subr.bf16.mxu0 0
    %2311 = vmatpush1.bf16.msra.mxu0 0
    %2312 = vmatprep.subr.bf16.mxu0 0
    %2313 = vmatpush1.bf16.msra.mxu0 0
    %2314 = vmatprep.subr.bf16.mxu0 0
    %2315 = vmatpush1.bf16.msra.mxu0 0
    %2316 = vmatprep.subr.bf16.mxu0 0
    %2317 = vmatpush1.bf16.msra.mxu0 0
    %2318 = vmatprep.subr.bf16.mxu0 0
    %2319 = vmatpush1.bf16.msra.mxu0 0
    %2320 = vmatprep.subr.bf16.mxu0 0
    %2321 = vmatpush1.bf16.msra.mxu0 0
    %2322 = vmatprep.subr.bf16.mxu0 0
    %2323 = vmatpush1.bf16.msra.mxu0 0
    %2324 = vmatprep.subr.bf16.mxu0 0
    %2325 = vmatpush1.bf16.msra.mxu0 0
    %2326 = vmatprep.subr.bf16.mxu0 0
    %2327 = vmatpush1.bf16.msra.mxu0 0
    %2328 = vmatprep.mubr.bf16.mxu0 0
    %2329 = vmatmul.mubr.bf16.gmra.mrb[0].mxu0 %v2270
    %v2330 = vpop.f32.mrb[0].mxu0
    %v2331 = vadd.f32 0.0, %v2330
    %v2332 = vpop.f32.mrb[0].mxu0
    %v2333 = vpop.f32.mrb[0].mxu0
    %v2334 = vadd.f32 0.0, %v2333
    %v2335 = vpop.f32.mrb[0].mxu0
    %2336 = vmatprep.mubr.bf16.mxu0 0
    %2337 = vmatmul.mubr.bf16.gmra.mrb[0].mxu0 %v2273
    %v2338 = vpop.f32.mrb[0].mxu0
    %v2339 = vadd.f32 0.0, %v2338
    %v2340 = vpop.f32.mrb[0].mxu0
    %v2341 = vpop.f32.mrb[0].mxu0
    %v2342 = vadd.f32 0.0, %v2341
    %v2343 = vpop.f32.mrb[0].mxu0
    %2344 = vmatprep.mubr.bf16.mxu0 0
    %2345 = vmatmul.mubr.bf16.gmra.mrb[0].mxu0 %v2276
    %v2346 = vpop.f32.mrb[0].mxu0
    %v2347 = vadd.f32 0.0, %v2346
    %v2348 = vpop.f32.mrb[0].mxu0
    %v2349 = vpop.f32.mrb[0].mxu0
    %v2350 = vadd.f32 0.0, %v2349
    %v2351 = vpop.f32.mrb[0].mxu0
    %2352 = vmatprep.mubr.bf16.mxu0 0
    %2353 = vmatmul.mubr.bf16.gmra.mrb[0].mxu0 %v2279
    %v2354 = vpop.f32.mrb[0].mxu0
    %v2355 = vadd.f32 0.0, %v2354
    %v2356 = vpop.f32.mrb[0].mxu0
    %v2357 = vpop.f32.mrb[0].mxu0
    %v2358 = vadd.f32 0.0, %v2357
    %v2359 = vpop.f32.mrb[0].mxu0
    %2360 = vmatprep.mubr.bf16.mxu0 0
    %2361 = vmatmul.mubr.bf16.gmra.mrb[0].mxu0 %v2282
    %v2362 = vpop.f32.mrb[0].mxu0
    %v2363 = vadd.f32 0.0, %v2362
    %v2364 = vpop.f32.mrb[0].mxu0
    %v2365 = vpop.f32.mrb[0].mxu0
    %v2366 = vadd.f32 0.0, %v2365
    %v2367 = vpop.f32.mrb[0].mxu0
    %2368 = vmatprep.mubr.bf16.mxu0 0
    %2369 = vmatmul.mubr.bf16.gmra.mrb[0].mxu0 %v2285
    %v2370 = vpop.f32.mrb[0].mxu0
    %v2371 = vadd.f32 0.0, %v2370
    %v2372 = vpop.f32.mrb[0].mxu0
    %v2373 = vpop.f32.mrb[0].mxu0
    %v2374 = vadd.f32 0.0, %v2373
    %v2375 = vpop.f32.mrb[0].mxu0
    %2376 = vmatprep.mubr.bf16.mxu0 0
    %2377 = vmatmul.mubr.bf16.gmra.mrb[0].mxu0 %v2288
    %v2378 = vpop.f32.mrb[0].mxu0
    %v2379 = vadd.f32 0.0, %v2378
    %v2380 = vpop.f32.mrb[0].mxu0
    %v2381 = vpop.f32.mrb[0].mxu0
    %v2382 = vadd.f32 0.0, %v2381
    %v2383 = vpop.f32.mrb[0].mxu0
    %2384 = vmatprep.mubr.bf16.mxu0 0
    %2385 = vmatmul.mubr.bf16.gmra.mrb[0].mxu0 %v2291
    %v2386 = vpop.f32.mrb[0].mxu0
    %v2387 = vadd.f32 0.0, %v2386
    %v2388 = vpop.f32.mrb[0].mxu0
    %v2389 = vpop.f32.mrb[0].mxu0
    %v2390 = vadd.f32 0.0, %v2389
    %v2391 = vpop.f32.mrb[0].mxu0
    %2392 = vdwg.mxu0
    %v2393 = vadd.f32 %v1856, %v2331
    %v2394 = vadd.f32 %v1857, %v2334
    %v2395 = vadd.f32 %v1858, %v2339
    %v2396 = vadd.f32 %v1859, %v2342
    %v2397 = vadd.f32 %v1860, %v2347
    %v2398 = vadd.f32 %v1861, %v2350
    %v2399 = vadd.f32 %v1862, %v2355
    %v2400 = vadd.f32 %v1863, %v2358
    %v2401 = vadd.f32 %v1864, %v2363
    %v2402 = vadd.f32 %v1865, %v2366
    %v2403 = vadd.f32 %v1866, %v2371
    %v2404 = vadd.f32 %v1867, %v2374
    %v2405 = vadd.f32 %v1868, %v2379
    %v2406 = vadd.f32 %v1869, %v2382
    %v2407 = vadd.f32 %v1870, %v2387
    %v2408 = vadd.f32 %v1871, %v2390
    %s2409 = scalar_lea.vmem %s1, 1024
    %v2410 = vld [vmem:[%s2409] sm:$0xff]
    %v2411 = vld [vmem:[%s2409 + $0x8] sm:$0xff]
    %v2412 = vld [vmem:[%s2409 + $0x10] sm:$0xff]
    %v2413 = vld [vmem:[%s2409 + $0x18] sm:$0xff]
    %v2414 = vld [vmem:[%s2409 + $0x20] sm:$0xff]
    %v2415 = vld [vmem:[%s2409 + $0x28] sm:$0xff]
    %v2416 = vld [vmem:[%s2409 + $0x30] sm:$0xff]
    %v2417 = vld [vmem:[%s2409 + $0x38] sm:$0xff]
    %v2418 = vld [vmem:[%s2409 + $0x40] sm:$0xff]
    %v2419 = vld [vmem:[%s2409 + $0x48] sm:$0xff]
    %v2420 = vld [vmem:[%s2409 + $0x50] sm:$0xff]
    %v2421 = vld [vmem:[%s2409 + $0x58] sm:$0xff]
    %v2422 = vld [vmem:[%s2409 + $0x60] sm:$0xff]
    %v2423 = vld [vmem:[%s2409 + $0x68] sm:$0xff]
    %v2424 = vld [vmem:[%s2409 + $0x70] sm:$0xff]
    %v2425 = vld [vmem:[%s2409 + $0x78] sm:$0xff]
    %v2426 = vld [vmem:[%s2409 + $0x80] sm:$0xff]
    %v2427 = vld [vmem:[%s2409 + $0x88] sm:$0xff]
    %v2428 = vld [vmem:[%s2409 + $0x90] sm:$0xff]
    %v2429 = vld [vmem:[%s2409 + $0x98] sm:$0xff]
    %v2430 = vld [vmem:[%s2409 + $0xa0] sm:$0xff]
    %v2431 = vld [vmem:[%s2409 + $0xa8] sm:$0xff]
    %v2432 = vld [vmem:[%s2409 + $0xb0] sm:$0xff]
    %v2433 = vld [vmem:[%s2409 + $0xb8] sm:$0xff]
    %v2434 = vld [vmem:[%s2409 + $0xc0] sm:$0xff]
    %v2435 = vld [vmem:[%s2409 + $0xc8] sm:$0xff]
    %v2436 = vld [vmem:[%s2409 + $0xd0] sm:$0xff]
    %v2437 = vld [vmem:[%s2409 + $0xd8] sm:$0xff]
    %v2438 = vld [vmem:[%s2409 + $0xe0] sm:$0xff]
    %v2439 = vld [vmem:[%s2409 + $0xe8] sm:$0xff]
    %v2440 = vld [vmem:[%s2409 + $0xf0] sm:$0xff]
    %v2441 = vld [vmem:[%s2409 + $0xf8] sm:$0xff]
    %s2442 = scalar_lea.vmem %s5, 16
    %v2443 = vld [vmem:[%s2442] sm:$0xf]
    %v2476 = vunpack.c.l.b16 %v2410
    %v2477 = vunpack.c.h.b16 %v2410
    %v2478 = vunpack.c.l.b16 %v2411
    %v2479 = vunpack.c.h.b16 %v2411
    %v2480 = vunpack.c.l.b16 %v2412
    %v2481 = vunpack.c.h.b16 %v2412
    %v2482 = vunpack.c.l.b16 %v2413
    %v2483 = vunpack.c.h.b16 %v2413
    %v2484 = vunpack.c.l.b16 %v2414
    %v2485 = vunpack.c.h.b16 %v2414
    %v2486 = vunpack.c.l.b16 %v2415
    %v2487 = vunpack.c.h.b16 %v2415
    %v2488 = vunpack.c.l.b16 %v2416
    %v2489 = vunpack.c.h.b16 %v2416
    %v2490 = vunpack.c.l.b16 %v2417
    %v2491 = vunpack.c.h.b16 %v2417
    %v2492 = vunpack.c.l.b16 %v2418
    %v2493 = vunpack.c.h.b16 %v2418
    %v2494 = vunpack.c.l.b16 %v2419
    %v2495 = vunpack.c.h.b16 %v2419
    %v2496 = vunpack.c.l.b16 %v2420
    %v2497 = vunpack.c.h.b16 %v2420
    %v2498 = vunpack.c.l.b16 %v2421
    %v2499 = vunpack.c.h.b16 %v2421
    %v2500 = vunpack.c.l.b16 %v2422
    %v2501 = vunpack.c.h.b16 %v2422
    %v2502 = vunpack.c.l.b16 %v2423
    %v2503 = vunpack.c.h.b16 %v2423
    %v2504 = vunpack.c.l.b16 %v2424
    %v2505 = vunpack.c.h.b16 %v2424
    %v2506 = vunpack.c.l.b16 %v2425
    %v2507 = vunpack.c.h.b16 %v2425
    %v2508 = vunpack.c.l.b16 %v2426
    %v2509 = vunpack.c.h.b16 %v2426
    %v2510 = vunpack.c.l.b16 %v2427
    %v2511 = vunpack.c.h.b16 %v2427
    %v2512 = vunpack.c.l.b16 %v2428
    %v2513 = vunpack.c.h.b16 %v2428
    %v2514 = vunpack.c.l.b16 %v2429
    %v2515 = vunpack.c.h.b16 %v2429
    %v2516 = vunpack.c.l.b16 %v2430
    %v2517 = vunpack.c.h.b16 %v2430
    %v2518 = vunpack.c.l.b16 %v2431
    %v2519 = vunpack.c.h.b16 %v2431
    %v2520 = vunpack.c.l.b16 %v2432
    %v2521 = vunpack.c.h.b16 %v2432
    %v2522 = vunpack.c.l.b16 %v2433
    %v2523 = vunpack.c.h.b16 %v2433
    %v2524 = vunpack.c.l.b16 %v2434
    %v2525 = vunpack.c.h.b16 %v2434
    %v2526 = vunpack.c.l.b16 %v2435
    %v2527 = vunpack.c.h.b16 %v2435
    %v2528 = vunpack.c.l.b16 %v2436
    %v2529 = vunpack.c.h.b16 %v2436
    %v2530 = vunpack.c.l.b16 %v2437
    %v2531 = vunpack.c.h.b16 %v2437
    %v2532 = vunpack.c.l.b16 %v2438
    %v2533 = vunpack.c.h.b16 %v2438
    %v2534 = vunpack.c.l.b16 %v2439
    %v2535 = vunpack.c.h.b16 %v2439
    %v2536 = vunpack.c.l.b16 %v2440
    %v2537 = vunpack.c.h.b16 %v2440
    %v2538 = vunpack.c.l.b16 %v2441
    %v2539 = vunpack.c.h.b16 %v2441
    %v2540 = vpack.c.b16 %v2480, %v2476
    %v2541 = vpack.c.b16 %v2481, %v2477
    %v2542 = vpack.c.b16 %v2482, %v2478
    %v2543 = vpack.c.b16 %v2483, %v2479
    %v2544 = vpack.c.b16 %v2488, %v2484
    %v2545 = vpack.c.b16 %v2489, %v2485
    %v2546 = vpack.c.b16 %v2490, %v2486
    %v2547 = vpack.c.b16 %v2491, %v2487
    %v2548 = vpack.c.b16 %v2496, %v2492
    %v2549 = vpack.c.b16 %v2497, %v2493
    %v2550 = vpack.c.b16 %v2498, %v2494
    %v2551 = vpack.c.b16 %v2499, %v2495
    %v2552 = vpack.c.b16 %v2504, %v2500
    %v2553 = vpack.c.b16 %v2505, %v2501
    %v2554 = vpack.c.b16 %v2506, %v2502
    %v2555 = vpack.c.b16 %v2507, %v2503
    %v2556 = vpack.c.b16 %v2512, %v2508
    %v2557 = vpack.c.b16 %v2513, %v2509
    %v2558 = vpack.c.b16 %v2514, %v2510
    %v2559 = vpack.c.b16 %v2515, %v2511
    %v2560 = vpack.c.b16 %v2520, %v2516
    %v2561 = vpack.c.b16 %v2521, %v2517
    %v2562 = vpack.c.b16 %v2522, %v2518
    %v2563 = vpack.c.b16 %v2523, %v2519
    %v2564 = vpack.c.b16 %v2528, %v2524
    %v2565 = vpack.c.b16 %v2529, %v2525
    %v2566 = vpack.c.b16 %v2530, %v2526
    %v2567 = vpack.c.b16 %v2531, %v2527
    %v2568 = vpack.c.b16 %v2536, %v2532
    %v2569 = vpack.c.b16 %v2537, %v2533
    %v2570 = vpack.c.b16 %v2538, %v2534
    %v2571 = vpack.c.b16 %v2539, %v2535
    %2604 = vmatprep.subr.bf16.mxu0 0
    %2605 = vmatpush1.bf16.msra.mxu0 %v422
    %2606 = vmatprep.subr.bf16.mxu0 0
    %2607 = vmatpush1.bf16.msra.mxu0 %v423
    %2608 = vmatprep.subr.bf16.mxu0 0
    %2609 = vmatpush1.bf16.msra.mxu0 %v424
    %2610 = vmatprep.subr.bf16.mxu0 0
    %2611 = vmatpush1.bf16.msra.mxu0 %v425
    %2612 = vmatprep.subr.bf16.mxu0 0
    %2613 = vmatpush1.bf16.msra.mxu0 %v426
    %2614 = vmatprep.subr.bf16.mxu0 0
    %2615 = vmatpush1.bf16.msra.mxu0 %v427
    %2616 = vmatprep.subr.bf16.mxu0 0
    %2617 = vmatpush1.bf16.msra.mxu0 %v428
    %2618 = vmatprep.subr.bf16.mxu0 0
    %2619 = vmatpush1.bf16.msra.mxu0 %v429
    %2620 = vmatprep.subr.bf16.mxu0 0
    %2621 = vmatpush1.bf16.msra.mxu0 %v430
    %2622 = vmatprep.subr.bf16.mxu0 0
    %2623 = vmatpush1.bf16.msra.mxu0 %v431
    %2624 = vmatprep.subr.bf16.mxu0 0
    %2625 = vmatpush1.bf16.msra.mxu0 %v432
    %2626 = vmatprep.subr.bf16.mxu0 0
    %2627 = vmatpush1.bf16.msra.mxu0 %v433
    %2628 = vmatprep.subr.bf16.mxu0 0
    %2629 = vmatpush1.bf16.msra.mxu0 %v434
    %2630 = vmatprep.subr.bf16.mxu0 0
    %2631 = vmatpush1.bf16.msra.mxu0 %v435
    %2632 = vmatprep.subr.bf16.mxu0 0
    %2633 = vmatpush1.bf16.msra.mxu0 %v436
    %2634 = vmatprep.subr.bf16.mxu0 0
    %2635 = vmatpush1.bf16.msra.mxu0 %v437
    %2636 = vmatprep.mubr.bf16.mxu0 %v2541
    %2637 = vmatmul.mubr.bf16.gmra.mrb[0].mxu0 %v2540
    %v2638 = vpop.f32.mrb[0].mxu0
    %v2639 = vadd.f32 0.0, %v2638
    %v2640 = vpop.f32.mrb[0].mxu0
    %v2641 = vpop.f32.mrb[0].mxu0
    %v2642 = vadd.f32 0.0, %v2641
    %v2643 = vpop.f32.mrb[0].mxu0
    %2644 = vmatprep.mubr.bf16.mxu0 %v2545
    %2645 = vmatmul.mubr.bf16.gmra.mrb[0].mxu0 %v2544
    %v2646 = vpop.f32.mrb[0].mxu0
    %v2647 = vadd.f32 0.0, %v2646
    %v2648 = vpop.f32.mrb[0].mxu0
    %v2649 = vpop.f32.mrb[0].mxu0
    %v2650 = vadd.f32 0.0, %v2649
    %v2651 = vpop.f32.mrb[0].mxu0
    %2652 = vmatprep.mubr.bf16.mxu0 %v2549
    %2653 = vmatmul.mubr.bf16.gmra.mrb[0].mxu0 %v2548
    %v2654 = vpop.f32.mrb[0].mxu0
    %v2655 = vadd.f32 0.0, %v2654
    %v2656 = vpop.f32.mrb[0].mxu0
    %v2657 = vpop.f32.mrb[0].mxu0
    %v2658 = vadd.f32 0.0, %v2657
    %v2659 = vpop.f32.mrb[0].mxu0
    %2660 = vmatprep.mubr.bf16.mxu0 %v2553
    %2661 = vmatmul.mubr.bf16.gmra.mrb[0].mxu0 %v2552
    %v2662 = vpop.f32.mrb[0].mxu0
    %v2663 = vadd.f32 0.0, %v2662
    %v2664 = vpop.f32.mrb[0].mxu0
    %v2665 = vpop.f32.mrb[0].mxu0
    %v2666 = vadd.f32 0.0, %v2665
    %v2667 = vpop.f32.mrb[0].mxu0
    %2668 = vmatprep.mubr.bf16.mxu0 %v2557
    %2669 = vmatmul.mubr.bf16.gmra.mrb[0].mxu0 %v2556
    %v2670 = vpop.f32.mrb[0].mxu0
    %v2671 = vadd.f32 0.0, %v2670
    %v2672 = vpop.f32.mrb[0].mxu0
    %v2673 = vpop.f32.mrb[0].mxu0
    %v2674 = vadd.f32 0.0, %v2673
    %v2675 = vpop.f32.mrb[0].mxu0
    %2676 = vmatprep.mubr.bf16.mxu0 %v2561
    %2677 = vmatmul.mubr.bf16.gmra.mrb[0].mxu0 %v2560
    %v2678 = vpop.f32.mrb[0].mxu0
    %v2679 = vadd.f32 0.0, %v2678
    %v2680 = vpop.f32.mrb[0].mxu0
    %v2681 = vpop.f32.mrb[0].mxu0
    %v2682 = vadd.f32 0.0, %v2681
    %v2683 = vpop.f32.mrb[0].mxu0
    %2684 = vmatprep.mubr.bf16.mxu0 %v2565
    %2685 = vmatmul.mubr.bf16.gmra.mrb[0].mxu0 %v2564
    %v2686 = vpop.f32.mrb[0].mxu0
    %v2687 = vadd.f32 0.0, %v2686
    %v2688 = vpop.f32.mrb[0].mxu0
    %v2689 = vpop.f32.mrb[0].mxu0
    %v2690 = vadd.f32 0.0, %v2689
    %v2691 = vpop.f32.mrb[0].mxu0
    %2692 = vmatprep.mubr.bf16.mxu0 %v2569
    %2693 = vmatmul.mubr.bf16.gmra.mrb[0].mxu0 %v2568
    %v2694 = vpop.f32.mrb[0].mxu0
    %v2695 = vadd.f32 0.0, %v2694
    %v2696 = vpop.f32.mrb[0].mxu0
    %v2697 = vpop.f32.mrb[0].mxu0
    %v2698 = vadd.f32 0.0, %v2697
    %v2699 = vpop.f32.mrb[0].mxu0
    %2700 = vdwg.mxu0
    %2701 = vmatprep.subr.bf16.mxu0 0
    %2702 = vmatpush1.bf16.msra.mxu0 %v438
    %2703 = vmatprep.subr.bf16.mxu0 0
    %2704 = vmatpush1.bf16.msra.mxu0 %v439
    %2705 = vmatprep.subr.bf16.mxu0 0
    %2706 = vmatpush1.bf16.msra.mxu0 %v440
    %2707 = vmatprep.subr.bf16.mxu0 0
    %2708 = vmatpush1.bf16.msra.mxu0 %v441
    %2709 = vmatprep.subr.bf16.mxu0 0
    %2710 = vmatpush1.bf16.msra.mxu0 %v442
    %2711 = vmatprep.subr.bf16.mxu0 0
    %2712 = vmatpush1.bf16.msra.mxu0 %v443
    %2713 = vmatprep.subr.bf16.mxu0 0
    %2714 = vmatpush1.bf16.msra.mxu0 %v444
    %2715 = vmatprep.subr.bf16.mxu0 0
    %2716 = vmatpush1.bf16.msra.mxu0 %v445
    %2717 = vmatprep.subr.bf16.mxu0 0
    %2718 = vmatpush1.bf16.msra.mxu0 %v446
    %2719 = vmatprep.subr.bf16.mxu0 0
    %2720 = vmatpush1.bf16.msra.mxu0 %v447
    %2721 = vmatprep.subr.bf16.mxu0 0
    %2722 = vmatpush1.bf16.msra.mxu0 %v448
    %2723 = vmatprep.subr.bf16.mxu0 0
    %2724 = vmatpush1.bf16.msra.mxu0 %v449
    %2725 = vmatprep.subr.bf16.mxu0 0
    %2726 = vmatpush1.bf16.msra.mxu0 %v450
    %2727 = vmatprep.subr.bf16.mxu0 0
    %2728 = vmatpush1.bf16.msra.mxu0 %v451
    %2729 = vmatprep.subr.bf16.mxu0 0
    %2730 = vmatpush1.bf16.msra.mxu0 %v452
    %2731 = vmatprep.subr.bf16.mxu0 0
    %2732 = vmatpush1.bf16.msra.mxu0 %v453
    %2733 = vmatprep.mubr.bf16.mxu0 %v2543
    %2734 = vmatmul.mubr.bf16.gmra.mrb[0].mxu0 %v2542
    %v2735 = vpop.f32.mrb[0].mxu0
    %v2736 = vadd.f32 %v2639, %v2735
    %v2737 = vpop.f32.mrb[0].mxu0
    %v2738 = vpop.f32.mrb[0].mxu0
    %v2739 = vadd.f32 %v2642, %v2738
    %v2740 = vpop.f32.mrb[0].mxu0
    %2741 = vmatprep.mubr.bf16.mxu0 %v2547
    %2742 = vmatmul.mubr.bf16.gmra.mrb[0].mxu0 %v2546
    %v2743 = vpop.f32.mrb[0].mxu0
    %v2744 = vadd.f32 %v2647, %v2743
    %v2745 = vpop.f32.mrb[0].mxu0
    %v2746 = vpop.f32.mrb[0].mxu0
    %v2747 = vadd.f32 %v2650, %v2746
    %v2748 = vpop.f32.mrb[0].mxu0
    %2749 = vmatprep.mubr.bf16.mxu0 %v2551
    %2750 = vmatmul.mubr.bf16.gmra.mrb[0].mxu0 %v2550
    %v2751 = vpop.f32.mrb[0].mxu0
    %v2752 = vadd.f32 %v2655, %v2751
    %v2753 = vpop.f32.mrb[0].mxu0
    %v2754 = vpop.f32.mrb[0].mxu0
    %v2755 = vadd.f32 %v2658, %v2754
    %v2756 = vpop.f32.mrb[0].mxu0
    %2757 = vmatprep.mubr.bf16.mxu0 %v2555
    %2758 = vmatmul.mubr.bf16.gmra.mrb[0].mxu0 %v2554
    %v2759 = vpop.f32.mrb[0].mxu0
    %v2760 = vadd.f32 %v2663, %v2759
    %v2761 = vpop.f32.mrb[0].mxu0
    %v2762 = vpop.f32.mrb[0].mxu0
    %v2763 = vadd.f32 %v2666, %v2762
    %v2764 = vpop.f32.mrb[0].mxu0
    %2765 = vmatprep.mubr.bf16.mxu0 %v2559
    %2766 = vmatmul.mubr.bf16.gmra.mrb[0].mxu0 %v2558
    %v2767 = vpop.f32.mrb[0].mxu0
    %v2768 = vadd.f32 %v2671, %v2767
    %v2769 = vpop.f32.mrb[0].mxu0
    %v2770 = vpop.f32.mrb[0].mxu0
    %v2771 = vadd.f32 %v2674, %v2770
    %v2772 = vpop.f32.mrb[0].mxu0
    %2773 = vmatprep.mubr.bf16.mxu0 %v2563
    %2774 = vmatmul.mubr.bf16.gmra.mrb[0].mxu0 %v2562
    %v2775 = vpop.f32.mrb[0].mxu0
    %v2776 = vadd.f32 %v2679, %v2775
    %v2777 = vpop.f32.mrb[0].mxu0
    %v2778 = vpop.f32.mrb[0].mxu0
    %v2779 = vadd.f32 %v2682, %v2778
    %v2780 = vpop.f32.mrb[0].mxu0
    %2781 = vmatprep.mubr.bf16.mxu0 %v2567
    %2782 = vmatmul.mubr.bf16.gmra.mrb[0].mxu0 %v2566
    %v2783 = vpop.f32.mrb[0].mxu0
    %v2784 = vadd.f32 %v2687, %v2783
    %v2785 = vpop.f32.mrb[0].mxu0
    %v2786 = vpop.f32.mrb[0].mxu0
    %v2787 = vadd.f32 %v2690, %v2786
    %v2788 = vpop.f32.mrb[0].mxu0
    %2789 = vmatprep.mubr.bf16.mxu0 %v2571
    %2790 = vmatmul.mubr.bf16.gmra.mrb[0].mxu0 %v2570
    %v2791 = vpop.f32.mrb[0].mxu0
    %v2792 = vadd.f32 %v2695, %v2791
    %v2793 = vpop.f32.mrb[0].mxu0
    %v2794 = vpop.f32.mrb[0].mxu0
    %v2795 = vadd.f32 %v2698, %v2794
    %v2796 = vpop.f32.mrb[0].mxu0
    %2797 = vdwg.mxu0
    %v2798 = vpack.c.bf16 %v2739, %v2736
    %v2799 = vpack.c.bf16 %v2747, %v2744
    %v2800 = vpack.c.bf16 %v2755, %v2752
    %v2801 = vpack.c.bf16 %v2763, %v2760
    %v2802 = vpack.c.bf16 %v2771, %v2768
    %v2803 = vpack.c.bf16 %v2779, %v2776
    %v2804 = vpack.c.bf16 %v2787, %v2784
    %v2805 = vpack.c.bf16 %v2795, %v2792
    %v2807 = vsel %vm1085, %v2798, 0
    %v2810 = vsel %vm1085, %v2799, 0
    %v2813 = vsel %vm1085, %v2800, 0
    %v2816 = vsel %vm1085, %v2801, 0
    %v2819 = vsel %vm1085, %v2802, 0
    %v2822 = vsel %vm1085, %v2803, 0
    %v2825 = vsel %vm1085, %v2804, 0
    %v2828 = vsel %vm1085, %v2805, 0
    %v2831 = vsel %vm1110, %v2443, 0
    %2833 = vmatprep.subr.bf16.mxu0 0
    %2834 = vmatpush1.bf16.msra.mxu0 %v2831
    %2835 = vmatprep.subr.bf16.mxu0 0
    %2836 = vmatpush1.bf16.msra.mxu0 0
    %2837 = vmatprep.subr.bf16.mxu0 0
    %2838 = vmatpush1.bf16.msra.mxu0 0
    %2839 = vmatprep.subr.bf16.mxu0 0
    %2840 = vmatpush1.bf16.msra.mxu0 0
    %2841 = vmatprep.subr.bf16.mxu0 0
    %2842 = vmatpush1.bf16.msra.mxu0 0
    %2843 = vmatprep.subr.bf16.mxu0 0
    %2844 = vmatpush1.bf16.msra.mxu0 0
    %2845 = vmatprep.subr.bf16.mxu0 0
    %2846 = vmatpush1.bf16.msra.mxu0 0
    %2847 = vmatprep.subr.bf16.mxu0 0
    %2848 = vmatpush1.bf16.msra.mxu0 0
    %2849 = vmatprep.subr.bf16.mxu0 0
    %2850 = vmatpush1.bf16.msra.mxu0 0
    %2851 = vmatprep.subr.bf16.mxu0 0
    %2852 = vmatpush1.bf16.msra.mxu0 0
    %2853 = vmatprep.subr.bf16.mxu0 0
    %2854 = vmatpush1.bf16.msra.mxu0 0
    %2855 = vmatprep.subr.bf16.mxu0 0
    %2856 = vmatpush1.bf16.msra.mxu0 0
    %2857 = vmatprep.subr.bf16.mxu0 0
    %2858 = vmatpush1.bf16.msra.mxu0 0
    %2859 = vmatprep.subr.bf16.mxu0 0
    %2860 = vmatpush1.bf16.msra.mxu0 0
    %2861 = vmatprep.subr.bf16.mxu0 0
    %2862 = vmatpush1.bf16.msra.mxu0 0
    %2863 = vmatprep.subr.bf16.mxu0 0
    %2864 = vmatpush1.bf16.msra.mxu0 0
    %2865 = vmatprep.mubr.bf16.mxu0 0
    %2866 = vmatmul.mubr.bf16.gmra.mrb[0].mxu0 %v2807
    %v2867 = vpop.f32.mrb[0].mxu0
    %v2868 = vadd.f32 0.0, %v2867
    %v2869 = vpop.f32.mrb[0].mxu0
    %v2870 = vpop.f32.mrb[0].mxu0
    %v2871 = vadd.f32 0.0, %v2870
    %v2872 = vpop.f32.mrb[0].mxu0
    %2873 = vmatprep.mubr.bf16.mxu0 0
    %2874 = vmatmul.mubr.bf16.gmra.mrb[0].mxu0 %v2810
    %v2875 = vpop.f32.mrb[0].mxu0
    %v2876 = vadd.f32 0.0, %v2875
    %v2877 = vpop.f32.mrb[0].mxu0
    %v2878 = vpop.f32.mrb[0].mxu0
    %v2879 = vadd.f32 0.0, %v2878
    %v2880 = vpop.f32.mrb[0].mxu0
    %2881 = vmatprep.mubr.bf16.mxu0 0
    %2882 = vmatmul.mubr.bf16.gmra.mrb[0].mxu0 %v2813
    %v2883 = vpop.f32.mrb[0].mxu0
    %v2884 = vadd.f32 0.0, %v2883
    %v2885 = vpop.f32.mrb[0].mxu0
    %v2886 = vpop.f32.mrb[0].mxu0
    %v2887 = vadd.f32 0.0, %v2886
    %v2888 = vpop.f32.mrb[0].mxu0
    %2889 = vmatprep.mubr.bf16.mxu0 0
    %2890 = vmatmul.mubr.bf16.gmra.mrb[0].mxu0 %v2816
    %v2891 = vpop.f32.mrb[0].mxu0
    %v2892 = vadd.f32 0.0, %v2891
    %v2893 = vpop.f32.mrb[0].mxu0
    %v2894 = vpop.f32.mrb[0].mxu0
    %v2895 = vadd.f32 0.0, %v2894
    %v2896 = vpop.f32.mrb[0].mxu0
    %2897 = vmatprep.mubr.bf16.mxu0 0
    %2898 = vmatmul.mubr.bf16.gmra.mrb[0].mxu0 %v2819
    %v2899 = vpop.f32.mrb[0].mxu0
    %v2900 = vadd.f32 0.0, %v2899
    %v2901 = vpop.f32.mrb[0].mxu0
    %v2902 = vpop.f32.mrb[0].mxu0
    %v2903 = vadd.f32 0.0, %v2902
    %v2904 = vpop.f32.mrb[0].mxu0
    %2905 = vmatprep.mubr.bf16.mxu0 0
    %2906 = vmatmul.mubr.bf16.gmra.mrb[0].mxu0 %v2822
    %v2907 = vpop.f32.mrb[0].mxu0
    %v2908 = vadd.f32 0.0, %v2907
    %v2909 = vpop.f32.mrb[0].mxu0
    %v2910 = vpop.f32.mrb[0].mxu0
    %v2911 = vadd.f32 0.0, %v2910
    %v2912 = vpop.f32.mrb[0].mxu0
    %2913 = vmatprep.mubr.bf16.mxu0 0
    %2914 = vmatmul.mubr.bf16.gmra.mrb[0].mxu0 %v2825
    %v2915 = vpop.f32.mrb[0].mxu0
    %v2916 = vadd.f32 0.0, %v2915
    %v2917 = vpop.f32.mrb[0].mxu0
    %v2918 = vpop.f32.mrb[0].mxu0
    %v2919 = vadd.f32 0.0, %v2918
    %v2920 = vpop.f32.mrb[0].mxu0
    %2921 = vmatprep.mubr.bf16.mxu0 0
    %2922 = vmatmul.mubr.bf16.gmra.mrb[0].mxu0 %v2828
    %v2923 = vpop.f32.mrb[0].mxu0
    %v2924 = vadd.f32 0.0, %v2923
    %v2925 = vpop.f32.mrb[0].mxu0
    %v2926 = vpop.f32.mrb[0].mxu0
    %v2927 = vadd.f32 0.0, %v2926
    %v2928 = vpop.f32.mrb[0].mxu0
    %2929 = vdwg.mxu0
    %v2930 = vadd.f32 %v2393, %v2868
    %v2931 = vadd.f32 %v2394, %v2871
    %v2932 = vadd.f32 %v2395, %v2876
    %v2933 = vadd.f32 %v2396, %v2879
    %v2934 = vadd.f32 %v2397, %v2884
    %v2935 = vadd.f32 %v2398, %v2887
    %v2936 = vadd.f32 %v2399, %v2892
    %v2937 = vadd.f32 %v2400, %v2895
    %v2938 = vadd.f32 %v2401, %v2900
    %v2939 = vadd.f32 %v2402, %v2903
    %v2940 = vadd.f32 %v2403, %v2908
    %v2941 = vadd.f32 %v2404, %v2911
    %v2942 = vadd.f32 %v2405, %v2916
    %v2943 = vadd.f32 %v2406, %v2919
    %v2944 = vadd.f32 %v2407, %v2924
    %v2945 = vadd.f32 %v2408, %v2927
    %s2946 = scalar_lea.vmem %s1, 1280
    %v2947 = vld [vmem:[%s2946] sm:$0xff]
    %v2948 = vld [vmem:[%s2946 + $0x8] sm:$0xff]
    %v2949 = vld [vmem:[%s2946 + $0x10] sm:$0xff]
    %v2950 = vld [vmem:[%s2946 + $0x18] sm:$0xff]
    %v2951 = vld [vmem:[%s2946 + $0x20] sm:$0xff]
    %v2952 = vld [vmem:[%s2946 + $0x28] sm:$0xff]
    %v2953 = vld [vmem:[%s2946 + $0x30] sm:$0xff]
    %v2954 = vld [vmem:[%s2946 + $0x38] sm:$0xff]
    %v2955 = vld [vmem:[%s2946 + $0x40] sm:$0xff]
    %v2956 = vld [vmem:[%s2946 + $0x48] sm:$0xff]
    %v2957 = vld [vmem:[%s2946 + $0x50] sm:$0xff]
    %v2958 = vld [vmem:[%s2946 + $0x58] sm:$0xff]
    %v2959 = vld [vmem:[%s2946 + $0x60] sm:$0xff]
    %v2960 = vld [vmem:[%s2946 + $0x68] sm:$0xff]
    %v2961 = vld [vmem:[%s2946 + $0x70] sm:$0xff]
    %v2962 = vld [vmem:[%s2946 + $0x78] sm:$0xff]
    %v2963 = vld [vmem:[%s2946 + $0x80] sm:$0xff]
    %v2964 = vld [vmem:[%s2946 + $0x88] sm:$0xff]
    %v2965 = vld [vmem:[%s2946 + $0x90] sm:$0xff]
    %v2966 = vld [vmem:[%s2946 + $0x98] sm:$0xff]
    %v2967 = vld [vmem:[%s2946 + $0xa0] sm:$0xff]
    %v2968 = vld [vmem:[%s2946 + $0xa8] sm:$0xff]
    %v2969 = vld [vmem:[%s2946 + $0xb0] sm:$0xff]
    %v2970 = vld [vmem:[%s2946 + $0xb8] sm:$0xff]
    %v2971 = vld [vmem:[%s2946 + $0xc0] sm:$0xff]
    %v2972 = vld [vmem:[%s2946 + $0xc8] sm:$0xff]
    %v2973 = vld [vmem:[%s2946 + $0xd0] sm:$0xff]
    %v2974 = vld [vmem:[%s2946 + $0xd8] sm:$0xff]
    %v2975 = vld [vmem:[%s2946 + $0xe0] sm:$0xff]
    %v2976 = vld [vmem:[%s2946 + $0xe8] sm:$0xff]
    %v2977 = vld [vmem:[%s2946 + $0xf0] sm:$0xff]
    %v2978 = vld [vmem:[%s2946 + $0xf8] sm:$0xff]
    %s2979 = scalar_lea.vmem %s5, 20
    %v2980 = vld [vmem:[%s2979] sm:$0xf]
    %v3013 = vunpack.c.l.b16 %v2947
    %v3014 = vunpack.c.h.b16 %v2947
    %v3015 = vunpack.c.l.b16 %v2948
    %v3016 = vunpack.c.h.b16 %v2948
    %v3017 = vunpack.c.l.b16 %v2949
    %v3018 = vunpack.c.h.b16 %v2949
    %v3019 = vunpack.c.l.b16 %v2950
    %v3020 = vunpack.c.h.b16 %v2950
    %v3021 = vunpack.c.l.b16 %v2951
    %v3022 = vunpack.c.h.b16 %v2951
    %v3023 = vunpack.c.l.b16 %v2952
    %v3024 = vunpack.c.h.b16 %v2952
    %v3025 = vunpack.c.l.b16 %v2953
    %v3026 = vunpack.c.h.b16 %v2953
    %v3027 = vunpack.c.l.b16 %v2954
    %v3028 = vunpack.c.h.b16 %v2954
    %v3029 = vunpack.c.l.b16 %v2955
    %v3030 = vunpack.c.h.b16 %v2955
    %v3031 = vunpack.c.l.b16 %v2956
    %v3032 = vunpack.c.h.b16 %v2956
    %v3033 = vunpack.c.l.b16 %v2957
    %v3034 = vunpack.c.h.b16 %v2957
    %v3035 = vunpack.c.l.b16 %v2958
    %v3036 = vunpack.c.h.b16 %v2958
    %v3037 = vunpack.c.l.b16 %v2959
    %v3038 = vunpack.c.h.b16 %v2959
    %v3039 = vunpack.c.l.b16 %v2960
    %v3040 = vunpack.c.h.b16 %v2960
    %v3041 = vunpack.c.l.b16 %v2961
    %v3042 = vunpack.c.h.b16 %v2961
    %v3043 = vunpack.c.l.b16 %v2962
    %v3044 = vunpack.c.h.b16 %v2962
    %v3045 = vunpack.c.l.b16 %v2963
    %v3046 = vunpack.c.h.b16 %v2963
    %v3047 = vunpack.c.l.b16 %v2964
    %v3048 = vunpack.c.h.b16 %v2964
    %v3049 = vunpack.c.l.b16 %v2965
    %v3050 = vunpack.c.h.b16 %v2965
    %v3051 = vunpack.c.l.b16 %v2966
    %v3052 = vunpack.c.h.b16 %v2966
    %v3053 = vunpack.c.l.b16 %v2967
    %v3054 = vunpack.c.h.b16 %v2967
    %v3055 = vunpack.c.l.b16 %v2968
    %v3056 = vunpack.c.h.b16 %v2968
    %v3057 = vunpack.c.l.b16 %v2969
    %v3058 = vunpack.c.h.b16 %v2969
    %v3059 = vunpack.c.l.b16 %v2970
    %v3060 = vunpack.c.h.b16 %v2970
    %v3061 = vunpack.c.l.b16 %v2971
    %v3062 = vunpack.c.h.b16 %v2971
    %v3063 = vunpack.c.l.b16 %v2972
    %v3064 = vunpack.c.h.b16 %v2972
    %v3065 = vunpack.c.l.b16 %v2973
    %v3066 = vunpack.c.h.b16 %v2973
    %v3067 = vunpack.c.l.b16 %v2974
    %v3068 = vunpack.c.h.b16 %v2974
    %v3069 = vunpack.c.l.b16 %v2975
    %v3070 = vunpack.c.h.b16 %v2975
    %v3071 = vunpack.c.l.b16 %v2976
    %v3072 = vunpack.c.h.b16 %v2976
    %v3073 = vunpack.c.l.b16 %v2977
    %v3074 = vunpack.c.h.b16 %v2977
    %v3075 = vunpack.c.l.b16 %v2978
    %v3076 = vunpack.c.h.b16 %v2978
    %v3077 = vpack.c.b16 %v3017, %v3013
    %v3078 = vpack.c.b16 %v3018, %v3014
    %v3079 = vpack.c.b16 %v3019, %v3015
    %v3080 = vpack.c.b16 %v3020, %v3016
    %v3081 = vpack.c.b16 %v3025, %v3021
    %v3082 = vpack.c.b16 %v3026, %v3022
    %v3083 = vpack.c.b16 %v3027, %v3023
    %v3084 = vpack.c.b16 %v3028, %v3024
    %v3085 = vpack.c.b16 %v3033, %v3029
    %v3086 = vpack.c.b16 %v3034, %v3030
    %v3087 = vpack.c.b16 %v3035, %v3031
    %v3088 = vpack.c.b16 %v3036, %v3032
    %v3089 = vpack.c.b16 %v3041, %v3037
    %v3090 = vpack.c.b16 %v3042, %v3038
    %v3091 = vpack.c.b16 %v3043, %v3039
    %v3092 = vpack.c.b16 %v3044, %v3040
    %v3093 = vpack.c.b16 %v3049, %v3045
    %v3094 = vpack.c.b16 %v3050, %v3046
    %v3095 = vpack.c.b16 %v3051, %v3047
    %v3096 = vpack.c.b16 %v3052, %v3048
    %v3097 = vpack.c.b16 %v3057, %v3053
    %v3098 = vpack.c.b16 %v3058, %v3054
    %v3099 = vpack.c.b16 %v3059, %v3055
    %v3100 = vpack.c.b16 %v3060, %v3056
    %v3101 = vpack.c.b16 %v3065, %v3061
    %v3102 = vpack.c.b16 %v3066, %v3062
    %v3103 = vpack.c.b16 %v3067, %v3063
    %v3104 = vpack.c.b16 %v3068, %v3064
    %v3105 = vpack.c.b16 %v3073, %v3069
    %v3106 = vpack.c.b16 %v3074, %v3070
    %v3107 = vpack.c.b16 %v3075, %v3071
    %v3108 = vpack.c.b16 %v3076, %v3072
    %3141 = vmatprep.subr.bf16.mxu0 0
    %3142 = vmatpush1.bf16.msra.mxu0 %v422
    %3143 = vmatprep.subr.bf16.mxu0 0
    %3144 = vmatpush1.bf16.msra.mxu0 %v423
    %3145 = vmatprep.subr.bf16.mxu0 0
    %3146 = vmatpush1.bf16.msra.mxu0 %v424
    %3147 = vmatprep.subr.bf16.mxu0 0
    %3148 = vmatpush1.bf16.msra.mxu0 %v425
    %3149 = vmatprep.subr.bf16.mxu0 0
    %3150 = vmatpush1.bf16.msra.mxu0 %v426
    %3151 = vmatprep.subr.bf16.mxu0 0
    %3152 = vmatpush1.bf16.msra.mxu0 %v427
    %3153 = vmatprep.subr.bf16.mxu0 0
    %3154 = vmatpush1.bf16.msra.mxu0 %v428
    %3155 = vmatprep.subr.bf16.mxu0 0
    %3156 = vmatpush1.bf16.msra.mxu0 %v429
    %3157 = vmatprep.subr.bf16.mxu0 0
    %3158 = vmatpush1.bf16.msra.mxu0 %v430
    %3159 = vmatprep.subr.bf16.mxu0 0
    %3160 = vmatpush1.bf16.msra.mxu0 %v431
    %3161 = vmatprep.subr.bf16.mxu0 0
    %3162 = vmatpush1.bf16.msra.mxu0 %v432
    %3163 = vmatprep.subr.bf16.mxu0 0
    %3164 = vmatpush1.bf16.msra.mxu0 %v433
    %3165 = vmatprep.subr.bf16.mxu0 0
    %3166 = vmatpush1.bf16.msra.mxu0 %v434
    %3167 = vmatprep.subr.bf16.mxu0 0
    %3168 = vmatpush1.bf16.msra.mxu0 %v435
    %3169 = vmatprep.subr.bf16.mxu0 0
    %3170 = vmatpush1.bf16.msra.mxu0 %v436
    %3171 = vmatprep.subr.bf16.mxu0 0
    %3172 = vmatpush1.bf16.msra.mxu0 %v437
    %3173 = vmatprep.mubr.bf16.mxu0 %v3078
    %3174 = vmatmul.mubr.bf16.gmra.mrb[0].mxu0 %v3077
    %v3175 = vpop.f32.mrb[0].mxu0
    %v3176 = vadd.f32 0.0, %v3175
    %v3177 = vpop.f32.mrb[0].mxu0
    %v3178 = vpop.f32.mrb[0].mxu0
    %v3179 = vadd.f32 0.0, %v3178
    %v3180 = vpop.f32.mrb[0].mxu0
    %3181 = vmatprep.mubr.bf16.mxu0 %v3082
    %3182 = vmatmul.mubr.bf16.gmra.mrb[0].mxu0 %v3081
    %v3183 = vpop.f32.mrb[0].mxu0
    %v3184 = vadd.f32 0.0, %v3183
    %v3185 = vpop.f32.mrb[0].mxu0
    %v3186 = vpop.f32.mrb[0].mxu0
    %v3187 = vadd.f32 0.0, %v3186
    %v3188 = vpop.f32.mrb[0].mxu0
    %3189 = vmatprep.mubr.bf16.mxu0 %v3086
    %3190 = vmatmul.mubr.bf16.gmra.mrb[0].mxu0 %v3085
    %v3191 = vpop.f32.mrb[0].mxu0
    %v3192 = vadd.f32 0.0, %v3191
    %v3193 = vpop.f32.mrb[0].mxu0
    %v3194 = vpop.f32.mrb[0].mxu0
    %v3195 = vadd.f32 0.0, %v3194
    %v3196 = vpop.f32.mrb[0].mxu0
    %3197 = vmatprep.mubr.bf16.mxu0 %v3090
    %3198 = vmatmul.mubr.bf16.gmra.mrb[0].mxu0 %v3089
    %v3199 = vpop.f32.mrb[0].mxu0
    %v3200 = vadd.f32 0.0, %v3199
    %v3201 = vpop.f32.mrb[0].mxu0
    %v3202 = vpop.f32.mrb[0].mxu0
    %v3203 = vadd.f32 0.0, %v3202
    %v3204 = vpop.f32.mrb[0].mxu0
    %3205 = vmatprep.mubr.bf16.mxu0 %v3094
    %3206 = vmatmul.mubr.bf16.gmra.mrb[0].mxu0 %v3093
    %v3207 = vpop.f32.mrb[0].mxu0
    %v3208 = vadd.f32 0.0, %v3207
    %v3209 = vpop.f32.mrb[0].mxu0
    %v3210 = vpop.f32.mrb[0].mxu0
    %v3211 = vadd.f32 0.0, %v3210
    %v3212 = vpop.f32.mrb[0].mxu0
    %3213 = vmatprep.mubr.bf16.mxu0 %v3098
    %3214 = vmatmul.mubr.bf16.gmra.mrb[0].mxu0 %v3097
    %v3215 = vpop.f32.mrb[0].mxu0
    %v3216 = vadd.f32 0.0, %v3215
    %v3217 = vpop.f32.mrb[0].mxu0
    %v3218 = vpop.f32.mrb[0].mxu0
    %v3219 = vadd.f32 0.0, %v3218
    %v3220 = vpop.f32.mrb[0].mxu0
    %3221 = vmatprep.mubr.bf16.mxu0 %v3102
    %3222 = vmatmul.mubr.bf16.gmra.mrb[0].mxu0 %v3101
    %v3223 = vpop.f32.mrb[0].mxu0
    %v3224 = vadd.f32 0.0, %v3223
    %v3225 = vpop.f32.mrb[0].mxu0
    %v3226 = vpop.f32.mrb[0].mxu0
    %v3227 = vadd.f32 0.0, %v3226
    %v3228 = vpop.f32.mrb[0].mxu0
    %3229 = vmatprep.mubr.bf16.mxu0 %v3106
    %3230 = vmatmul.mubr.bf16.gmra.mrb[0].mxu0 %v3105
    %v3231 = vpop.f32.mrb[0].mxu0
    %v3232 = vadd.f32 0.0, %v3231
    %v3233 = vpop.f32.mrb[0].mxu0
    %v3234 = vpop.f32.mrb[0].mxu0
    %v3235 = vadd.f32 0.0, %v3234
    %v3236 = vpop.f32.mrb[0].mxu0
    %3237 = vdwg.mxu0
    %3238 = vmatprep.subr.bf16.mxu0 0
    %3239 = vmatpush1.bf16.msra.mxu0 %v438
    %3240 = vmatprep.subr.bf16.mxu0 0
    %3241 = vmatpush1.bf16.msra.mxu0 %v439
    %3242 = vmatprep.subr.bf16.mxu0 0
    %3243 = vmatpush1.bf16.msra.mxu0 %v440
    %3244 = vmatprep.subr.bf16.mxu0 0
    %3245 = vmatpush1.bf16.msra.mxu0 %v441
    %3246 = vmatprep.subr.bf16.mxu0 0
    %3247 = vmatpush1.bf16.msra.mxu0 %v442
    %3248 = vmatprep.subr.bf16.mxu0 0
    %3249 = vmatpush1.bf16.msra.mxu0 %v443
    %3250 = vmatprep.subr.bf16.mxu0 0
    %3251 = vmatpush1.bf16.msra.mxu0 %v444
    %3252 = vmatprep.subr.bf16.mxu0 0
    %3253 = vmatpush1.bf16.msra.mxu0 %v445
    %3254 = vmatprep.subr.bf16.mxu0 0
    %3255 = vmatpush1.bf16.msra.mxu0 %v446
    %3256 = vmatprep.subr.bf16.mxu0 0
    %3257 = vmatpush1.bf16.msra.mxu0 %v447
    %3258 = vmatprep.subr.bf16.mxu0 0
    %3259 = vmatpush1.bf16.msra.mxu0 %v448
    %3260 = vmatprep.subr.bf16.mxu0 0
    %3261 = vmatpush1.bf16.msra.mxu0 %v449
    %3262 = vmatprep.subr.bf16.mxu0 0
    %3263 = vmatpush1.bf16.msra.mxu0 %v450
    %3264 = vmatprep.subr.bf16.mxu0 0
    %3265 = vmatpush1.bf16.msra.mxu0 %v451
    %3266 = vmatprep.subr.bf16.mxu0 0
    %3267 = vmatpush1.bf16.msra.mxu0 %v452
    %3268 = vmatprep.subr.bf16.mxu0 0
    %3269 = vmatpush1.bf16.msra.mxu0 %v453
    %3270 = vmatprep.mubr.bf16.mxu0 %v3080
    %3271 = vmatmul.mubr.bf16.gmra.mrb[0].mxu0 %v3079
    %v3272 = vpop.f32.mrb[0].mxu0
    %v3273 = vadd.f32 %v3176, %v3272
    %v3274 = vpop.f32.mrb[0].mxu0
    %v3275 = vpop.f32.mrb[0].mxu0
    %v3276 = vadd.f32 %v3179, %v3275
    %v3277 = vpop.f32.mrb[0].mxu0
    %3278 = vmatprep.mubr.bf16.mxu0 %v3084
    %3279 = vmatmul.mubr.bf16.gmra.mrb[0].mxu0 %v3083
    %v3280 = vpop.f32.mrb[0].mxu0
    %v3281 = vadd.f32 %v3184, %v3280
    %v3282 = vpop.f32.mrb[0].mxu0
    %v3283 = vpop.f32.mrb[0].mxu0
    %v3284 = vadd.f32 %v3187, %v3283
    %v3285 = vpop.f32.mrb[0].mxu0
    %3286 = vmatprep.mubr.bf16.mxu0 %v3088
    %3287 = vmatmul.mubr.bf16.gmra.mrb[0].mxu0 %v3087
    %v3288 = vpop.f32.mrb[0].mxu0
    %v3289 = vadd.f32 %v3192, %v3288
    %v3290 = vpop.f32.mrb[0].mxu0
    %v3291 = vpop.f32.mrb[0].mxu0
    %v3292 = vadd.f32 %v3195, %v3291
    %v3293 = vpop.f32.mrb[0].mxu0
    %3294 = vmatprep.mubr.bf16.mxu0 %v3092
    %3295 = vmatmul.mubr.bf16.gmra.mrb[0].mxu0 %v3091
    %v3296 = vpop.f32.mrb[0].mxu0
    %v3297 = vadd.f32 %v3200, %v3296
    %v3298 = vpop.f32.mrb[0].mxu0
    %v3299 = vpop.f32.mrb[0].mxu0
    %v3300 = vadd.f32 %v3203, %v3299
    %v3301 = vpop.f32.mrb[0].mxu0
    %3302 = vmatprep.mubr.bf16.mxu0 %v3096
    %3303 = vmatmul.mubr.bf16.gmra.mrb[0].mxu0 %v3095
    %v3304 = vpop.f32.mrb[0].mxu0
    %v3305 = vadd.f32 %v3208, %v3304
    %v3306 = vpop.f32.mrb[0].mxu0
    %v3307 = vpop.f32.mrb[0].mxu0
    %v3308 = vadd.f32 %v3211, %v3307
    %v3309 = vpop.f32.mrb[0].mxu0
    %3310 = vmatprep.mubr.bf16.mxu0 %v3100
    %3311 = vmatmul.mubr.bf16.gmra.mrb[0].mxu0 %v3099
    %v3312 = vpop.f32.mrb[0].mxu0
    %v3313 = vadd.f32 %v3216, %v3312
    %v3314 = vpop.f32.mrb[0].mxu0
    %v3315 = vpop.f32.mrb[0].mxu0
    %v3316 = vadd.f32 %v3219, %v3315
    %v3317 = vpop.f32.mrb[0].mxu0
    %3318 = vmatprep.mubr.bf16.mxu0 %v3104
    %3319 = vmatmul.mubr.bf16.gmra.mrb[0].mxu0 %v3103
    %v3320 = vpop.f32.mrb[0].mxu0
    %v3321 = vadd.f32 %v3224, %v3320
    %v3322 = vpop.f32.mrb[0].mxu0
    %v3323 = vpop.f32.mrb[0].mxu0
    %v3324 = vadd.f32 %v3227, %v3323
    %v3325 = vpop.f32.mrb[0].mxu0
    %3326 = vmatprep.mubr.bf16.mxu0 %v3108
    %3327 = vmatmul.mubr.bf16.gmra.mrb[0].mxu0 %v3107
    %v3328 = vpop.f32.mrb[0].mxu0
    %v3329 = vadd.f32 %v3232, %v3328
    %v3330 = vpop.f32.mrb[0].mxu0
    %v3331 = vpop.f32.mrb[0].mxu0
    %v3332 = vadd.f32 %v3235, %v3331
    %v3333 = vpop.f32.mrb[0].mxu0
    %3334 = vdwg.mxu0
    %v3335 = vpack.c.bf16 %v3276, %v3273
    %v3336 = vpack.c.bf16 %v3284, %v3281
    %v3337 = vpack.c.bf16 %v3292, %v3289
    %v3338 = vpack.c.bf16 %v3300, %v3297
    %v3339 = vpack.c.bf16 %v3308, %v3305
    %v3340 = vpack.c.bf16 %v3316, %v3313
    %v3341 = vpack.c.bf16 %v3324, %v3321
    %v3342 = vpack.c.bf16 %v3332, %v3329
    %v3344 = vsel %vm1085, %v3335, 0
    %v3347 = vsel %vm1085, %v3336, 0
    %v3350 = vsel %vm1085, %v3337, 0
    %v3353 = vsel %vm1085, %v3338, 0
    %v3356 = vsel %vm1085, %v3339, 0
    %v3359 = vsel %vm1085, %v3340, 0
    %v3362 = vsel %vm1085, %v3341, 0
    %v3365 = vsel %vm1085, %v3342, 0
    %v3368 = vsel %vm1110, %v2980, 0
    %3370 = vmatprep.subr.bf16.mxu0 0
    %3371 = vmatpush1.bf16.msra.mxu0 %v3368
    %3372 = vmatprep.subr.bf16.mxu0 0
    %3373 = vmatpush1.bf16.msra.mxu0 0
    %3374 = vmatprep.subr.bf16.mxu0 0
    %3375 = vmatpush1.bf16.msra.mxu0 0
    %3376 = vmatprep.subr.bf16.mxu0 0
    %3377 = vmatpush1.bf16.msra.mxu0 0
    %3378 = vmatprep.subr.bf16.mxu0 0
    %3379 = vmatpush1.bf16.msra.mxu0 0
    %3380 = vmatprep.subr.bf16.mxu0 0
    %3381 = vmatpush1.bf16.msra.mxu0 0
    %3382 = vmatprep.subr.bf16.mxu0 0
    %3383 = vmatpush1.bf16.msra.mxu0 0
    %3384 = vmatprep.subr.bf16.mxu0 0
    %3385 = vmatpush1.bf16.msra.mxu0 0
    %3386 = vmatprep.subr.bf16.mxu0 0
    %3387 = vmatpush1.bf16.msra.mxu0 0
    %3388 = vmatprep.subr.bf16.mxu0 0
    %3389 = vmatpush1.bf16.msra.mxu0 0
    %3390 = vmatprep.subr.bf16.mxu0 0
    %3391 = vmatpush1.bf16.msra.mxu0 0
    %3392 = vmatprep.subr.bf16.mxu0 0
    %3393 = vmatpush1.bf16.msra.mxu0 0
    %3394 = vmatprep.subr.bf16.mxu0 0
    %3395 = vmatpush1.bf16.msra.mxu0 0
    %3396 = vmatprep.subr.bf16.mxu0 0
    %3397 = vmatpush1.bf16.msra.mxu0 0
    %3398 = vmatprep.subr.bf16.mxu0 0
    %3399 = vmatpush1.bf16.msra.mxu0 0
    %3400 = vmatprep.subr.bf16.mxu0 0
    %3401 = vmatpush1.bf16.msra.mxu0 0
    %3402 = vmatprep.mubr.bf16.mxu0 0
    %3403 = vmatmul.mubr.bf16.gmra.mrb[0].mxu0 %v3344
    %v3404 = vpop.f32.mrb[0].mxu0
    %v3405 = vadd.f32 0.0, %v3404
    %v3406 = vpop.f32.mrb[0].mxu0
    %v3407 = vpop.f32.mrb[0].mxu0
    %v3408 = vadd.f32 0.0, %v3407
    %v3409 = vpop.f32.mrb[0].mxu0
    %3410 = vmatprep.mubr.bf16.mxu0 0
    %3411 = vmatmul.mubr.bf16.gmra.mrb[0].mxu0 %v3347
    %v3412 = vpop.f32.mrb[0].mxu0
    %v3413 = vadd.f32 0.0, %v3412
    %v3414 = vpop.f32.mrb[0].mxu0
    %v3415 = vpop.f32.mrb[0].mxu0
    %v3416 = vadd.f32 0.0, %v3415
    %v3417 = vpop.f32.mrb[0].mxu0
    %3418 = vmatprep.mubr.bf16.mxu0 0
    %3419 = vmatmul.mubr.bf16.gmra.mrb[0].mxu0 %v3350
    %v3420 = vpop.f32.mrb[0].mxu0
    %v3421 = vadd.f32 0.0, %v3420
    %v3422 = vpop.f32.mrb[0].mxu0
    %v3423 = vpop.f32.mrb[0].mxu0
    %v3424 = vadd.f32 0.0, %v3423
    %v3425 = vpop.f32.mrb[0].mxu0
    %3426 = vmatprep.mubr.bf16.mxu0 0
    %3427 = vmatmul.mubr.bf16.gmra.mrb[0].mxu0 %v3353
    %v3428 = vpop.f32.mrb[0].mxu0
    %v3429 = vadd.f32 0.0, %v3428
    %v3430 = vpop.f32.mrb[0].mxu0
    %v3431 = vpop.f32.mrb[0].mxu0
    %v3432 = vadd.f32 0.0, %v3431
    %v3433 = vpop.f32.mrb[0].mxu0
    %3434 = vmatprep.mubr.bf16.mxu0 0
    %3435 = vmatmul.mubr.bf16.gmra.mrb[0].mxu0 %v3356
    %v3436 = vpop.f32.mrb[0].mxu0
    %v3437 = vadd.f32 0.0, %v3436
    %v3438 = vpop.f32.mrb[0].mxu0
    %v3439 = vpop.f32.mrb[0].mxu0
    %v3440 = vadd.f32 0.0, %v3439
    %v3441 = vpop.f32.mrb[0].mxu0
    %3442 = vmatprep.mubr.bf16.mxu0 0
    %3443 = vmatmul.mubr.bf16.gmra.mrb[0].mxu0 %v3359
    %v3444 = vpop.f32.mrb[0].mxu0
    %v3445 = vadd.f32 0.0, %v3444
    %v3446 = vpop.f32.mrb[0].mxu0
    %v3447 = vpop.f32.mrb[0].mxu0
    %v3448 = vadd.f32 0.0, %v3447
    %v3449 = vpop.f32.mrb[0].mxu0
    %3450 = vmatprep.mubr.bf16.mxu0 0
    %3451 = vmatmul.mubr.bf16.gmra.mrb[0].mxu0 %v3362
    %v3452 = vpop.f32.mrb[0].mxu0
    %v3453 = vadd.f32 0.0, %v3452
    %v3454 = vpop.f32.mrb[0].mxu0
    %v3455 = vpop.f32.mrb[0].mxu0
    %v3456 = vadd.f32 0.0, %v3455
    %v3457 = vpop.f32.mrb[0].mxu0
    %3458 = vmatprep.mubr.bf16.mxu0 0
    %3459 = vmatmul.mubr.bf16.gmra.mrb[0].mxu0 %v3365
    %v3460 = vpop.f32.mrb[0].mxu0
    %v3461 = vadd.f32 0.0, %v3460
    %v3462 = vpop.f32.mrb[0].mxu0
    %v3463 = vpop.f32.mrb[0].mxu0
    %v3464 = vadd.f32 0.0, %v3463
    %v3465 = vpop.f32.mrb[0].mxu0
    %3466 = vdwg.mxu0
    %v3467 = vadd.f32 %v2930, %v3405
    %v3468 = vadd.f32 %v2931, %v3408
    %v3469 = vadd.f32 %v2932, %v3413
    %v3470 = vadd.f32 %v2933, %v3416
    %v3471 = vadd.f32 %v2934, %v3421
    %v3472 = vadd.f32 %v2935, %v3424
    %v3473 = vadd.f32 %v2936, %v3429
    %v3474 = vadd.f32 %v2937, %v3432
    %v3475 = vadd.f32 %v2938, %v3437
    %v3476 = vadd.f32 %v2939, %v3440
    %v3477 = vadd.f32 %v2940, %v3445
    %v3478 = vadd.f32 %v2941, %v3448
    %v3479 = vadd.f32 %v2942, %v3453
    %v3480 = vadd.f32 %v2943, %v3456
    %v3481 = vadd.f32 %v2944, %v3461
    %v3482 = vadd.f32 %v2945, %v3464
    %s3483 = scalar_lea.vmem %s1, 1536
    %v3484 = vld [vmem:[%s3483] sm:$0xff]
    %v3485 = vld [vmem:[%s3483 + $0x8] sm:$0xff]
    %v3486 = vld [vmem:[%s3483 + $0x10] sm:$0xff]
    %v3487 = vld [vmem:[%s3483 + $0x18] sm:$0xff]
    %v3488 = vld [vmem:[%s3483 + $0x20] sm:$0xff]
    %v3489 = vld [vmem:[%s3483 + $0x28] sm:$0xff]
    %v3490 = vld [vmem:[%s3483 + $0x30] sm:$0xff]
    %v3491 = vld [vmem:[%s3483 + $0x38] sm:$0xff]
    %v3492 = vld [vmem:[%s3483 + $0x40] sm:$0xff]
    %v3493 = vld [vmem:[%s3483 + $0x48] sm:$0xff]
    %v3494 = vld [vmem:[%s3483 + $0x50] sm:$0xff]
    %v3495 = vld [vmem:[%s3483 + $0x58] sm:$0xff]
    %v3496 = vld [vmem:[%s3483 + $0x60] sm:$0xff]
    %v3497 = vld [vmem:[%s3483 + $0x68] sm:$0xff]
    %v3498 = vld [vmem:[%s3483 + $0x70] sm:$0xff]
    %v3499 = vld [vmem:[%s3483 + $0x78] sm:$0xff]
    %v3500 = vld [vmem:[%s3483 + $0x80] sm:$0xff]
    %v3501 = vld [vmem:[%s3483 + $0x88] sm:$0xff]
    %v3502 = vld [vmem:[%s3483 + $0x90] sm:$0xff]
    %v3503 = vld [vmem:[%s3483 + $0x98] sm:$0xff]
    %v3504 = vld [vmem:[%s3483 + $0xa0] sm:$0xff]
    %v3505 = vld [vmem:[%s3483 + $0xa8] sm:$0xff]
    %v3506 = vld [vmem:[%s3483 + $0xb0] sm:$0xff]
    %v3507 = vld [vmem:[%s3483 + $0xb8] sm:$0xff]
    %v3508 = vld [vmem:[%s3483 + $0xc0] sm:$0xff]
    %v3509 = vld [vmem:[%s3483 + $0xc8] sm:$0xff]
    %v3510 = vld [vmem:[%s3483 + $0xd0] sm:$0xff]
    %v3511 = vld [vmem:[%s3483 + $0xd8] sm:$0xff]
    %v3512 = vld [vmem:[%s3483 + $0xe0] sm:$0xff]
    %v3513 = vld [vmem:[%s3483 + $0xe8] sm:$0xff]
    %v3514 = vld [vmem:[%s3483 + $0xf0] sm:$0xff]
    %v3515 = vld [vmem:[%s3483 + $0xf8] sm:$0xff]
    %s3516 = scalar_lea.vmem %s5, 24
    %v3517 = vld [vmem:[%s3516] sm:$0xf]
    %v3550 = vunpack.c.l.b16 %v3484
    %v3551 = vunpack.c.h.b16 %v3484
    %v3552 = vunpack.c.l.b16 %v3485
    %v3553 = vunpack.c.h.b16 %v3485
    %v3554 = vunpack.c.l.b16 %v3486
    %v3555 = vunpack.c.h.b16 %v3486
    %v3556 = vunpack.c.l.b16 %v3487
    %v3557 = vunpack.c.h.b16 %v3487
    %v3558 = vunpack.c.l.b16 %v3488
    %v3559 = vunpack.c.h.b16 %v3488
    %v3560 = vunpack.c.l.b16 %v3489
    %v3561 = vunpack.c.h.b16 %v3489
    %v3562 = vunpack.c.l.b16 %v3490
    %v3563 = vunpack.c.h.b16 %v3490
    %v3564 = vunpack.c.l.b16 %v3491
    %v3565 = vunpack.c.h.b16 %v3491
    %v3566 = vunpack.c.l.b16 %v3492
    %v3567 = vunpack.c.h.b16 %v3492
    %v3568 = vunpack.c.l.b16 %v3493
    %v3569 = vunpack.c.h.b16 %v3493
    %v3570 = vunpack.c.l.b16 %v3494
    %v3571 = vunpack.c.h.b16 %v3494
    %v3572 = vunpack.c.l.b16 %v3495
    %v3573 = vunpack.c.h.b16 %v3495
    %v3574 = vunpack.c.l.b16 %v3496
    %v3575 = vunpack.c.h.b16 %v3496
    %v3576 = vunpack.c.l.b16 %v3497
    %v3577 = vunpack.c.h.b16 %v3497
    %v3578 = vunpack.c.l.b16 %v3498
    %v3579 = vunpack.c.h.b16 %v3498
    %v3580 = vunpack.c.l.b16 %v3499
    %v3581 = vunpack.c.h.b16 %v3499
    %v3582 = vunpack.c.l.b16 %v3500
    %v3583 = vunpack.c.h.b16 %v3500
    %v3584 = vunpack.c.l.b16 %v3501
    %v3585 = vunpack.c.h.b16 %v3501
    %v3586 = vunpack.c.l.b16 %v3502
    %v3587 = vunpack.c.h.b16 %v3502
    %v3588 = vunpack.c.l.b16 %v3503
    %v3589 = vunpack.c.h.b16 %v3503
    %v3590 = vunpack.c.l.b16 %v3504
    %v3591 = vunpack.c.h.b16 %v3504
    %v3592 = vunpack.c.l.b16 %v3505
    %v3593 = vunpack.c.h.b16 %v3505
    %v3594 = vunpack.c.l.b16 %v3506
    %v3595 = vunpack.c.h.b16 %v3506
    %v3596 = vunpack.c.l.b16 %v3507
    %v3597 = vunpack.c.h.b16 %v3507
    %v3598 = vunpack.c.l.b16 %v3508
    %v3599 = vunpack.c.h.b16 %v3508
    %v3600 = vunpack.c.l.b16 %v3509
    %v3601 = vunpack.c.h.b16 %v3509
    %v3602 = vunpack.c.l.b16 %v3510
    %v3603 = vunpack.c.h.b16 %v3510
    %v3604 = vunpack.c.l.b16 %v3511
    %v3605 = vunpack.c.h.b16 %v3511
    %v3606 = vunpack.c.l.b16 %v3512
    %v3607 = vunpack.c.h.b16 %v3512
    %v3608 = vunpack.c.l.b16 %v3513
    %v3609 = vunpack.c.h.b16 %v3513
    %v3610 = vunpack.c.l.b16 %v3514
    %v3611 = vunpack.c.h.b16 %v3514
    %v3612 = vunpack.c.l.b16 %v3515
    %v3613 = vunpack.c.h.b16 %v3515
    %v3614 = vpack.c.b16 %v3554, %v3550
    %v3615 = vpack.c.b16 %v3555, %v3551
    %v3616 = vpack.c.b16 %v3556, %v3552
    %v3617 = vpack.c.b16 %v3557, %v3553
    %v3618 = vpack.c.b16 %v3562, %v3558
    %v3619 = vpack.c.b16 %v3563, %v3559
    %v3620 = vpack.c.b16 %v3564, %v3560
    %v3621 = vpack.c.b16 %v3565, %v3561
    %v3622 = vpack.c.b16 %v3570, %v3566
    %v3623 = vpack.c.b16 %v3571, %v3567
    %v3624 = vpack.c.b16 %v3572, %v3568
    %v3625 = vpack.c.b16 %v3573, %v3569
    %v3626 = vpack.c.b16 %v3578, %v3574
    %v3627 = vpack.c.b16 %v3579, %v3575
    %v3628 = vpack.c.b16 %v3580, %v3576
    %v3629 = vpack.c.b16 %v3581, %v3577
    %v3630 = vpack.c.b16 %v3586, %v3582
    %v3631 = vpack.c.b16 %v3587, %v3583
    %v3632 = vpack.c.b16 %v3588, %v3584
    %v3633 = vpack.c.b16 %v3589, %v3585
    %v3634 = vpack.c.b16 %v3594, %v3590
    %v3635 = vpack.c.b16 %v3595, %v3591
    %v3636 = vpack.c.b16 %v3596, %v3592
    %v3637 = vpack.c.b16 %v3597, %v3593
    %v3638 = vpack.c.b16 %v3602, %v3598
    %v3639 = vpack.c.b16 %v3603, %v3599
    %v3640 = vpack.c.b16 %v3604, %v3600
    %v3641 = vpack.c.b16 %v3605, %v3601
    %v3642 = vpack.c.b16 %v3610, %v3606
    %v3643 = vpack.c.b16 %v3611, %v3607
    %v3644 = vpack.c.b16 %v3612, %v3608
    %v3645 = vpack.c.b16 %v3613, %v3609
    %3678 = vmatprep.subr.bf16.mxu0 0
    %3679 = vmatpush1.bf16.msra.mxu0 %v422
    %3680 = vmatprep.subr.bf16.mxu0 0
    %3681 = vmatpush1.bf16.msra.mxu0 %v423
    %3682 = vmatprep.subr.bf16.mxu0 0
    %3683 = vmatpush1.bf16.msra.mxu0 %v424
    %3684 = vmatprep.subr.bf16.mxu0 0
    %3685 = vmatpush1.bf16.msra.mxu0 %v425
    %3686 = vmatprep.subr.bf16.mxu0 0
    %3687 = vmatpush1.bf16.msra.mxu0 %v426
    %3688 = vmatprep.subr.bf16.mxu0 0
    %3689 = vmatpush1.bf16.msra.mxu0 %v427
    %3690 = vmatprep.subr.bf16.mxu0 0
    %3691 = vmatpush1.bf16.msra.mxu0 %v428
    %3692 = vmatprep.subr.bf16.mxu0 0
    %3693 = vmatpush1.bf16.msra.mxu0 %v429
    %3694 = vmatprep.subr.bf16.mxu0 0
    %3695 = vmatpush1.bf16.msra.mxu0 %v430
    %3696 = vmatprep.subr.bf16.mxu0 0
    %3697 = vmatpush1.bf16.msra.mxu0 %v431
    %3698 = vmatprep.subr.bf16.mxu0 0
    %3699 = vmatpush1.bf16.msra.mxu0 %v432
    %3700 = vmatprep.subr.bf16.mxu0 0
    %3701 = vmatpush1.bf16.msra.mxu0 %v433
    %3702 = vmatprep.subr.bf16.mxu0 0
    %3703 = vmatpush1.bf16.msra.mxu0 %v434
    %3704 = vmatprep.subr.bf16.mxu0 0
    %3705 = vmatpush1.bf16.msra.mxu0 %v435
    %3706 = vmatprep.subr.bf16.mxu0 0
    %3707 = vmatpush1.bf16.msra.mxu0 %v436
    %3708 = vmatprep.subr.bf16.mxu0 0
    %3709 = vmatpush1.bf16.msra.mxu0 %v437
    %3710 = vmatprep.mubr.bf16.mxu0 %v3615
    %3711 = vmatmul.mubr.bf16.gmra.mrb[0].mxu0 %v3614
    %v3712 = vpop.f32.mrb[0].mxu0
    %v3713 = vadd.f32 0.0, %v3712
    %v3714 = vpop.f32.mrb[0].mxu0
    %v3715 = vpop.f32.mrb[0].mxu0
    %v3716 = vadd.f32 0.0, %v3715
    %v3717 = vpop.f32.mrb[0].mxu0
    %3718 = vmatprep.mubr.bf16.mxu0 %v3619
    %3719 = vmatmul.mubr.bf16.gmra.mrb[0].mxu0 %v3618
    %v3720 = vpop.f32.mrb[0].mxu0
    %v3721 = vadd.f32 0.0, %v3720
    %v3722 = vpop.f32.mrb[0].mxu0
    %v3723 = vpop.f32.mrb[0].mxu0
    %v3724 = vadd.f32 0.0, %v3723
    %v3725 = vpop.f32.mrb[0].mxu0
    %3726 = vmatprep.mubr.bf16.mxu0 %v3623
    %3727 = vmatmul.mubr.bf16.gmra.mrb[0].mxu0 %v3622
    %v3728 = vpop.f32.mrb[0].mxu0
    %v3729 = vadd.f32 0.0, %v3728
    %v3730 = vpop.f32.mrb[0].mxu0
    %v3731 = vpop.f32.mrb[0].mxu0
    %v3732 = vadd.f32 0.0, %v3731
    %v3733 = vpop.f32.mrb[0].mxu0
    %3734 = vmatprep.mubr.bf16.mxu0 %v3627
    %3735 = vmatmul.mubr.bf16.gmra.mrb[0].mxu0 %v3626
    %v3736 = vpop.f32.mrb[0].mxu0
    %v3737 = vadd.f32 0.0, %v3736
    %v3738 = vpop.f32.mrb[0].mxu0
    %v3739 = vpop.f32.mrb[0].mxu0
    %v3740 = vadd.f32 0.0, %v3739
    %v3741 = vpop.f32.mrb[0].mxu0
    %3742 = vmatprep.mubr.bf16.mxu0 %v3631
    %3743 = vmatmul.mubr.bf16.gmra.mrb[0].mxu0 %v3630
    %v3744 = vpop.f32.mrb[0].mxu0
    %v3745 = vadd.f32 0.0, %v3744
    %v3746 = vpop.f32.mrb[0].mxu0
    %v3747 = vpop.f32.mrb[0].mxu0
    %v3748 = vadd.f32 0.0, %v3747
    %v3749 = vpop.f32.mrb[0].mxu0
    %3750 = vmatprep.mubr.bf16.mxu0 %v3635
    %3751 = vmatmul.mubr.bf16.gmra.mrb[0].mxu0 %v3634
    %v3752 = vpop.f32.mrb[0].mxu0
    %v3753 = vadd.f32 0.0, %v3752
    %v3754 = vpop.f32.mrb[0].mxu0
    %v3755 = vpop.f32.mrb[0].mxu0
    %v3756 = vadd.f32 0.0, %v3755
    %v3757 = vpop.f32.mrb[0].mxu0
    %3758 = vmatprep.mubr.bf16.mxu0 %v3639
    %3759 = vmatmul.mubr.bf16.gmra.mrb[0].mxu0 %v3638
    %v3760 = vpop.f32.mrb[0].mxu0
    %v3761 = vadd.f32 0.0, %v3760
    %v3762 = vpop.f32.mrb[0].mxu0
    %v3763 = vpop.f32.mrb[0].mxu0
    %v3764 = vadd.f32 0.0, %v3763
    %v3765 = vpop.f32.mrb[0].mxu0
    %3766 = vmatprep.mubr.bf16.mxu0 %v3643
    %3767 = vmatmul.mubr.bf16.gmra.mrb[0].mxu0 %v3642
    %v3768 = vpop.f32.mrb[0].mxu0
    %v3769 = vadd.f32 0.0, %v3768
    %v3770 = vpop.f32.mrb[0].mxu0
    %v3771 = vpop.f32.mrb[0].mxu0
    %v3772 = vadd.f32 0.0, %v3771
    %v3773 = vpop.f32.mrb[0].mxu0
    %3774 = vdwg.mxu0
    %3775 = vmatprep.subr.bf16.mxu0 0
    %3776 = vmatpush1.bf16.msra.mxu0 %v438
    %3777 = vmatprep.subr.bf16.mxu0 0
    %3778 = vmatpush1.bf16.msra.mxu0 %v439
    %3779 = vmatprep.subr.bf16.mxu0 0
    %3780 = vmatpush1.bf16.msra.mxu0 %v440
    %3781 = vmatprep.subr.bf16.mxu0 0
    %3782 = vmatpush1.bf16.msra.mxu0 %v441
    %3783 = vmatprep.subr.bf16.mxu0 0
    %3784 = vmatpush1.bf16.msra.mxu0 %v442
    %3785 = vmatprep.subr.bf16.mxu0 0
    %3786 = vmatpush1.bf16.msra.mxu0 %v443
    %3787 = vmatprep.subr.bf16.mxu0 0
    %3788 = vmatpush1.bf16.msra.mxu0 %v444
    %3789 = vmatprep.subr.bf16.mxu0 0
    %3790 = vmatpush1.bf16.msra.mxu0 %v445
    %3791 = vmatprep.subr.bf16.mxu0 0
    %3792 = vmatpush1.bf16.msra.mxu0 %v446
    %3793 = vmatprep.subr.bf16.mxu0 0
    %3794 = vmatpush1.bf16.msra.mxu0 %v447
    %3795 = vmatprep.subr.bf16.mxu0 0
    %3796 = vmatpush1.bf16.msra.mxu0 %v448
    %3797 = vmatprep.subr.bf16.mxu0 0
    %3798 = vmatpush1.bf16.msra.mxu0 %v449
    %3799 = vmatprep.subr.bf16.mxu0 0
    %3800 = vmatpush1.bf16.msra.mxu0 %v450
    %3801 = vmatprep.subr.bf16.mxu0 0
    %3802 = vmatpush1.bf16.msra.mxu0 %v451
    %3803 = vmatprep.subr.bf16.mxu0 0
    %3804 = vmatpush1.bf16.msra.mxu0 %v452
    %3805 = vmatprep.subr.bf16.mxu0 0
    %3806 = vmatpush1.bf16.msra.mxu0 %v453
    %3807 = vmatprep.mubr.bf16.mxu0 %v3617
    %3808 = vmatmul.mubr.bf16.gmra.mrb[0].mxu0 %v3616
    %v3809 = vpop.f32.mrb[0].mxu0
    %v3810 = vadd.f32 %v3713, %v3809
    %v3811 = vpop.f32.mrb[0].mxu0
    %v3812 = vpop.f32.mrb[0].mxu0
    %v3813 = vadd.f32 %v3716, %v3812
    %v3814 = vpop.f32.mrb[0].mxu0
    %3815 = vmatprep.mubr.bf16.mxu0 %v3621
    %3816 = vmatmul.mubr.bf16.gmra.mrb[0].mxu0 %v3620
    %v3817 = vpop.f32.mrb[0].mxu0
    %v3818 = vadd.f32 %v3721, %v3817
    %v3819 = vpop.f32.mrb[0].mxu0
    %v3820 = vpop.f32.mrb[0].mxu0
    %v3821 = vadd.f32 %v3724, %v3820
    %v3822 = vpop.f32.mrb[0].mxu0
    %3823 = vmatprep.mubr.bf16.mxu0 %v3625
    %3824 = vmatmul.mubr.bf16.gmra.mrb[0].mxu0 %v3624
    %v3825 = vpop.f32.mrb[0].mxu0
    %v3826 = vadd.f32 %v3729, %v3825
    %v3827 = vpop.f32.mrb[0].mxu0
    %v3828 = vpop.f32.mrb[0].mxu0
    %v3829 = vadd.f32 %v3732, %v3828
    %v3830 = vpop.f32.mrb[0].mxu0
    %3831 = vmatprep.mubr.bf16.mxu0 %v3629
    %3832 = vmatmul.mubr.bf16.gmra.mrb[0].mxu0 %v3628
    %v3833 = vpop.f32.mrb[0].mxu0
    %v3834 = vadd.f32 %v3737, %v3833
    %v3835 = vpop.f32.mrb[0].mxu0
    %v3836 = vpop.f32.mrb[0].mxu0
    %v3837 = vadd.f32 %v3740, %v3836
    %v3838 = vpop.f32.mrb[0].mxu0
    %3839 = vmatprep.mubr.bf16.mxu0 %v3633
    %3840 = vmatmul.mubr.bf16.gmra.mrb[0].mxu0 %v3632
    %v3841 = vpop.f32.mrb[0].mxu0
    %v3842 = vadd.f32 %v3745, %v3841
    %v3843 = vpop.f32.mrb[0].mxu0
    %v3844 = vpop.f32.mrb[0].mxu0
    %v3845 = vadd.f32 %v3748, %v3844
    %v3846 = vpop.f32.mrb[0].mxu0
    %3847 = vmatprep.mubr.bf16.mxu0 %v3637
    %3848 = vmatmul.mubr.bf16.gmra.mrb[0].mxu0 %v3636
    %v3849 = vpop.f32.mrb[0].mxu0
    %v3850 = vadd.f32 %v3753, %v3849
    %v3851 = vpop.f32.mrb[0].mxu0
    %v3852 = vpop.f32.mrb[0].mxu0
    %v3853 = vadd.f32 %v3756, %v3852
    %v3854 = vpop.f32.mrb[0].mxu0
    %3855 = vmatprep.mubr.bf16.mxu0 %v3641
    %3856 = vmatmul.mubr.bf16.gmra.mrb[0].mxu0 %v3640
    %v3857 = vpop.f32.mrb[0].mxu0
    %v3858 = vadd.f32 %v3761, %v3857
    %v3859 = vpop.f32.mrb[0].mxu0
    %v3860 = vpop.f32.mrb[0].mxu0
    %v3861 = vadd.f32 %v3764, %v3860
    %v3862 = vpop.f32.mrb[0].mxu0
    %3863 = vmatprep.mubr.bf16.mxu0 %v3645
    %3864 = vmatmul.mubr.bf16.gmra.mrb[0].mxu0 %v3644
    %v3865 = vpop.f32.mrb[0].mxu0
    %v3866 = vadd.f32 %v3769, %v3865
    %v3867 = vpop.f32.mrb[0].mxu0
    %v3868 = vpop.f32.mrb[0].mxu0
    %v3869 = vadd.f32 %v3772, %v3868
    %v3870 = vpop.f32.mrb[0].mxu0
    %3871 = vdwg.mxu0
    %v3872 = vpack.c.bf16 %v3813, %v3810
    %v3873 = vpack.c.bf16 %v3821, %v3818
    %v3874 = vpack.c.bf16 %v3829, %v3826
    %v3875 = vpack.c.bf16 %v3837, %v3834
    %v3876 = vpack.c.bf16 %v3845, %v3842
    %v3877 = vpack.c.bf16 %v3853, %v3850
    %v3878 = vpack.c.bf16 %v3861, %v3858
    %v3879 = vpack.c.bf16 %v3869, %v3866
    %v3881 = vsel %vm1085, %v3872, 0
    %v3884 = vsel %vm1085, %v3873, 0
    %v3887 = vsel %vm1085, %v3874, 0
    %v3890 = vsel %vm1085, %v3875, 0
    %v3893 = vsel %vm1085, %v3876, 0
    %v3896 = vsel %vm1085, %v3877, 0
    %v3899 = vsel %vm1085, %v3878, 0
    %v3902 = vsel %vm1085, %v3879, 0
    %v3905 = vsel %vm1110, %v3517, 0
    %3907 = vmatprep.subr.bf16.mxu0 0
    %3908 = vmatpush1.bf16.msra.mxu0 %v3905
    %3909 = vmatprep.subr.bf16.mxu0 0
    %3910 = vmatpush1.bf16.msra.mxu0 0
    %3911 = vmatprep.subr.bf16.mxu0 0
    %3912 = vmatpush1.bf16.msra.mxu0 0
    %3913 = vmatprep.subr.bf16.mxu0 0
    %3914 = vmatpush1.bf16.msra.mxu0 0
    %3915 = vmatprep.subr.bf16.mxu0 0
    %3916 = vmatpush1.bf16.msra.mxu0 0
    %3917 = vmatprep.subr.bf16.mxu0 0
    %3918 = vmatpush1.bf16.msra.mxu0 0
    %3919 = vmatprep.subr.bf16.mxu0 0
    %3920 = vmatpush1.bf16.msra.mxu0 0
    %3921 = vmatprep.subr.bf16.mxu0 0
    %3922 = vmatpush1.bf16.msra.mxu0 0
    %3923 = vmatprep.subr.bf16.mxu0 0
    %3924 = vmatpush1.bf16.msra.mxu0 0
    %3925 = vmatprep.subr.bf16.mxu0 0
    %3926 = vmatpush1.bf16.msra.mxu0 0
    %3927 = vmatprep.subr.bf16.mxu0 0
    %3928 = vmatpush1.bf16.msra.mxu0 0
    %3929 = vmatprep.subr.bf16.mxu0 0
    %3930 = vmatpush1.bf16.msra.mxu0 0
    %3931 = vmatprep.subr.bf16.mxu0 0
    %3932 = vmatpush1.bf16.msra.mxu0 0
    %3933 = vmatprep.subr.bf16.mxu0 0
    %3934 = vmatpush1.bf16.msra.mxu0 0
    %3935 = vmatprep.subr.bf16.mxu0 0
    %3936 = vmatpush1.bf16.msra.mxu0 0
    %3937 = vmatprep.subr.bf16.mxu0 0
    %3938 = vmatpush1.bf16.msra.mxu0 0
    %3939 = vmatprep.mubr.bf16.mxu0 0
    %3940 = vmatmul.mubr.bf16.gmra.mrb[0].mxu0 %v3881
    %v3941 = vpop.f32.mrb[0].mxu0
    %v3942 = vadd.f32 0.0, %v3941
    %v3943 = vpop.f32.mrb[0].mxu0
    %v3944 = vpop.f32.mrb[0].mxu0
    %v3945 = vadd.f32 0.0, %v3944
    %v3946 = vpop.f32.mrb[0].mxu0
    %3947 = vmatprep.mubr.bf16.mxu0 0
    %3948 = vmatmul.mubr.bf16.gmra.mrb[0].mxu0 %v3884
    %v3949 = vpop.f32.mrb[0].mxu0
    %v3950 = vadd.f32 0.0, %v3949
    %v3951 = vpop.f32.mrb[0].mxu0
    %v3952 = vpop.f32.mrb[0].mxu0
    %v3953 = vadd.f32 0.0, %v3952
    %v3954 = vpop.f32.mrb[0].mxu0
    %3955 = vmatprep.mubr.bf16.mxu0 0
    %3956 = vmatmul.mubr.bf16.gmra.mrb[0].mxu0 %v3887
    %v3957 = vpop.f32.mrb[0].mxu0
    %v3958 = vadd.f32 0.0, %v3957
    %v3959 = vpop.f32.mrb[0].mxu0
    %v3960 = vpop.f32.mrb[0].mxu0
    %v3961 = vadd.f32 0.0, %v3960
    %v3962 = vpop.f32.mrb[0].mxu0
    %3963 = vmatprep.mubr.bf16.mxu0 0
    %3964 = vmatmul.mubr.bf16.gmra.mrb[0].mxu0 %v3890
    %v3965 = vpop.f32.mrb[0].mxu0
    %v3966 = vadd.f32 0.0, %v3965
    %v3967 = vpop.f32.mrb[0].mxu0
    %v3968 = vpop.f32.mrb[0].mxu0
    %v3969 = vadd.f32 0.0, %v3968
    %v3970 = vpop.f32.mrb[0].mxu0
    %3971 = vmatprep.mubr.bf16.mxu0 0
    %3972 = vmatmul.mubr.bf16.gmra.mrb[0].mxu0 %v3893
    %v3973 = vpop.f32.mrb[0].mxu0
    %v3974 = vadd.f32 0.0, %v3973
    %v3975 = vpop.f32.mrb[0].mxu0
    %v3976 = vpop.f32.mrb[0].mxu0
    %v3977 = vadd.f32 0.0, %v3976
    %v3978 = vpop.f32.mrb[0].mxu0
    %3979 = vmatprep.mubr.bf16.mxu0 0
    %3980 = vmatmul.mubr.bf16.gmra.mrb[0].mxu0 %v3896
    %v3981 = vpop.f32.mrb[0].mxu0
    %v3982 = vadd.f32 0.0, %v3981
    %v3983 = vpop.f32.mrb[0].mxu0
    %v3984 = vpop.f32.mrb[0].mxu0
    %v3985 = vadd.f32 0.0, %v3984
    %v3986 = vpop.f32.mrb[0].mxu0
    %3987 = vmatprep.mubr.bf16.mxu0 0
    %3988 = vmatmul.mubr.bf16.gmra.mrb[0].mxu0 %v3899
    %v3989 = vpop.f32.mrb[0].mxu0
    %v3990 = vadd.f32 0.0, %v3989
    %v3991 = vpop.f32.mrb[0].mxu0
    %v3992 = vpop.f32.mrb[0].mxu0
    %v3993 = vadd.f32 0.0, %v3992
    %v3994 = vpop.f32.mrb[0].mxu0
    %3995 = vmatprep.mubr.bf16.mxu0 0
    %3996 = vmatmul.mubr.bf16.gmra.mrb[0].mxu0 %v3902
    %v3997 = vpop.f32.mrb[0].mxu0
    %v3998 = vadd.f32 0.0, %v3997
    %v3999 = vpop.f32.mrb[0].mxu0
    %v4000 = vpop.f32.mrb[0].mxu0
    %v4001 = vadd.f32 0.0, %v4000
    %v4002 = vpop.f32.mrb[0].mxu0
    %4003 = vdwg.mxu0
    %v4004 = vadd.f32 %v3467, %v3942
    %v4005 = vadd.f32 %v3468, %v3945
    %v4006 = vadd.f32 %v3469, %v3950
    %v4007 = vadd.f32 %v3470, %v3953
    %v4008 = vadd.f32 %v3471, %v3958
    %v4009 = vadd.f32 %v3472, %v3961
    %v4010 = vadd.f32 %v3473, %v3966
    %v4011 = vadd.f32 %v3474, %v3969
    %v4012 = vadd.f32 %v3475, %v3974
    %v4013 = vadd.f32 %v3476, %v3977
    %v4014 = vadd.f32 %v3477, %v3982
    %v4015 = vadd.f32 %v3478, %v3985
    %v4016 = vadd.f32 %v3479, %v3990
    %v4017 = vadd.f32 %v3480, %v3993
    %v4018 = vadd.f32 %v3481, %v3998
    %v4019 = vadd.f32 %v3482, %v4001
    %s4020 = scalar_lea.vmem %s1, 1792
    %v4021 = vld [vmem:[%s4020] sm:$0xff]
    %v4022 = vld [vmem:[%s4020 + $0x8] sm:$0xff]
    %v4023 = vld [vmem:[%s4020 + $0x10] sm:$0xff]
    %v4024 = vld [vmem:[%s4020 + $0x18] sm:$0xff]
    %v4025 = vld [vmem:[%s4020 + $0x20] sm:$0xff]
    %v4026 = vld [vmem:[%s4020 + $0x28] sm:$0xff]
    %v4027 = vld [vmem:[%s4020 + $0x30] sm:$0xff]
    %v4028 = vld [vmem:[%s4020 + $0x38] sm:$0xff]
    %v4029 = vld [vmem:[%s4020 + $0x40] sm:$0xff]
    %v4030 = vld [vmem:[%s4020 + $0x48] sm:$0xff]
    %v4031 = vld [vmem:[%s4020 + $0x50] sm:$0xff]
    %v4032 = vld [vmem:[%s4020 + $0x58] sm:$0xff]
    %v4033 = vld [vmem:[%s4020 + $0x60] sm:$0xff]
    %v4034 = vld [vmem:[%s4020 + $0x68] sm:$0xff]
    %v4035 = vld [vmem:[%s4020 + $0x70] sm:$0xff]
    %v4036 = vld [vmem:[%s4020 + $0x78] sm:$0xff]
    %v4037 = vld [vmem:[%s4020 + $0x80] sm:$0xff]
    %v4038 = vld [vmem:[%s4020 + $0x88] sm:$0xff]
    %v4039 = vld [vmem:[%s4020 + $0x90] sm:$0xff]
    %v4040 = vld [vmem:[%s4020 + $0x98] sm:$0xff]
    %v4041 = vld [vmem:[%s4020 + $0xa0] sm:$0xff]
    %v4042 = vld [vmem:[%s4020 + $0xa8] sm:$0xff]
    %v4043 = vld [vmem:[%s4020 + $0xb0] sm:$0xff]
    %v4044 = vld [vmem:[%s4020 + $0xb8] sm:$0xff]
    %v4045 = vld [vmem:[%s4020 + $0xc0] sm:$0xff]
    %v4046 = vld [vmem:[%s4020 + $0xc8] sm:$0xff]
    %v4047 = vld [vmem:[%s4020 + $0xd0] sm:$0xff]
    %v4048 = vld [vmem:[%s4020 + $0xd8] sm:$0xff]
    %v4049 = vld [vmem:[%s4020 + $0xe0] sm:$0xff]
    %v4050 = vld [vmem:[%s4020 + $0xe8] sm:$0xff]
    %v4051 = vld [vmem:[%s4020 + $0xf0] sm:$0xff]
    %v4052 = vld [vmem:[%s4020 + $0xf8] sm:$0xff]
    %s4053 = scalar_lea.vmem %s5, 28
    %v4054 = vld [vmem:[%s4053] sm:$0xf]
    %v4087 = vunpack.c.l.b16 %v4021
    %v4088 = vunpack.c.h.b16 %v4021
    %v4089 = vunpack.c.l.b16 %v4022
    %v4090 = vunpack.c.h.b16 %v4022
    %v4091 = vunpack.c.l.b16 %v4023
    %v4092 = vunpack.c.h.b16 %v4023
    %v4093 = vunpack.c.l.b16 %v4024
    %v4094 = vunpack.c.h.b16 %v4024
    %v4095 = vunpack.c.l.b16 %v4025
    %v4096 = vunpack.c.h.b16 %v4025
    %v4097 = vunpack.c.l.b16 %v4026
    %v4098 = vunpack.c.h.b16 %v4026
    %v4099 = vunpack.c.l.b16 %v4027
    %v4100 = vunpack.c.h.b16 %v4027
    %v4101 = vunpack.c.l.b16 %v4028
    %v4102 = vunpack.c.h.b16 %v4028
    %v4103 = vunpack.c.l.b16 %v4029
    %v4104 = vunpack.c.h.b16 %v4029
    %v4105 = vunpack.c.l.b16 %v4030
    %v4106 = vunpack.c.h.b16 %v4030
    %v4107 = vunpack.c.l.b16 %v4031
    %v4108 = vunpack.c.h.b16 %v4031
    %v4109 = vunpack.c.l.b16 %v4032
    %v4110 = vunpack.c.h.b16 %v4032
    %v4111 = vunpack.c.l.b16 %v4033
    %v4112 = vunpack.c.h.b16 %v4033
    %v4113 = vunpack.c.l.b16 %v4034
    %v4114 = vunpack.c.h.b16 %v4034
    %v4115 = vunpack.c.l.b16 %v4035
    %v4116 = vunpack.c.h.b16 %v4035
    %v4117 = vunpack.c.l.b16 %v4036
    %v4118 = vunpack.c.h.b16 %v4036
    %v4119 = vunpack.c.l.b16 %v4037
    %v4120 = vunpack.c.h.b16 %v4037
    %v4121 = vunpack.c.l.b16 %v4038
    %v4122 = vunpack.c.h.b16 %v4038
    %v4123 = vunpack.c.l.b16 %v4039
    %v4124 = vunpack.c.h.b16 %v4039
    %v4125 = vunpack.c.l.b16 %v4040
    %v4126 = vunpack.c.h.b16 %v4040
    %v4127 = vunpack.c.l.b16 %v4041
    %v4128 = vunpack.c.h.b16 %v4041
    %v4129 = vunpack.c.l.b16 %v4042
    %v4130 = vunpack.c.h.b16 %v4042
    %v4131 = vunpack.c.l.b16 %v4043
    %v4132 = vunpack.c.h.b16 %v4043
    %v4133 = vunpack.c.l.b16 %v4044
    %v4134 = vunpack.c.h.b16 %v4044
    %v4135 = vunpack.c.l.b16 %v4045
    %v4136 = vunpack.c.h.b16 %v4045
    %v4137 = vunpack.c.l.b16 %v4046
    %v4138 = vunpack.c.h.b16 %v4046
    %v4139 = vunpack.c.l.b16 %v4047
    %v4140 = vunpack.c.h.b16 %v4047
    %v4141 = vunpack.c.l.b16 %v4048
    %v4142 = vunpack.c.h.b16 %v4048
    %v4143 = vunpack.c.l.b16 %v4049
    %v4144 = vunpack.c.h.b16 %v4049
    %v4145 = vunpack.c.l.b16 %v4050
    %v4146 = vunpack.c.h.b16 %v4050
    %v4147 = vunpack.c.l.b16 %v4051
    %v4148 = vunpack.c.h.b16 %v4051
    %v4149 = vunpack.c.l.b16 %v4052
    %v4150 = vunpack.c.h.b16 %v4052
    %v4151 = vpack.c.b16 %v4091, %v4087
    %v4152 = vpack.c.b16 %v4092, %v4088
    %v4153 = vpack.c.b16 %v4093, %v4089
    %v4154 = vpack.c.b16 %v4094, %v4090
    %v4155 = vpack.c.b16 %v4099, %v4095
    %v4156 = vpack.c.b16 %v4100, %v4096
    %v4157 = vpack.c.b16 %v4101, %v4097
    %v4158 = vpack.c.b16 %v4102, %v4098
    %v4159 = vpack.c.b16 %v4107, %v4103
    %v4160 = vpack.c.b16 %v4108, %v4104
    %v4161 = vpack.c.b16 %v4109, %v4105
    %v4162 = vpack.c.b16 %v4110, %v4106
    %v4163 = vpack.c.b16 %v4115, %v4111
    %v4164 = vpack.c.b16 %v4116, %v4112
    %v4165 = vpack.c.b16 %v4117, %v4113
    %v4166 = vpack.c.b16 %v4118, %v4114
    %v4167 = vpack.c.b16 %v4123, %v4119
    %v4168 = vpack.c.b16 %v4124, %v4120
    %v4169 = vpack.c.b16 %v4125, %v4121
    %v4170 = vpack.c.b16 %v4126, %v4122
    %v4171 = vpack.c.b16 %v4131, %v4127
    %v4172 = vpack.c.b16 %v4132, %v4128
    %v4173 = vpack.c.b16 %v4133, %v4129
    %v4174 = vpack.c.b16 %v4134, %v4130
    %v4175 = vpack.c.b16 %v4139, %v4135
    %v4176 = vpack.c.b16 %v4140, %v4136
    %v4177 = vpack.c.b16 %v4141, %v4137
    %v4178 = vpack.c.b16 %v4142, %v4138
    %v4179 = vpack.c.b16 %v4147, %v4143
    %v4180 = vpack.c.b16 %v4148, %v4144
    %v4181 = vpack.c.b16 %v4149, %v4145
    %v4182 = vpack.c.b16 %v4150, %v4146
    %4215 = vmatprep.subr.bf16.mxu0 0
    %4216 = vmatpush1.bf16.msra.mxu0 %v422
    %4217 = vmatprep.subr.bf16.mxu0 0
    %4218 = vmatpush1.bf16.msra.mxu0 %v423
    %4219 = vmatprep.subr.bf16.mxu0 0
    %4220 = vmatpush1.bf16.msra.mxu0 %v424
    %4221 = vmatprep.subr.bf16.mxu0 0
    %4222 = vmatpush1.bf16.msra.mxu0 %v425
    %4223 = vmatprep.subr.bf16.mxu0 0
    %4224 = vmatpush1.bf16.msra.mxu0 %v426
    %4225 = vmatprep.subr.bf16.mxu0 0
    %4226 = vmatpush1.bf16.msra.mxu0 %v427
    %4227 = vmatprep.subr.bf16.mxu0 0
    %4228 = vmatpush1.bf16.msra.mxu0 %v428
    %4229 = vmatprep.subr.bf16.mxu0 0
    %4230 = vmatpush1.bf16.msra.mxu0 %v429
    %4231 = vmatprep.subr.bf16.mxu0 0
    %4232 = vmatpush1.bf16.msra.mxu0 %v430
    %4233 = vmatprep.subr.bf16.mxu0 0
    %4234 = vmatpush1.bf16.msra.mxu0 %v431
    %4235 = vmatprep.subr.bf16.mxu0 0
    %4236 = vmatpush1.bf16.msra.mxu0 %v432
    %4237 = vmatprep.subr.bf16.mxu0 0
    %4238 = vmatpush1.bf16.msra.mxu0 %v433
    %4239 = vmatprep.subr.bf16.mxu0 0
    %4240 = vmatpush1.bf16.msra.mxu0 %v434
    %4241 = vmatprep.subr.bf16.mxu0 0
    %4242 = vmatpush1.bf16.msra.mxu0 %v435
    %4243 = vmatprep.subr.bf16.mxu0 0
    %4244 = vmatpush1.bf16.msra.mxu0 %v436
    %4245 = vmatprep.subr.bf16.mxu0 0
    %4246 = vmatpush1.bf16.msra.mxu0 %v437
    %4247 = vmatprep.mubr.bf16.mxu0 %v4152
    %4248 = vmatmul.mubr.bf16.gmra.mrb[0].mxu0 %v4151
    %v4249 = vpop.f32.mrb[0].mxu0
    %v4250 = vadd.f32 0.0, %v4249
    %v4251 = vpop.f32.mrb[0].mxu0
    %v4252 = vpop.f32.mrb[0].mxu0
    %v4253 = vadd.f32 0.0, %v4252
    %v4254 = vpop.f32.mrb[0].mxu0
    %4255 = vmatprep.mubr.bf16.mxu0 %v4156
    %4256 = vmatmul.mubr.bf16.gmra.mrb[0].mxu0 %v4155
    %v4257 = vpop.f32.mrb[0].mxu0
    %v4258 = vadd.f32 0.0, %v4257
    %v4259 = vpop.f32.mrb[0].mxu0
    %v4260 = vpop.f32.mrb[0].mxu0
    %v4261 = vadd.f32 0.0, %v4260
    %v4262 = vpop.f32.mrb[0].mxu0
    %4263 = vmatprep.mubr.bf16.mxu0 %v4160
    %4264 = vmatmul.mubr.bf16.gmra.mrb[0].mxu0 %v4159
    %v4265 = vpop.f32.mrb[0].mxu0
    %v4266 = vadd.f32 0.0, %v4265
    %v4267 = vpop.f32.mrb[0].mxu0
    %v4268 = vpop.f32.mrb[0].mxu0
    %v4269 = vadd.f32 0.0, %v4268
    %v4270 = vpop.f32.mrb[0].mxu0
    %4271 = vmatprep.mubr.bf16.mxu0 %v4164
    %4272 = vmatmul.mubr.bf16.gmra.mrb[0].mxu0 %v4163
    %v4273 = vpop.f32.mrb[0].mxu0
    %v4274 = vadd.f32 0.0, %v4273
    %v4275 = vpop.f32.mrb[0].mxu0
    %v4276 = vpop.f32.mrb[0].mxu0
    %v4277 = vadd.f32 0.0, %v4276
    %v4278 = vpop.f32.mrb[0].mxu0
    %4279 = vmatprep.mubr.bf16.mxu0 %v4168
    %4280 = vmatmul.mubr.bf16.gmra.mrb[0].mxu0 %v4167
    %v4281 = vpop.f32.mrb[0].mxu0
    %v4282 = vadd.f32 0.0, %v4281
    %v4283 = vpop.f32.mrb[0].mxu0
    %v4284 = vpop.f32.mrb[0].mxu0
    %v4285 = vadd.f32 0.0, %v4284
    %v4286 = vpop.f32.mrb[0].mxu0
    %4287 = vmatprep.mubr.bf16.mxu0 %v4172
    %4288 = vmatmul.mubr.bf16.gmra.mrb[0].mxu0 %v4171
    %v4289 = vpop.f32.mrb[0].mxu0
    %v4290 = vadd.f32 0.0, %v4289
    %v4291 = vpop.f32.mrb[0].mxu0
    %v4292 = vpop.f32.mrb[0].mxu0
    %v4293 = vadd.f32 0.0, %v4292
    %v4294 = vpop.f32.mrb[0].mxu0
    %4295 = vmatprep.mubr.bf16.mxu0 %v4176
    %4296 = vmatmul.mubr.bf16.gmra.mrb[0].mxu0 %v4175
    %v4297 = vpop.f32.mrb[0].mxu0
    %v4298 = vadd.f32 0.0, %v4297
    %v4299 = vpop.f32.mrb[0].mxu0
    %v4300 = vpop.f32.mrb[0].mxu0
    %v4301 = vadd.f32 0.0, %v4300
    %v4302 = vpop.f32.mrb[0].mxu0
    %4303 = vmatprep.mubr.bf16.mxu0 %v4180
    %4304 = vmatmul.mubr.bf16.gmra.mrb[0].mxu0 %v4179
    %v4305 = vpop.f32.mrb[0].mxu0
    %v4306 = vadd.f32 0.0, %v4305
    %v4307 = vpop.f32.mrb[0].mxu0
    %v4308 = vpop.f32.mrb[0].mxu0
    %v4309 = vadd.f32 0.0, %v4308
    %v4310 = vpop.f32.mrb[0].mxu0
    %4311 = vdwg.mxu0
    %4312 = vmatprep.subr.bf16.mxu0 0
    %4313 = vmatpush1.bf16.msra.mxu0 %v438
    %4314 = vmatprep.subr.bf16.mxu0 0
    %4315 = vmatpush1.bf16.msra.mxu0 %v439
    %4316 = vmatprep.subr.bf16.mxu0 0
    %4317 = vmatpush1.bf16.msra.mxu0 %v440
    %4318 = vmatprep.subr.bf16.mxu0 0
    %4319 = vmatpush1.bf16.msra.mxu0 %v441
    %4320 = vmatprep.subr.bf16.mxu0 0
    %4321 = vmatpush1.bf16.msra.mxu0 %v442
    %4322 = vmatprep.subr.bf16.mxu0 0
    %4323 = vmatpush1.bf16.msra.mxu0 %v443
    %4324 = vmatprep.subr.bf16.mxu0 0
    %4325 = vmatpush1.bf16.msra.mxu0 %v444
    %4326 = vmatprep.subr.bf16.mxu0 0
    %4327 = vmatpush1.bf16.msra.mxu0 %v445
    %4328 = vmatprep.subr.bf16.mxu0 0
    %4329 = vmatpush1.bf16.msra.mxu0 %v446
    %4330 = vmatprep.subr.bf16.mxu0 0
    %4331 = vmatpush1.bf16.msra.mxu0 %v447
    %4332 = vmatprep.subr.bf16.mxu0 0
    %4333 = vmatpush1.bf16.msra.mxu0 %v448
    %4334 = vmatprep.subr.bf16.mxu0 0
    %4335 = vmatpush1.bf16.msra.mxu0 %v449
    %4336 = vmatprep.subr.bf16.mxu0 0
    %4337 = vmatpush1.bf16.msra.mxu0 %v450
    %4338 = vmatprep.subr.bf16.mxu0 0
    %4339 = vmatpush1.bf16.msra.mxu0 %v451
    %4340 = vmatprep.subr.bf16.mxu0 0
    %4341 = vmatpush1.bf16.msra.mxu0 %v452
    %4342 = vmatprep.subr.bf16.mxu0 0
    %4343 = vmatpush1.bf16.msra.mxu0 %v453
    %4344 = vmatprep.mubr.bf16.mxu0 %v4154
    %4345 = vmatmul.mubr.bf16.gmra.mrb[0].mxu0 %v4153
    %v4346 = vpop.f32.mrb[0].mxu0
    %v4347 = vadd.f32 %v4250, %v4346
    %v4348 = vpop.f32.mrb[0].mxu0
    %v4349 = vpop.f32.mrb[0].mxu0
    %v4350 = vadd.f32 %v4253, %v4349
    %v4351 = vpop.f32.mrb[0].mxu0
    %4352 = vmatprep.mubr.bf16.mxu0 %v4158
    %4353 = vmatmul.mubr.bf16.gmra.mrb[0].mxu0 %v4157
    %v4354 = vpop.f32.mrb[0].mxu0
    %v4355 = vadd.f32 %v4258, %v4354
    %v4356 = vpop.f32.mrb[0].mxu0
    %v4357 = vpop.f32.mrb[0].mxu0
    %v4358 = vadd.f32 %v4261, %v4357
    %v4359 = vpop.f32.mrb[0].mxu0
    %4360 = vmatprep.mubr.bf16.mxu0 %v4162
    %4361 = vmatmul.mubr.bf16.gmra.mrb[0].mxu0 %v4161
    %v4362 = vpop.f32.mrb[0].mxu0
    %v4363 = vadd.f32 %v4266, %v4362
    %v4364 = vpop.f32.mrb[0].mxu0
    %v4365 = vpop.f32.mrb[0].mxu0
    %v4366 = vadd.f32 %v4269, %v4365
    %v4367 = vpop.f32.mrb[0].mxu0
    %4368 = vmatprep.mubr.bf16.mxu0 %v4166
    %4369 = vmatmul.mubr.bf16.gmra.mrb[0].mxu0 %v4165
    %v4370 = vpop.f32.mrb[0].mxu0
    %v4371 = vadd.f32 %v4274, %v4370
    %v4372 = vpop.f32.mrb[0].mxu0
    %v4373 = vpop.f32.mrb[0].mxu0
    %v4374 = vadd.f32 %v4277, %v4373
    %v4375 = vpop.f32.mrb[0].mxu0
    %4376 = vmatprep.mubr.bf16.mxu0 %v4170
    %4377 = vmatmul.mubr.bf16.gmra.mrb[0].mxu0 %v4169
    %v4378 = vpop.f32.mrb[0].mxu0
    %v4379 = vadd.f32 %v4282, %v4378
    %v4380 = vpop.f32.mrb[0].mxu0
    %v4381 = vpop.f32.mrb[0].mxu0
    %v4382 = vadd.f32 %v4285, %v4381
    %v4383 = vpop.f32.mrb[0].mxu0
    %4384 = vmatprep.mubr.bf16.mxu0 %v4174
    %4385 = vmatmul.mubr.bf16.gmra.mrb[0].mxu0 %v4173
    %v4386 = vpop.f32.mrb[0].mxu0
    %v4387 = vadd.f32 %v4290, %v4386
    %v4388 = vpop.f32.mrb[0].mxu0
    %v4389 = vpop.f32.mrb[0].mxu0
    %v4390 = vadd.f32 %v4293, %v4389
    %v4391 = vpop.f32.mrb[0].mxu0
    %4392 = vmatprep.mubr.bf16.mxu0 %v4178
    %4393 = vmatmul.mubr.bf16.gmra.mrb[0].mxu0 %v4177
    %v4394 = vpop.f32.mrb[0].mxu0
    %v4395 = vadd.f32 %v4298, %v4394
    %v4396 = vpop.f32.mrb[0].mxu0
    %v4397 = vpop.f32.mrb[0].mxu0
    %v4398 = vadd.f32 %v4301, %v4397
    %v4399 = vpop.f32.mrb[0].mxu0
    %4400 = vmatprep.mubr.bf16.mxu0 %v4182
    %4401 = vmatmul.mubr.bf16.gmra.mrb[0].mxu0 %v4181
    %v4402 = vpop.f32.mrb[0].mxu0
    %v4403 = vadd.f32 %v4306, %v4402
    %v4404 = vpop.f32.mrb[0].mxu0
    %v4405 = vpop.f32.mrb[0].mxu0
    %v4406 = vadd.f32 %v4309, %v4405
    %v4407 = vpop.f32.mrb[0].mxu0
    %4408 = vdwg.mxu0
    %v4409 = vpack.c.bf16 %v4350, %v4347
    %v4410 = vpack.c.bf16 %v4358, %v4355
    %v4411 = vpack.c.bf16 %v4366, %v4363
    %v4412 = vpack.c.bf16 %v4374, %v4371
    %v4413 = vpack.c.bf16 %v4382, %v4379
    %v4414 = vpack.c.bf16 %v4390, %v4387
    %v4415 = vpack.c.bf16 %v4398, %v4395
    %v4416 = vpack.c.bf16 %v4406, %v4403
    %v4418 = vsel %vm1085, %v4409, 0
    %v4421 = vsel %vm1085, %v4410, 0
    %v4424 = vsel %vm1085, %v4411, 0
    %v4427 = vsel %vm1085, %v4412, 0
    %v4430 = vsel %vm1085, %v4413, 0
    %v4433 = vsel %vm1085, %v4414, 0
    %v4436 = vsel %vm1085, %v4415, 0
    %v4439 = vsel %vm1085, %v4416, 0
    %v4442 = vsel %vm1110, %v4054, 0
    %4444 = vmatprep.subr.bf16.mxu0 0
    %4445 = vmatpush1.bf16.msra.mxu0 %v4442
    %4446 = vmatprep.subr.bf16.mxu0 0
    %4447 = vmatpush1.bf16.msra.mxu0 0
    %4448 = vmatprep.subr.bf16.mxu0 0
    %4449 = vmatpush1.bf16.msra.mxu0 0
    %4450 = vmatprep.subr.bf16.mxu0 0
    %4451 = vmatpush1.bf16.msra.mxu0 0
    %4452 = vmatprep.subr.bf16.mxu0 0
    %4453 = vmatpush1.bf16.msra.mxu0 0
    %4454 = vmatprep.subr.bf16.mxu0 0
    %4455 = vmatpush1.bf16.msra.mxu0 0
    %4456 = vmatprep.subr.bf16.mxu0 0
    %4457 = vmatpush1.bf16.msra.mxu0 0
    %4458 = vmatprep.subr.bf16.mxu0 0
    %4459 = vmatpush1.bf16.msra.mxu0 0
    %4460 = vmatprep.subr.bf16.mxu0 0
    %4461 = vmatpush1.bf16.msra.mxu0 0
    %4462 = vmatprep.subr.bf16.mxu0 0
    %4463 = vmatpush1.bf16.msra.mxu0 0
    %4464 = vmatprep.subr.bf16.mxu0 0
    %4465 = vmatpush1.bf16.msra.mxu0 0
    %4466 = vmatprep.subr.bf16.mxu0 0
    %4467 = vmatpush1.bf16.msra.mxu0 0
    %4468 = vmatprep.subr.bf16.mxu0 0
    %4469 = vmatpush1.bf16.msra.mxu0 0
    %4470 = vmatprep.subr.bf16.mxu0 0
    %4471 = vmatpush1.bf16.msra.mxu0 0
    %4472 = vmatprep.subr.bf16.mxu0 0
    %4473 = vmatpush1.bf16.msra.mxu0 0
    %4474 = vmatprep.subr.bf16.mxu0 0
    %4475 = vmatpush1.bf16.msra.mxu0 0
    %4476 = vmatprep.mubr.bf16.mxu0 0
    %4477 = vmatmul.mubr.bf16.gmra.mrb[0].mxu0 %v4418
    %v4478 = vpop.f32.mrb[0].mxu0
    %v4479 = vadd.f32 0.0, %v4478
    %v4480 = vpop.f32.mrb[0].mxu0
    %v4481 = vpop.f32.mrb[0].mxu0
    %v4482 = vadd.f32 0.0, %v4481
    %v4483 = vpop.f32.mrb[0].mxu0
    %4484 = vmatprep.mubr.bf16.mxu0 0
    %4485 = vmatmul.mubr.bf16.gmra.mrb[0].mxu0 %v4421
    %v4486 = vpop.f32.mrb[0].mxu0
    %v4487 = vadd.f32 0.0, %v4486
    %v4488 = vpop.f32.mrb[0].mxu0
    %v4489 = vpop.f32.mrb[0].mxu0
    %v4490 = vadd.f32 0.0, %v4489
    %v4491 = vpop.f32.mrb[0].mxu0
    %4492 = vmatprep.mubr.bf16.mxu0 0
    %4493 = vmatmul.mubr.bf16.gmra.mrb[0].mxu0 %v4424
    %v4494 = vpop.f32.mrb[0].mxu0
    %v4495 = vadd.f32 0.0, %v4494
    %v4496 = vpop.f32.mrb[0].mxu0
    %v4497 = vpop.f32.mrb[0].mxu0
    %v4498 = vadd.f32 0.0, %v4497
    %v4499 = vpop.f32.mrb[0].mxu0
    %4500 = vmatprep.mubr.bf16.mxu0 0
    %4501 = vmatmul.mubr.bf16.gmra.mrb[0].mxu0 %v4427
    %v4502 = vpop.f32.mrb[0].mxu0
    %v4503 = vadd.f32 0.0, %v4502
    %v4504 = vpop.f32.mrb[0].mxu0
    %v4505 = vpop.f32.mrb[0].mxu0
    %v4506 = vadd.f32 0.0, %v4505
    %v4507 = vpop.f32.mrb[0].mxu0
    %4508 = vmatprep.mubr.bf16.mxu0 0
    %4509 = vmatmul.mubr.bf16.gmra.mrb[0].mxu0 %v4430
    %v4510 = vpop.f32.mrb[0].mxu0
    %v4511 = vadd.f32 0.0, %v4510
    %v4512 = vpop.f32.mrb[0].mxu0
    %v4513 = vpop.f32.mrb[0].mxu0
    %v4514 = vadd.f32 0.0, %v4513
    %v4515 = vpop.f32.mrb[0].mxu0
    %4516 = vmatprep.mubr.bf16.mxu0 0
    %4517 = vmatmul.mubr.bf16.gmra.mrb[0].mxu0 %v4433
    %v4518 = vpop.f32.mrb[0].mxu0
    %v4519 = vadd.f32 0.0, %v4518
    %v4520 = vpop.f32.mrb[0].mxu0
    %v4521 = vpop.f32.mrb[0].mxu0
    %v4522 = vadd.f32 0.0, %v4521
    %v4523 = vpop.f32.mrb[0].mxu0
    %4524 = vmatprep.mubr.bf16.mxu0 0
    %4525 = vmatmul.mubr.bf16.gmra.mrb[0].mxu0 %v4436
    %v4526 = vpop.f32.mrb[0].mxu0
    %v4527 = vadd.f32 0.0, %v4526
    %v4528 = vpop.f32.mrb[0].mxu0
    %v4529 = vpop.f32.mrb[0].mxu0
    %v4530 = vadd.f32 0.0, %v4529
    %v4531 = vpop.f32.mrb[0].mxu0
    %4532 = vmatprep.mubr.bf16.mxu0 0
    %4533 = vmatmul.mubr.bf16.gmra.mrb[0].mxu0 %v4439
    %v4534 = vpop.f32.mrb[0].mxu0
    %v4535 = vadd.f32 0.0, %v4534
    %v4536 = vpop.f32.mrb[0].mxu0
    %v4537 = vpop.f32.mrb[0].mxu0
    %v4538 = vadd.f32 0.0, %v4537
    %v4539 = vpop.f32.mrb[0].mxu0
    %4540 = vdwg.mxu0
    %v4541 = vadd.f32 %v4004, %v4479
    %v4542 = vadd.f32 %v4005, %v4482
    %v4543 = vadd.f32 %v4006, %v4487
    %v4544 = vadd.f32 %v4007, %v4490
    %v4545 = vadd.f32 %v4008, %v4495
    %v4546 = vadd.f32 %v4009, %v4498
    %v4547 = vadd.f32 %v4010, %v4503
    %v4548 = vadd.f32 %v4011, %v4506
    %v4549 = vadd.f32 %v4012, %v4511
    %v4550 = vadd.f32 %v4013, %v4514
    %v4551 = vadd.f32 %v4014, %v4519
    %v4552 = vadd.f32 %v4015, %v4522
    %v4553 = vadd.f32 %v4016, %v4527
    %v4554 = vadd.f32 %v4017, %v4530
    %v4555 = vadd.f32 %v4018, %v4535
    %v4556 = vadd.f32 %v4019, %v4538
    %s4557 = scalar_lea.vmem %s1, 2048
    %v4558 = vld [vmem:[%s4557] sm:$0xff]
    %v4559 = vld [vmem:[%s4557 + $0x8] sm:$0xff]
    %v4560 = vld [vmem:[%s4557 + $0x10] sm:$0xff]
    %v4561 = vld [vmem:[%s4557 + $0x18] sm:$0xff]
    %v4562 = vld [vmem:[%s4557 + $0x20] sm:$0xff]
    %v4563 = vld [vmem:[%s4557 + $0x28] sm:$0xff]
    %v4564 = vld [vmem:[%s4557 + $0x30] sm:$0xff]
    %v4565 = vld [vmem:[%s4557 + $0x38] sm:$0xff]
    %v4566 = vld [vmem:[%s4557 + $0x40] sm:$0xff]
    %v4567 = vld [vmem:[%s4557 + $0x48] sm:$0xff]
    %v4568 = vld [vmem:[%s4557 + $0x50] sm:$0xff]
    %v4569 = vld [vmem:[%s4557 + $0x58] sm:$0xff]
    %v4570 = vld [vmem:[%s4557 + $0x60] sm:$0xff]
    %v4571 = vld [vmem:[%s4557 + $0x68] sm:$0xff]
    %v4572 = vld [vmem:[%s4557 + $0x70] sm:$0xff]
    %v4573 = vld [vmem:[%s4557 + $0x78] sm:$0xff]
    %v4574 = vld [vmem:[%s4557 + $0x80] sm:$0xff]
    %v4575 = vld [vmem:[%s4557 + $0x88] sm:$0xff]
    %v4576 = vld [vmem:[%s4557 + $0x90] sm:$0xff]
    %v4577 = vld [vmem:[%s4557 + $0x98] sm:$0xff]
    %v4578 = vld [vmem:[%s4557 + $0xa0] sm:$0xff]
    %v4579 = vld [vmem:[%s4557 + $0xa8] sm:$0xff]
    %v4580 = vld [vmem:[%s4557 + $0xb0] sm:$0xff]
    %v4581 = vld [vmem:[%s4557 + $0xb8] sm:$0xff]
    %v4582 = vld [vmem:[%s4557 + $0xc0] sm:$0xff]
    %v4583 = vld [vmem:[%s4557 + $0xc8] sm:$0xff]
    %v4584 = vld [vmem:[%s4557 + $0xd0] sm:$0xff]
    %v4585 = vld [vmem:[%s4557 + $0xd8] sm:$0xff]
    %v4586 = vld [vmem:[%s4557 + $0xe0] sm:$0xff]
    %v4587 = vld [vmem:[%s4557 + $0xe8] sm:$0xff]
    %v4588 = vld [vmem:[%s4557 + $0xf0] sm:$0xff]
    %v4589 = vld [vmem:[%s4557 + $0xf8] sm:$0xff]
    %s4590 = scalar_lea.vmem %s5, 32
    %v4591 = vld [vmem:[%s4590] sm:$0xf]
    %v4624 = vunpack.c.l.b16 %v4558
    %v4625 = vunpack.c.h.b16 %v4558
    %v4626 = vunpack.c.l.b16 %v4559
    %v4627 = vunpack.c.h.b16 %v4559
    %v4628 = vunpack.c.l.b16 %v4560
    %v4629 = vunpack.c.h.b16 %v4560
    %v4630 = vunpack.c.l.b16 %v4561
    %v4631 = vunpack.c.h.b16 %v4561
    %v4632 = vunpack.c.l.b16 %v4562
    %v4633 = vunpack.c.h.b16 %v4562
    %v4634 = vunpack.c.l.b16 %v4563
    %v4635 = vunpack.c.h.b16 %v4563
    %v4636 = vunpack.c.l.b16 %v4564
    %v4637 = vunpack.c.h.b16 %v4564
    %v4638 = vunpack.c.l.b16 %v4565
    %v4639 = vunpack.c.h.b16 %v4565
    %v4640 = vunpack.c.l.b16 %v4566
    %v4641 = vunpack.c.h.b16 %v4566
    %v4642 = vunpack.c.l.b16 %v4567
    %v4643 = vunpack.c.h.b16 %v4567
    %v4644 = vunpack.c.l.b16 %v4568
    %v4645 = vunpack.c.h.b16 %v4568
    %v4646 = vunpack.c.l.b16 %v4569
    %v4647 = vunpack.c.h.b16 %v4569
    %v4648 = vunpack.c.l.b16 %v4570
    %v4649 = vunpack.c.h.b16 %v4570
    %v4650 = vunpack.c.l.b16 %v4571
    %v4651 = vunpack.c.h.b16 %v4571
    %v4652 = vunpack.c.l.b16 %v4572
    %v4653 = vunpack.c.h.b16 %v4572
    %v4654 = vunpack.c.l.b16 %v4573
    %v4655 = vunpack.c.h.b16 %v4573
    %v4656 = vunpack.c.l.b16 %v4574
    %v4657 = vunpack.c.h.b16 %v4574
    %v4658 = vunpack.c.l.b16 %v4575
    %v4659 = vunpack.c.h.b16 %v4575
    %v4660 = vunpack.c.l.b16 %v4576
    %v4661 = vunpack.c.h.b16 %v4576
    %v4662 = vunpack.c.l.b16 %v4577
    %v4663 = vunpack.c.h.b16 %v4577
    %v4664 = vunpack.c.l.b16 %v4578
    %v4665 = vunpack.c.h.b16 %v4578
    %v4666 = vunpack.c.l.b16 %v4579
    %v4667 = vunpack.c.h.b16 %v4579
    %v4668 = vunpack.c.l.b16 %v4580
    %v4669 = vunpack.c.h.b16 %v4580
    %v4670 = vunpack.c.l.b16 %v4581
    %v4671 = vunpack.c.h.b16 %v4581
    %v4672 = vunpack.c.l.b16 %v4582
    %v4673 = vunpack.c.h.b16 %v4582
    %v4674 = vunpack.c.l.b16 %v4583
    %v4675 = vunpack.c.h.b16 %v4583
    %v4676 = vunpack.c.l.b16 %v4584
    %v4677 = vunpack.c.h.b16 %v4584
    %v4678 = vunpack.c.l.b16 %v4585
    %v4679 = vunpack.c.h.b16 %v4585
    %v4680 = vunpack.c.l.b16 %v4586
    %v4681 = vunpack.c.h.b16 %v4586
    %v4682 = vunpack.c.l.b16 %v4587
    %v4683 = vunpack.c.h.b16 %v4587
    %v4684 = vunpack.c.l.b16 %v4588
    %v4685 = vunpack.c.h.b16 %v4588
    %v4686 = vunpack.c.l.b16 %v4589
    %v4687 = vunpack.c.h.b16 %v4589
    %v4688 = vpack.c.b16 %v4628, %v4624
    %v4689 = vpack.c.b16 %v4629, %v4625
    %v4690 = vpack.c.b16 %v4630, %v4626
    %v4691 = vpack.c.b16 %v4631, %v4627
    %v4692 = vpack.c.b16 %v4636, %v4632
    %v4693 = vpack.c.b16 %v4637, %v4633
    %v4694 = vpack.c.b16 %v4638, %v4634
    %v4695 = vpack.c.b16 %v4639, %v4635
    %v4696 = vpack.c.b16 %v4644, %v4640
    %v4697 = vpack.c.b16 %v4645, %v4641
    %v4698 = vpack.c.b16 %v4646, %v4642
    %v4699 = vpack.c.b16 %v4647, %v4643
    %v4700 = vpack.c.b16 %v4652, %v4648
    %v4701 = vpack.c.b16 %v4653, %v4649
    %v4702 = vpack.c.b16 %v4654, %v4650
    %v4703 = vpack.c.b16 %v4655, %v4651
    %v4704 = vpack.c.b16 %v4660, %v4656
    %v4705 = vpack.c.b16 %v4661, %v4657
    %v4706 = vpack.c.b16 %v4662, %v4658
    %v4707 = vpack.c.b16 %v4663, %v4659
    %v4708 = vpack.c.b16 %v4668, %v4664
    %v4709 = vpack.c.b16 %v4669, %v4665
    %v4710 = vpack.c.b16 %v4670, %v4666
    %v4711 = vpack.c.b16 %v4671, %v4667
    %v4712 = vpack.c.b16 %v4676, %v4672
    %v4713 = vpack.c.b16 %v4677, %v4673
    %v4714 = vpack.c.b16 %v4678, %v4674
    %v4715 = vpack.c.b16 %v4679, %v4675
    %v4716 = vpack.c.b16 %v4684, %v4680
    %v4717 = vpack.c.b16 %v4685, %v4681
    %v4718 = vpack.c.b16 %v4686, %v4682
    %v4719 = vpack.c.b16 %v4687, %v4683
    %4752 = vmatprep.subr.bf16.mxu0 0
    %4753 = vmatpush1.bf16.msra.mxu0 %v422
    %4754 = vmatprep.subr.bf16.mxu0 0
    %4755 = vmatpush1.bf16.msra.mxu0 %v423
    %4756 = vmatprep.subr.bf16.mxu0 0
    %4757 = vmatpush1.bf16.msra.mxu0 %v424
    %4758 = vmatprep.subr.bf16.mxu0 0
    %4759 = vmatpush1.bf16.msra.mxu0 %v425
    %4760 = vmatprep.subr.bf16.mxu0 0
    %4761 = vmatpush1.bf16.msra.mxu0 %v426
    %4762 = vmatprep.subr.bf16.mxu0 0
    %4763 = vmatpush1.bf16.msra.mxu0 %v427
    %4764 = vmatprep.subr.bf16.mxu0 0
    %4765 = vmatpush1.bf16.msra.mxu0 %v428
    %4766 = vmatprep.subr.bf16.mxu0 0
    %4767 = vmatpush1.bf16.msra.mxu0 %v429
    %4768 = vmatprep.subr.bf16.mxu0 0
    %4769 = vmatpush1.bf16.msra.mxu0 %v430
    %4770 = vmatprep.subr.bf16.mxu0 0
    %4771 = vmatpush1.bf16.msra.mxu0 %v431
    %4772 = vmatprep.subr.bf16.mxu0 0
    %4773 = vmatpush1.bf16.msra.mxu0 %v432
    %4774 = vmatprep.subr.bf16.mxu0 0
    %4775 = vmatpush1.bf16.msra.mxu0 %v433
    %4776 = vmatprep.subr.bf16.mxu0 0
    %4777 = vmatpush1.bf16.msra.mxu0 %v434
    %4778 = vmatprep.subr.bf16.mxu0 0
    %4779 = vmatpush1.bf16.msra.mxu0 %v435
    %4780 = vmatprep.subr.bf16.mxu0 0
    %4781 = vmatpush1.bf16.msra.mxu0 %v436
    %4782 = vmatprep.subr.bf16.mxu0 0
    %4783 = vmatpush1.bf16.msra.mxu0 %v437
    %4784 = vmatprep.mubr.bf16.mxu0 %v4689
    %4785 = vmatmul.mubr.bf16.gmra.mrb[0].mxu0 %v4688
    %v4786 = vpop.f32.mrb[0].mxu0
    %v4787 = vadd.f32 0.0, %v4786
    %v4788 = vpop.f32.mrb[0].mxu0
    %v4789 = vpop.f32.mrb[0].mxu0
    %v4790 = vadd.f32 0.0, %v4789
    %v4791 = vpop.f32.mrb[0].mxu0
    %4792 = vmatprep.mubr.bf16.mxu0 %v4693
    %4793 = vmatmul.mubr.bf16.gmra.mrb[0].mxu0 %v4692
    %v4794 = vpop.f32.mrb[0].mxu0
    %v4795 = vadd.f32 0.0, %v4794
    %v4796 = vpop.f32.mrb[0].mxu0
    %v4797 = vpop.f32.mrb[0].mxu0
    %v4798 = vadd.f32 0.0, %v4797
    %v4799 = vpop.f32.mrb[0].mxu0
    %4800 = vmatprep.mubr.bf16.mxu0 %v4697
    %4801 = vmatmul.mubr.bf16.gmra.mrb[0].mxu0 %v4696
    %v4802 = vpop.f32.mrb[0].mxu0
    %v4803 = vadd.f32 0.0, %v4802
    %v4804 = vpop.f32.mrb[0].mxu0
    %v4805 = vpop.f32.mrb[0].mxu0
    %v4806 = vadd.f32 0.0, %v4805
    %v4807 = vpop.f32.mrb[0].mxu0
    %4808 = vmatprep.mubr.bf16.mxu0 %v4701
    %4809 = vmatmul.mubr.bf16.gmra.mrb[0].mxu0 %v4700
    %v4810 = vpop.f32.mrb[0].mxu0
    %v4811 = vadd.f32 0.0, %v4810
    %v4812 = vpop.f32.mrb[0].mxu0
    %v4813 = vpop.f32.mrb[0].mxu0
    %v4814 = vadd.f32 0.0, %v4813
    %v4815 = vpop.f32.mrb[0].mxu0
    %4816 = vmatprep.mubr.bf16.mxu0 %v4705
    %4817 = vmatmul.mubr.bf16.gmra.mrb[0].mxu0 %v4704
    %v4818 = vpop.f32.mrb[0].mxu0
    %v4819 = vadd.f32 0.0, %v4818
    %v4820 = vpop.f32.mrb[0].mxu0
    %v4821 = vpop.f32.mrb[0].mxu0
    %v4822 = vadd.f32 0.0, %v4821
    %v4823 = vpop.f32.mrb[0].mxu0
    %4824 = vmatprep.mubr.bf16.mxu0 %v4709
    %4825 = vmatmul.mubr.bf16.gmra.mrb[0].mxu0 %v4708
    %v4826 = vpop.f32.mrb[0].mxu0
    %v4827 = vadd.f32 0.0, %v4826
    %v4828 = vpop.f32.mrb[0].mxu0
    %v4829 = vpop.f32.mrb[0].mxu0
    %v4830 = vadd.f32 0.0, %v4829
    %v4831 = vpop.f32.mrb[0].mxu0
    %4832 = vmatprep.mubr.bf16.mxu0 %v4713
    %4833 = vmatmul.mubr.bf16.gmra.mrb[0].mxu0 %v4712
    %v4834 = vpop.f32.mrb[0].mxu0
    %v4835 = vadd.f32 0.0, %v4834
    %v4836 = vpop.f32.mrb[0].mxu0
    %v4837 = vpop.f32.mrb[0].mxu0
    %v4838 = vadd.f32 0.0, %v4837
    %v4839 = vpop.f32.mrb[0].mxu0
    %4840 = vmatprep.mubr.bf16.mxu0 %v4717
    %4841 = vmatmul.mubr.bf16.gmra.mrb[0].mxu0 %v4716
    %v4842 = vpop.f32.mrb[0].mxu0
    %v4843 = vadd.f32 0.0, %v4842
    %v4844 = vpop.f32.mrb[0].mxu0
    %v4845 = vpop.f32.mrb[0].mxu0
    %v4846 = vadd.f32 0.0, %v4845
    %v4847 = vpop.f32.mrb[0].mxu0
    %4848 = vdwg.mxu0
    %4849 = vmatprep.subr.bf16.mxu0 0
    %4850 = vmatpush1.bf16.msra.mxu0 %v438
    %4851 = vmatprep.subr.bf16.mxu0 0
    %4852 = vmatpush1.bf16.msra.mxu0 %v439
    %4853 = vmatprep.subr.bf16.mxu0 0
    %4854 = vmatpush1.bf16.msra.mxu0 %v440
    %4855 = vmatprep.subr.bf16.mxu0 0
    %4856 = vmatpush1.bf16.msra.mxu0 %v441
    %4857 = vmatprep.subr.bf16.mxu0 0
    %4858 = vmatpush1.bf16.msra.mxu0 %v442
    %4859 = vmatprep.subr.bf16.mxu0 0
    %4860 = vmatpush1.bf16.msra.mxu0 %v443
    %4861 = vmatprep.subr.bf16.mxu0 0
    %4862 = vmatpush1.bf16.msra.mxu0 %v444
    %4863 = vmatprep.subr.bf16.mxu0 0
    %4864 = vmatpush1.bf16.msra.mxu0 %v445
    %4865 = vmatprep.subr.bf16.mxu0 0
    %4866 = vmatpush1.bf16.msra.mxu0 %v446
    %4867 = vmatprep.subr.bf16.mxu0 0
    %4868 = vmatpush1.bf16.msra.mxu0 %v447
    %4869 = vmatprep.subr.bf16.mxu0 0
    %4870 = vmatpush1.bf16.msra.mxu0 %v448
    %4871 = vmatprep.subr.bf16.mxu0 0
    %4872 = vmatpush1.bf16.msra.mxu0 %v449
    %4873 = vmatprep.subr.bf16.mxu0 0
    %4874 = vmatpush1.bf16.msra.mxu0 %v450
    %4875 = vmatprep.subr.bf16.mxu0 0
    %4876 = vmatpush1.bf16.msra.mxu0 %v451
    %4877 = vmatprep.subr.bf16.mxu0 0
    %4878 = vmatpush1.bf16.msra.mxu0 %v452
    %4879 = vmatprep.subr.bf16.mxu0 0
    %4880 = vmatpush1.bf16.msra.mxu0 %v453
    %4881 = vmatprep.mubr.bf16.mxu0 %v4691
    %4882 = vmatmul.mubr.bf16.gmra.mrb[0].mxu0 %v4690
    %v4883 = vpop.f32.mrb[0].mxu0
    %v4884 = vadd.f32 %v4787, %v4883
    %v4885 = vpop.f32.mrb[0].mxu0
    %v4886 = vpop.f32.mrb[0].mxu0
    %v4887 = vadd.f32 %v4790, %v4886
    %v4888 = vpop.f32.mrb[0].mxu0
    %4889 = vmatprep.mubr.bf16.mxu0 %v4695
    %4890 = vmatmul.mubr.bf16.gmra.mrb[0].mxu0 %v4694
    %v4891 = vpop.f32.mrb[0].mxu0
    %v4892 = vadd.f32 %v4795, %v4891
    %v4893 = vpop.f32.mrb[0].mxu0
    %v4894 = vpop.f32.mrb[0].mxu0
    %v4895 = vadd.f32 %v4798, %v4894
    %v4896 = vpop.f32.mrb[0].mxu0
    %4897 = vmatprep.mubr.bf16.mxu0 %v4699
    %4898 = vmatmul.mubr.bf16.gmra.mrb[0].mxu0 %v4698
    %v4899 = vpop.f32.mrb[0].mxu0
    %v4900 = vadd.f32 %v4803, %v4899
    %v4901 = vpop.f32.mrb[0].mxu0
    %v4902 = vpop.f32.mrb[0].mxu0
    %v4903 = vadd.f32 %v4806, %v4902
    %v4904 = vpop.f32.mrb[0].mxu0
    %4905 = vmatprep.mubr.bf16.mxu0 %v4703
    %4906 = vmatmul.mubr.bf16.gmra.mrb[0].mxu0 %v4702
    %v4907 = vpop.f32.mrb[0].mxu0
    %v4908 = vadd.f32 %v4811, %v4907
    %v4909 = vpop.f32.mrb[0].mxu0
    %v4910 = vpop.f32.mrb[0].mxu0
    %v4911 = vadd.f32 %v4814, %v4910
    %v4912 = vpop.f32.mrb[0].mxu0
    %4913 = vmatprep.mubr.bf16.mxu0 %v4707
    %4914 = vmatmul.mubr.bf16.gmra.mrb[0].mxu0 %v4706
    %v4915 = vpop.f32.mrb[0].mxu0
    %v4916 = vadd.f32 %v4819, %v4915
    %v4917 = vpop.f32.mrb[0].mxu0
    %v4918 = vpop.f32.mrb[0].mxu0
    %v4919 = vadd.f32 %v4822, %v4918
    %v4920 = vpop.f32.mrb[0].mxu0
    %4921 = vmatprep.mubr.bf16.mxu0 %v4711
    %4922 = vmatmul.mubr.bf16.gmra.mrb[0].mxu0 %v4710
    %v4923 = vpop.f32.mrb[0].mxu0
    %v4924 = vadd.f32 %v4827, %v4923
    %v4925 = vpop.f32.mrb[0].mxu0
    %v4926 = vpop.f32.mrb[0].mxu0
    %v4927 = vadd.f32 %v4830, %v4926
    %v4928 = vpop.f32.mrb[0].mxu0
    %4929 = vmatprep.mubr.bf16.mxu0 %v4715
    %4930 = vmatmul.mubr.bf16.gmra.mrb[0].mxu0 %v4714
    %v4931 = vpop.f32.mrb[0].mxu0
    %v4932 = vadd.f32 %v4835, %v4931
    %v4933 = vpop.f32.mrb[0].mxu0
    %v4934 = vpop.f32.mrb[0].mxu0
    %v4935 = vadd.f32 %v4838, %v4934
    %v4936 = vpop.f32.mrb[0].mxu0
    %4937 = vmatprep.mubr.bf16.mxu0 %v4719
    %4938 = vmatmul.mubr.bf16.gmra.mrb[0].mxu0 %v4718
    %v4939 = vpop.f32.mrb[0].mxu0
    %v4940 = vadd.f32 %v4843, %v4939
    %v4941 = vpop.f32.mrb[0].mxu0
    %v4942 = vpop.f32.mrb[0].mxu0
    %v4943 = vadd.f32 %v4846, %v4942
    %v4944 = vpop.f32.mrb[0].mxu0
    %4945 = vdwg.mxu0
    %v4946 = vpack.c.bf16 %v4887, %v4884
    %v4947 = vpack.c.bf16 %v4895, %v4892
    %v4948 = vpack.c.bf16 %v4903, %v4900
    %v4949 = vpack.c.bf16 %v4911, %v4908
    %v4950 = vpack.c.bf16 %v4919, %v4916
    %v4951 = vpack.c.bf16 %v4927, %v4924
    %v4952 = vpack.c.bf16 %v4935, %v4932
    %v4953 = vpack.c.bf16 %v4943, %v4940
    %v4955 = vsel %vm1085, %v4946, 0
    %v4958 = vsel %vm1085, %v4947, 0
    %v4961 = vsel %vm1085, %v4948, 0
    %v4964 = vsel %vm1085, %v4949, 0
    %v4967 = vsel %vm1085, %v4950, 0
    %v4970 = vsel %vm1085, %v4951, 0
    %v4973 = vsel %vm1085, %v4952, 0
    %v4976 = vsel %vm1085, %v4953, 0
    %v4979 = vsel %vm1110, %v4591, 0
    %4981 = vmatprep.subr.bf16.mxu0 0
    %4982 = vmatpush1.bf16.msra.mxu0 %v4979
    %4983 = vmatprep.subr.bf16.mxu0 0
    %4984 = vmatpush1.bf16.msra.mxu0 0
    %4985 = vmatprep.subr.bf16.mxu0 0
    %4986 = vmatpush1.bf16.msra.mxu0 0
    %4987 = vmatprep.subr.bf16.mxu0 0
    %4988 = vmatpush1.bf16.msra.mxu0 0
    %4989 = vmatprep.subr.bf16.mxu0 0
    %4990 = vmatpush1.bf16.msra.mxu0 0
    %4991 = vmatprep.subr.bf16.mxu0 0
    %4992 = vmatpush1.bf16.msra.mxu0 0
    %4993 = vmatprep.subr.bf16.mxu0 0
    %4994 = vmatpush1.bf16.msra.mxu0 0
    %4995 = vmatprep.subr.bf16.mxu0 0
    %4996 = vmatpush1.bf16.msra.mxu0 0
    %4997 = vmatprep.subr.bf16.mxu0 0
    %4998 = vmatpush1.bf16.msra.mxu0 0
    %4999 = vmatprep.subr.bf16.mxu0 0
    %5000 = vmatpush1.bf16.msra.mxu0 0
    %5001 = vmatprep.subr.bf16.mxu0 0
    %5002 = vmatpush1.bf16.msra.mxu0 0
    %5003 = vmatprep.subr.bf16.mxu0 0
    %5004 = vmatpush1.bf16.msra.mxu0 0
    %5005 = vmatprep.subr.bf16.mxu0 0
    %5006 = vmatpush1.bf16.msra.mxu0 0
    %5007 = vmatprep.subr.bf16.mxu0 0
    %5008 = vmatpush1.bf16.msra.mxu0 0
    %5009 = vmatprep.subr.bf16.mxu0 0
    %5010 = vmatpush1.bf16.msra.mxu0 0
    %5011 = vmatprep.subr.bf16.mxu0 0
    %5012 = vmatpush1.bf16.msra.mxu0 0
    %5013 = vmatprep.mubr.bf16.mxu0 0
    %5014 = vmatmul.mubr.bf16.gmra.mrb[0].mxu0 %v4955
    %v5015 = vpop.f32.mrb[0].mxu0
    %v5016 = vadd.f32 0.0, %v5015
    %v5017 = vpop.f32.mrb[0].mxu0
    %v5018 = vpop.f32.mrb[0].mxu0
    %v5019 = vadd.f32 0.0, %v5018
    %v5020 = vpop.f32.mrb[0].mxu0
    %5021 = vmatprep.mubr.bf16.mxu0 0
    %5022 = vmatmul.mubr.bf16.gmra.mrb[0].mxu0 %v4958
    %v5023 = vpop.f32.mrb[0].mxu0
    %v5024 = vadd.f32 0.0, %v5023
    %v5025 = vpop.f32.mrb[0].mxu0
    %v5026 = vpop.f32.mrb[0].mxu0
    %v5027 = vadd.f32 0.0, %v5026
    %v5028 = vpop.f32.mrb[0].mxu0
    %5029 = vmatprep.mubr.bf16.mxu0 0
    %5030 = vmatmul.mubr.bf16.gmra.mrb[0].mxu0 %v4961
    %v5031 = vpop.f32.mrb[0].mxu0
    %v5032 = vadd.f32 0.0, %v5031
    %v5033 = vpop.f32.mrb[0].mxu0
    %v5034 = vpop.f32.mrb[0].mxu0
    %v5035 = vadd.f32 0.0, %v5034
    %v5036 = vpop.f32.mrb[0].mxu0
    %5037 = vmatprep.mubr.bf16.mxu0 0
    %5038 = vmatmul.mubr.bf16.gmra.mrb[0].mxu0 %v4964
    %v5039 = vpop.f32.mrb[0].mxu0
    %v5040 = vadd.f32 0.0, %v5039
    %v5041 = vpop.f32.mrb[0].mxu0
    %v5042 = vpop.f32.mrb[0].mxu0
    %v5043 = vadd.f32 0.0, %v5042
    %v5044 = vpop.f32.mrb[0].mxu0
    %5045 = vmatprep.mubr.bf16.mxu0 0
    %5046 = vmatmul.mubr.bf16.gmra.mrb[0].mxu0 %v4967
    %v5047 = vpop.f32.mrb[0].mxu0
    %v5048 = vadd.f32 0.0, %v5047
    %v5049 = vpop.f32.mrb[0].mxu0
    %v5050 = vpop.f32.mrb[0].mxu0
    %v5051 = vadd.f32 0.0, %v5050
    %v5052 = vpop.f32.mrb[0].mxu0
    %5053 = vmatprep.mubr.bf16.mxu0 0
    %5054 = vmatmul.mubr.bf16.gmra.mrb[0].mxu0 %v4970
    %v5055 = vpop.f32.mrb[0].mxu0
    %v5056 = vadd.f32 0.0, %v5055
    %v5057 = vpop.f32.mrb[0].mxu0
    %v5058 = vpop.f32.mrb[0].mxu0
    %v5059 = vadd.f32 0.0, %v5058
    %v5060 = vpop.f32.mrb[0].mxu0
    %5061 = vmatprep.mubr.bf16.mxu0 0
    %5062 = vmatmul.mubr.bf16.gmra.mrb[0].mxu0 %v4973
    %v5063 = vpop.f32.mrb[0].mxu0
    %v5064 = vadd.f32 0.0, %v5063
    %v5065 = vpop.f32.mrb[0].mxu0
    %v5066 = vpop.f32.mrb[0].mxu0
    %v5067 = vadd.f32 0.0, %v5066
    %v5068 = vpop.f32.mrb[0].mxu0
    %5069 = vmatprep.mubr.bf16.mxu0 0
    %5070 = vmatmul.mubr.bf16.gmra.mrb[0].mxu0 %v4976
    %v5071 = vpop.f32.mrb[0].mxu0
    %v5072 = vadd.f32 0.0, %v5071
    %v5073 = vpop.f32.mrb[0].mxu0
    %v5074 = vpop.f32.mrb[0].mxu0
    %v5075 = vadd.f32 0.0, %v5074
    %v5076 = vpop.f32.mrb[0].mxu0
    %5077 = vdwg.mxu0
    %v5078 = vadd.f32 %v4541, %v5016
    %v5079 = vadd.f32 %v4542, %v5019
    %v5080 = vadd.f32 %v4543, %v5024
    %v5081 = vadd.f32 %v4544, %v5027
    %v5082 = vadd.f32 %v4545, %v5032
    %v5083 = vadd.f32 %v4546, %v5035
    %v5084 = vadd.f32 %v4547, %v5040
    %v5085 = vadd.f32 %v4548, %v5043
    %v5086 = vadd.f32 %v4549, %v5048
    %v5087 = vadd.f32 %v4550, %v5051
    %v5088 = vadd.f32 %v4551, %v5056
    %v5089 = vadd.f32 %v4552, %v5059
    %v5090 = vadd.f32 %v4553, %v5064
    %v5091 = vadd.f32 %v4554, %v5067
    %v5092 = vadd.f32 %v4555, %v5072
    %v5093 = vadd.f32 %v4556, %v5075
    %v5094 = vld [vmem:[%s9] sm:$0x1]
    %v5096 = vlaneseq
    %v5097 = vshrl.u32 %v5096, 7
    %v5098 = vsub.s32 0, %v5097
    %v5099 = vrot.slane %v5094, %v5098
    %v5101 = vadd.f32 %v5078, %v5099
    %v5102 = vadd.f32 %v5079, %v5099
    %v5103 = vadd.f32 %v5080, %v5099
    %v5104 = vadd.f32 %v5081, %v5099
    %v5105 = vadd.f32 %v5082, %v5099
    %v5106 = vadd.f32 %v5083, %v5099
    %v5107 = vadd.f32 %v5084, %v5099
    %v5108 = vadd.f32 %v5085, %v5099
    %v5109 = vadd.f32 %v5086, %v5099
    %v5110 = vadd.f32 %v5087, %v5099
    %v5111 = vadd.f32 %v5088, %v5099
    %v5112 = vadd.f32 %v5089, %v5099
    %v5113 = vadd.f32 %v5090, %v5099
    %v5114 = vadd.f32 %v5091, %v5099
    %v5115 = vadd.f32 %v5092, %v5099
    %v5116 = vadd.f32 %v5093, %v5099
    %v5117 = vmax.f32 %v5101, 0.0
    %v5118 = vmax.f32 %v5102, 0.0
    %v5119 = vmax.f32 %v5103, 0.0
    %v5120 = vmax.f32 %v5104, 0.0
    %v5121 = vmax.f32 %v5105, 0.0
    %v5122 = vmax.f32 %v5106, 0.0
    %v5123 = vmax.f32 %v5107, 0.0
    %v5124 = vmax.f32 %v5108, 0.0
    %v5125 = vmax.f32 %v5109, 0.0
    %v5126 = vmax.f32 %v5110, 0.0
    %v5127 = vmax.f32 %v5111, 0.0
    %v5128 = vmax.f32 %v5112, 0.0
    %v5129 = vmax.f32 %v5113, 0.0
    %v5130 = vmax.f32 %v5114, 0.0
    %v5131 = vmax.f32 %v5115, 0.0
    %v5132 = vmax.f32 %v5116, 0.0
    %v5133 = vadd.f32 %v5117, %v5118
    %v5134 = vadd.f32 %v5133, %v5119
    %v5135 = vadd.f32 %v5134, %v5120
    %v5136 = vadd.f32 %v5135, %v5121
    %v5137 = vadd.f32 %v5136, %v5122
    %v5138 = vadd.f32 %v5137, %v5123
    %v5139 = vadd.f32 %v5138, %v5124
    %v5140 = vadd.f32 %v5139, %v5125
    %v5141 = vadd.f32 %v5140, %v5126
    %v5142 = vadd.f32 %v5141, %v5127
    %v5143 = vadd.f32 %v5142, %v5128
    %v5144 = vadd.f32 %v5143, %v5129
    %v5145 = vadd.f32 %v5144, %v5130
    %v5146 = vadd.f32 %v5145, %v5131
    %v5147 = vadd.f32 %v5146, %v5132
    %v5148 = vrot.slane %v5147, 4
    %v5149 = vadd.f32 %v5147, %v5148
    %v5150 = vrot.slane %v5149, 2
    %v5151 = vadd.f32 %v5149, %v5150
    %v5152 = vrot.slane %v5151, 1
    %v5153 = vadd.f32 %v5151, %v5152
    %v5154 = vmul.f32 %v5153, 0.0078125
    %v5155 = vmul.f32 %v5117, %v5117
    %v5156 = vmul.f32 %v5118, %v5118
    %v5157 = vmul.f32 %v5119, %v5119
    %v5158 = vmul.f32 %v5120, %v5120
    %v5159 = vmul.f32 %v5121, %v5121
    %v5160 = vmul.f32 %v5122, %v5122
    %v5161 = vmul.f32 %v5123, %v5123
    %v5162 = vmul.f32 %v5124, %v5124
    %v5163 = vmul.f32 %v5125, %v5125
    %v5164 = vmul.f32 %v5126, %v5126
    %v5165 = vmul.f32 %v5127, %v5127
    %v5166 = vmul.f32 %v5128, %v5128
    %v5167 = vmul.f32 %v5129, %v5129
    %v5168 = vmul.f32 %v5130, %v5130
    %v5169 = vmul.f32 %v5131, %v5131
    %v5170 = vmul.f32 %v5132, %v5132
    %v5171 = vadd.f32 %v5155, %v5156
    %v5172 = vadd.f32 %v5171, %v5157
    %v5173 = vadd.f32 %v5172, %v5158
    %v5174 = vadd.f32 %v5173, %v5159
    %v5175 = vadd.f32 %v5174, %v5160
    %v5176 = vadd.f32 %v5175, %v5161
    %v5177 = vadd.f32 %v5176, %v5162
    %v5178 = vadd.f32 %v5177, %v5163
    %v5179 = vadd.f32 %v5178, %v5164
    %v5180 = vadd.f32 %v5179, %v5165
    %v5181 = vadd.f32 %v5180, %v5166
    %v5182 = vadd.f32 %v5181, %v5167
    %v5183 = vadd.f32 %v5182, %v5168
    %v5184 = vadd.f32 %v5183, %v5169
    %v5185 = vadd.f32 %v5184, %v5170
    %v5186 = vrot.slane %v5185, 4
    %v5187 = vadd.f32 %v5185, %v5186
    %v5188 = vrot.slane %v5187, 2
    %v5189 = vadd.f32 %v5187, %v5188
    %v5190 = vrot.slane %v5189, 1
    %v5191 = vadd.f32 %v5189, %v5190
    %v5192 = vmul.f32 %v5191, 0.0078125
    %v5193 = vmul.f32 %v5154, %v5154
    %v5194 = vsub.f32 %v5192, %v5193
    %v5195 = vsub.f32 %v5117, %v5154
    %v5196 = vsub.f32 %v5118, %v5154
    %v5197 = vsub.f32 %v5119, %v5154
    %v5198 = vsub.f32 %v5120, %v5154
    %v5199 = vsub.f32 %v5121, %v5154
    %v5200 = vsub.f32 %v5122, %v5154
    %v5201 = vsub.f32 %v5123, %v5154
    %v5202 = vsub.f32 %v5124, %v5154
    %v5203 = vsub.f32 %v5125, %v5154
    %v5204 = vsub.f32 %v5126, %v5154
    %v5205 = vsub.f32 %v5127, %v5154
    %v5206 = vsub.f32 %v5128, %v5154
    %v5207 = vsub.f32 %v5129, %v5154
    %v5208 = vsub.f32 %v5130, %v5154
    %v5209 = vsub.f32 %v5131, %v5154
    %v5210 = vsub.f32 %v5132, %v5154
    %v5211 = vadd.f32 %v5194, 1e-05
    %v5212 = vrsqrt.pop %v5211
    %v5213 = vmul.f32 %v5195, %v5212
    %v5214 = vmul.f32 %v5196, %v5212
    %v5215 = vmul.f32 %v5197, %v5212
    %v5216 = vmul.f32 %v5198, %v5212
    %v5217 = vmul.f32 %v5199, %v5212
    %v5218 = vmul.f32 %v5200, %v5212
    %v5219 = vmul.f32 %v5201, %v5212
    %v5220 = vmul.f32 %v5202, %v5212
    %v5221 = vmul.f32 %v5203, %v5212
    %v5222 = vmul.f32 %v5204, %v5212
    %v5223 = vmul.f32 %v5205, %v5212
    %v5224 = vmul.f32 %v5206, %v5212
    %v5225 = vmul.f32 %v5207, %v5212
    %v5226 = vmul.f32 %v5208, %v5212
    %v5227 = vmul.f32 %v5209, %v5212
    %v5228 = vmul.f32 %v5210, %v5212
    %v5229 = vpack.c.bf16 %v5214, %v5213
    %v5230 = vpack.c.bf16 %v5216, %v5215
    %v5231 = vpack.c.bf16 %v5218, %v5217
    %v5232 = vpack.c.bf16 %v5220, %v5219
    %v5233 = vpack.c.bf16 %v5222, %v5221
    %v5234 = vpack.c.bf16 %v5224, %v5223
    %v5235 = vpack.c.bf16 %v5226, %v5225
    %v5236 = vpack.c.bf16 %v5228, %v5227
    %v5237 = vld [vmem:[%s2] sm:$0xf]
    %v5238 = vld [vmem:[%s2 + $0x4] sm:$0xf]
    %v5239 = vld [vmem:[%s2 + $0x8] sm:$0xf]
    %v5240 = vld [vmem:[%s2 + $0xc] sm:$0xf]
    %v5241 = vld [vmem:[%s6] sm:$0xf]
    %v5242 = vld [vmem:[%s6 + $0x4] sm:$0xf]
    %v5243 = vld [vmem:[%s6 + $0x8] sm:$0xf]
    %v5244 = vld [vmem:[%s6 + $0xc] sm:$0xf]
    %v5245 = vld [vmem:[%s6 + $0x10] sm:$0xf]
    %v5246 = vld [vmem:[%s6 + $0x14] sm:$0xf]
    %v5247 = vld [vmem:[%s6 + $0x18] sm:$0xf]
    %v5248 = vld [vmem:[%s6 + $0x1c] sm:$0xf]
    %v5249 = vld [vmem:[%s6 + $0x20] sm:$0xf]
    %v5250 = vld [vmem:[%s6 + $0x24] sm:$0xf]
    %v5251 = vld [vmem:[%s6 + $0x28] sm:$0xf]
    %v5252 = vld [vmem:[%s6 + $0x2c] sm:$0xf]
    %v5253 = vld [vmem:[%s6 + $0x30] sm:$0xf]
    %v5254 = vld [vmem:[%s6 + $0x34] sm:$0xf]
    %v5255 = vld [vmem:[%s6 + $0x38] sm:$0xf]
    %v5256 = vld [vmem:[%s6 + $0x3c] sm:$0xf]
    %v5261 = vunpack.c.l.b16 %v5237
    %v5262 = vunpack.c.l.b16 %v5238
    %v5263 = vunpack.c.l.b16 %v5239
    %v5264 = vunpack.c.l.b16 %v5240
    %v5265 = vpack.c.b16 %v5262, %v5261
    %v5266 = vpack.c.b16 %v5264, %v5263
    %5269 = vmatprep.subr.bf16.mxu0 0
    %5270 = vmatpush1.bf16.msra.mxu0 %v5229
    %5271 = vmatprep.subr.bf16.mxu0 0
    %5272 = vmatpush1.bf16.msra.mxu0 %v5230
    %5273 = vmatprep.subr.bf16.mxu0 0
    %5274 = vmatpush1.bf16.msra.mxu0 %v5231
    %5275 = vmatprep.subr.bf16.mxu0 0
    %5276 = vmatpush1.bf16.msra.mxu0 %v5232
    %5277 = vmatprep.subr.bf16.mxu0 0
    %5278 = vmatpush1.bf16.msra.mxu0 %v5233
    %5279 = vmatprep.subr.bf16.mxu0 0
    %5280 = vmatpush1.bf16.msra.mxu0 %v5234
    %5281 = vmatprep.subr.bf16.mxu0 0
    %5282 = vmatpush1.bf16.msra.mxu0 %v5235
    %5283 = vmatprep.subr.bf16.mxu0 0
    %5284 = vmatpush1.bf16.msra.mxu0 %v5236
    %5285 = vmatprep.subr.bf16.mxu0 0
    %5286 = vmatpush1.bf16.msra.mxu0 0
    %5287 = vmatprep.subr.bf16.mxu0 0
    %5288 = vmatpush1.bf16.msra.mxu0 0
    %5289 = vmatprep.subr.bf16.mxu0 0
    %5290 = vmatpush1.bf16.msra.mxu0 0
    %5291 = vmatprep.subr.bf16.mxu0 0
    %5292 = vmatpush1.bf16.msra.mxu0 0
    %5293 = vmatprep.subr.bf16.mxu0 0
    %5294 = vmatpush1.bf16.msra.mxu0 0
    %5295 = vmatprep.subr.bf16.mxu0 0
    %5296 = vmatpush1.bf16.msra.mxu0 0
    %5297 = vmatprep.subr.bf16.mxu0 0
    %5298 = vmatpush1.bf16.msra.mxu0 0
    %5299 = vmatprep.subr.bf16.mxu0 0
    %5300 = vmatpush1.bf16.msra.mxu0 0
    %5301 = vmatprep.mubr.bf16.mxu0 0
    %5302 = vmatmul.mubr.bf16.gmra.mrb[0].mxu0 %v5265
    %v5303 = vpop.f32.mrb[0].mxu0
    %v5304 = vadd.f32 0.0, %v5303
    %v5305 = vpop.f32.mrb[0].mxu0
    %v5306 = vpop.f32.mrb[0].mxu0
    %v5307 = vadd.f32 0.0, %v5306
    %v5308 = vpop.f32.mrb[0].mxu0
    %5309 = vmatprep.mubr.bf16.mxu0 0
    %5310 = vmatmul.mubr.bf16.gmra.mrb[0].mxu0 %v5266
    %v5311 = vpop.f32.mrb[0].mxu0
    %v5312 = vadd.f32 0.0, %v5311
    %v5313 = vpop.f32.mrb[0].mxu0
    %v5314 = vpop.f32.mrb[0].mxu0
    %v5315 = vadd.f32 0.0, %v5314
    %v5316 = vpop.f32.mrb[0].mxu0
    %5317 = vdwg.mxu0
    %v5318 = vpack.c.bf16 %v5307, %v5304
    %v5319 = vpack.c.bf16 %v5315, %v5312
    %s5320 = scalar_lea.vmem %s2, 16
    %v5321 = vld [vmem:[%s5320] sm:$0xf]
    %v5322 = vld [vmem:[%s5320 + $0x4] sm:$0xf]
    %v5323 = vld [vmem:[%s5320 + $0x8] sm:$0xf]
    %v5324 = vld [vmem:[%s5320 + $0xc] sm:$0xf]
    %s5325 = scalar_lea.vmem %s6, 64
    %v5326 = vld [vmem:[%s5325] sm:$0xf]
    %v5327 = vld [vmem:[%s5325 + $0x4] sm:$0xf]
    %v5328 = vld [vmem:[%s5325 + $0x8] sm:$0xf]
    %v5329 = vld [vmem:[%s5325 + $0xc] sm:$0xf]
    %v5330 = vld [vmem:[%s5325 + $0x10] sm:$0xf]
    %v5331 = vld [vmem:[%s5325 + $0x14] sm:$0xf]
    %v5332 = vld [vmem:[%s5325 + $0x18] sm:$0xf]
    %v5333 = vld [vmem:[%s5325 + $0x1c] sm:$0xf]
    %v5334 = vld [vmem:[%s5325 + $0x20] sm:$0xf]
    %v5335 = vld [vmem:[%s5325 + $0x24] sm:$0xf]
    %v5336 = vld [vmem:[%s5325 + $0x28] sm:$0xf]
    %v5337 = vld [vmem:[%s5325 + $0x2c] sm:$0xf]
    %v5338 = vld [vmem:[%s5325 + $0x30] sm:$0xf]
    %v5339 = vld [vmem:[%s5325 + $0x34] sm:$0xf]
    %v5340 = vld [vmem:[%s5325 + $0x38] sm:$0xf]
    %v5341 = vld [vmem:[%s5325 + $0x3c] sm:$0xf]
    %v5346 = vunpack.c.l.b16 %v5321
    %v5347 = vunpack.c.l.b16 %v5322
    %v5348 = vunpack.c.l.b16 %v5323
    %v5349 = vunpack.c.l.b16 %v5324
    %v5350 = vpack.c.b16 %v5347, %v5346
    %v5351 = vpack.c.b16 %v5349, %v5348
    %5354 = vmatprep.subr.bf16.mxu0 0
    %5355 = vmatpush1.bf16.msra.mxu0 %v5229
    %5356 = vmatprep.subr.bf16.mxu0 0
    %5357 = vmatpush1.bf16.msra.mxu0 %v5230
    %5358 = vmatprep.subr.bf16.mxu0 0
    %5359 = vmatpush1.bf16.msra.mxu0 %v5231
    %5360 = vmatprep.subr.bf16.mxu0 0
    %5361 = vmatpush1.bf16.msra.mxu0 %v5232
    %5362 = vmatprep.subr.bf16.mxu0 0
    %5363 = vmatpush1.bf16.msra.mxu0 %v5233
    %5364 = vmatprep.subr.bf16.mxu0 0
    %5365 = vmatpush1.bf16.msra.mxu0 %v5234
    %5366 = vmatprep.subr.bf16.mxu0 0
    %5367 = vmatpush1.bf16.msra.mxu0 %v5235
    %5368 = vmatprep.subr.bf16.mxu0 0
    %5369 = vmatpush1.bf16.msra.mxu0 %v5236
    %5370 = vmatprep.subr.bf16.mxu0 0
    %5371 = vmatpush1.bf16.msra.mxu0 0
    %5372 = vmatprep.subr.bf16.mxu0 0
    %5373 = vmatpush1.bf16.msra.mxu0 0
    %5374 = vmatprep.subr.bf16.mxu0 0
    %5375 = vmatpush1.bf16.msra.mxu0 0
    %5376 = vmatprep.subr.bf16.mxu0 0
    %5377 = vmatpush1.bf16.msra.mxu0 0
    %5378 = vmatprep.subr.bf16.mxu0 0
    %5379 = vmatpush1.bf16.msra.mxu0 0
    %5380 = vmatprep.subr.bf16.mxu0 0
    %5381 = vmatpush1.bf16.msra.mxu0 0
    %5382 = vmatprep.subr.bf16.mxu0 0
    %5383 = vmatpush1.bf16.msra.mxu0 0
    %5384 = vmatprep.subr.bf16.mxu0 0
    %5385 = vmatpush1.bf16.msra.mxu0 0
    %5386 = vmatprep.mubr.bf16.mxu0 0
    %5387 = vmatmul.mubr.bf16.gmra.mrb[0].mxu0 %v5350
    %v5388 = vpop.f32.mrb[0].mxu0
    %v5389 = vadd.f32 0.0, %v5388
    %v5390 = vpop.f32.mrb[0].mxu0
    %v5391 = vpop.f32.mrb[0].mxu0
    %v5392 = vadd.f32 0.0, %v5391
    %v5393 = vpop.f32.mrb[0].mxu0
    %5394 = vmatprep.mubr.bf16.mxu0 0
    %5395 = vmatmul.mubr.bf16.gmra.mrb[0].mxu0 %v5351
    %v5396 = vpop.f32.mrb[0].mxu0
    %v5397 = vadd.f32 0.0, %v5396
    %v5398 = vpop.f32.mrb[0].mxu0
    %v5399 = vpop.f32.mrb[0].mxu0
    %v5400 = vadd.f32 0.0, %v5399
    %v5401 = vpop.f32.mrb[0].mxu0
    %5402 = vdwg.mxu0
    %v5403 = vpack.c.bf16 %v5392, %v5389
    %v5404 = vpack.c.bf16 %v5400, %v5397
    %v5421 = vunpack.c.l.b16 %v5326
    %v5422 = vunpack.c.l.b16 %v5327
    %v5423 = vunpack.c.l.b16 %v5328
    %v5424 = vunpack.c.l.b16 %v5329
    %v5425 = vunpack.c.l.b16 %v5330
    %v5426 = vunpack.c.l.b16 %v5331
    %v5427 = vunpack.c.l.b16 %v5332
    %v5428 = vunpack.c.l.b16 %v5333
    %v5429 = vunpack.c.l.b16 %v5334
    %v5430 = vunpack.c.l.b16 %v5335
    %v5431 = vunpack.c.l.b16 %v5336
    %v5432 = vunpack.c.l.b16 %v5337
    %v5433 = vunpack.c.l.b16 %v5338
    %v5434 = vunpack.c.l.b16 %v5339
    %v5435 = vunpack.c.l.b16 %v5340
    %v5436 = vunpack.c.l.b16 %v5341
    %v5437 = vpack.c.b16 %v5422, %v5421
    %v5438 = vpack.c.b16 %v5424, %v5423
    %v5439 = vpack.c.b16 %v5426, %v5425
    %v5440 = vpack.c.b16 %v5428, %v5427
    %v5441 = vpack.c.b16 %v5430, %v5429
    %v5442 = vpack.c.b16 %v5432, %v5431
    %v5443 = vpack.c.b16 %v5434, %v5433
    %v5444 = vpack.c.b16 %v5436, %v5435
    %5453 = vmatprep.subr.bf16.mxu0 0
    %5454 = vmatpush1.bf16.msra.mxu0 %v5437
    %5455 = vmatprep.subr.bf16.mxu0 0
    %5456 = vmatpush1.bf16.msra.mxu0 %v5438
    %5457 = vmatprep.subr.bf16.mxu0 0
    %5458 = vmatpush1.bf16.msra.mxu0 %v5439
    %5459 = vmatprep.subr.bf16.mxu0 0
    %5460 = vmatpush1.bf16.msra.mxu0 %v5440
    %5461 = vmatprep.subr.bf16.mxu0 0
    %5462 = vmatpush1.bf16.msra.mxu0 %v5441
    %5463 = vmatprep.subr.bf16.mxu0 0
    %5464 = vmatpush1.bf16.msra.mxu0 %v5442
    %5465 = vmatprep.subr.bf16.mxu0 0
    %5466 = vmatpush1.bf16.msra.mxu0 %v5443
    %5467 = vmatprep.subr.bf16.mxu0 0
    %5468 = vmatpush1.bf16.msra.mxu0 %v5444
    %5469 = vmatprep.subr.bf16.mxu0 0
    %5470 = vmatpush1.bf16.msra.mxu0 0
    %5471 = vmatprep.subr.bf16.mxu0 0
    %5472 = vmatpush1.bf16.msra.mxu0 0
    %5473 = vmatprep.subr.bf16.mxu0 0
    %5474 = vmatpush1.bf16.msra.mxu0 0
    %5475 = vmatprep.subr.bf16.mxu0 0
    %5476 = vmatpush1.bf16.msra.mxu0 0
    %5477 = vmatprep.subr.bf16.mxu0 0
    %5478 = vmatpush1.bf16.msra.mxu0 0
    %5479 = vmatprep.subr.bf16.mxu0 0
    %5480 = vmatpush1.bf16.msra.mxu0 0
    %5481 = vmatprep.subr.bf16.mxu0 0
    %5482 = vmatpush1.bf16.msra.mxu0 0
    %5483 = vmatprep.subr.bf16.mxu0 0
    %5484 = vmatpush1.bf16.msra.mxu0 0
    %5485 = vmatprep.mubr.bf16.mxu0 0
    %5486 = vmatmul.mubr.bf16.gmra.mrb[0].mxu0 %v5403
    %v5487 = vpop.f32.mrb[0].mxu0
    %v5488 = vadd.f32 0.0, %v5487
    %v5489 = vpop.f32.mrb[0].mxu0
    %v5490 = vpop.f32.mrb[0].mxu0
    %v5491 = vadd.f32 0.0, %v5490
    %v5492 = vpop.f32.mrb[0].mxu0
    %5493 = vmatprep.mubr.bf16.mxu0 0
    %5494 = vmatmul.mubr.bf16.gmra.mrb[0].mxu0 %v5404
    %v5495 = vpop.f32.mrb[0].mxu0
    %v5496 = vadd.f32 0.0, %v5495
    %v5497 = vpop.f32.mrb[0].mxu0
    %v5498 = vpop.f32.mrb[0].mxu0
    %v5499 = vadd.f32 0.0, %v5498
    %v5500 = vpop.f32.mrb[0].mxu0
    %5501 = vdwg.mxu0
    %v5518 = vunpack.c.l.b16 %v5241
    %v5519 = vunpack.c.l.b16 %v5242
    %v5520 = vunpack.c.l.b16 %v5243
    %v5521 = vunpack.c.l.b16 %v5244
    %v5522 = vunpack.c.l.b16 %v5245
    %v5523 = vunpack.c.l.b16 %v5246
    %v5524 = vunpack.c.l.b16 %v5247
    %v5525 = vunpack.c.l.b16 %v5248
    %v5526 = vunpack.c.l.b16 %v5249
    %v5527 = vunpack.c.l.b16 %v5250
    %v5528 = vunpack.c.l.b16 %v5251
    %v5529 = vunpack.c.l.b16 %v5252
    %v5530 = vunpack.c.l.b16 %v5253
    %v5531 = vunpack.c.l.b16 %v5254
    %v5532 = vunpack.c.l.b16 %v5255
    %v5533 = vunpack.c.l.b16 %v5256
    %v5534 = vpack.c.b16 %v5519, %v5518
    %v5535 = vpack.c.b16 %v5521, %v5520
    %v5536 = vpack.c.b16 %v5523, %v5522
    %v5537 = vpack.c.b16 %v5525, %v5524
    %v5538 = vpack.c.b16 %v5527, %v5526
    %v5539 = vpack.c.b16 %v5529, %v5528
    %v5540 = vpack.c.b16 %v5531, %v5530
    %v5541 = vpack.c.b16 %v5533, %v5532
    %5550 = vmatprep.subr.bf16.mxu0 0
    %5551 = vmatpush1.bf16.msra.mxu0 %v5534
    %5552 = vmatprep.subr.bf16.mxu0 0
    %5553 = vmatpush1.bf16.msra.mxu0 %v5535
    %5554 = vmatprep.subr.bf16.mxu0 0
    %5555 = vmatpush1.bf16.msra.mxu0 %v5536
    %5556 = vmatprep.subr.bf16.mxu0 0
    %5557 = vmatpush1.bf16.msra.mxu0 %v5537
    %5558 = vmatprep.subr.bf16.mxu0 0
    %5559 = vmatpush1.bf16.msra.mxu0 %v5538
    %5560 = vmatprep.subr.bf16.mxu0 0
    %5561 = vmatpush1.bf16.msra.mxu0 %v5539
    %5562 = vmatprep.subr.bf16.mxu0 0
    %5563 = vmatpush1.bf16.msra.mxu0 %v5540
    %5564 = vmatprep.subr.bf16.mxu0 0
    %5565 = vmatpush1.bf16.msra.mxu0 %v5541
    %5566 = vmatprep.subr.bf16.mxu0 0
    %5567 = vmatpush1.bf16.msra.mxu0 0
    %5568 = vmatprep.subr.bf16.mxu0 0
    %5569 = vmatpush1.bf16.msra.mxu0 0
    %5570 = vmatprep.subr.bf16.mxu0 0
    %5571 = vmatpush1.bf16.msra.mxu0 0
    %5572 = vmatprep.subr.bf16.mxu0 0
    %5573 = vmatpush1.bf16.msra.mxu0 0
    %5574 = vmatprep.subr.bf16.mxu0 0
    %5575 = vmatpush1.bf16.msra.mxu0 0
    %5576 = vmatprep.subr.bf16.mxu0 0
    %5577 = vmatpush1.bf16.msra.mxu0 0
    %5578 = vmatprep.subr.bf16.mxu0 0
    %5579 = vmatpush1.bf16.msra.mxu0 0
    %5580 = vmatprep.subr.bf16.mxu0 0
    %5581 = vmatpush1.bf16.msra.mxu0 0
    %5582 = vmatprep.mubr.bf16.mxu0 0
    %5583 = vmatmul.mubr.bf16.gmra.mrb[0].mxu0 %v5318
    %v5584 = vpop.f32.mrb[0].mxu0
    %v5585 = vadd.f32 %v5488, %v5584
    %v5586 = vpop.f32.mrb[0].mxu0
    %v5587 = vpop.f32.mrb[0].mxu0
    %v5588 = vadd.f32 %v5491, %v5587
    %v5589 = vpop.f32.mrb[0].mxu0
    %5590 = vmatprep.mubr.bf16.mxu0 0
    %5591 = vmatmul.mubr.bf16.gmra.mrb[0].mxu0 %v5319
    %v5592 = vpop.f32.mrb[0].mxu0
    %v5593 = vadd.f32 %v5496, %v5592
    %v5594 = vpop.f32.mrb[0].mxu0
    %v5595 = vpop.f32.mrb[0].mxu0
    %v5596 = vadd.f32 %v5499, %v5595
    %v5597 = vpop.f32.mrb[0].mxu0
    %5598 = vdwg.mxu0
    %s5599 = scalar_lea.vmem %s2, 32
    %v5600 = vld [vmem:[%s5599] sm:$0xf]
    %v5601 = vld [vmem:[%s5599 + $0x4] sm:$0xf]
    %v5602 = vld [vmem:[%s5599 + $0x8] sm:$0xf]
    %v5603 = vld [vmem:[%s5599 + $0xc] sm:$0xf]
    %s5604 = scalar_lea.vmem %s6, 128
    %v5605 = vld [vmem:[%s5604] sm:$0xf]
    %v5606 = vld [vmem:[%s5604 + $0x4] sm:$0xf]
    %v5607 = vld [vmem:[%s5604 + $0x8] sm:$0xf]
    %v5608 = vld [vmem:[%s5604 + $0xc] sm:$0xf]
    %v5609 = vld [vmem:[%s5604 + $0x10] sm:$0xf]
    %v5610 = vld [vmem:[%s5604 + $0x14] sm:$0xf]
    %v5611 = vld [vmem:[%s5604 + $0x18] sm:$0xf]
    %v5612 = vld [vmem:[%s5604 + $0x1c] sm:$0xf]
    %v5613 = vld [vmem:[%s5604 + $0x20] sm:$0xf]
    %v5614 = vld [vmem:[%s5604 + $0x24] sm:$0xf]
    %v5615 = vld [vmem:[%s5604 + $0x28] sm:$0xf]
    %v5616 = vld [vmem:[%s5604 + $0x2c] sm:$0xf]
    %v5617 = vld [vmem:[%s5604 + $0x30] sm:$0xf]
    %v5618 = vld [vmem:[%s5604 + $0x34] sm:$0xf]
    %v5619 = vld [vmem:[%s5604 + $0x38] sm:$0xf]
    %v5620 = vld [vmem:[%s5604 + $0x3c] sm:$0xf]
    %v5625 = vunpack.c.l.b16 %v5600
    %v5626 = vunpack.c.l.b16 %v5601
    %v5627 = vunpack.c.l.b16 %v5602
    %v5628 = vunpack.c.l.b16 %v5603
    %v5629 = vpack.c.b16 %v5626, %v5625
    %v5630 = vpack.c.b16 %v5628, %v5627
    %5633 = vmatprep.subr.bf16.mxu0 0
    %5634 = vmatpush1.bf16.msra.mxu0 %v5229
    %5635 = vmatprep.subr.bf16.mxu0 0
    %5636 = vmatpush1.bf16.msra.mxu0 %v5230
    %5637 = vmatprep.subr.bf16.mxu0 0
    %5638 = vmatpush1.bf16.msra.mxu0 %v5231
    %5639 = vmatprep.subr.bf16.mxu0 0
    %5640 = vmatpush1.bf16.msra.mxu0 %v5232
    %5641 = vmatprep.subr.bf16.mxu0 0
    %5642 = vmatpush1.bf16.msra.mxu0 %v5233
    %5643 = vmatprep.subr.bf16.mxu0 0
    %5644 = vmatpush1.bf16.msra.mxu0 %v5234
    %5645 = vmatprep.subr.bf16.mxu0 0
    %5646 = vmatpush1.bf16.msra.mxu0 %v5235
    %5647 = vmatprep.subr.bf16.mxu0 0
    %5648 = vmatpush1.bf16.msra.mxu0 %v5236
    %5649 = vmatprep.subr.bf16.mxu0 0
    %5650 = vmatpush1.bf16.msra.mxu0 0
    %5651 = vmatprep.subr.bf16.mxu0 0
    %5652 = vmatpush1.bf16.msra.mxu0 0
    %5653 = vmatprep.subr.bf16.mxu0 0
    %5654 = vmatpush1.bf16.msra.mxu0 0
    %5655 = vmatprep.subr.bf16.mxu0 0
    %5656 = vmatpush1.bf16.msra.mxu0 0
    %5657 = vmatprep.subr.bf16.mxu0 0
    %5658 = vmatpush1.bf16.msra.mxu0 0
    %5659 = vmatprep.subr.bf16.mxu0 0
    %5660 = vmatpush1.bf16.msra.mxu0 0
    %5661 = vmatprep.subr.bf16.mxu0 0
    %5662 = vmatpush1.bf16.msra.mxu0 0
    %5663 = vmatprep.subr.bf16.mxu0 0
    %5664 = vmatpush1.bf16.msra.mxu0 0
    %5665 = vmatprep.mubr.bf16.mxu0 0
    %5666 = vmatmul.mubr.bf16.gmra.mrb[0].mxu0 %v5629
    %v5667 = vpop.f32.mrb[0].mxu0
    %v5668 = vadd.f32 0.0, %v5667
    %v5669 = vpop.f32.mrb[0].mxu0
    %v5670 = vpop.f32.mrb[0].mxu0
    %v5671 = vadd.f32 0.0, %v5670
    %v5672 = vpop.f32.mrb[0].mxu0
    %5673 = vmatprep.mubr.bf16.mxu0 0
    %5674 = vmatmul.mubr.bf16.gmra.mrb[0].mxu0 %v5630
    %v5675 = vpop.f32.mrb[0].mxu0
    %v5676 = vadd.f32 0.0, %v5675
    %v5677 = vpop.f32.mrb[0].mxu0
    %v5678 = vpop.f32.mrb[0].mxu0
    %v5679 = vadd.f32 0.0, %v5678
    %v5680 = vpop.f32.mrb[0].mxu0
    %5681 = vdwg.mxu0
    %v5682 = vpack.c.bf16 %v5671, %v5668
    %v5683 = vpack.c.bf16 %v5679, %v5676
    %v5700 = vunpack.c.l.b16 %v5605
    %v5701 = vunpack.c.l.b16 %v5606
    %v5702 = vunpack.c.l.b16 %v5607
    %v5703 = vunpack.c.l.b16 %v5608
    %v5704 = vunpack.c.l.b16 %v5609
    %v5705 = vunpack.c.l.b16 %v5610
    %v5706 = vunpack.c.l.b16 %v5611
    %v5707 = vunpack.c.l.b16 %v5612
    %v5708 = vunpack.c.l.b16 %v5613
    %v5709 = vunpack.c.l.b16 %v5614
    %v5710 = vunpack.c.l.b16 %v5615
    %v5711 = vunpack.c.l.b16 %v5616
    %v5712 = vunpack.c.l.b16 %v5617
    %v5713 = vunpack.c.l.b16 %v5618
    %v5714 = vunpack.c.l.b16 %v5619
    %v5715 = vunpack.c.l.b16 %v5620
    %v5716 = vpack.c.b16 %v5701, %v5700
    %v5717 = vpack.c.b16 %v5703, %v5702
    %v5718 = vpack.c.b16 %v5705, %v5704
    %v5719 = vpack.c.b16 %v5707, %v5706
    %v5720 = vpack.c.b16 %v5709, %v5708
    %v5721 = vpack.c.b16 %v5711, %v5710
    %v5722 = vpack.c.b16 %v5713, %v5712
    %v5723 = vpack.c.b16 %v5715, %v5714
    %5732 = vmatprep.subr.bf16.mxu0 0
    %5733 = vmatpush1.bf16.msra.mxu0 %v5716
    %5734 = vmatprep.subr.bf16.mxu0 0
    %5735 = vmatpush1.bf16.msra.mxu0 %v5717
    %5736 = vmatprep.subr.bf16.mxu0 0
    %5737 = vmatpush1.bf16.msra.mxu0 %v5718
    %5738 = vmatprep.subr.bf16.mxu0 0
    %5739 = vmatpush1.bf16.msra.mxu0 %v5719
    %5740 = vmatprep.subr.bf16.mxu0 0
    %5741 = vmatpush1.bf16.msra.mxu0 %v5720
    %5742 = vmatprep.subr.bf16.mxu0 0
    %5743 = vmatpush1.bf16.msra.mxu0 %v5721
    %5744 = vmatprep.subr.bf16.mxu0 0
    %5745 = vmatpush1.bf16.msra.mxu0 %v5722
    %5746 = vmatprep.subr.bf16.mxu0 0
    %5747 = vmatpush1.bf16.msra.mxu0 %v5723
    %5748 = vmatprep.subr.bf16.mxu0 0
    %5749 = vmatpush1.bf16.msra.mxu0 0
    %5750 = vmatprep.subr.bf16.mxu0 0
    %5751 = vmatpush1.bf16.msra.mxu0 0
    %5752 = vmatprep.subr.bf16.mxu0 0
    %5753 = vmatpush1.bf16.msra.mxu0 0
    %5754 = vmatprep.subr.bf16.mxu0 0
    %5755 = vmatpush1.bf16.msra.mxu0 0
    %5756 = vmatprep.subr.bf16.mxu0 0
    %5757 = vmatpush1.bf16.msra.mxu0 0
    %5758 = vmatprep.subr.bf16.mxu0 0
    %5759 = vmatpush1.bf16.msra.mxu0 0
    %5760 = vmatprep.subr.bf16.mxu0 0
    %5761 = vmatpush1.bf16.msra.mxu0 0
    %5762 = vmatprep.subr.bf16.mxu0 0
    %5763 = vmatpush1.bf16.msra.mxu0 0
    %5764 = vmatprep.mubr.bf16.mxu0 0
    %5765 = vmatmul.mubr.bf16.gmra.mrb[0].mxu0 %v5682
    %v5766 = vpop.f32.mrb[0].mxu0
    %v5767 = vadd.f32 0.0, %v5766
    %v5768 = vpop.f32.mrb[0].mxu0
    %v5769 = vpop.f32.mrb[0].mxu0
    %v5770 = vadd.f32 0.0, %v5769
    %v5771 = vpop.f32.mrb[0].mxu0
    %5772 = vmatprep.mubr.bf16.mxu0 0
    %5773 = vmatmul.mubr.bf16.gmra.mrb[0].mxu0 %v5683
    %v5774 = vpop.f32.mrb[0].mxu0
    %v5775 = vadd.f32 0.0, %v5774
    %v5776 = vpop.f32.mrb[0].mxu0
    %v5777 = vpop.f32.mrb[0].mxu0
    %v5778 = vadd.f32 0.0, %v5777
    %v5779 = vpop.f32.mrb[0].mxu0
    %5780 = vdwg.mxu0
    %v5781 = vadd.f32 %v5585, %v5767
    %v5782 = vadd.f32 %v5588, %v5770
    %v5783 = vadd.f32 %v5593, %v5775
    %v5784 = vadd.f32 %v5596, %v5778
    %s5785 = scalar_lea.vmem %s2, 48
    %v5786 = vld [vmem:[%s5785] sm:$0xf]
    %v5787 = vld [vmem:[%s5785 + $0x4] sm:$0xf]
    %v5788 = vld [vmem:[%s5785 + $0x8] sm:$0xf]
    %v5789 = vld [vmem:[%s5785 + $0xc] sm:$0xf]
    %s5790 = scalar_lea.vmem %s6, 192
    %v5791 = vld [vmem:[%s5790] sm:$0xf]
    %v5792 = vld [vmem:[%s5790 + $0x4] sm:$0xf]
    %v5793 = vld [vmem:[%s5790 + $0x8] sm:$0xf]
    %v5794 = vld [vmem:[%s5790 + $0xc] sm:$0xf]
    %v5795 = vld [vmem:[%s5790 + $0x10] sm:$0xf]
    %v5796 = vld [vmem:[%s5790 + $0x14] sm:$0xf]
    %v5797 = vld [vmem:[%s5790 + $0x18] sm:$0xf]
    %v5798 = vld [vmem:[%s5790 + $0x1c] sm:$0xf]
    %v5799 = vld [vmem:[%s5790 + $0x20] sm:$0xf]
    %v5800 = vld [vmem:[%s5790 + $0x24] sm:$0xf]
    %v5801 = vld [vmem:[%s5790 + $0x28] sm:$0xf]
    %v5802 = vld [vmem:[%s5790 + $0x2c] sm:$0xf]
    %v5803 = vld [vmem:[%s5790 + $0x30] sm:$0xf]
    %v5804 = vld [vmem:[%s5790 + $0x34] sm:$0xf]
    %v5805 = vld [vmem:[%s5790 + $0x38] sm:$0xf]
    %v5806 = vld [vmem:[%s5790 + $0x3c] sm:$0xf]
    %v5811 = vunpack.c.l.b16 %v5786
    %v5812 = vunpack.c.l.b16 %v5787
    %v5813 = vunpack.c.l.b16 %v5788
    %v5814 = vunpack.c.l.b16 %v5789
    %v5815 = vpack.c.b16 %v5812, %v5811
    %v5816 = vpack.c.b16 %v5814, %v5813
    %5819 = vmatprep.subr.bf16.mxu0 0
    %5820 = vmatpush1.bf16.msra.mxu0 %v5229
    %5821 = vmatprep.subr.bf16.mxu0 0
    %5822 = vmatpush1.bf16.msra.mxu0 %v5230
    %5823 = vmatprep.subr.bf16.mxu0 0
    %5824 = vmatpush1.bf16.msra.mxu0 %v5231
    %5825 = vmatprep.subr.bf16.mxu0 0
    %5826 = vmatpush1.bf16.msra.mxu0 %v5232
    %5827 = vmatprep.subr.bf16.mxu0 0
    %5828 = vmatpush1.bf16.msra.mxu0 %v5233
    %5829 = vmatprep.subr.bf16.mxu0 0
    %5830 = vmatpush1.bf16.msra.mxu0 %v5234
    %5831 = vmatprep.subr.bf16.mxu0 0
    %5832 = vmatpush1.bf16.msra.mxu0 %v5235
    %5833 = vmatprep.subr.bf16.mxu0 0
    %5834 = vmatpush1.bf16.msra.mxu0 %v5236
    %5835 = vmatprep.subr.bf16.mxu0 0
    %5836 = vmatpush1.bf16.msra.mxu0 0
    %5837 = vmatprep.subr.bf16.mxu0 0
    %5838 = vmatpush1.bf16.msra.mxu0 0
    %5839 = vmatprep.subr.bf16.mxu0 0
    %5840 = vmatpush1.bf16.msra.mxu0 0
    %5841 = vmatprep.subr.bf16.mxu0 0
    %5842 = vmatpush1.bf16.msra.mxu0 0
    %5843 = vmatprep.subr.bf16.mxu0 0
    %5844 = vmatpush1.bf16.msra.mxu0 0
    %5845 = vmatprep.subr.bf16.mxu0 0
    %5846 = vmatpush1.bf16.msra.mxu0 0
    %5847 = vmatprep.subr.bf16.mxu0 0
    %5848 = vmatpush1.bf16.msra.mxu0 0
    %5849 = vmatprep.subr.bf16.mxu0 0
    %5850 = vmatpush1.bf16.msra.mxu0 0
    %5851 = vmatprep.mubr.bf16.mxu0 0
    %5852 = vmatmul.mubr.bf16.gmra.mrb[0].mxu0 %v5815
    %v5853 = vpop.f32.mrb[0].mxu0
    %v5854 = vadd.f32 0.0, %v5853
    %v5855 = vpop.f32.mrb[0].mxu0
    %v5856 = vpop.f32.mrb[0].mxu0
    %v5857 = vadd.f32 0.0, %v5856
    %v5858 = vpop.f32.mrb[0].mxu0
    %5859 = vmatprep.mubr.bf16.mxu0 0
    %5860 = vmatmul.mubr.bf16.gmra.mrb[0].mxu0 %v5816
    %v5861 = vpop.f32.mrb[0].mxu0
    %v5862 = vadd.f32 0.0, %v5861
    %v5863 = vpop.f32.mrb[0].mxu0
    %v5864 = vpop.f32.mrb[0].mxu0
    %v5865 = vadd.f32 0.0, %v5864
    %v5866 = vpop.f32.mrb[0].mxu0
    %5867 = vdwg.mxu0
    %v5868 = vpack.c.bf16 %v5857, %v5854
    %v5869 = vpack.c.bf16 %v5865, %v5862
    %v5886 = vunpack.c.l.b16 %v5791
    %v5887 = vunpack.c.l.b16 %v5792
    %v5888 = vunpack.c.l.b16 %v5793
    %v5889 = vunpack.c.l.b16 %v5794
    %v5890 = vunpack.c.l.b16 %v5795
    %v5891 = vunpack.c.l.b16 %v5796
    %v5892 = vunpack.c.l.b16 %v5797
    %v5893 = vunpack.c.l.b16 %v5798
    %v5894 = vunpack.c.l.b16 %v5799
    %v5895 = vunpack.c.l.b16 %v5800
    %v5896 = vunpack.c.l.b16 %v5801
    %v5897 = vunpack.c.l.b16 %v5802
    %v5898 = vunpack.c.l.b16 %v5803
    %v5899 = vunpack.c.l.b16 %v5804
    %v5900 = vunpack.c.l.b16 %v5805
    %v5901 = vunpack.c.l.b16 %v5806
    %v5902 = vpack.c.b16 %v5887, %v5886
    %v5903 = vpack.c.b16 %v5889, %v5888
    %v5904 = vpack.c.b16 %v5891, %v5890
    %v5905 = vpack.c.b16 %v5893, %v5892
    %v5906 = vpack.c.b16 %v5895, %v5894
    %v5907 = vpack.c.b16 %v5897, %v5896
    %v5908 = vpack.c.b16 %v5899, %v5898
    %v5909 = vpack.c.b16 %v5901, %v5900
    %5918 = vmatprep.subr.bf16.mxu0 0
    %5919 = vmatpush1.bf16.msra.mxu0 %v5902
    %5920 = vmatprep.subr.bf16.mxu0 0
    %5921 = vmatpush1.bf16.msra.mxu0 %v5903
    %5922 = vmatprep.subr.bf16.mxu0 0
    %5923 = vmatpush1.bf16.msra.mxu0 %v5904
    %5924 = vmatprep.subr.bf16.mxu0 0
    %5925 = vmatpush1.bf16.msra.mxu0 %v5905
    %5926 = vmatprep.subr.bf16.mxu0 0
    %5927 = vmatpush1.bf16.msra.mxu0 %v5906
    %5928 = vmatprep.subr.bf16.mxu0 0
    %5929 = vmatpush1.bf16.msra.mxu0 %v5907
    %5930 = vmatprep.subr.bf16.mxu0 0
    %5931 = vmatpush1.bf16.msra.mxu0 %v5908
    %5932 = vmatprep.subr.bf16.mxu0 0
    %5933 = vmatpush1.bf16.msra.mxu0 %v5909
    %5934 = vmatprep.subr.bf16.mxu0 0
    %5935 = vmatpush1.bf16.msra.mxu0 0
    %5936 = vmatprep.subr.bf16.mxu0 0
    %5937 = vmatpush1.bf16.msra.mxu0 0
    %5938 = vmatprep.subr.bf16.mxu0 0
    %5939 = vmatpush1.bf16.msra.mxu0 0
    %5940 = vmatprep.subr.bf16.mxu0 0
    %5941 = vmatpush1.bf16.msra.mxu0 0
    %5942 = vmatprep.subr.bf16.mxu0 0
    %5943 = vmatpush1.bf16.msra.mxu0 0
    %5944 = vmatprep.subr.bf16.mxu0 0
    %5945 = vmatpush1.bf16.msra.mxu0 0
    %5946 = vmatprep.subr.bf16.mxu0 0
    %5947 = vmatpush1.bf16.msra.mxu0 0
    %5948 = vmatprep.subr.bf16.mxu0 0
    %5949 = vmatpush1.bf16.msra.mxu0 0
    %5950 = vmatprep.mubr.bf16.mxu0 0
    %5951 = vmatmul.mubr.bf16.gmra.mrb[0].mxu0 %v5868
    %v5952 = vpop.f32.mrb[0].mxu0
    %v5953 = vadd.f32 0.0, %v5952
    %v5954 = vpop.f32.mrb[0].mxu0
    %v5955 = vpop.f32.mrb[0].mxu0
    %v5956 = vadd.f32 0.0, %v5955
    %v5957 = vpop.f32.mrb[0].mxu0
    %5958 = vmatprep.mubr.bf16.mxu0 0
    %5959 = vmatmul.mubr.bf16.gmra.mrb[0].mxu0 %v5869
    %v5960 = vpop.f32.mrb[0].mxu0
    %v5961 = vadd.f32 0.0, %v5960
    %v5962 = vpop.f32.mrb[0].mxu0
    %v5963 = vpop.f32.mrb[0].mxu0
    %v5964 = vadd.f32 0.0, %v5963
    %v5965 = vpop.f32.mrb[0].mxu0
    %5966 = vdwg.mxu0
    %v5967 = vadd.f32 %v5781, %v5953
    %v5968 = vadd.f32 %v5782, %v5956
    %v5969 = vadd.f32 %v5783, %v5961
    %v5970 = vadd.f32 %v5784, %v5964
    %s5971 = scalar_lea.vmem %s2, 64
    %v5972 = vld [vmem:[%s5971] sm:$0xf]
    %v5973 = vld [vmem:[%s5971 + $0x4] sm:$0xf]
    %v5974 = vld [vmem:[%s5971 + $0x8] sm:$0xf]
    %v5975 = vld [vmem:[%s5971 + $0xc] sm:$0xf]
    %s5976 = scalar_lea.vmem %s6, 256
    %v5977 = vld [vmem:[%s5976] sm:$0xf]
    %v5978 = vld [vmem:[%s5976 + $0x4] sm:$0xf]
    %v5979 = vld [vmem:[%s5976 + $0x8] sm:$0xf]
    %v5980 = vld [vmem:[%s5976 + $0xc] sm:$0xf]
    %v5981 = vld [vmem:[%s5976 + $0x10] sm:$0xf]
    %v5982 = vld [vmem:[%s5976 + $0x14] sm:$0xf]
    %v5983 = vld [vmem:[%s5976 + $0x18] sm:$0xf]
    %v5984 = vld [vmem:[%s5976 + $0x1c] sm:$0xf]
    %v5985 = vld [vmem:[%s5976 + $0x20] sm:$0xf]
    %v5986 = vld [vmem:[%s5976 + $0x24] sm:$0xf]
    %v5987 = vld [vmem:[%s5976 + $0x28] sm:$0xf]
    %v5988 = vld [vmem:[%s5976 + $0x2c] sm:$0xf]
    %v5989 = vld [vmem:[%s5976 + $0x30] sm:$0xf]
    %v5990 = vld [vmem:[%s5976 + $0x34] sm:$0xf]
    %v5991 = vld [vmem:[%s5976 + $0x38] sm:$0xf]
    %v5992 = vld [vmem:[%s5976 + $0x3c] sm:$0xf]
    %v5997 = vunpack.c.l.b16 %v5972
    %v5998 = vunpack.c.l.b16 %v5973
    %v5999 = vunpack.c.l.b16 %v5974
    %v6000 = vunpack.c.l.b16 %v5975
    %v6001 = vpack.c.b16 %v5998, %v5997
    %v6002 = vpack.c.b16 %v6000, %v5999
    %6005 = vmatprep.subr.bf16.mxu0 0
    %6006 = vmatpush1.bf16.msra.mxu0 %v5229
    %6007 = vmatprep.subr.bf16.mxu0 0
    %6008 = vmatpush1.bf16.msra.mxu0 %v5230
    %6009 = vmatprep.subr.bf16.mxu0 0
    %6010 = vmatpush1.bf16.msra.mxu0 %v5231
    %6011 = vmatprep.subr.bf16.mxu0 0
    %6012 = vmatpush1.bf16.msra.mxu0 %v5232
    %6013 = vmatprep.subr.bf16.mxu0 0
    %6014 = vmatpush1.bf16.msra.mxu0 %v5233
    %6015 = vmatprep.subr.bf16.mxu0 0
    %6016 = vmatpush1.bf16.msra.mxu0 %v5234
    %6017 = vmatprep.subr.bf16.mxu0 0
    %6018 = vmatpush1.bf16.msra.mxu0 %v5235
    %6019 = vmatprep.subr.bf16.mxu0 0
    %6020 = vmatpush1.bf16.msra.mxu0 %v5236
    %6021 = vmatprep.subr.bf16.mxu0 0
    %6022 = vmatpush1.bf16.msra.mxu0 0
    %6023 = vmatprep.subr.bf16.mxu0 0
    %6024 = vmatpush1.bf16.msra.mxu0 0
    %6025 = vmatprep.subr.bf16.mxu0 0
    %6026 = vmatpush1.bf16.msra.mxu0 0
    %6027 = vmatprep.subr.bf16.mxu0 0
    %6028 = vmatpush1.bf16.msra.mxu0 0
    %6029 = vmatprep.subr.bf16.mxu0 0
    %6030 = vmatpush1.bf16.msra.mxu0 0
    %6031 = vmatprep.subr.bf16.mxu0 0
    %6032 = vmatpush1.bf16.msra.mxu0 0
    %6033 = vmatprep.subr.bf16.mxu0 0
    %6034 = vmatpush1.bf16.msra.mxu0 0
    %6035 = vmatprep.subr.bf16.mxu0 0
    %6036 = vmatpush1.bf16.msra.mxu0 0
    %6037 = vmatprep.mubr.bf16.mxu0 0
    %6038 = vmatmul.mubr.bf16.gmra.mrb[0].mxu0 %v6001
    %v6039 = vpop.f32.mrb[0].mxu0
    %v6040 = vadd.f32 0.0, %v6039
    %v6041 = vpop.f32.mrb[0].mxu0
    %v6042 = vpop.f32.mrb[0].mxu0
    %v6043 = vadd.f32 0.0, %v6042
    %v6044 = vpop.f32.mrb[0].mxu0
    %6045 = vmatprep.mubr.bf16.mxu0 0
    %6046 = vmatmul.mubr.bf16.gmra.mrb[0].mxu0 %v6002
    %v6047 = vpop.f32.mrb[0].mxu0
    %v6048 = vadd.f32 0.0, %v6047
    %v6049 = vpop.f32.mrb[0].mxu0
    %v6050 = vpop.f32.mrb[0].mxu0
    %v6051 = vadd.f32 0.0, %v6050
    %v6052 = vpop.f32.mrb[0].mxu0
    %6053 = vdwg.mxu0
    %v6054 = vpack.c.bf16 %v6043, %v6040
    %v6055 = vpack.c.bf16 %v6051, %v6048
    %v6072 = vunpack.c.l.b16 %v5977
    %v6073 = vunpack.c.l.b16 %v5978
    %v6074 = vunpack.c.l.b16 %v5979
    %v6075 = vunpack.c.l.b16 %v5980
    %v6076 = vunpack.c.l.b16 %v5981
    %v6077 = vunpack.c.l.b16 %v5982
    %v6078 = vunpack.c.l.b16 %v5983
    %v6079 = vunpack.c.l.b16 %v5984
    %v6080 = vunpack.c.l.b16 %v5985
    %v6081 = vunpack.c.l.b16 %v5986
    %v6082 = vunpack.c.l.b16 %v5987
    %v6083 = vunpack.c.l.b16 %v5988
    %v6084 = vunpack.c.l.b16 %v5989
    %v6085 = vunpack.c.l.b16 %v5990
    %v6086 = vunpack.c.l.b16 %v5991
    %v6087 = vunpack.c.l.b16 %v5992
    %v6088 = vpack.c.b16 %v6073, %v6072
    %v6089 = vpack.c.b16 %v6075, %v6074
    %v6090 = vpack.c.b16 %v6077, %v6076
    %v6091 = vpack.c.b16 %v6079, %v6078
    %v6092 = vpack.c.b16 %v6081, %v6080
    %v6093 = vpack.c.b16 %v6083, %v6082
    %v6094 = vpack.c.b16 %v6085, %v6084
    %v6095 = vpack.c.b16 %v6087, %v6086
    %6104 = vmatprep.subr.bf16.mxu0 0
    %6105 = vmatpush1.bf16.msra.mxu0 %v6088
    %6106 = vmatprep.subr.bf16.mxu0 0
    %6107 = vmatpush1.bf16.msra.mxu0 %v6089
    %6108 = vmatprep.subr.bf16.mxu0 0
    %6109 = vmatpush1.bf16.msra.mxu0 %v6090
    %6110 = vmatprep.subr.bf16.mxu0 0
    %6111 = vmatpush1.bf16.msra.mxu0 %v6091
    %6112 = vmatprep.subr.bf16.mxu0 0
    %6113 = vmatpush1.bf16.msra.mxu0 %v6092
    %6114 = vmatprep.subr.bf16.mxu0 0
    %6115 = vmatpush1.bf16.msra.mxu0 %v6093
    %6116 = vmatprep.subr.bf16.mxu0 0
    %6117 = vmatpush1.bf16.msra.mxu0 %v6094
    %6118 = vmatprep.subr.bf16.mxu0 0
    %6119 = vmatpush1.bf16.msra.mxu0 %v6095
    %6120 = vmatprep.subr.bf16.mxu0 0
    %6121 = vmatpush1.bf16.msra.mxu0 0
    %6122 = vmatprep.subr.bf16.mxu0 0
    %6123 = vmatpush1.bf16.msra.mxu0 0
    %6124 = vmatprep.subr.bf16.mxu0 0
    %6125 = vmatpush1.bf16.msra.mxu0 0
    %6126 = vmatprep.subr.bf16.mxu0 0
    %6127 = vmatpush1.bf16.msra.mxu0 0
    %6128 = vmatprep.subr.bf16.mxu0 0
    %6129 = vmatpush1.bf16.msra.mxu0 0
    %6130 = vmatprep.subr.bf16.mxu0 0
    %6131 = vmatpush1.bf16.msra.mxu0 0
    %6132 = vmatprep.subr.bf16.mxu0 0
    %6133 = vmatpush1.bf16.msra.mxu0 0
    %6134 = vmatprep.subr.bf16.mxu0 0
    %6135 = vmatpush1.bf16.msra.mxu0 0
    %6136 = vmatprep.mubr.bf16.mxu0 0
    %6137 = vmatmul.mubr.bf16.gmra.mrb[0].mxu0 %v6054
    %v6138 = vpop.f32.mrb[0].mxu0
    %v6139 = vadd.f32 0.0, %v6138
    %v6140 = vpop.f32.mrb[0].mxu0
    %v6141 = vpop.f32.mrb[0].mxu0
    %v6142 = vadd.f32 0.0, %v6141
    %v6143 = vpop.f32.mrb[0].mxu0
    %6144 = vmatprep.mubr.bf16.mxu0 0
    %6145 = vmatmul.mubr.bf16.gmra.mrb[0].mxu0 %v6055
    %v6146 = vpop.f32.mrb[0].mxu0
    %v6147 = vadd.f32 0.0, %v6146
    %v6148 = vpop.f32.mrb[0].mxu0
    %v6149 = vpop.f32.mrb[0].mxu0
    %v6150 = vadd.f32 0.0, %v6149
    %v6151 = vpop.f32.mrb[0].mxu0
    %6152 = vdwg.mxu0
    %v6153 = vadd.f32 %v5967, %v6139
    %v6154 = vadd.f32 %v5968, %v6142
    %v6155 = vadd.f32 %v5969, %v6147
    %v6156 = vadd.f32 %v5970, %v6150
    %s6157 = scalar_lea.vmem %s2, 80
    %v6158 = vld [vmem:[%s6157] sm:$0xf]
    %v6159 = vld [vmem:[%s6157 + $0x4] sm:$0xf]
    %v6160 = vld [vmem:[%s6157 + $0x8] sm:$0xf]
    %v6161 = vld [vmem:[%s6157 + $0xc] sm:$0xf]
    %s6162 = scalar_lea.vmem %s6, 320
    %v6163 = vld [vmem:[%s6162] sm:$0xf]
    %v6164 = vld [vmem:[%s6162 + $0x4] sm:$0xf]
    %v6165 = vld [vmem:[%s6162 + $0x8] sm:$0xf]
    %v6166 = vld [vmem:[%s6162 + $0xc] sm:$0xf]
    %v6167 = vld [vmem:[%s6162 + $0x10] sm:$0xf]
    %v6168 = vld [vmem:[%s6162 + $0x14] sm:$0xf]
    %v6169 = vld [vmem:[%s6162 + $0x18] sm:$0xf]
    %v6170 = vld [vmem:[%s6162 + $0x1c] sm:$0xf]
    %v6171 = vld [vmem:[%s6162 + $0x20] sm:$0xf]
    %v6172 = vld [vmem:[%s6162 + $0x24] sm:$0xf]
    %v6173 = vld [vmem:[%s6162 + $0x28] sm:$0xf]
    %v6174 = vld [vmem:[%s6162 + $0x2c] sm:$0xf]
    %v6175 = vld [vmem:[%s6162 + $0x30] sm:$0xf]
    %v6176 = vld [vmem:[%s6162 + $0x34] sm:$0xf]
    %v6177 = vld [vmem:[%s6162 + $0x38] sm:$0xf]
    %v6178 = vld [vmem:[%s6162 + $0x3c] sm:$0xf]
    %v6183 = vunpack.c.l.b16 %v6158
    %v6184 = vunpack.c.l.b16 %v6159
    %v6185 = vunpack.c.l.b16 %v6160
    %v6186 = vunpack.c.l.b16 %v6161
    %v6187 = vpack.c.b16 %v6184, %v6183
    %v6188 = vpack.c.b16 %v6186, %v6185
    %6191 = vmatprep.subr.bf16.mxu0 0
    %6192 = vmatpush1.bf16.msra.mxu0 %v5229
    %6193 = vmatprep.subr.bf16.mxu0 0
    %6194 = vmatpush1.bf16.msra.mxu0 %v5230
    %6195 = vmatprep.subr.bf16.mxu0 0
    %6196 = vmatpush1.bf16.msra.mxu0 %v5231
    %6197 = vmatprep.subr.bf16.mxu0 0
    %6198 = vmatpush1.bf16.msra.mxu0 %v5232
    %6199 = vmatprep.subr.bf16.mxu0 0
    %6200 = vmatpush1.bf16.msra.mxu0 %v5233
    %6201 = vmatprep.subr.bf16.mxu0 0
    %6202 = vmatpush1.bf16.msra.mxu0 %v5234
    %6203 = vmatprep.subr.bf16.mxu0 0
    %6204 = vmatpush1.bf16.msra.mxu0 %v5235
    %6205 = vmatprep.subr.bf16.mxu0 0
    %6206 = vmatpush1.bf16.msra.mxu0 %v5236
    %6207 = vmatprep.subr.bf16.mxu0 0
    %6208 = vmatpush1.bf16.msra.mxu0 0
    %6209 = vmatprep.subr.bf16.mxu0 0
    %6210 = vmatpush1.bf16.msra.mxu0 0
    %6211 = vmatprep.subr.bf16.mxu0 0
    %6212 = vmatpush1.bf16.msra.mxu0 0
    %6213 = vmatprep.subr.bf16.mxu0 0
    %6214 = vmatpush1.bf16.msra.mxu0 0
    %6215 = vmatprep.subr.bf16.mxu0 0
    %6216 = vmatpush1.bf16.msra.mxu0 0
    %6217 = vmatprep.subr.bf16.mxu0 0
    %6218 = vmatpush1.bf16.msra.mxu0 0
    %6219 = vmatprep.subr.bf16.mxu0 0
    %6220 = vmatpush1.bf16.msra.mxu0 0
    %6221 = vmatprep.subr.bf16.mxu0 0
    %6222 = vmatpush1.bf16.msra.mxu0 0
    %6223 = vmatprep.mubr.bf16.mxu0 0
    %6224 = vmatmul.mubr.bf16.gmra.mrb[0].mxu0 %v6187
    %v6225 = vpop.f32.mrb[0].mxu0
    %v6226 = vadd.f32 0.0, %v6225
    %v6227 = vpop.f32.mrb[0].mxu0
    %v6228 = vpop.f32.mrb[0].mxu0
    %v6229 = vadd.f32 0.0, %v6228
    %v6230 = vpop.f32.mrb[0].mxu0
    %6231 = vmatprep.mubr.bf16.mxu0 0
    %6232 = vmatmul.mubr.bf16.gmra.mrb[0].mxu0 %v6188
    %v6233 = vpop.f32.mrb[0].mxu0
    %v6234 = vadd.f32 0.0, %v6233
    %v6235 = vpop.f32.mrb[0].mxu0
    %v6236 = vpop.f32.mrb[0].mxu0
    %v6237 = vadd.f32 0.0, %v6236
    %v6238 = vpop.f32.mrb[0].mxu0
    %6239 = vdwg.mxu0
    %v6240 = vpack.c.bf16 %v6229, %v6226
    %v6241 = vpack.c.bf16 %v6237, %v6234
    %v6258 = vunpack.c.l.b16 %v6163
    %v6259 = vunpack.c.l.b16 %v6164
    %v6260 = vunpack.c.l.b16 %v6165
    %v6261 = vunpack.c.l.b16 %v6166
    %v6262 = vunpack.c.l.b16 %v6167
    %v6263 = vunpack.c.l.b16 %v6168
    %v6264 = vunpack.c.l.b16 %v6169
    %v6265 = vunpack.c.l.b16 %v6170
    %v6266 = vunpack.c.l.b16 %v6171
    %v6267 = vunpack.c.l.b16 %v6172
    %v6268 = vunpack.c.l.b16 %v6173
    %v6269 = vunpack.c.l.b16 %v6174
    %v6270 = vunpack.c.l.b16 %v6175
    %v6271 = vunpack.c.l.b16 %v6176
    %v6272 = vunpack.c.l.b16 %v6177
    %v6273 = vunpack.c.l.b16 %v6178
    %v6274 = vpack.c.b16 %v6259, %v6258
    %v6275 = vpack.c.b16 %v6261, %v6260
    %v6276 = vpack.c.b16 %v6263, %v6262
    %v6277 = vpack.c.b16 %v6265, %v6264
    %v6278 = vpack.c.b16 %v6267, %v6266
    %v6279 = vpack.c.b16 %v6269, %v6268
    %v6280 = vpack.c.b16 %v6271, %v6270
    %v6281 = vpack.c.b16 %v6273, %v6272
    %6290 = vmatprep.subr.bf16.mxu0 0
    %6291 = vmatpush1.bf16.msra.mxu0 %v6274
    %6292 = vmatprep.subr.bf16.mxu0 0
    %6293 = vmatpush1.bf16.msra.mxu0 %v6275
    %6294 = vmatprep.subr.bf16.mxu0 0
    %6295 = vmatpush1.bf16.msra.mxu0 %v6276
    %6296 = vmatprep.subr.bf16.mxu0 0
    %6297 = vmatpush1.bf16.msra.mxu0 %v6277
    %6298 = vmatprep.subr.bf16.mxu0 0
    %6299 = vmatpush1.bf16.msra.mxu0 %v6278
    %6300 = vmatprep.subr.bf16.mxu0 0
    %6301 = vmatpush1.bf16.msra.mxu0 %v6279
    %6302 = vmatprep.subr.bf16.mxu0 0
    %6303 = vmatpush1.bf16.msra.mxu0 %v6280
    %6304 = vmatprep.subr.bf16.mxu0 0
    %6305 = vmatpush1.bf16.msra.mxu0 %v6281
    %6306 = vmatprep.subr.bf16.mxu0 0
    %6307 = vmatpush1.bf16.msra.mxu0 0
    %6308 = vmatprep.subr.bf16.mxu0 0
    %6309 = vmatpush1.bf16.msra.mxu0 0
    %6310 = vmatprep.subr.bf16.mxu0 0
    %6311 = vmatpush1.bf16.msra.mxu0 0
    %6312 = vmatprep.subr.bf16.mxu0 0
    %6313 = vmatpush1.bf16.msra.mxu0 0
    %6314 = vmatprep.subr.bf16.mxu0 0
    %6315 = vmatpush1.bf16.msra.mxu0 0
    %6316 = vmatprep.subr.bf16.mxu0 0
    %6317 = vmatpush1.bf16.msra.mxu0 0
    %6318 = vmatprep.subr.bf16.mxu0 0
    %6319 = vmatpush1.bf16.msra.mxu0 0
    %6320 = vmatprep.subr.bf16.mxu0 0
    %6321 = vmatpush1.bf16.msra.mxu0 0
    %6322 = vmatprep.mubr.bf16.mxu0 0
    %6323 = vmatmul.mubr.bf16.gmra.mrb[0].mxu0 %v6240
    %v6324 = vpop.f32.mrb[0].mxu0
    %v6325 = vadd.f32 0.0, %v6324
    %v6326 = vpop.f32.mrb[0].mxu0
    %v6327 = vpop.f32.mrb[0].mxu0
    %v6328 = vadd.f32 0.0, %v6327
    %v6329 = vpop.f32.mrb[0].mxu0
    %6330 = vmatprep.mubr.bf16.mxu0 0
    %6331 = vmatmul.mubr.bf16.gmra.mrb[0].mxu0 %v6241
    %v6332 = vpop.f32.mrb[0].mxu0
    %v6333 = vadd.f32 0.0, %v6332
    %v6334 = vpop.f32.mrb[0].mxu0
    %v6335 = vpop.f32.mrb[0].mxu0
    %v6336 = vadd.f32 0.0, %v6335
    %v6337 = vpop.f32.mrb[0].mxu0
    %6338 = vdwg.mxu0
    %v6339 = vadd.f32 %v6153, %v6325
    %v6340 = vadd.f32 %v6154, %v6328
    %v6341 = vadd.f32 %v6155, %v6333
    %v6342 = vadd.f32 %v6156, %v6336
    %s6343 = scalar_lea.vmem %s2, 96
    %v6344 = vld [vmem:[%s6343] sm:$0xf]
    %v6345 = vld [vmem:[%s6343 + $0x4] sm:$0xf]
    %v6346 = vld [vmem:[%s6343 + $0x8] sm:$0xf]
    %v6347 = vld [vmem:[%s6343 + $0xc] sm:$0xf]
    %s6348 = scalar_lea.vmem %s6, 384
    %v6349 = vld [vmem:[%s6348] sm:$0xf]
    %v6350 = vld [vmem:[%s6348 + $0x4] sm:$0xf]
    %v6351 = vld [vmem:[%s6348 + $0x8] sm:$0xf]
    %v6352 = vld [vmem:[%s6348 + $0xc] sm:$0xf]
    %v6353 = vld [vmem:[%s6348 + $0x10] sm:$0xf]
    %v6354 = vld [vmem:[%s6348 + $0x14] sm:$0xf]
    %v6355 = vld [vmem:[%s6348 + $0x18] sm:$0xf]
    %v6356 = vld [vmem:[%s6348 + $0x1c] sm:$0xf]
    %v6357 = vld [vmem:[%s6348 + $0x20] sm:$0xf]
    %v6358 = vld [vmem:[%s6348 + $0x24] sm:$0xf]
    %v6359 = vld [vmem:[%s6348 + $0x28] sm:$0xf]
    %v6360 = vld [vmem:[%s6348 + $0x2c] sm:$0xf]
    %v6361 = vld [vmem:[%s6348 + $0x30] sm:$0xf]
    %v6362 = vld [vmem:[%s6348 + $0x34] sm:$0xf]
    %v6363 = vld [vmem:[%s6348 + $0x38] sm:$0xf]
    %v6364 = vld [vmem:[%s6348 + $0x3c] sm:$0xf]
    %v6369 = vunpack.c.l.b16 %v6344
    %v6370 = vunpack.c.l.b16 %v6345
    %v6371 = vunpack.c.l.b16 %v6346
    %v6372 = vunpack.c.l.b16 %v6347
    %v6373 = vpack.c.b16 %v6370, %v6369
    %v6374 = vpack.c.b16 %v6372, %v6371
    %6377 = vmatprep.subr.bf16.mxu0 0
    %6378 = vmatpush1.bf16.msra.mxu0 %v5229
    %6379 = vmatprep.subr.bf16.mxu0 0
    %6380 = vmatpush1.bf16.msra.mxu0 %v5230
    %6381 = vmatprep.subr.bf16.mxu0 0
    %6382 = vmatpush1.bf16.msra.mxu0 %v5231
    %6383 = vmatprep.subr.bf16.mxu0 0
    %6384 = vmatpush1.bf16.msra.mxu0 %v5232
    %6385 = vmatprep.subr.bf16.mxu0 0
    %6386 = vmatpush1.bf16.msra.mxu0 %v5233
    %6387 = vmatprep.subr.bf16.mxu0 0
    %6388 = vmatpush1.bf16.msra.mxu0 %v5234
    %6389 = vmatprep.subr.bf16.mxu0 0
    %6390 = vmatpush1.bf16.msra.mxu0 %v5235
    %6391 = vmatprep.subr.bf16.mxu0 0
    %6392 = vmatpush1.bf16.msra.mxu0 %v5236
    %6393 = vmatprep.subr.bf16.mxu0 0
    %6394 = vmatpush1.bf16.msra.mxu0 0
    %6395 = vmatprep.subr.bf16.mxu0 0
    %6396 = vmatpush1.bf16.msra.mxu0 0
    %6397 = vmatprep.subr.bf16.mxu0 0
    %6398 = vmatpush1.bf16.msra.mxu0 0
    %6399 = vmatprep.subr.bf16.mxu0 0
    %6400 = vmatpush1.bf16.msra.mxu0 0
    %6401 = vmatprep.subr.bf16.mxu0 0
    %6402 = vmatpush1.bf16.msra.mxu0 0
    %6403 = vmatprep.subr.bf16.mxu0 0
    %6404 = vmatpush1.bf16.msra.mxu0 0
    %6405 = vmatprep.subr.bf16.mxu0 0
    %6406 = vmatpush1.bf16.msra.mxu0 0
    %6407 = vmatprep.subr.bf16.mxu0 0
    %6408 = vmatpush1.bf16.msra.mxu0 0
    %6409 = vmatprep.mubr.bf16.mxu0 0
    %6410 = vmatmul.mubr.bf16.gmra.mrb[0].mxu0 %v6373
    %v6411 = vpop.f32.mrb[0].mxu0
    %v6412 = vadd.f32 0.0, %v6411
    %v6413 = vpop.f32.mrb[0].mxu0
    %v6414 = vpop.f32.mrb[0].mxu0
    %v6415 = vadd.f32 0.0, %v6414
    %v6416 = vpop.f32.mrb[0].mxu0
    %6417 = vmatprep.mubr.bf16.mxu0 0
    %6418 = vmatmul.mubr.bf16.gmra.mrb[0].mxu0 %v6374
    %v6419 = vpop.f32.mrb[0].mxu0
    %v6420 = vadd.f32 0.0, %v6419
    %v6421 = vpop.f32.mrb[0].mxu0
    %v6422 = vpop.f32.mrb[0].mxu0
    %v6423 = vadd.f32 0.0, %v6422
    %v6424 = vpop.f32.mrb[0].mxu0
    %6425 = vdwg.mxu0
    %v6426 = vpack.c.bf16 %v6415, %v6412
    %v6427 = vpack.c.bf16 %v6423, %v6420
    %v6444 = vunpack.c.l.b16 %v6349
    %v6445 = vunpack.c.l.b16 %v6350
    %v6446 = vunpack.c.l.b16 %v6351
    %v6447 = vunpack.c.l.b16 %v6352
    %v6448 = vunpack.c.l.b16 %v6353
    %v6449 = vunpack.c.l.b16 %v6354
    %v6450 = vunpack.c.l.b16 %v6355
    %v6451 = vunpack.c.l.b16 %v6356
    %v6452 = vunpack.c.l.b16 %v6357
    %v6453 = vunpack.c.l.b16 %v6358
    %v6454 = vunpack.c.l.b16 %v6359
    %v6455 = vunpack.c.l.b16 %v6360
    %v6456 = vunpack.c.l.b16 %v6361
    %v6457 = vunpack.c.l.b16 %v6362
    %v6458 = vunpack.c.l.b16 %v6363
    %v6459 = vunpack.c.l.b16 %v6364
    %v6460 = vpack.c.b16 %v6445, %v6444
    %v6461 = vpack.c.b16 %v6447, %v6446
    %v6462 = vpack.c.b16 %v6449, %v6448
    %v6463 = vpack.c.b16 %v6451, %v6450
    %v6464 = vpack.c.b16 %v6453, %v6452
    %v6465 = vpack.c.b16 %v6455, %v6454
    %v6466 = vpack.c.b16 %v6457, %v6456
    %v6467 = vpack.c.b16 %v6459, %v6458
    %6476 = vmatprep.subr.bf16.mxu0 0
    %6477 = vmatpush1.bf16.msra.mxu0 %v6460
    %6478 = vmatprep.subr.bf16.mxu0 0
    %6479 = vmatpush1.bf16.msra.mxu0 %v6461
    %6480 = vmatprep.subr.bf16.mxu0 0
    %6481 = vmatpush1.bf16.msra.mxu0 %v6462
    %6482 = vmatprep.subr.bf16.mxu0 0
    %6483 = vmatpush1.bf16.msra.mxu0 %v6463
    %6484 = vmatprep.subr.bf16.mxu0 0
    %6485 = vmatpush1.bf16.msra.mxu0 %v6464
    %6486 = vmatprep.subr.bf16.mxu0 0
    %6487 = vmatpush1.bf16.msra.mxu0 %v6465
    %6488 = vmatprep.subr.bf16.mxu0 0
    %6489 = vmatpush1.bf16.msra.mxu0 %v6466
    %6490 = vmatprep.subr.bf16.mxu0 0
    %6491 = vmatpush1.bf16.msra.mxu0 %v6467
    %6492 = vmatprep.subr.bf16.mxu0 0
    %6493 = vmatpush1.bf16.msra.mxu0 0
    %6494 = vmatprep.subr.bf16.mxu0 0
    %6495 = vmatpush1.bf16.msra.mxu0 0
    %6496 = vmatprep.subr.bf16.mxu0 0
    %6497 = vmatpush1.bf16.msra.mxu0 0
    %6498 = vmatprep.subr.bf16.mxu0 0
    %6499 = vmatpush1.bf16.msra.mxu0 0
    %6500 = vmatprep.subr.bf16.mxu0 0
    %6501 = vmatpush1.bf16.msra.mxu0 0
    %6502 = vmatprep.subr.bf16.mxu0 0
    %6503 = vmatpush1.bf16.msra.mxu0 0
    %6504 = vmatprep.subr.bf16.mxu0 0
    %6505 = vmatpush1.bf16.msra.mxu0 0
    %6506 = vmatprep.subr.bf16.mxu0 0
    %6507 = vmatpush1.bf16.msra.mxu0 0
    %6508 = vmatprep.mubr.bf16.mxu0 0
    %6509 = vmatmul.mubr.bf16.gmra.mrb[0].mxu0 %v6426
    %v6510 = vpop.f32.mrb[0].mxu0
    %v6511 = vadd.f32 0.0, %v6510
    %v6512 = vpop.f32.mrb[0].mxu0
    %v6513 = vpop.f32.mrb[0].mxu0
    %v6514 = vadd.f32 0.0, %v6513
    %v6515 = vpop.f32.mrb[0].mxu0
    %6516 = vmatprep.mubr.bf16.mxu0 0
    %6517 = vmatmul.mubr.bf16.gmra.mrb[0].mxu0 %v6427
    %v6518 = vpop.f32.mrb[0].mxu0
    %v6519 = vadd.f32 0.0, %v6518
    %v6520 = vpop.f32.mrb[0].mxu0
    %v6521 = vpop.f32.mrb[0].mxu0
    %v6522 = vadd.f32 0.0, %v6521
    %v6523 = vpop.f32.mrb[0].mxu0
    %6524 = vdwg.mxu0
    %v6525 = vadd.f32 %v6339, %v6511
    %v6526 = vadd.f32 %v6340, %v6514
    %v6527 = vadd.f32 %v6341, %v6519
    %v6528 = vadd.f32 %v6342, %v6522
    %s6529 = scalar_lea.vmem %s2, 112
    %v6530 = vld [vmem:[%s6529] sm:$0xf]
    %v6531 = vld [vmem:[%s6529 + $0x4] sm:$0xf]
    %v6532 = vld [vmem:[%s6529 + $0x8] sm:$0xf]
    %v6533 = vld [vmem:[%s6529 + $0xc] sm:$0xf]
    %s6534 = scalar_lea.vmem %s6, 448
    %v6535 = vld [vmem:[%s6534] sm:$0xf]
    %v6536 = vld [vmem:[%s6534 + $0x4] sm:$0xf]
    %v6537 = vld [vmem:[%s6534 + $0x8] sm:$0xf]
    %v6538 = vld [vmem:[%s6534 + $0xc] sm:$0xf]
    %v6539 = vld [vmem:[%s6534 + $0x10] sm:$0xf]
    %v6540 = vld [vmem:[%s6534 + $0x14] sm:$0xf]
    %v6541 = vld [vmem:[%s6534 + $0x18] sm:$0xf]
    %v6542 = vld [vmem:[%s6534 + $0x1c] sm:$0xf]
    %v6543 = vld [vmem:[%s6534 + $0x20] sm:$0xf]
    %v6544 = vld [vmem:[%s6534 + $0x24] sm:$0xf]
    %v6545 = vld [vmem:[%s6534 + $0x28] sm:$0xf]
    %v6546 = vld [vmem:[%s6534 + $0x2c] sm:$0xf]
    %v6547 = vld [vmem:[%s6534 + $0x30] sm:$0xf]
    %v6548 = vld [vmem:[%s6534 + $0x34] sm:$0xf]
    %v6549 = vld [vmem:[%s6534 + $0x38] sm:$0xf]
    %v6550 = vld [vmem:[%s6534 + $0x3c] sm:$0xf]
    %v6555 = vunpack.c.l.b16 %v6530
    %v6556 = vunpack.c.l.b16 %v6531
    %v6557 = vunpack.c.l.b16 %v6532
    %v6558 = vunpack.c.l.b16 %v6533
    %v6559 = vpack.c.b16 %v6556, %v6555
    %v6560 = vpack.c.b16 %v6558, %v6557
    %6563 = vmatprep.subr.bf16.mxu0 0
    %6564 = vmatpush1.bf16.msra.mxu0 %v5229
    %6565 = vmatprep.subr.bf16.mxu0 0
    %6566 = vmatpush1.bf16.msra.mxu0 %v5230
    %6567 = vmatprep.subr.bf16.mxu0 0
    %6568 = vmatpush1.bf16.msra.mxu0 %v5231
    %6569 = vmatprep.subr.bf16.mxu0 0
    %6570 = vmatpush1.bf16.msra.mxu0 %v5232
    %6571 = vmatprep.subr.bf16.mxu0 0
    %6572 = vmatpush1.bf16.msra.mxu0 %v5233
    %6573 = vmatprep.subr.bf16.mxu0 0
    %6574 = vmatpush1.bf16.msra.mxu0 %v5234
    %6575 = vmatprep.subr.bf16.mxu0 0
    %6576 = vmatpush1.bf16.msra.mxu0 %v5235
    %6577 = vmatprep.subr.bf16.mxu0 0
    %6578 = vmatpush1.bf16.msra.mxu0 %v5236
    %6579 = vmatprep.subr.bf16.mxu0 0
    %6580 = vmatpush1.bf16.msra.mxu0 0
    %6581 = vmatprep.subr.bf16.mxu0 0
    %6582 = vmatpush1.bf16.msra.mxu0 0
    %6583 = vmatprep.subr.bf16.mxu0 0
    %6584 = vmatpush1.bf16.msra.mxu0 0
    %6585 = vmatprep.subr.bf16.mxu0 0
    %6586 = vmatpush1.bf16.msra.mxu0 0
    %6587 = vmatprep.subr.bf16.mxu0 0
    %6588 = vmatpush1.bf16.msra.mxu0 0
    %6589 = vmatprep.subr.bf16.mxu0 0
    %6590 = vmatpush1.bf16.msra.mxu0 0
    %6591 = vmatprep.subr.bf16.mxu0 0
    %6592 = vmatpush1.bf16.msra.mxu0 0
    %6593 = vmatprep.subr.bf16.mxu0 0
    %6594 = vmatpush1.bf16.msra.mxu0 0
    %6595 = vmatprep.mubr.bf16.mxu0 0
    %6596 = vmatmul.mubr.bf16.gmra.mrb[0].mxu0 %v6559
    %v6597 = vpop.f32.mrb[0].mxu0
    %v6598 = vadd.f32 0.0, %v6597
    %v6599 = vpop.f32.mrb[0].mxu0
    %v6600 = vpop.f32.mrb[0].mxu0
    %v6601 = vadd.f32 0.0, %v6600
    %v6602 = vpop.f32.mrb[0].mxu0
    %6603 = vmatprep.mubr.bf16.mxu0 0
    %6604 = vmatmul.mubr.bf16.gmra.mrb[0].mxu0 %v6560
    %v6605 = vpop.f32.mrb[0].mxu0
    %v6606 = vadd.f32 0.0, %v6605
    %v6607 = vpop.f32.mrb[0].mxu0
    %v6608 = vpop.f32.mrb[0].mxu0
    %v6609 = vadd.f32 0.0, %v6608
    %v6610 = vpop.f32.mrb[0].mxu0
    %6611 = vdwg.mxu0
    %v6612 = vpack.c.bf16 %v6601, %v6598
    %v6613 = vpack.c.bf16 %v6609, %v6606
    %v6630 = vunpack.c.l.b16 %v6535
    %v6631 = vunpack.c.l.b16 %v6536
    %v6632 = vunpack.c.l.b16 %v6537
    %v6633 = vunpack.c.l.b16 %v6538
    %v6634 = vunpack.c.l.b16 %v6539
    %v6635 = vunpack.c.l.b16 %v6540
    %v6636 = vunpack.c.l.b16 %v6541
    %v6637 = vunpack.c.l.b16 %v6542
    %v6638 = vunpack.c.l.b16 %v6543
    %v6639 = vunpack.c.l.b16 %v6544
    %v6640 = vunpack.c.l.b16 %v6545
    %v6641 = vunpack.c.l.b16 %v6546
    %v6642 = vunpack.c.l.b16 %v6547
    %v6643 = vunpack.c.l.b16 %v6548
    %v6644 = vunpack.c.l.b16 %v6549
    %v6645 = vunpack.c.l.b16 %v6550
    %v6646 = vpack.c.b16 %v6631, %v6630
    %v6647 = vpack.c.b16 %v6633, %v6632
    %v6648 = vpack.c.b16 %v6635, %v6634
    %v6649 = vpack.c.b16 %v6637, %v6636
    %v6650 = vpack.c.b16 %v6639, %v6638
    %v6651 = vpack.c.b16 %v6641, %v6640
    %v6652 = vpack.c.b16 %v6643, %v6642
    %v6653 = vpack.c.b16 %v6645, %v6644
    %6662 = vmatprep.subr.bf16.mxu0 0
    %6663 = vmatpush1.bf16.msra.mxu0 %v6646
    %6664 = vmatprep.subr.bf16.mxu0 0
    %6665 = vmatpush1.bf16.msra.mxu0 %v6647
    %6666 = vmatprep.subr.bf16.mxu0 0
    %6667 = vmatpush1.bf16.msra.mxu0 %v6648
    %6668 = vmatprep.subr.bf16.mxu0 0
    %6669 = vmatpush1.bf16.msra.mxu0 %v6649
    %6670 = vmatprep.subr.bf16.mxu0 0
    %6671 = vmatpush1.bf16.msra.mxu0 %v6650
    %6672 = vmatprep.subr.bf16.mxu0 0
    %6673 = vmatpush1.bf16.msra.mxu0 %v6651
    %6674 = vmatprep.subr.bf16.mxu0 0
    %6675 = vmatpush1.bf16.msra.mxu0 %v6652
    %6676 = vmatprep.subr.bf16.mxu0 0
    %6677 = vmatpush1.bf16.msra.mxu0 %v6653
    %6678 = vmatprep.subr.bf16.mxu0 0
    %6679 = vmatpush1.bf16.msra.mxu0 0
    %6680 = vmatprep.subr.bf16.mxu0 0
    %6681 = vmatpush1.bf16.msra.mxu0 0
    %6682 = vmatprep.subr.bf16.mxu0 0
    %6683 = vmatpush1.bf16.msra.mxu0 0
    %6684 = vmatprep.subr.bf16.mxu0 0
    %6685 = vmatpush1.bf16.msra.mxu0 0
    %6686 = vmatprep.subr.bf16.mxu0 0
    %6687 = vmatpush1.bf16.msra.mxu0 0
    %6688 = vmatprep.subr.bf16.mxu0 0
    %6689 = vmatpush1.bf16.msra.mxu0 0
    %6690 = vmatprep.subr.bf16.mxu0 0
    %6691 = vmatpush1.bf16.msra.mxu0 0
    %6692 = vmatprep.subr.bf16.mxu0 0
    %6693 = vmatpush1.bf16.msra.mxu0 0
    %6694 = vmatprep.mubr.bf16.mxu0 0
    %6695 = vmatmul.mubr.bf16.gmra.mrb[0].mxu0 %v6612
    %v6696 = vpop.f32.mrb[0].mxu0
    %v6697 = vadd.f32 0.0, %v6696
    %v6698 = vpop.f32.mrb[0].mxu0
    %v6699 = vpop.f32.mrb[0].mxu0
    %v6700 = vadd.f32 0.0, %v6699
    %v6701 = vpop.f32.mrb[0].mxu0
    %6702 = vmatprep.mubr.bf16.mxu0 0
    %6703 = vmatmul.mubr.bf16.gmra.mrb[0].mxu0 %v6613
    %v6704 = vpop.f32.mrb[0].mxu0
    %v6705 = vadd.f32 0.0, %v6704
    %v6706 = vpop.f32.mrb[0].mxu0
    %v6707 = vpop.f32.mrb[0].mxu0
    %v6708 = vadd.f32 0.0, %v6707
    %v6709 = vpop.f32.mrb[0].mxu0
    %6710 = vdwg.mxu0
    %v6711 = vadd.f32 %v6525, %v6697
    %v6712 = vadd.f32 %v6526, %v6700
    %v6713 = vadd.f32 %v6527, %v6705
    %v6714 = vadd.f32 %v6528, %v6708
    %s6715 = scalar_lea.vmem %s2, 128
    %v6716 = vld [vmem:[%s6715] sm:$0xf]
    %v6717 = vld [vmem:[%s6715 + $0x4] sm:$0xf]
    %v6718 = vld [vmem:[%s6715 + $0x8] sm:$0xf]
    %v6719 = vld [vmem:[%s6715 + $0xc] sm:$0xf]
    %s6720 = scalar_lea.vmem %s6, 512
    %v6721 = vld [vmem:[%s6720] sm:$0xf]
    %v6722 = vld [vmem:[%s6720 + $0x4] sm:$0xf]
    %v6723 = vld [vmem:[%s6720 + $0x8] sm:$0xf]
    %v6724 = vld [vmem:[%s6720 + $0xc] sm:$0xf]
    %v6725 = vld [vmem:[%s6720 + $0x10] sm:$0xf]
    %v6726 = vld [vmem:[%s6720 + $0x14] sm:$0xf]
    %v6727 = vld [vmem:[%s6720 + $0x18] sm:$0xf]
    %v6728 = vld [vmem:[%s6720 + $0x1c] sm:$0xf]
    %v6729 = vld [vmem:[%s6720 + $0x20] sm:$0xf]
    %v6730 = vld [vmem:[%s6720 + $0x24] sm:$0xf]
    %v6731 = vld [vmem:[%s6720 + $0x28] sm:$0xf]
    %v6732 = vld [vmem:[%s6720 + $0x2c] sm:$0xf]
    %v6733 = vld [vmem:[%s6720 + $0x30] sm:$0xf]
    %v6734 = vld [vmem:[%s6720 + $0x34] sm:$0xf]
    %v6735 = vld [vmem:[%s6720 + $0x38] sm:$0xf]
    %v6736 = vld [vmem:[%s6720 + $0x3c] sm:$0xf]
    %v6741 = vunpack.c.l.b16 %v6716
    %v6742 = vunpack.c.l.b16 %v6717
    %v6743 = vunpack.c.l.b16 %v6718
    %v6744 = vunpack.c.l.b16 %v6719
    %v6745 = vpack.c.b16 %v6742, %v6741
    %v6746 = vpack.c.b16 %v6744, %v6743
    %6749 = vmatprep.subr.bf16.mxu0 0
    %6750 = vmatpush1.bf16.msra.mxu0 %v5229
    %6751 = vmatprep.subr.bf16.mxu0 0
    %6752 = vmatpush1.bf16.msra.mxu0 %v5230
    %6753 = vmatprep.subr.bf16.mxu0 0
    %6754 = vmatpush1.bf16.msra.mxu0 %v5231
    %6755 = vmatprep.subr.bf16.mxu0 0
    %6756 = vmatpush1.bf16.msra.mxu0 %v5232
    %6757 = vmatprep.subr.bf16.mxu0 0
    %6758 = vmatpush1.bf16.msra.mxu0 %v5233
    %6759 = vmatprep.subr.bf16.mxu0 0
    %6760 = vmatpush1.bf16.msra.mxu0 %v5234
    %6761 = vmatprep.subr.bf16.mxu0 0
    %6762 = vmatpush1.bf16.msra.mxu0 %v5235
    %6763 = vmatprep.subr.bf16.mxu0 0
    %6764 = vmatpush1.bf16.msra.mxu0 %v5236
    %6765 = vmatprep.subr.bf16.mxu0 0
    %6766 = vmatpush1.bf16.msra.mxu0 0
    %6767 = vmatprep.subr.bf16.mxu0 0
    %6768 = vmatpush1.bf16.msra.mxu0 0
    %6769 = vmatprep.subr.bf16.mxu0 0
    %6770 = vmatpush1.bf16.msra.mxu0 0
    %6771 = vmatprep.subr.bf16.mxu0 0
    %6772 = vmatpush1.bf16.msra.mxu0 0
    %6773 = vmatprep.subr.bf16.mxu0 0
    %6774 = vmatpush1.bf16.msra.mxu0 0
    %6775 = vmatprep.subr.bf16.mxu0 0
    %6776 = vmatpush1.bf16.msra.mxu0 0
    %6777 = vmatprep.subr.bf16.mxu0 0
    %6778 = vmatpush1.bf16.msra.mxu0 0
    %6779 = vmatprep.subr.bf16.mxu0 0
    %6780 = vmatpush1.bf16.msra.mxu0 0
    %6781 = vmatprep.mubr.bf16.mxu0 0
    %6782 = vmatmul.mubr.bf16.gmra.mrb[0].mxu0 %v6745
    %v6783 = vpop.f32.mrb[0].mxu0
    %v6784 = vadd.f32 0.0, %v6783
    %v6785 = vpop.f32.mrb[0].mxu0
    %v6786 = vpop.f32.mrb[0].mxu0
    %v6787 = vadd.f32 0.0, %v6786
    %v6788 = vpop.f32.mrb[0].mxu0
    %6789 = vmatprep.mubr.bf16.mxu0 0
    %6790 = vmatmul.mubr.bf16.gmra.mrb[0].mxu0 %v6746
    %v6791 = vpop.f32.mrb[0].mxu0
    %v6792 = vadd.f32 0.0, %v6791
    %v6793 = vpop.f32.mrb[0].mxu0
    %v6794 = vpop.f32.mrb[0].mxu0
    %v6795 = vadd.f32 0.0, %v6794
    %v6796 = vpop.f32.mrb[0].mxu0
    %6797 = vdwg.mxu0
    %v6798 = vpack.c.bf16 %v6787, %v6784
    %v6799 = vpack.c.bf16 %v6795, %v6792
    %v6816 = vunpack.c.l.b16 %v6721
    %v6817 = vunpack.c.l.b16 %v6722
    %v6818 = vunpack.c.l.b16 %v6723
    %v6819 = vunpack.c.l.b16 %v6724
    %v6820 = vunpack.c.l.b16 %v6725
    %v6821 = vunpack.c.l.b16 %v6726
    %v6822 = vunpack.c.l.b16 %v6727
    %v6823 = vunpack.c.l.b16 %v6728
    %v6824 = vunpack.c.l.b16 %v6729
    %v6825 = vunpack.c.l.b16 %v6730
    %v6826 = vunpack.c.l.b16 %v6731
    %v6827 = vunpack.c.l.b16 %v6732
    %v6828 = vunpack.c.l.b16 %v6733
    %v6829 = vunpack.c.l.b16 %v6734
    %v6830 = vunpack.c.l.b16 %v6735
    %v6831 = vunpack.c.l.b16 %v6736
    %v6832 = vpack.c.b16 %v6817, %v6816
    %v6833 = vpack.c.b16 %v6819, %v6818
    %v6834 = vpack.c.b16 %v6821, %v6820
    %v6835 = vpack.c.b16 %v6823, %v6822
    %v6836 = vpack.c.b16 %v6825, %v6824
    %v6837 = vpack.c.b16 %v6827, %v6826
    %v6838 = vpack.c.b16 %v6829, %v6828
    %v6839 = vpack.c.b16 %v6831, %v6830
    %6848 = vmatprep.subr.bf16.mxu0 0
    %6849 = vmatpush1.bf16.msra.mxu0 %v6832
    %6850 = vmatprep.subr.bf16.mxu0 0
    %6851 = vmatpush1.bf16.msra.mxu0 %v6833
    %6852 = vmatprep.subr.bf16.mxu0 0
    %6853 = vmatpush1.bf16.msra.mxu0 %v6834
    %6854 = vmatprep.subr.bf16.mxu0 0
    %6855 = vmatpush1.bf16.msra.mxu0 %v6835
    %6856 = vmatprep.subr.bf16.mxu0 0
    %6857 = vmatpush1.bf16.msra.mxu0 %v6836
    %6858 = vmatprep.subr.bf16.mxu0 0
    %6859 = vmatpush1.bf16.msra.mxu0 %v6837
    %6860 = vmatprep.subr.bf16.mxu0 0
    %6861 = vmatpush1.bf16.msra.mxu0 %v6838
    %6862 = vmatprep.subr.bf16.mxu0 0
    %6863 = vmatpush1.bf16.msra.mxu0 %v6839
    %6864 = vmatprep.subr.bf16.mxu0 0
    %6865 = vmatpush1.bf16.msra.mxu0 0
    %6866 = vmatprep.subr.bf16.mxu0 0
    %6867 = vmatpush1.bf16.msra.mxu0 0
    %6868 = vmatprep.subr.bf16.mxu0 0
    %6869 = vmatpush1.bf16.msra.mxu0 0
    %6870 = vmatprep.subr.bf16.mxu0 0
    %6871 = vmatpush1.bf16.msra.mxu0 0
    %6872 = vmatprep.subr.bf16.mxu0 0
    %6873 = vmatpush1.bf16.msra.mxu0 0
    %6874 = vmatprep.subr.bf16.mxu0 0
    %6875 = vmatpush1.bf16.msra.mxu0 0
    %6876 = vmatprep.subr.bf16.mxu0 0
    %6877 = vmatpush1.bf16.msra.mxu0 0
    %6878 = vmatprep.subr.bf16.mxu0 0
    %6879 = vmatpush1.bf16.msra.mxu0 0
    %6880 = vmatprep.mubr.bf16.mxu0 0
    %6881 = vmatmul.mubr.bf16.gmra.mrb[0].mxu0 %v6798
    %v6882 = vpop.f32.mrb[0].mxu0
    %v6883 = vadd.f32 0.0, %v6882
    %v6884 = vpop.f32.mrb[0].mxu0
    %v6885 = vpop.f32.mrb[0].mxu0
    %v6886 = vadd.f32 0.0, %v6885
    %v6887 = vpop.f32.mrb[0].mxu0
    %6888 = vmatprep.mubr.bf16.mxu0 0
    %6889 = vmatmul.mubr.bf16.gmra.mrb[0].mxu0 %v6799
    %v6890 = vpop.f32.mrb[0].mxu0
    %v6891 = vadd.f32 0.0, %v6890
    %v6892 = vpop.f32.mrb[0].mxu0
    %v6893 = vpop.f32.mrb[0].mxu0
    %v6894 = vadd.f32 0.0, %v6893
    %v6895 = vpop.f32.mrb[0].mxu0
    %6896 = vdwg.mxu0
    %v6897 = vadd.f32 %v6711, %v6883
    %v6898 = vadd.f32 %v6712, %v6886
    %v6899 = vadd.f32 %v6713, %v6891
    %v6900 = vadd.f32 %v6714, %v6894
    %s6901 = scalar_lea.vmem %s9, 1
    %v6902 = vld [vmem:[%s6901] sm:$0x1]
    %v6904 = vlaneseq
    %v6905 = vshrl.u32 %v6904, 7
    %v6906 = vsub.s32 0, %v6905
    %v6907 = vrot.slane %v6902, %v6906
    %v6909 = vadd.f32 %v6897, %v6907
    %v6910 = vadd.f32 %v6898, %v6907
    %v6911 = vadd.f32 %v6899, %v6907
    %v6912 = vadd.f32 %v6900, %v6907
    %v6913 = vmax.f32 %v6909, 0.0
    %v6914 = vmax.f32 %v6910, 0.0
    %v6915 = vmax.f32 %v6911, 0.0
    %v6916 = vmax.f32 %v6912, 0.0
    %v6917 = vadd.f32 %v6913, %v6914
    %v6918 = vadd.f32 %v6917, %v6915
    %v6919 = vadd.f32 %v6918, %v6916
    %v6920 = vrot.slane %v6919, 4
    %v6921 = vadd.f32 %v6919, %v6920
    %v6922 = vrot.slane %v6921, 2
    %v6923 = vadd.f32 %v6921, %v6922
    %v6924 = vrot.slane %v6923, 1
    %v6925 = vadd.f32 %v6923, %v6924
    %v6926 = vmul.f32 %v6925, 0.03125
    %v6927 = vmul.f32 %v6913, %v6913
    %v6928 = vmul.f32 %v6914, %v6914
    %v6929 = vmul.f32 %v6915, %v6915
    %v6930 = vmul.f32 %v6916, %v6916
    %v6931 = vadd.f32 %v6927, %v6928
    %v6932 = vadd.f32 %v6931, %v6929
    %v6933 = vadd.f32 %v6932, %v6930
    %v6934 = vrot.slane %v6933, 4
    %v6935 = vadd.f32 %v6933, %v6934
    %v6936 = vrot.slane %v6935, 2
    %v6937 = vadd.f32 %v6935, %v6936
    %v6938 = vrot.slane %v6937, 1
    %v6939 = vadd.f32 %v6937, %v6938
    %v6940 = vmul.f32 %v6939, 0.03125
    %v6941 = vmul.f32 %v6926, %v6926
    %v6942 = vsub.f32 %v6940, %v6941
    %v6943 = vsub.f32 %v6913, %v6926
    %v6944 = vsub.f32 %v6914, %v6926
    %v6945 = vsub.f32 %v6915, %v6926
    %v6946 = vsub.f32 %v6916, %v6926
    %v6947 = vadd.f32 %v6942, 1e-05
    %v6948 = vrsqrt.pop %v6947
    %v6949 = vmul.f32 %v6943, %v6948
    %v6950 = vmul.f32 %v6944, %v6948
    %v6951 = vmul.f32 %v6945, %v6948
    %v6952 = vmul.f32 %v6946, %v6948
    %v6953 = vpack.c.bf16 %v6950, %v6949
    %v6954 = vpack.c.bf16 %v6952, %v6951
    %v6955 = vld [vmem:[%s3] sm:$0xf]
    %v6956 = vld [vmem:[%s7] sm:$0xf]
    %v6957 = vld [vmem:[%s7 + $0x4] sm:$0xf]
    %v6958 = vld [vmem:[%s7 + $0x8] sm:$0xf]
    %v6959 = vld [vmem:[%s7 + $0xc] sm:$0xf]
    %v6960 = vld [vmem:[%s7 + $0x10] sm:$0xf]
    %v6961 = vld [vmem:[%s7 + $0x14] sm:$0xf]
    %v6962 = vld [vmem:[%s7 + $0x18] sm:$0xf]
    %v6963 = vld [vmem:[%s7 + $0x1c] sm:$0xf]
    %v6964 = vld [vmem:[%s7 + $0x20] sm:$0xf]
    %v6965 = vld [vmem:[%s7 + $0x24] sm:$0xf]
    %v6966 = vld [vmem:[%s7 + $0x28] sm:$0xf]
    %v6967 = vld [vmem:[%s7 + $0x2c] sm:$0xf]
    %v6968 = vld [vmem:[%s7 + $0x30] sm:$0xf]
    %v6969 = vld [vmem:[%s7 + $0x34] sm:$0xf]
    %v6970 = vld [vmem:[%s7 + $0x38] sm:$0xf]
    %v6971 = vld [vmem:[%s7 + $0x3c] sm:$0xf]
    %vm6972 = vcmask 261120
    %v6974 = vsel %vm6972, %v6955, 0
    %6976 = vmatprep.subr.bf16.mxu0 0
    %6977 = vmatpush1.bf16.msra.mxu0 %v6953
    %6978 = vmatprep.subr.bf16.mxu0 0
    %6979 = vmatpush1.bf16.msra.mxu0 %v6954
    %6980 = vmatprep.subr.bf16.mxu0 0
    %6981 = vmatpush1.bf16.msra.mxu0 0
    %6982 = vmatprep.subr.bf16.mxu0 0
    %6983 = vmatpush1.bf16.msra.mxu0 0
    %6984 = vmatprep.subr.bf16.mxu0 0
    %6985 = vmatpush1.bf16.msra.mxu0 0
    %6986 = vmatprep.subr.bf16.mxu0 0
    %6987 = vmatpush1.bf16.msra.mxu0 0
    %6988 = vmatprep.subr.bf16.mxu0 0
    %6989 = vmatpush1.bf16.msra.mxu0 0
    %6990 = vmatprep.subr.bf16.mxu0 0
    %6991 = vmatpush1.bf16.msra.mxu0 0
    %6992 = vmatprep.subr.bf16.mxu0 0
    %6993 = vmatpush1.bf16.msra.mxu0 0
    %6994 = vmatprep.subr.bf16.mxu0 0
    %6995 = vmatpush1.bf16.msra.mxu0 0
    %6996 = vmatprep.subr.bf16.mxu0 0
    %6997 = vmatpush1.bf16.msra.mxu0 0
    %6998 = vmatprep.subr.bf16.mxu0 0
    %6999 = vmatpush1.bf16.msra.mxu0 0
    %7000 = vmatprep.subr.bf16.mxu0 0
    %7001 = vmatpush1.bf16.msra.mxu0 0
    %7002 = vmatprep.subr.bf16.mxu0 0
    %7003 = vmatpush1.bf16.msra.mxu0 0
    %7004 = vmatprep.subr.bf16.mxu0 0
    %7005 = vmatpush1.bf16.msra.mxu0 0
    %7006 = vmatprep.subr.bf16.mxu0 0
    %7007 = vmatpush1.bf16.msra.mxu0 0
    %7008 = vmatprep.mubr.bf16.mxu0 0
    %7009 = vmatmul.mubr.bf16.gmra.mrb[0].mxu0 %v6974
    %v7010 = vpop.f32.mrb[0].mxu0
    %v7011 = vadd.f32 0.0, %v7010
    %v7012 = vpop.f32.mrb[0].mxu0
    %v7013 = vpop.f32.mrb[0].mxu0
    %v7014 = vpop.f32.mrb[0].mxu0
    %7015 = vdwg.mxu0
    %v7016 = vpack.c.bf16 %v7011, %v7011
    %s7017 = scalar_lea.vmem %s3, 4
    %v7018 = vld [vmem:[%s7017] sm:$0xf]
    %s7019 = scalar_lea.vmem %s7, 64
    %v7020 = vld [vmem:[%s7019] sm:$0xf]
    %v7021 = vld [vmem:[%s7019 + $0x4] sm:$0xf]
    %v7022 = vld [vmem:[%s7019 + $0x8] sm:$0xf]
    %v7023 = vld [vmem:[%s7019 + $0xc] sm:$0xf]
    %v7024 = vld [vmem:[%s7019 + $0x10] sm:$0xf]
    %v7025 = vld [vmem:[%s7019 + $0x14] sm:$0xf]
    %v7026 = vld [vmem:[%s7019 + $0x18] sm:$0xf]
    %v7027 = vld [vmem:[%s7019 + $0x1c] sm:$0xf]
    %v7028 = vld [vmem:[%s7019 + $0x20] sm:$0xf]
    %v7029 = vld [vmem:[%s7019 + $0x24] sm:$0xf]
    %v7030 = vld [vmem:[%s7019 + $0x28] sm:$0xf]
    %v7031 = vld [vmem:[%s7019 + $0x2c] sm:$0xf]
    %v7032 = vld [vmem:[%s7019 + $0x30] sm:$0xf]
    %v7033 = vld [vmem:[%s7019 + $0x34] sm:$0xf]
    %v7034 = vld [vmem:[%s7019 + $0x38] sm:$0xf]
    %v7035 = vld [vmem:[%s7019 + $0x3c] sm:$0xf]
    %v7037 = vsel %vm6972, %v7018, 0
    %7039 = vmatprep.subr.bf16.mxu0 0
    %7040 = vmatpush1.bf16.msra.mxu0 %v6953
    %7041 = vmatprep.subr.bf16.mxu0 0
    %7042 = vmatpush1.bf16.msra.mxu0 %v6954
    %7043 = vmatprep.subr.bf16.mxu0 0
    %7044 = vmatpush1.bf16.msra.mxu0 0
    %7045 = vmatprep.subr.bf16.mxu0 0
    %7046 = vmatpush1.bf16.msra.mxu0 0
    %7047 = vmatprep.subr.bf16.mxu0 0
    %7048 = vmatpush1.bf16.msra.mxu0 0
    %7049 = vmatprep.subr.bf16.mxu0 0
    %7050 = vmatpush1.bf16.msra.mxu0 0
    %7051 = vmatprep.subr.bf16.mxu0 0
    %7052 = vmatpush1.bf16.msra.mxu0 0
    %7053 = vmatprep.subr.bf16.mxu0 0
    %7054 = vmatpush1.bf16.msra.mxu0 0
    %7055 = vmatprep.subr.bf16.mxu0 0
    %7056 = vmatpush1.bf16.msra.mxu0 0
    %7057 = vmatprep.subr.bf16.mxu0 0
    %7058 = vmatpush1.bf16.msra.mxu0 0
    %7059 = vmatprep.subr.bf16.mxu0 0
    %7060 = vmatpush1.bf16.msra.mxu0 0
    %7061 = vmatprep.subr.bf16.mxu0 0
    %7062 = vmatpush1.bf16.msra.mxu0 0
    %7063 = vmatprep.subr.bf16.mxu0 0
    %7064 = vmatpush1.bf16.msra.mxu0 0
    %7065 = vmatprep.subr.bf16.mxu0 0
    %7066 = vmatpush1.bf16.msra.mxu0 0
    %7067 = vmatprep.subr.bf16.mxu0 0
    %7068 = vmatpush1.bf16.msra.mxu0 0
    %7069 = vmatprep.subr.bf16.mxu0 0
    %7070 = vmatpush1.bf16.msra.mxu0 0
    %7071 = vmatprep.mubr.bf16.mxu0 0
    %7072 = vmatmul.mubr.bf16.gmra.mrb[0].mxu0 %v7037
    %v7073 = vpop.f32.mrb[0].mxu0
    %v7074 = vadd.f32 0.0, %v7073
    %v7075 = vpop.f32.mrb[0].mxu0
    %v7076 = vpop.f32.mrb[0].mxu0
    %v7077 = vpop.f32.mrb[0].mxu0
    %7078 = vdwg.mxu0
    %v7079 = vpack.c.bf16 %v7074, %v7074
    %v7096 = vunpack.c.l.b16 %v7020
    %v7097 = vunpack.c.l.b16 %v7021
    %v7098 = vunpack.c.l.b16 %v7022
    %v7099 = vunpack.c.l.b16 %v7023
    %v7100 = vunpack.c.l.b16 %v7024
    %v7101 = vunpack.c.l.b16 %v7025
    %v7102 = vunpack.c.l.b16 %v7026
    %v7103 = vunpack.c.l.b16 %v7027
    %v7104 = vunpack.c.l.b16 %v7028
    %v7105 = vunpack.c.l.b16 %v7029
    %v7106 = vunpack.c.l.b16 %v7030
    %v7107 = vunpack.c.l.b16 %v7031
    %v7108 = vunpack.c.l.b16 %v7032
    %v7109 = vunpack.c.l.b16 %v7033
    %v7110 = vunpack.c.l.b16 %v7034
    %v7111 = vunpack.c.l.b16 %v7035
    %v7112 = vpack.c.b16 %v7097, %v7096
    %v7113 = vpack.c.b16 %v7099, %v7098
    %v7114 = vpack.c.b16 %v7101, %v7100
    %v7115 = vpack.c.b16 %v7103, %v7102
    %v7116 = vpack.c.b16 %v7105, %v7104
    %v7117 = vpack.c.b16 %v7107, %v7106
    %v7118 = vpack.c.b16 %v7109, %v7108
    %v7119 = vpack.c.b16 %v7111, %v7110
    %7128 = vmatprep.subr.bf16.mxu0 0
    %7129 = vmatpush1.bf16.msra.mxu0 %v7112
    %7130 = vmatprep.subr.bf16.mxu0 0
    %7131 = vmatpush1.bf16.msra.mxu0 %v7113
    %7132 = vmatprep.subr.bf16.mxu0 0
    %7133 = vmatpush1.bf16.msra.mxu0 %v7114
    %7134 = vmatprep.subr.bf16.mxu0 0
    %7135 = vmatpush1.bf16.msra.mxu0 %v7115
    %7136 = vmatprep.subr.bf16.mxu0 0
    %7137 = vmatpush1.bf16.msra.mxu0 %v7116
    %7138 = vmatprep.subr.bf16.mxu0 0
    %7139 = vmatpush1.bf16.msra.mxu0 %v7117
    %7140 = vmatprep.subr.bf16.mxu0 0
    %7141 = vmatpush1.bf16.msra.mxu0 %v7118
    %7142 = vmatprep.subr.bf16.mxu0 0
    %7143 = vmatpush1.bf16.msra.mxu0 %v7119
    %7144 = vmatprep.subr.bf16.mxu0 0
    %7145 = vmatpush1.bf16.msra.mxu0 0
    %7146 = vmatprep.subr.bf16.mxu0 0
    %7147 = vmatpush1.bf16.msra.mxu0 0
    %7148 = vmatprep.subr.bf16.mxu0 0
    %7149 = vmatpush1.bf16.msra.mxu0 0
    %7150 = vmatprep.subr.bf16.mxu0 0
    %7151 = vmatpush1.bf16.msra.mxu0 0
    %7152 = vmatprep.subr.bf16.mxu0 0
    %7153 = vmatpush1.bf16.msra.mxu0 0
    %7154 = vmatprep.subr.bf16.mxu0 0
    %7155 = vmatpush1.bf16.msra.mxu0 0
    %7156 = vmatprep.subr.bf16.mxu0 0
    %7157 = vmatpush1.bf16.msra.mxu0 0
    %7158 = vmatprep.subr.bf16.mxu0 0
    %7159 = vmatpush1.bf16.msra.mxu0 0
    %7160 = vmatprep.mubr.bf16.mxu0 0
    %7161 = vmatmul.mubr.bf16.gmra.mrb[0].mxu0 %v7079
    %v7162 = vpop.f32.mrb[0].mxu0
    %v7163 = vadd.f32 0.0, %v7162
    %v7164 = vpop.f32.mrb[0].mxu0
    %v7165 = vpop.f32.mrb[0].mxu0
    %v7166 = vpop.f32.mrb[0].mxu0
    %7167 = vdwg.mxu0
    %v7184 = vunpack.c.l.b16 %v6956
    %v7185 = vunpack.c.l.b16 %v6957
    %v7186 = vunpack.c.l.b16 %v6958
    %v7187 = vunpack.c.l.b16 %v6959
    %v7188 = vunpack.c.l.b16 %v6960
    %v7189 = vunpack.c.l.b16 %v6961
    %v7190 = vunpack.c.l.b16 %v6962
    %v7191 = vunpack.c.l.b16 %v6963
    %v7192 = vunpack.c.l.b16 %v6964
    %v7193 = vunpack.c.l.b16 %v6965
    %v7194 = vunpack.c.l.b16 %v6966
    %v7195 = vunpack.c.l.b16 %v6967
    %v7196 = vunpack.c.l.b16 %v6968
    %v7197 = vunpack.c.l.b16 %v6969
    %v7198 = vunpack.c.l.b16 %v6970
    %v7199 = vunpack.c.l.b16 %v6971
    %v7200 = vpack.c.b16 %v7185, %v7184
    %v7201 = vpack.c.b16 %v7187, %v7186
    %v7202 = vpack.c.b16 %v7189, %v7188
    %v7203 = vpack.c.b16 %v7191, %v7190
    %v7204 = vpack.c.b16 %v7193, %v7192
    %v7205 = vpack.c.b16 %v7195, %v7194
    %v7206 = vpack.c.b16 %v7197, %v7196
    %v7207 = vpack.c.b16 %v7199, %v7198
    %7216 = vmatprep.subr.bf16.mxu0 0
    %7217 = vmatpush1.bf16.msra.mxu0 %v7200
    %7218 = vmatprep.subr.bf16.mxu0 0
    %7219 = vmatpush1.bf16.msra.mxu0 %v7201
    %7220 = vmatprep.subr.bf16.mxu0 0
    %7221 = vmatpush1.bf16.msra.mxu0 %v7202
    %7222 = vmatprep.subr.bf16.mxu0 0
    %7223 = vmatpush1.bf16.msra.mxu0 %v7203
    %7224 = vmatprep.subr.bf16.mxu0 0
    %7225 = vmatpush1.bf16.msra.mxu0 %v7204
    %7226 = vmatprep.subr.bf16.mxu0 0
    %7227 = vmatpush1.bf16.msra.mxu0 %v7205
    %7228 = vmatprep.subr.bf16.mxu0 0
    %7229 = vmatpush1.bf16.msra.mxu0 %v7206
    %7230 = vmatprep.subr.bf16.mxu0 0
    %7231 = vmatpush1.bf16.msra.mxu0 %v7207
    %7232 = vmatprep.subr.bf16.mxu0 0
    %7233 = vmatpush1.bf16.msra.mxu0 0
    %7234 = vmatprep.subr.bf16.mxu0 0
    %7235 = vmatpush1.bf16.msra.mxu0 0
    %7236 = vmatprep.subr.bf16.mxu0 0
    %7237 = vmatpush1.bf16.msra.mxu0 0
    %7238 = vmatprep.subr.bf16.mxu0 0
    %7239 = vmatpush1.bf16.msra.mxu0 0
    %7240 = vmatprep.subr.bf16.mxu0 0
    %7241 = vmatpush1.bf16.msra.mxu0 0
    %7242 = vmatprep.subr.bf16.mxu0 0
    %7243 = vmatpush1.bf16.msra.mxu0 0
    %7244 = vmatprep.subr.bf16.mxu0 0
    %7245 = vmatpush1.bf16.msra.mxu0 0
    %7246 = vmatprep.subr.bf16.mxu0 0
    %7247 = vmatpush1.bf16.msra.mxu0 0
    %7248 = vmatprep.mubr.bf16.mxu0 0
    %7249 = vmatmul.mubr.bf16.gmra.mrb[0].mxu0 %v7016
    %v7250 = vpop.f32.mrb[0].mxu0
    %v7251 = vadd.f32 %v7163, %v7250
    %v7252 = vpop.f32.mrb[0].mxu0
    %v7253 = vpop.f32.mrb[0].mxu0
    %v7254 = vpop.f32.mrb[0].mxu0
    %7255 = vdwg.mxu0
    %s7256 = scalar_lea.vmem %s3, 8
    %v7257 = vld [vmem:[%s7256] sm:$0xf]
    %s7258 = scalar_lea.vmem %s7, 128
    %v7259 = vld [vmem:[%s7258] sm:$0xf]
    %v7260 = vld [vmem:[%s7258 + $0x4] sm:$0xf]
    %v7261 = vld [vmem:[%s7258 + $0x8] sm:$0xf]
    %v7262 = vld [vmem:[%s7258 + $0xc] sm:$0xf]
    %v7263 = vld [vmem:[%s7258 + $0x10] sm:$0xf]
    %v7264 = vld [vmem:[%s7258 + $0x14] sm:$0xf]
    %v7265 = vld [vmem:[%s7258 + $0x18] sm:$0xf]
    %v7266 = vld [vmem:[%s7258 + $0x1c] sm:$0xf]
    %v7267 = vld [vmem:[%s7258 + $0x20] sm:$0xf]
    %v7268 = vld [vmem:[%s7258 + $0x24] sm:$0xf]
    %v7269 = vld [vmem:[%s7258 + $0x28] sm:$0xf]
    %v7270 = vld [vmem:[%s7258 + $0x2c] sm:$0xf]
    %v7271 = vld [vmem:[%s7258 + $0x30] sm:$0xf]
    %v7272 = vld [vmem:[%s7258 + $0x34] sm:$0xf]
    %v7273 = vld [vmem:[%s7258 + $0x38] sm:$0xf]
    %v7274 = vld [vmem:[%s7258 + $0x3c] sm:$0xf]
    %v7276 = vsel %vm6972, %v7257, 0
    %7278 = vmatprep.subr.bf16.mxu0 0
    %7279 = vmatpush1.bf16.msra.mxu0 %v6953
    %7280 = vmatprep.subr.bf16.mxu0 0
    %7281 = vmatpush1.bf16.msra.mxu0 %v6954
    %7282 = vmatprep.subr.bf16.mxu0 0
    %7283 = vmatpush1.bf16.msra.mxu0 0
    %7284 = vmatprep.subr.bf16.mxu0 0
    %7285 = vmatpush1.bf16.msra.mxu0 0
    %7286 = vmatprep.subr.bf16.mxu0 0
    %7287 = vmatpush1.bf16.msra.mxu0 0
    %7288 = vmatprep.subr.bf16.mxu0 0
    %7289 = vmatpush1.bf16.msra.mxu0 0
    %7290 = vmatprep.subr.bf16.mxu0 0
    %7291 = vmatpush1.bf16.msra.mxu0 0
    %7292 = vmatprep.subr.bf16.mxu0 0
    %7293 = vmatpush1.bf16.msra.mxu0 0
    %7294 = vmatprep.subr.bf16.mxu0 0
    %7295 = vmatpush1.bf16.msra.mxu0 0
    %7296 = vmatprep.subr.bf16.mxu0 0
    %7297 = vmatpush1.bf16.msra.mxu0 0
    %7298 = vmatprep.subr.bf16.mxu0 0
    %7299 = vmatpush1.bf16.msra.mxu0 0
    %7300 = vmatprep.subr.bf16.mxu0 0
    %7301 = vmatpush1.bf16.msra.mxu0 0
    %7302 = vmatprep.subr.bf16.mxu0 0
    %7303 = vmatpush1.bf16.msra.mxu0 0
    %7304 = vmatprep.subr.bf16.mxu0 0
    %7305 = vmatpush1.bf16.msra.mxu0 0
    %7306 = vmatprep.subr.bf16.mxu0 0
    %7307 = vmatpush1.bf16.msra.mxu0 0
    %7308 = vmatprep.subr.bf16.mxu0 0
    %7309 = vmatpush1.bf16.msra.mxu0 0
    %7310 = vmatprep.mubr.bf16.mxu0 0
    %7311 = vmatmul.mubr.bf16.gmra.mrb[0].mxu0 %v7276
    %v7312 = vpop.f32.mrb[0].mxu0
    %v7313 = vadd.f32 0.0, %v7312
    %v7314 = vpop.f32.mrb[0].mxu0
    %v7315 = vpop.f32.mrb[0].mxu0
    %v7316 = vpop.f32.mrb[0].mxu0
    %7317 = vdwg.mxu0
    %v7318 = vpack.c.bf16 %v7313, %v7313
    %v7335 = vunpack.c.l.b16 %v7259
    %v7336 = vunpack.c.l.b16 %v7260
    %v7337 = vunpack.c.l.b16 %v7261
    %v7338 = vunpack.c.l.b16 %v7262
    %v7339 = vunpack.c.l.b16 %v7263
    %v7340 = vunpack.c.l.b16 %v7264
    %v7341 = vunpack.c.l.b16 %v7265
    %v7342 = vunpack.c.l.b16 %v7266
    %v7343 = vunpack.c.l.b16 %v7267
    %v7344 = vunpack.c.l.b16 %v7268
    %v7345 = vunpack.c.l.b16 %v7269
    %v7346 = vunpack.c.l.b16 %v7270
    %v7347 = vunpack.c.l.b16 %v7271
    %v7348 = vunpack.c.l.b16 %v7272
    %v7349 = vunpack.c.l.b16 %v7273
    %v7350 = vunpack.c.l.b16 %v7274
    %v7351 = vpack.c.b16 %v7336, %v7335
    %v7352 = vpack.c.b16 %v7338, %v7337
    %v7353 = vpack.c.b16 %v7340, %v7339
    %v7354 = vpack.c.b16 %v7342, %v7341
    %v7355 = vpack.c.b16 %v7344, %v7343
    %v7356 = vpack.c.b16 %v7346, %v7345
    %v7357 = vpack.c.b16 %v7348, %v7347
    %v7358 = vpack.c.b16 %v7350, %v7349
    %7367 = vmatprep.subr.bf16.mxu0 0
    %7368 = vmatpush1.bf16.msra.mxu0 %v7351
    %7369 = vmatprep.subr.bf16.mxu0 0
    %7370 = vmatpush1.bf16.msra.mxu0 %v7352
    %7371 = vmatprep.subr.bf16.mxu0 0
    %7372 = vmatpush1.bf16.msra.mxu0 %v7353
    %7373 = vmatprep.subr.bf16.mxu0 0
    %7374 = vmatpush1.bf16.msra.mxu0 %v7354
    %7375 = vmatprep.subr.bf16.mxu0 0
    %7376 = vmatpush1.bf16.msra.mxu0 %v7355
    %7377 = vmatprep.subr.bf16.mxu0 0
    %7378 = vmatpush1.bf16.msra.mxu0 %v7356
    %7379 = vmatprep.subr.bf16.mxu0 0
    %7380 = vmatpush1.bf16.msra.mxu0 %v7357
    %7381 = vmatprep.subr.bf16.mxu0 0
    %7382 = vmatpush1.bf16.msra.mxu0 %v7358
    %7383 = vmatprep.subr.bf16.mxu0 0
    %7384 = vmatpush1.bf16.msra.mxu0 0
    %7385 = vmatprep.subr.bf16.mxu0 0
    %7386 = vmatpush1.bf16.msra.mxu0 0
    %7387 = vmatprep.subr.bf16.mxu0 0
    %7388 = vmatpush1.bf16.msra.mxu0 0
    %7389 = vmatprep.subr.bf16.mxu0 0
    %7390 = vmatpush1.bf16.msra.mxu0 0
    %7391 = vmatprep.subr.bf16.mxu0 0
    %7392 = vmatpush1.bf16.msra.mxu0 0
    %7393 = vmatprep.subr.bf16.mxu0 0
    %7394 = vmatpush1.bf16.msra.mxu0 0
    %7395 = vmatprep.subr.bf16.mxu0 0
    %7396 = vmatpush1.bf16.msra.mxu0 0
    %7397 = vmatprep.subr.bf16.mxu0 0
    %7398 = vmatpush1.bf16.msra.mxu0 0
    %7399 = vmatprep.mubr.bf16.mxu0 0
    %7400 = vmatmul.mubr.bf16.gmra.mrb[0].mxu0 %v7318
    %v7401 = vpop.f32.mrb[0].mxu0
    %v7402 = vadd.f32 0.0, %v7401
    %v7403 = vpop.f32.mrb[0].mxu0
    %v7404 = vpop.f32.mrb[0].mxu0
    %v7405 = vpop.f32.mrb[0].mxu0
    %7406 = vdwg.mxu0
    %v7407 = vadd.f32 %v7251, %v7402
    %s7408 = scalar_lea.vmem %s3, 12
    %v7409 = vld [vmem:[%s7408] sm:$0xf]
    %s7410 = scalar_lea.vmem %s7, 192
    %v7411 = vld [vmem:[%s7410] sm:$0xf]
    %v7412 = vld [vmem:[%s7410 + $0x4] sm:$0xf]
    %v7413 = vld [vmem:[%s7410 + $0x8] sm:$0xf]
    %v7414 = vld [vmem:[%s7410 + $0xc] sm:$0xf]
    %v7415 = vld [vmem:[%s7410 + $0x10] sm:$0xf]
    %v7416 = vld [vmem:[%s7410 + $0x14] sm:$0xf]
    %v7417 = vld [vmem:[%s7410 + $0x18] sm:$0xf]
    %v7418 = vld [vmem:[%s7410 + $0x1c] sm:$0xf]
    %v7419 = vld [vmem:[%s7410 + $0x20] sm:$0xf]
    %v7420 = vld [vmem:[%s7410 + $0x24] sm:$0xf]
    %v7421 = vld [vmem:[%s7410 + $0x28] sm:$0xf]
    %v7422 = vld [vmem:[%s7410 + $0x2c] sm:$0xf]
    %v7423 = vld [vmem:[%s7410 + $0x30] sm:$0xf]
    %v7424 = vld [vmem:[%s7410 + $0x34] sm:$0xf]
    %v7425 = vld [vmem:[%s7410 + $0x38] sm:$0xf]
    %v7426 = vld [vmem:[%s7410 + $0x3c] sm:$0xf]
    %v7428 = vsel %vm6972, %v7409, 0
    %7430 = vmatprep.subr.bf16.mxu0 0
    %7431 = vmatpush1.bf16.msra.mxu0 %v6953
    %7432 = vmatprep.subr.bf16.mxu0 0
    %7433 = vmatpush1.bf16.msra.mxu0 %v6954
    %7434 = vmatprep.subr.bf16.mxu0 0
    %7435 = vmatpush1.bf16.msra.mxu0 0
    %7436 = vmatprep.subr.bf16.mxu0 0
    %7437 = vmatpush1.bf16.msra.mxu0 0
    %7438 = vmatprep.subr.bf16.mxu0 0
    %7439 = vmatpush1.bf16.msra.mxu0 0
    %7440 = vmatprep.subr.bf16.mxu0 0
    %7441 = vmatpush1.bf16.msra.mxu0 0
    %7442 = vmatprep.subr.bf16.mxu0 0
    %7443 = vmatpush1.bf16.msra.mxu0 0
    %7444 = vmatprep.subr.bf16.mxu0 0
    %7445 = vmatpush1.bf16.msra.mxu0 0
    %7446 = vmatprep.subr.bf16.mxu0 0
    %7447 = vmatpush1.bf16.msra.mxu0 0
    %7448 = vmatprep.subr.bf16.mxu0 0
    %7449 = vmatpush1.bf16.msra.mxu0 0
    %7450 = vmatprep.subr.bf16.mxu0 0
    %7451 = vmatpush1.bf16.msra.mxu0 0
    %7452 = vmatprep.subr.bf16.mxu0 0
    %7453 = vmatpush1.bf16.msra.mxu0 0
    %7454 = vmatprep.subr.bf16.mxu0 0
    %7455 = vmatpush1.bf16.msra.mxu0 0
    %7456 = vmatprep.subr.bf16.mxu0 0
    %7457 = vmatpush1.bf16.msra.mxu0 0
    %7458 = vmatprep.subr.bf16.mxu0 0
    %7459 = vmatpush1.bf16.msra.mxu0 0
    %7460 = vmatprep.subr.bf16.mxu0 0
    %7461 = vmatpush1.bf16.msra.mxu0 0
    %7462 = vmatprep.mubr.bf16.mxu0 0
    %7463 = vmatmul.mubr.bf16.gmra.mrb[0].mxu0 %v7428
    %v7464 = vpop.f32.mrb[0].mxu0
    %v7465 = vadd.f32 0.0, %v7464
    %v7466 = vpop.f32.mrb[0].mxu0
    %v7467 = vpop.f32.mrb[0].mxu0
    %v7468 = vpop.f32.mrb[0].mxu0
    %7469 = vdwg.mxu0
    %v7470 = vpack.c.bf16 %v7465, %v7465
    %v7487 = vunpack.c.l.b16 %v7411
    %v7488 = vunpack.c.l.b16 %v7412
    %v7489 = vunpack.c.l.b16 %v7413
    %v7490 = vunpack.c.l.b16 %v7414
    %v7491 = vunpack.c.l.b16 %v7415
    %v7492 = vunpack.c.l.b16 %v7416
    %v7493 = vunpack.c.l.b16 %v7417
    %v7494 = vunpack.c.l.b16 %v7418
    %v7495 = vunpack.c.l.b16 %v7419
    %v7496 = vunpack.c.l.b16 %v7420
    %v7497 = vunpack.c.l.b16 %v7421
    %v7498 = vunpack.c.l.b16 %v7422
    %v7499 = vunpack.c.l.b16 %v7423
    %v7500 = vunpack.c.l.b16 %v7424
    %v7501 = vunpack.c.l.b16 %v7425
    %v7502 = vunpack.c.l.b16 %v7426
    %v7503 = vpack.c.b16 %v7488, %v7487
    %v7504 = vpack.c.b16 %v7490, %v7489
    %v7505 = vpack.c.b16 %v7492, %v7491
    %v7506 = vpack.c.b16 %v7494, %v7493
    %v7507 = vpack.c.b16 %v7496, %v7495
    %v7508 = vpack.c.b16 %v7498, %v7497
    %v7509 = vpack.c.b16 %v7500, %v7499
    %v7510 = vpack.c.b16 %v7502, %v7501
    %7519 = vmatprep.subr.bf16.mxu0 0
    %7520 = vmatpush1.bf16.msra.mxu0 %v7503
    %7521 = vmatprep.subr.bf16.mxu0 0
    %7522 = vmatpush1.bf16.msra.mxu0 %v7504
    %7523 = vmatprep.subr.bf16.mxu0 0
    %7524 = vmatpush1.bf16.msra.mxu0 %v7505
    %7525 = vmatprep.subr.bf16.mxu0 0
    %7526 = vmatpush1.bf16.msra.mxu0 %v7506
    %7527 = vmatprep.subr.bf16.mxu0 0
    %7528 = vmatpush1.bf16.msra.mxu0 %v7507
    %7529 = vmatprep.subr.bf16.mxu0 0
    %7530 = vmatpush1.bf16.msra.mxu0 %v7508
    %7531 = vmatprep.subr.bf16.mxu0 0
    %7532 = vmatpush1.bf16.msra.mxu0 %v7509
    %7533 = vmatprep.subr.bf16.mxu0 0
    %7534 = vmatpush1.bf16.msra.mxu0 %v7510
    %7535 = vmatprep.subr.bf16.mxu0 0
    %7536 = vmatpush1.bf16.msra.mxu0 0
    %7537 = vmatprep.subr.bf16.mxu0 0
    %7538 = vmatpush1.bf16.msra.mxu0 0
    %7539 = vmatprep.subr.bf16.mxu0 0
    %7540 = vmatpush1.bf16.msra.mxu0 0
    %7541 = vmatprep.subr.bf16.mxu0 0
    %7542 = vmatpush1.bf16.msra.mxu0 0
    %7543 = vmatprep.subr.bf16.mxu0 0
    %7544 = vmatpush1.bf16.msra.mxu0 0
    %7545 = vmatprep.subr.bf16.mxu0 0
    %7546 = vmatpush1.bf16.msra.mxu0 0
    %7547 = vmatprep.subr.bf16.mxu0 0
    %7548 = vmatpush1.bf16.msra.mxu0 0
    %7549 = vmatprep.subr.bf16.mxu0 0
    %7550 = vmatpush1.bf16.msra.mxu0 0
    %7551 = vmatprep.mubr.bf16.mxu0 0
    %7552 = vmatmul.mubr.bf16.gmra.mrb[0].mxu0 %v7470
    %v7553 = vpop.f32.mrb[0].mxu0
    %v7554 = vadd.f32 0.0, %v7553
    %v7555 = vpop.f32.mrb[0].mxu0
    %v7556 = vpop.f32.mrb[0].mxu0
    %v7557 = vpop.f32.mrb[0].mxu0
    %7558 = vdwg.mxu0
    %v7559 = vadd.f32 %v7407, %v7554
    %s7560 = scalar_lea.vmem %s3, 16
    %v7561 = vld [vmem:[%s7560] sm:$0xf]
    %s7562 = scalar_lea.vmem %s7, 256
    %v7563 = vld [vmem:[%s7562] sm:$0xf]
    %v7564 = vld [vmem:[%s7562 + $0x4] sm:$0xf]
    %v7565 = vld [vmem:[%s7562 + $0x8] sm:$0xf]
    %v7566 = vld [vmem:[%s7562 + $0xc] sm:$0xf]
    %v7567 = vld [vmem:[%s7562 + $0x10] sm:$0xf]
    %v7568 = vld [vmem:[%s7562 + $0x14] sm:$0xf]
    %v7569 = vld [vmem:[%s7562 + $0x18] sm:$0xf]
    %v7570 = vld [vmem:[%s7562 + $0x1c] sm:$0xf]
    %v7571 = vld [vmem:[%s7562 + $0x20] sm:$0xf]
    %v7572 = vld [vmem:[%s7562 + $0x24] sm:$0xf]
    %v7573 = vld [vmem:[%s7562 + $0x28] sm:$0xf]
    %v7574 = vld [vmem:[%s7562 + $0x2c] sm:$0xf]
    %v7575 = vld [vmem:[%s7562 + $0x30] sm:$0xf]
    %v7576 = vld [vmem:[%s7562 + $0x34] sm:$0xf]
    %v7577 = vld [vmem:[%s7562 + $0x38] sm:$0xf]
    %v7578 = vld [vmem:[%s7562 + $0x3c] sm:$0xf]
    %v7580 = vsel %vm6972, %v7561, 0
    %7582 = vmatprep.subr.bf16.mxu0 0
    %7583 = vmatpush1.bf16.msra.mxu0 %v6953
    %7584 = vmatprep.subr.bf16.mxu0 0
    %7585 = vmatpush1.bf16.msra.mxu0 %v6954
    %7586 = vmatprep.subr.bf16.mxu0 0
    %7587 = vmatpush1.bf16.msra.mxu0 0
    %7588 = vmatprep.subr.bf16.mxu0 0
    %7589 = vmatpush1.bf16.msra.mxu0 0
    %7590 = vmatprep.subr.bf16.mxu0 0
    %7591 = vmatpush1.bf16.msra.mxu0 0
    %7592 = vmatprep.subr.bf16.mxu0 0
    %7593 = vmatpush1.bf16.msra.mxu0 0
    %7594 = vmatprep.subr.bf16.mxu0 0
    %7595 = vmatpush1.bf16.msra.mxu0 0
    %7596 = vmatprep.subr.bf16.mxu0 0
    %7597 = vmatpush1.bf16.msra.mxu0 0
    %7598 = vmatprep.subr.bf16.mxu0 0
    %7599 = vmatpush1.bf16.msra.mxu0 0
    %7600 = vmatprep.subr.bf16.mxu0 0
    %7601 = vmatpush1.bf16.msra.mxu0 0
    %7602 = vmatprep.subr.bf16.mxu0 0
    %7603 = vmatpush1.bf16.msra.mxu0 0
    %7604 = vmatprep.subr.bf16.mxu0 0
    %7605 = vmatpush1.bf16.msra.mxu0 0
    %7606 = vmatprep.subr.bf16.mxu0 0
    %7607 = vmatpush1.bf16.msra.mxu0 0
    %7608 = vmatprep.subr.bf16.mxu0 0
    %7609 = vmatpush1.bf16.msra.mxu0 0
    %7610 = vmatprep.subr.bf16.mxu0 0
    %7611 = vmatpush1.bf16.msra.mxu0 0
    %7612 = vmatprep.subr.bf16.mxu0 0
    %7613 = vmatpush1.bf16.msra.mxu0 0
    %7614 = vmatprep.mubr.bf16.mxu0 0
    %7615 = vmatmul.mubr.bf16.gmra.mrb[0].mxu0 %v7580
    %v7616 = vpop.f32.mrb[0].mxu0
    %v7617 = vadd.f32 0.0, %v7616
    %v7618 = vpop.f32.mrb[0].mxu0
    %v7619 = vpop.f32.mrb[0].mxu0
    %v7620 = vpop.f32.mrb[0].mxu0
    %7621 = vdwg.mxu0
    %v7622 = vpack.c.bf16 %v7617, %v7617
    %v7639 = vunpack.c.l.b16 %v7563
    %v7640 = vunpack.c.l.b16 %v7564
    %v7641 = vunpack.c.l.b16 %v7565
    %v7642 = vunpack.c.l.b16 %v7566
    %v7643 = vunpack.c.l.b16 %v7567
    %v7644 = vunpack.c.l.b16 %v7568
    %v7645 = vunpack.c.l.b16 %v7569
    %v7646 = vunpack.c.l.b16 %v7570
    %v7647 = vunpack.c.l.b16 %v7571
    %v7648 = vunpack.c.l.b16 %v7572
    %v7649 = vunpack.c.l.b16 %v7573
    %v7650 = vunpack.c.l.b16 %v7574
    %v7651 = vunpack.c.l.b16 %v7575
    %v7652 = vunpack.c.l.b16 %v7576
    %v7653 = vunpack.c.l.b16 %v7577
    %v7654 = vunpack.c.l.b16 %v7578
    %v7655 = vpack.c.b16 %v7640, %v7639
    %v7656 = vpack.c.b16 %v7642, %v7641
    %v7657 = vpack.c.b16 %v7644, %v7643
    %v7658 = vpack.c.b16 %v7646, %v7645
    %v7659 = vpack.c.b16 %v7648, %v7647
    %v7660 = vpack.c.b16 %v7650, %v7649
    %v7661 = vpack.c.b16 %v7652, %v7651
    %v7662 = vpack.c.b16 %v7654, %v7653
    %7671 = vmatprep.subr.bf16.mxu0 0
    %7672 = vmatpush1.bf16.msra.mxu0 %v7655
    %7673 = vmatprep.subr.bf16.mxu0 0
    %7674 = vmatpush1.bf16.msra.mxu0 %v7656
    %7675 = vmatprep.subr.bf16.mxu0 0
    %7676 = vmatpush1.bf16.msra.mxu0 %v7657
    %7677 = vmatprep.subr.bf16.mxu0 0
    %7678 = vmatpush1.bf16.msra.mxu0 %v7658
    %7679 = vmatprep.subr.bf16.mxu0 0
    %7680 = vmatpush1.bf16.msra.mxu0 %v7659
    %7681 = vmatprep.subr.bf16.mxu0 0
    %7682 = vmatpush1.bf16.msra.mxu0 %v7660
    %7683 = vmatprep.subr.bf16.mxu0 0
    %7684 = vmatpush1.bf16.msra.mxu0 %v7661
    %7685 = vmatprep.subr.bf16.mxu0 0
    %7686 = vmatpush1.bf16.msra.mxu0 %v7662
    %7687 = vmatprep.subr.bf16.mxu0 0
    %7688 = vmatpush1.bf16.msra.mxu0 0
    %7689 = vmatprep.subr.bf16.mxu0 0
    %7690 = vmatpush1.bf16.msra.mxu0 0
    %7691 = vmatprep.subr.bf16.mxu0 0
    %7692 = vmatpush1.bf16.msra.mxu0 0
    %7693 = vmatprep.subr.bf16.mxu0 0
    %7694 = vmatpush1.bf16.msra.mxu0 0
    %7695 = vmatprep.subr.bf16.mxu0 0
    %7696 = vmatpush1.bf16.msra.mxu0 0
    %7697 = vmatprep.subr.bf16.mxu0 0
    %7698 = vmatpush1.bf16.msra.mxu0 0
    %7699 = vmatprep.subr.bf16.mxu0 0
    %7700 = vmatpush1.bf16.msra.mxu0 0
    %7701 = vmatprep.subr.bf16.mxu0 0
    %7702 = vmatpush1.bf16.msra.mxu0 0
    %7703 = vmatprep.mubr.bf16.mxu0 0
    %7704 = vmatmul.mubr.bf16.gmra.mrb[0].mxu0 %v7622
    %v7705 = vpop.f32.mrb[0].mxu0
    %v7706 = vadd.f32 0.0, %v7705
    %v7707 = vpop.f32.mrb[0].mxu0
    %v7708 = vpop.f32.mrb[0].mxu0
    %v7709 = vpop.f32.mrb[0].mxu0
    %7710 = vdwg.mxu0
    %v7711 = vadd.f32 %v7559, %v7706
    %s7712 = scalar_lea.vmem %s3, 20
    %v7713 = vld [vmem:[%s7712] sm:$0xf]
    %s7714 = scalar_lea.vmem %s7, 320
    %v7715 = vld [vmem:[%s7714] sm:$0xf]
    %v7716 = vld [vmem:[%s7714 + $0x4] sm:$0xf]
    %v7717 = vld [vmem:[%s7714 + $0x8] sm:$0xf]
    %v7718 = vld [vmem:[%s7714 + $0xc] sm:$0xf]
    %v7719 = vld [vmem:[%s7714 + $0x10] sm:$0xf]
    %v7720 = vld [vmem:[%s7714 + $0x14] sm:$0xf]
    %v7721 = vld [vmem:[%s7714 + $0x18] sm:$0xf]
    %v7722 = vld [vmem:[%s7714 + $0x1c] sm:$0xf]
    %v7723 = vld [vmem:[%s7714 + $0x20] sm:$0xf]
    %v7724 = vld [vmem:[%s7714 + $0x24] sm:$0xf]
    %v7725 = vld [vmem:[%s7714 + $0x28] sm:$0xf]
    %v7726 = vld [vmem:[%s7714 + $0x2c] sm:$0xf]
    %v7727 = vld [vmem:[%s7714 + $0x30] sm:$0xf]
    %v7728 = vld [vmem:[%s7714 + $0x34] sm:$0xf]
    %v7729 = vld [vmem:[%s7714 + $0x38] sm:$0xf]
    %v7730 = vld [vmem:[%s7714 + $0x3c] sm:$0xf]
    %v7732 = vsel %vm6972, %v7713, 0
    %7734 = vmatprep.subr.bf16.mxu0 0
    %7735 = vmatpush1.bf16.msra.mxu0 %v6953
    %7736 = vmatprep.subr.bf16.mxu0 0
    %7737 = vmatpush1.bf16.msra.mxu0 %v6954
    %7738 = vmatprep.subr.bf16.mxu0 0
    %7739 = vmatpush1.bf16.msra.mxu0 0
    %7740 = vmatprep.subr.bf16.mxu0 0
    %7741 = vmatpush1.bf16.msra.mxu0 0
    %7742 = vmatprep.subr.bf16.mxu0 0
    %7743 = vmatpush1.bf16.msra.mxu0 0
    %7744 = vmatprep.subr.bf16.mxu0 0
    %7745 = vmatpush1.bf16.msra.mxu0 0
    %7746 = vmatprep.subr.bf16.mxu0 0
    %7747 = vmatpush1.bf16.msra.mxu0 0
    %7748 = vmatprep.subr.bf16.mxu0 0
    %7749 = vmatpush1.bf16.msra.mxu0 0
    %7750 = vmatprep.subr.bf16.mxu0 0
    %7751 = vmatpush1.bf16.msra.mxu0 0
    %7752 = vmatprep.subr.bf16.mxu0 0
    %7753 = vmatpush1.bf16.msra.mxu0 0
    %7754 = vmatprep.subr.bf16.mxu0 0
    %7755 = vmatpush1.bf16.msra.mxu0 0
    %7756 = vmatprep.subr.bf16.mxu0 0
    %7757 = vmatpush1.bf16.msra.mxu0 0
    %7758 = vmatprep.subr.bf16.mxu0 0
    %7759 = vmatpush1.bf16.msra.mxu0 0
    %7760 = vmatprep.subr.bf16.mxu0 0
    %7761 = vmatpush1.bf16.msra.mxu0 0
    %7762 = vmatprep.subr.bf16.mxu0 0
    %7763 = vmatpush1.bf16.msra.mxu0 0
    %7764 = vmatprep.subr.bf16.mxu0 0
    %7765 = vmatpush1.bf16.msra.mxu0 0
    %7766 = vmatprep.mubr.bf16.mxu0 0
    %7767 = vmatmul.mubr.bf16.gmra.mrb[0].mxu0 %v7732
    %v7768 = vpop.f32.mrb[0].mxu0
    %v7769 = vadd.f32 0.0, %v7768
    %v7770 = vpop.f32.mrb[0].mxu0
    %v7771 = vpop.f32.mrb[0].mxu0
    %v7772 = vpop.f32.mrb[0].mxu0
    %7773 = vdwg.mxu0
    %v7774 = vpack.c.bf16 %v7769, %v7769
    %v7791 = vunpack.c.l.b16 %v7715
    %v7792 = vunpack.c.l.b16 %v7716
    %v7793 = vunpack.c.l.b16 %v7717
    %v7794 = vunpack.c.l.b16 %v7718
    %v7795 = vunpack.c.l.b16 %v7719
    %v7796 = vunpack.c.l.b16 %v7720
    %v7797 = vunpack.c.l.b16 %v7721
    %v7798 = vunpack.c.l.b16 %v7722
    %v7799 = vunpack.c.l.b16 %v7723
    %v7800 = vunpack.c.l.b16 %v7724
    %v7801 = vunpack.c.l.b16 %v7725
    %v7802 = vunpack.c.l.b16 %v7726
    %v7803 = vunpack.c.l.b16 %v7727
    %v7804 = vunpack.c.l.b16 %v7728
    %v7805 = vunpack.c.l.b16 %v7729
    %v7806 = vunpack.c.l.b16 %v7730
    %v7807 = vpack.c.b16 %v7792, %v7791
    %v7808 = vpack.c.b16 %v7794, %v7793
    %v7809 = vpack.c.b16 %v7796, %v7795
    %v7810 = vpack.c.b16 %v7798, %v7797
    %v7811 = vpack.c.b16 %v7800, %v7799
    %v7812 = vpack.c.b16 %v7802, %v7801
    %v7813 = vpack.c.b16 %v7804, %v7803
    %v7814 = vpack.c.b16 %v7806, %v7805
    %7823 = vmatprep.subr.bf16.mxu0 0
    %7824 = vmatpush1.bf16.msra.mxu0 %v7807
    %7825 = vmatprep.subr.bf16.mxu0 0
    %7826 = vmatpush1.bf16.msra.mxu0 %v7808
    %7827 = vmatprep.subr.bf16.mxu0 0
    %7828 = vmatpush1.bf16.msra.mxu0 %v7809
    %7829 = vmatprep.subr.bf16.mxu0 0
    %7830 = vmatpush1.bf16.msra.mxu0 %v7810
    %7831 = vmatprep.subr.bf16.mxu0 0
    %7832 = vmatpush1.bf16.msra.mxu0 %v7811
    %7833 = vmatprep.subr.bf16.mxu0 0
    %7834 = vmatpush1.bf16.msra.mxu0 %v7812
    %7835 = vmatprep.subr.bf16.mxu0 0
    %7836 = vmatpush1.bf16.msra.mxu0 %v7813
    %7837 = vmatprep.subr.bf16.mxu0 0
    %7838 = vmatpush1.bf16.msra.mxu0 %v7814
    %7839 = vmatprep.subr.bf16.mxu0 0
    %7840 = vmatpush1.bf16.msra.mxu0 0
    %7841 = vmatprep.subr.bf16.mxu0 0
    %7842 = vmatpush1.bf16.msra.mxu0 0
    %7843 = vmatprep.subr.bf16.mxu0 0
    %7844 = vmatpush1.bf16.msra.mxu0 0
    %7845 = vmatprep.subr.bf16.mxu0 0
    %7846 = vmatpush1.bf16.msra.mxu0 0
    %7847 = vmatprep.subr.bf16.mxu0 0
    %7848 = vmatpush1.bf16.msra.mxu0 0
    %7849 = vmatprep.subr.bf16.mxu0 0
    %7850 = vmatpush1.bf16.msra.mxu0 0
    %7851 = vmatprep.subr.bf16.mxu0 0
    %7852 = vmatpush1.bf16.msra.mxu0 0
    %7853 = vmatprep.subr.bf16.mxu0 0
    %7854 = vmatpush1.bf16.msra.mxu0 0
    %7855 = vmatprep.mubr.bf16.mxu0 0
    %7856 = vmatmul.mubr.bf16.gmra.mrb[0].mxu0 %v7774
    %v7857 = vpop.f32.mrb[0].mxu0
    %v7858 = vadd.f32 0.0, %v7857
    %v7859 = vpop.f32.mrb[0].mxu0
    %v7860 = vpop.f32.mrb[0].mxu0
    %v7861 = vpop.f32.mrb[0].mxu0
    %7862 = vdwg.mxu0
    %v7863 = vadd.f32 %v7711, %v7858
    %s7864 = scalar_lea.vmem %s3, 24
    %v7865 = vld [vmem:[%s7864] sm:$0xf]
    %s7866 = scalar_lea.vmem %s7, 384
    %v7867 = vld [vmem:[%s7866] sm:$0xf]
    %v7868 = vld [vmem:[%s7866 + $0x4] sm:$0xf]
    %v7869 = vld [vmem:[%s7866 + $0x8] sm:$0xf]
    %v7870 = vld [vmem:[%s7866 + $0xc] sm:$0xf]
    %v7871 = vld [vmem:[%s7866 + $0x10] sm:$0xf]
    %v7872 = vld [vmem:[%s7866 + $0x14] sm:$0xf]
    %v7873 = vld [vmem:[%s7866 + $0x18] sm:$0xf]
    %v7874 = vld [vmem:[%s7866 + $0x1c] sm:$0xf]
    %v7875 = vld [vmem:[%s7866 + $0x20] sm:$0xf]
    %v7876 = vld [vmem:[%s7866 + $0x24] sm:$0xf]
    %v7877 = vld [vmem:[%s7866 + $0x28] sm:$0xf]
    %v7878 = vld [vmem:[%s7866 + $0x2c] sm:$0xf]
    %v7879 = vld [vmem:[%s7866 + $0x30] sm:$0xf]
    %v7880 = vld [vmem:[%s7866 + $0x34] sm:$0xf]
    %v7881 = vld [vmem:[%s7866 + $0x38] sm:$0xf]
    %v7882 = vld [vmem:[%s7866 + $0x3c] sm:$0xf]
    %v7884 = vsel %vm6972, %v7865, 0
    %7886 = vmatprep.subr.bf16.mxu0 0
    %7887 = vmatpush1.bf16.msra.mxu0 %v6953
    %7888 = vmatprep.subr.bf16.mxu0 0
    %7889 = vmatpush1.bf16.msra.mxu0 %v6954
    %7890 = vmatprep.subr.bf16.mxu0 0
    %7891 = vmatpush1.bf16.msra.mxu0 0
    %7892 = vmatprep.subr.bf16.mxu0 0
    %7893 = vmatpush1.bf16.msra.mxu0 0
    %7894 = vmatprep.subr.bf16.mxu0 0
    %7895 = vmatpush1.bf16.msra.mxu0 0
    %7896 = vmatprep.subr.bf16.mxu0 0
    %7897 = vmatpush1.bf16.msra.mxu0 0
    %7898 = vmatprep.subr.bf16.mxu0 0
    %7899 = vmatpush1.bf16.msra.mxu0 0
    %7900 = vmatprep.subr.bf16.mxu0 0
    %7901 = vmatpush1.bf16.msra.mxu0 0
    %7902 = vmatprep.subr.bf16.mxu0 0
    %7903 = vmatpush1.bf16.msra.mxu0 0
    %7904 = vmatprep.subr.bf16.mxu0 0
    %7905 = vmatpush1.bf16.msra.mxu0 0
    %7906 = vmatprep.subr.bf16.mxu0 0
    %7907 = vmatpush1.bf16.msra.mxu0 0
    %7908 = vmatprep.subr.bf16.mxu0 0
    %7909 = vmatpush1.bf16.msra.mxu0 0
    %7910 = vmatprep.subr.bf16.mxu0 0
    %7911 = vmatpush1.bf16.msra.mxu0 0
    %7912 = vmatprep.subr.bf16.mxu0 0
    %7913 = vmatpush1.bf16.msra.mxu0 0
    %7914 = vmatprep.subr.bf16.mxu0 0
    %7915 = vmatpush1.bf16.msra.mxu0 0
    %7916 = vmatprep.subr.bf16.mxu0 0
    %7917 = vmatpush1.bf16.msra.mxu0 0
    %7918 = vmatprep.mubr.bf16.mxu0 0
    %7919 = vmatmul.mubr.bf16.gmra.mrb[0].mxu0 %v7884
    %v7920 = vpop.f32.mrb[0].mxu0
    %v7921 = vadd.f32 0.0, %v7920
    %v7922 = vpop.f32.mrb[0].mxu0
    %v7923 = vpop.f32.mrb[0].mxu0
    %v7924 = vpop.f32.mrb[0].mxu0
    %7925 = vdwg.mxu0
    %v7926 = vpack.c.bf16 %v7921, %v7921
    %v7943 = vunpack.c.l.b16 %v7867
    %v7944 = vunpack.c.l.b16 %v7868
    %v7945 = vunpack.c.l.b16 %v7869
    %v7946 = vunpack.c.l.b16 %v7870
    %v7947 = vunpack.c.l.b16 %v7871
    %v7948 = vunpack.c.l.b16 %v7872
    %v7949 = vunpack.c.l.b16 %v7873
    %v7950 = vunpack.c.l.b16 %v7874
    %v7951 = vunpack.c.l.b16 %v7875
    %v7952 = vunpack.c.l.b16 %v7876
    %v7953 = vunpack.c.l.b16 %v7877
    %v7954 = vunpack.c.l.b16 %v7878
    %v7955 = vunpack.c.l.b16 %v7879
    %v7956 = vunpack.c.l.b16 %v7880
    %v7957 = vunpack.c.l.b16 %v7881
    %v7958 = vunpack.c.l.b16 %v7882
    %v7959 = vpack.c.b16 %v7944, %v7943
    %v7960 = vpack.c.b16 %v7946, %v7945
    %v7961 = vpack.c.b16 %v7948, %v7947
    %v7962 = vpack.c.b16 %v7950, %v7949
    %v7963 = vpack.c.b16 %v7952, %v7951
    %v7964 = vpack.c.b16 %v7954, %v7953
    %v7965 = vpack.c.b16 %v7956, %v7955
    %v7966 = vpack.c.b16 %v7958, %v7957
    %7975 = vmatprep.subr.bf16.mxu0 0
    %7976 = vmatpush1.bf16.msra.mxu0 %v7959
    %7977 = vmatprep.subr.bf16.mxu0 0
    %7978 = vmatpush1.bf16.msra.mxu0 %v7960
    %7979 = vmatprep.subr.bf16.mxu0 0
    %7980 = vmatpush1.bf16.msra.mxu0 %v7961
    %7981 = vmatprep.subr.bf16.mxu0 0
    %7982 = vmatpush1.bf16.msra.mxu0 %v7962
    %7983 = vmatprep.subr.bf16.mxu0 0
    %7984 = vmatpush1.bf16.msra.mxu0 %v7963
    %7985 = vmatprep.subr.bf16.mxu0 0
    %7986 = vmatpush1.bf16.msra.mxu0 %v7964
    %7987 = vmatprep.subr.bf16.mxu0 0
    %7988 = vmatpush1.bf16.msra.mxu0 %v7965
    %7989 = vmatprep.subr.bf16.mxu0 0
    %7990 = vmatpush1.bf16.msra.mxu0 %v7966
    %7991 = vmatprep.subr.bf16.mxu0 0
    %7992 = vmatpush1.bf16.msra.mxu0 0
    %7993 = vmatprep.subr.bf16.mxu0 0
    %7994 = vmatpush1.bf16.msra.mxu0 0
    %7995 = vmatprep.subr.bf16.mxu0 0
    %7996 = vmatpush1.bf16.msra.mxu0 0
    %7997 = vmatprep.subr.bf16.mxu0 0
    %7998 = vmatpush1.bf16.msra.mxu0 0
    %7999 = vmatprep.subr.bf16.mxu0 0
    %8000 = vmatpush1.bf16.msra.mxu0 0
    %8001 = vmatprep.subr.bf16.mxu0 0
    %8002 = vmatpush1.bf16.msra.mxu0 0
    %8003 = vmatprep.subr.bf16.mxu0 0
    %8004 = vmatpush1.bf16.msra.mxu0 0
    %8005 = vmatprep.subr.bf16.mxu0 0
    %8006 = vmatpush1.bf16.msra.mxu0 0
    %8007 = vmatprep.mubr.bf16.mxu0 0
    %8008 = vmatmul.mubr.bf16.gmra.mrb[0].mxu0 %v7926
    %v8009 = vpop.f32.mrb[0].mxu0
    %v8010 = vadd.f32 0.0, %v8009
    %v8011 = vpop.f32.mrb[0].mxu0
    %v8012 = vpop.f32.mrb[0].mxu0
    %v8013 = vpop.f32.mrb[0].mxu0
    %8014 = vdwg.mxu0
    %v8015 = vadd.f32 %v7863, %v8010
    %s8016 = scalar_lea.vmem %s3, 28
    %v8017 = vld [vmem:[%s8016] sm:$0xf]
    %s8018 = scalar_lea.vmem %s7, 448
    %v8019 = vld [vmem:[%s8018] sm:$0xf]
    %v8020 = vld [vmem:[%s8018 + $0x4] sm:$0xf]
    %v8021 = vld [vmem:[%s8018 + $0x8] sm:$0xf]
    %v8022 = vld [vmem:[%s8018 + $0xc] sm:$0xf]
    %v8023 = vld [vmem:[%s8018 + $0x10] sm:$0xf]
    %v8024 = vld [vmem:[%s8018 + $0x14] sm:$0xf]
    %v8025 = vld [vmem:[%s8018 + $0x18] sm:$0xf]
    %v8026 = vld [vmem:[%s8018 + $0x1c] sm:$0xf]
    %v8027 = vld [vmem:[%s8018 + $0x20] sm:$0xf]
    %v8028 = vld [vmem:[%s8018 + $0x24] sm:$0xf]
    %v8029 = vld [vmem:[%s8018 + $0x28] sm:$0xf]
    %v8030 = vld [vmem:[%s8018 + $0x2c] sm:$0xf]
    %v8031 = vld [vmem:[%s8018 + $0x30] sm:$0xf]
    %v8032 = vld [vmem:[%s8018 + $0x34] sm:$0xf]
    %v8033 = vld [vmem:[%s8018 + $0x38] sm:$0xf]
    %v8034 = vld [vmem:[%s8018 + $0x3c] sm:$0xf]
    %v8036 = vsel %vm6972, %v8017, 0
    %8038 = vmatprep.subr.bf16.mxu0 0
    %8039 = vmatpush1.bf16.msra.mxu0 %v6953
    %8040 = vmatprep.subr.bf16.mxu0 0
    %8041 = vmatpush1.bf16.msra.mxu0 %v6954
    %8042 = vmatprep.subr.bf16.mxu0 0
    %8043 = vmatpush1.bf16.msra.mxu0 0
    %8044 = vmatprep.subr.bf16.mxu0 0
    %8045 = vmatpush1.bf16.msra.mxu0 0
    %8046 = vmatprep.subr.bf16.mxu0 0
    %8047 = vmatpush1.bf16.msra.mxu0 0
    %8048 = vmatprep.subr.bf16.mxu0 0
    %8049 = vmatpush1.bf16.msra.mxu0 0
    %8050 = vmatprep.subr.bf16.mxu0 0
    %8051 = vmatpush1.bf16.msra.mxu0 0
    %8052 = vmatprep.subr.bf16.mxu0 0
    %8053 = vmatpush1.bf16.msra.mxu0 0
    %8054 = vmatprep.subr.bf16.mxu0 0
    %8055 = vmatpush1.bf16.msra.mxu0 0
    %8056 = vmatprep.subr.bf16.mxu0 0
    %8057 = vmatpush1.bf16.msra.mxu0 0
    %8058 = vmatprep.subr.bf16.mxu0 0
    %8059 = vmatpush1.bf16.msra.mxu0 0
    %8060 = vmatprep.subr.bf16.mxu0 0
    %8061 = vmatpush1.bf16.msra.mxu0 0
    %8062 = vmatprep.subr.bf16.mxu0 0
    %8063 = vmatpush1.bf16.msra.mxu0 0
    %8064 = vmatprep.subr.bf16.mxu0 0
    %8065 = vmatpush1.bf16.msra.mxu0 0
    %8066 = vmatprep.subr.bf16.mxu0 0
    %8067 = vmatpush1.bf16.msra.mxu0 0
    %8068 = vmatprep.subr.bf16.mxu0 0
    %8069 = vmatpush1.bf16.msra.mxu0 0
    %8070 = vmatprep.mubr.bf16.mxu0 0
    %8071 = vmatmul.mubr.bf16.gmra.mrb[0].mxu0 %v8036
    %v8072 = vpop.f32.mrb[0].mxu0
    %v8073 = vadd.f32 0.0, %v8072
    %v8074 = vpop.f32.mrb[0].mxu0
    %v8075 = vpop.f32.mrb[0].mxu0
    %v8076 = vpop.f32.mrb[0].mxu0
    %8077 = vdwg.mxu0
    %v8078 = vpack.c.bf16 %v8073, %v8073
    %v8095 = vunpack.c.l.b16 %v8019
    %v8096 = vunpack.c.l.b16 %v8020
    %v8097 = vunpack.c.l.b16 %v8021
    %v8098 = vunpack.c.l.b16 %v8022
    %v8099 = vunpack.c.l.b16 %v8023
    %v8100 = vunpack.c.l.b16 %v8024
    %v8101 = vunpack.c.l.b16 %v8025
    %v8102 = vunpack.c.l.b16 %v8026
    %v8103 = vunpack.c.l.b16 %v8027
    %v8104 = vunpack.c.l.b16 %v8028
    %v8105 = vunpack.c.l.b16 %v8029
    %v8106 = vunpack.c.l.b16 %v8030
    %v8107 = vunpack.c.l.b16 %v8031
    %v8108 = vunpack.c.l.b16 %v8032
    %v8109 = vunpack.c.l.b16 %v8033
    %v8110 = vunpack.c.l.b16 %v8034
    %v8111 = vpack.c.b16 %v8096, %v8095
    %v8112 = vpack.c.b16 %v8098, %v8097
    %v8113 = vpack.c.b16 %v8100, %v8099
    %v8114 = vpack.c.b16 %v8102, %v8101
    %v8115 = vpack.c.b16 %v8104, %v8103
    %v8116 = vpack.c.b16 %v8106, %v8105
    %v8117 = vpack.c.b16 %v8108, %v8107
    %v8118 = vpack.c.b16 %v8110, %v8109
    %8127 = vmatprep.subr.bf16.mxu0 0
    %8128 = vmatpush1.bf16.msra.mxu0 %v8111
    %8129 = vmatprep.subr.bf16.mxu0 0
    %8130 = vmatpush1.bf16.msra.mxu0 %v8112
    %8131 = vmatprep.subr.bf16.mxu0 0
    %8132 = vmatpush1.bf16.msra.mxu0 %v8113
    %8133 = vmatprep.subr.bf16.mxu0 0
    %8134 = vmatpush1.bf16.msra.mxu0 %v8114
    %8135 = vmatprep.subr.bf16.mxu0 0
    %8136 = vmatpush1.bf16.msra.mxu0 %v8115
    %8137 = vmatprep.subr.bf16.mxu0 0
    %8138 = vmatpush1.bf16.msra.mxu0 %v8116
    %8139 = vmatprep.subr.bf16.mxu0 0
    %8140 = vmatpush1.bf16.msra.mxu0 %v8117
    %8141 = vmatprep.subr.bf16.mxu0 0
    %8142 = vmatpush1.bf16.msra.mxu0 %v8118
    %8143 = vmatprep.subr.bf16.mxu0 0
    %8144 = vmatpush1.bf16.msra.mxu0 0
    %8145 = vmatprep.subr.bf16.mxu0 0
    %8146 = vmatpush1.bf16.msra.mxu0 0
    %8147 = vmatprep.subr.bf16.mxu0 0
    %8148 = vmatpush1.bf16.msra.mxu0 0
    %8149 = vmatprep.subr.bf16.mxu0 0
    %8150 = vmatpush1.bf16.msra.mxu0 0
    %8151 = vmatprep.subr.bf16.mxu0 0
    %8152 = vmatpush1.bf16.msra.mxu0 0
    %8153 = vmatprep.subr.bf16.mxu0 0
    %8154 = vmatpush1.bf16.msra.mxu0 0
    %8155 = vmatprep.subr.bf16.mxu0 0
    %8156 = vmatpush1.bf16.msra.mxu0 0
    %8157 = vmatprep.subr.bf16.mxu0 0
    %8158 = vmatpush1.bf16.msra.mxu0 0
    %8159 = vmatprep.mubr.bf16.mxu0 0
    %8160 = vmatmul.mubr.bf16.gmra.mrb[0].mxu0 %v8078
    %v8161 = vpop.f32.mrb[0].mxu0
    %v8162 = vadd.f32 0.0, %v8161
    %v8163 = vpop.f32.mrb[0].mxu0
    %v8164 = vpop.f32.mrb[0].mxu0
    %v8165 = vpop.f32.mrb[0].mxu0
    %8166 = vdwg.mxu0
    %v8167 = vadd.f32 %v8015, %v8162
    %s8168 = scalar_lea.vmem %s3, 32
    %v8169 = vld [vmem:[%s8168] sm:$0xf]
    %s8170 = scalar_lea.vmem %s7, 512
    %v8171 = vld [vmem:[%s8170] sm:$0xf]
    %v8172 = vld [vmem:[%s8170 + $0x4] sm:$0xf]
    %v8173 = vld [vmem:[%s8170 + $0x8] sm:$0xf]
    %v8174 = vld [vmem:[%s8170 + $0xc] sm:$0xf]
    %v8175 = vld [vmem:[%s8170 + $0x10] sm:$0xf]
    %v8176 = vld [vmem:[%s8170 + $0x14] sm:$0xf]
    %v8177 = vld [vmem:[%s8170 + $0x18] sm:$0xf]
    %v8178 = vld [vmem:[%s8170 + $0x1c] sm:$0xf]
    %v8179 = vld [vmem:[%s8170 + $0x20] sm:$0xf]
    %v8180 = vld [vmem:[%s8170 + $0x24] sm:$0xf]
    %v8181 = vld [vmem:[%s8170 + $0x28] sm:$0xf]
    %v8182 = vld [vmem:[%s8170 + $0x2c] sm:$0xf]
    %v8183 = vld [vmem:[%s8170 + $0x30] sm:$0xf]
    %v8184 = vld [vmem:[%s8170 + $0x34] sm:$0xf]
    %v8185 = vld [vmem:[%s8170 + $0x38] sm:$0xf]
    %v8186 = vld [vmem:[%s8170 + $0x3c] sm:$0xf]
    %v8188 = vsel %vm6972, %v8169, 0
    %8190 = vmatprep.subr.bf16.mxu0 0
    %8191 = vmatpush1.bf16.msra.mxu0 %v6953
    %8192 = vmatprep.subr.bf16.mxu0 0
    %8193 = vmatpush1.bf16.msra.mxu0 %v6954
    %8194 = vmatprep.subr.bf16.mxu0 0
    %8195 = vmatpush1.bf16.msra.mxu0 0
    %8196 = vmatprep.subr.bf16.mxu0 0
    %8197 = vmatpush1.bf16.msra.mxu0 0
    %8198 = vmatprep.subr.bf16.mxu0 0
    %8199 = vmatpush1.bf16.msra.mxu0 0
    %8200 = vmatprep.subr.bf16.mxu0 0
    %8201 = vmatpush1.bf16.msra.mxu0 0
    %8202 = vmatprep.subr.bf16.mxu0 0
    %8203 = vmatpush1.bf16.msra.mxu0 0
    %8204 = vmatprep.subr.bf16.mxu0 0
    %8205 = vmatpush1.bf16.msra.mxu0 0
    %8206 = vmatprep.subr.bf16.mxu0 0
    %8207 = vmatpush1.bf16.msra.mxu0 0
    %8208 = vmatprep.subr.bf16.mxu0 0
    %8209 = vmatpush1.bf16.msra.mxu0 0
    %8210 = vmatprep.subr.bf16.mxu0 0
    %8211 = vmatpush1.bf16.msra.mxu0 0
    %8212 = vmatprep.subr.bf16.mxu0 0
    %8213 = vmatpush1.bf16.msra.mxu0 0
    %8214 = vmatprep.subr.bf16.mxu0 0
    %8215 = vmatpush1.bf16.msra.mxu0 0
    %8216 = vmatprep.subr.bf16.mxu0 0
    %8217 = vmatpush1.bf16.msra.mxu0 0
    %8218 = vmatprep.subr.bf16.mxu0 0
    %8219 = vmatpush1.bf16.msra.mxu0 0
    %8220 = vmatprep.subr.bf16.mxu0 0
    %8221 = vmatpush1.bf16.msra.mxu0 0
    %8222 = vmatprep.mubr.bf16.mxu0 0
    %8223 = vmatmul.mubr.bf16.gmra.mrb[0].mxu0 %v8188
    %v8224 = vpop.f32.mrb[0].mxu0
    %v8225 = vadd.f32 0.0, %v8224
    %v8226 = vpop.f32.mrb[0].mxu0
    %v8227 = vpop.f32.mrb[0].mxu0
    %v8228 = vpop.f32.mrb[0].mxu0
    %8229 = vdwg.mxu0
    %v8230 = vpack.c.bf16 %v8225, %v8225
    %v8247 = vunpack.c.l.b16 %v8171
    %v8248 = vunpack.c.l.b16 %v8172
    %v8249 = vunpack.c.l.b16 %v8173
    %v8250 = vunpack.c.l.b16 %v8174
    %v8251 = vunpack.c.l.b16 %v8175
    %v8252 = vunpack.c.l.b16 %v8176
    %v8253 = vunpack.c.l.b16 %v8177
    %v8254 = vunpack.c.l.b16 %v8178
    %v8255 = vunpack.c.l.b16 %v8179
    %v8256 = vunpack.c.l.b16 %v8180
    %v8257 = vunpack.c.l.b16 %v8181
    %v8258 = vunpack.c.l.b16 %v8182
    %v8259 = vunpack.c.l.b16 %v8183
    %v8260 = vunpack.c.l.b16 %v8184
    %v8261 = vunpack.c.l.b16 %v8185
    %v8262 = vunpack.c.l.b16 %v8186
    %v8263 = vpack.c.b16 %v8248, %v8247
    %v8264 = vpack.c.b16 %v8250, %v8249
    %v8265 = vpack.c.b16 %v8252, %v8251
    %v8266 = vpack.c.b16 %v8254, %v8253
    %v8267 = vpack.c.b16 %v8256, %v8255
    %v8268 = vpack.c.b16 %v8258, %v8257
    %v8269 = vpack.c.b16 %v8260, %v8259
    %v8270 = vpack.c.b16 %v8262, %v8261
    %8279 = vmatprep.subr.bf16.mxu0 0
    %8280 = vmatpush1.bf16.msra.mxu0 %v8263
    %8281 = vmatprep.subr.bf16.mxu0 0
    %8282 = vmatpush1.bf16.msra.mxu0 %v8264
    %8283 = vmatprep.subr.bf16.mxu0 0
    %8284 = vmatpush1.bf16.msra.mxu0 %v8265
    %8285 = vmatprep.subr.bf16.mxu0 0
    %8286 = vmatpush1.bf16.msra.mxu0 %v8266
    %8287 = vmatprep.subr.bf16.mxu0 0
    %8288 = vmatpush1.bf16.msra.mxu0 %v8267
    %8289 = vmatprep.subr.bf16.mxu0 0
    %8290 = vmatpush1.bf16.msra.mxu0 %v8268
    %8291 = vmatprep.subr.bf16.mxu0 0
    %8292 = vmatpush1.bf16.msra.mxu0 %v8269
    %8293 = vmatprep.subr.bf16.mxu0 0
    %8294 = vmatpush1.bf16.msra.mxu0 %v8270
    %8295 = vmatprep.subr.bf16.mxu0 0
    %8296 = vmatpush1.bf16.msra.mxu0 0
    %8297 = vmatprep.subr.bf16.mxu0 0
    %8298 = vmatpush1.bf16.msra.mxu0 0
    %8299 = vmatprep.subr.bf16.mxu0 0
    %8300 = vmatpush1.bf16.msra.mxu0 0
    %8301 = vmatprep.subr.bf16.mxu0 0
    %8302 = vmatpush1.bf16.msra.mxu0 0
    %8303 = vmatprep.subr.bf16.mxu0 0
    %8304 = vmatpush1.bf16.msra.mxu0 0
    %8305 = vmatprep.subr.bf16.mxu0 0
    %8306 = vmatpush1.bf16.msra.mxu0 0
    %8307 = vmatprep.subr.bf16.mxu0 0
    %8308 = vmatpush1.bf16.msra.mxu0 0
    %8309 = vmatprep.subr.bf16.mxu0 0
    %8310 = vmatpush1.bf16.msra.mxu0 0
    %8311 = vmatprep.mubr.bf16.mxu0 0
    %8312 = vmatmul.mubr.bf16.gmra.mrb[0].mxu0 %v8230
    %v8313 = vpop.f32.mrb[0].mxu0
    %v8314 = vadd.f32 0.0, %v8313
    %v8315 = vpop.f32.mrb[0].mxu0
    %v8316 = vpop.f32.mrb[0].mxu0
    %v8317 = vpop.f32.mrb[0].mxu0
    %8318 = vdwg.mxu0
    %v8319 = vadd.f32 %v8167, %v8314
    %s8320 = scalar_lea.vmem %s9, 2
    %v8321 = vld [vmem:[%s8320] sm:$0x1]
    %v8323 = vlaneseq
    %v8324 = vshrl.u32 %v8323, 7
    %v8325 = vsub.s32 0, %v8324
    %v8326 = vrot.slane %v8321, %v8325
    %v8328 = vadd.f32 %v8319, %v8326
    %v8329 = vmax.f32 %v8328, 0.0
    %v8330 = vrot.slane %v8329, 4
    %v8331 = vadd.f32 %v8329, %v8330
    %v8332 = vrot.slane %v8331, 2
    %v8333 = vadd.f32 %v8331, %v8332
    %v8334 = vrot.slane %v8333, 1
    %v8335 = vadd.f32 %v8333, %v8334
    %v8336 = vmul.f32 %v8335, 0.125
    %v8337 = vmul.f32 %v8329, %v8329
    %v8338 = vrot.slane %v8337, 4
    %v8339 = vadd.f32 %v8337, %v8338
    %v8340 = vrot.slane %v8339, 2
    %v8341 = vadd.f32 %v8339, %v8340
    %v8342 = vrot.slane %v8341, 1
    %v8343 = vadd.f32 %v8341, %v8342
    %v8344 = vmul.f32 %v8343, 0.125
    %v8345 = vmul.f32 %v8336, %v8336
    %v8346 = vsub.f32 %v8344, %v8345
    %v8347 = vsub.f32 %v8329, %v8336
    %v8348 = vadd.f32 %v8346, 1e-05
    %v8349 = vrsqrt.pop %v8348
    %v8350 = vmul.f32 %v8347, %v8349
    %v8351 = vpack.c.bf16 %v8350, %v8350
    %v8352 = vld [vmem:[%s4] sm:$0x1]
    %v8353 = vld [vmem:[%s8] sm:$0xf]
    %v8354 = vld [vmem:[%s8 + $0x4] sm:$0xf]
    %v8355 = vld [vmem:[%s8 + $0x8] sm:$0xf]
    %v8356 = vld [vmem:[%s8 + $0xc] sm:$0xf]
    %v8357 = vld [vmem:[%s8 + $0x10] sm:$0xf]
    %v8358 = vld [vmem:[%s8 + $0x14] sm:$0xf]
    %v8359 = vld [vmem:[%s8 + $0x18] sm:$0xf]
    %v8360 = vld [vmem:[%s8 + $0x1c] sm:$0xf]
    %v8361 = vld [vmem:[%s8 + $0x20] sm:$0xf]
    %v8362 = vld [vmem:[%s8 + $0x24] sm:$0xf]
    %v8363 = vld [vmem:[%s8 + $0x28] sm:$0xf]
    %v8364 = vld [vmem:[%s8 + $0x2c] sm:$0xf]
    %v8365 = vld [vmem:[%s8 + $0x30] sm:$0xf]
    %v8366 = vld [vmem:[%s8 + $0x34] sm:$0xf]
    %v8367 = vld [vmem:[%s8 + $0x38] sm:$0xf]
    %v8368 = vld [vmem:[%s8 + $0x3c] sm:$0xf]
    %v8370 = vsel %vm1085, %v8352, 0
    %v8373 = vsel %vm1110, %v8351, 0
    %8375 = vmatprep.subr.bf16.mxu0 0
    %8376 = vmatpush1.bf16.msra.mxu0 %v8373
    %8377 = vmatprep.subr.bf16.mxu0 0
    %8378 = vmatpush1.bf16.msra.mxu0 0
    %8379 = vmatprep.subr.bf16.mxu0 0
    %8380 = vmatpush1.bf16.msra.mxu0 0
    %8381 = vmatprep.subr.bf16.mxu0 0
    %8382 = vmatpush1.bf16.msra.mxu0 0
    %8383 = vmatprep.subr.bf16.mxu0 0
    %8384 = vmatpush1.bf16.msra.mxu0 0
    %8385 = vmatprep.subr.bf16.mxu0 0
    %8386 = vmatpush1.bf16.msra.mxu0 0
    %8387 = vmatprep.subr.bf16.mxu0 0
    %8388 = vmatpush1.bf16.msra.mxu0 0
    %8389 = vmatprep.subr.bf16.mxu0 0
    %8390 = vmatpush1.bf16.msra.mxu0 0
    %8391 = vmatprep.subr.bf16.mxu0 0
    %8392 = vmatpush1.bf16.msra.mxu0 0
    %8393 = vmatprep.subr.bf16.mxu0 0
    %8394 = vmatpush1.bf16.msra.mxu0 0
    %8395 = vmatprep.subr.bf16.mxu0 0
    %8396 = vmatpush1.bf16.msra.mxu0 0
    %8397 = vmatprep.subr.bf16.mxu0 0
    %8398 = vmatpush1.bf16.msra.mxu0 0
    %8399 = vmatprep.subr.bf16.mxu0 0
    %8400 = vmatpush1.bf16.msra.mxu0 0
    %8401 = vmatprep.subr.bf16.mxu0 0
    %8402 = vmatpush1.bf16.msra.mxu0 0
    %8403 = vmatprep.subr.bf16.mxu0 0
    %8404 = vmatpush1.bf16.msra.mxu0 0
    %8405 = vmatprep.subr.bf16.mxu0 0
    %8406 = vmatpush1.bf16.msra.mxu0 0
    %8407 = vmatprep.mubr.bf16.mxu0 0
    %8408 = vmatmul.mubr.bf16.gmra.mrb[0].mxu0 %v8370
    %v8409 = vpop.f32.mrb[0].mxu0
    %v8410 = vadd.f32 0.0, %v8409
    %v8411 = vpop.f32.mrb[0].mxu0
    %v8412 = vpop.f32.mrb[0].mxu0
    %v8413 = vpop.f32.mrb[0].mxu0
    %8414 = vdwg.mxu0
    %v8415 = vpack.c.bf16 %v8410, %v8410
    %s8416 = scalar_lea.vmem %s4, 1
    %v8417 = vld [vmem:[%s8416] sm:$0x1]
    %s8418 = scalar_lea.vmem %s8, 64
    %v8419 = vld [vmem:[%s8418] sm:$0xf]
    %v8420 = vld [vmem:[%s8418 + $0x4] sm:$0xf]
    %v8421 = vld [vmem:[%s8418 + $0x8] sm:$0xf]
    %v8422 = vld [vmem:[%s8418 + $0xc] sm:$0xf]
    %v8423 = vld [vmem:[%s8418 + $0x10] sm:$0xf]
    %v8424 = vld [vmem:[%s8418 + $0x14] sm:$0xf]
    %v8425 = vld [vmem:[%s8418 + $0x18] sm:$0xf]
    %v8426 = vld [vmem:[%s8418 + $0x1c] sm:$0xf]
    %v8427 = vld [vmem:[%s8418 + $0x20] sm:$0xf]
    %v8428 = vld [vmem:[%s8418 + $0x24] sm:$0xf]
    %v8429 = vld [vmem:[%s8418 + $0x28] sm:$0xf]
    %v8430 = vld [vmem:[%s8418 + $0x2c] sm:$0xf]
    %v8431 = vld [vmem:[%s8418 + $0x30] sm:$0xf]
    %v8432 = vld [vmem:[%s8418 + $0x34] sm:$0xf]
    %v8433 = vld [vmem:[%s8418 + $0x38] sm:$0xf]
    %v8434 = vld [vmem:[%s8418 + $0x3c] sm:$0xf]
    %v8436 = vsel %vm1085, %v8417, 0
    %8438 = vmatprep.subr.bf16.mxu0 0
    %8439 = vmatpush1.bf16.msra.mxu0 %v8373
    %8440 = vmatprep.subr.bf16.mxu0 0
    %8441 = vmatpush1.bf16.msra.mxu0 0
    %8442 = vmatprep.subr.bf16.mxu0 0
    %8443 = vmatpush1.bf16.msra.mxu0 0
    %8444 = vmatprep.subr.bf16.mxu0 0
    %8445 = vmatpush1.bf16.msra.mxu0 0
    %8446 = vmatprep.subr.bf16.mxu0 0
    %8447 = vmatpush1.bf16.msra.mxu0 0
    %8448 = vmatprep.subr.bf16.mxu0 0
    %8449 = vmatpush1.bf16.msra.mxu0 0
    %8450 = vmatprep.subr.bf16.mxu0 0
    %8451 = vmatpush1.bf16.msra.mxu0 0
    %8452 = vmatprep.subr.bf16.mxu0 0
    %8453 = vmatpush1.bf16.msra.mxu0 0
    %8454 = vmatprep.subr.bf16.mxu0 0
    %8455 = vmatpush1.bf16.msra.mxu0 0
    %8456 = vmatprep.subr.bf16.mxu0 0
    %8457 = vmatpush1.bf16.msra.mxu0 0
    %8458 = vmatprep.subr.bf16.mxu0 0
    %8459 = vmatpush1.bf16.msra.mxu0 0
    %8460 = vmatprep.subr.bf16.mxu0 0
    %8461 = vmatpush1.bf16.msra.mxu0 0
    %8462 = vmatprep.subr.bf16.mxu0 0
    %8463 = vmatpush1.bf16.msra.mxu0 0
    %8464 = vmatprep.subr.bf16.mxu0 0
    %8465 = vmatpush1.bf16.msra.mxu0 0
    %8466 = vmatprep.subr.bf16.mxu0 0
    %8467 = vmatpush1.bf16.msra.mxu0 0
    %8468 = vmatprep.subr.bf16.mxu0 0
    %8469 = vmatpush1.bf16.msra.mxu0 0
    %8470 = vmatprep.mubr.bf16.mxu0 0
    %8471 = vmatmul.mubr.bf16.gmra.mrb[0].mxu0 %v8436
    %v8472 = vpop.f32.mrb[0].mxu0
    %v8473 = vadd.f32 0.0, %v8472
    %v8474 = vpop.f32.mrb[0].mxu0
    %v8475 = vpop.f32.mrb[0].mxu0
    %v8476 = vpop.f32.mrb[0].mxu0
    %8477 = vdwg.mxu0
    %v8478 = vpack.c.bf16 %v8473, %v8473
    %v8495 = vunpack.c.l.b16 %v8419
    %v8496 = vunpack.c.l.b16 %v8420
    %v8497 = vunpack.c.l.b16 %v8421
    %v8498 = vunpack.c.l.b16 %v8422
    %v8499 = vunpack.c.l.b16 %v8423
    %v8500 = vunpack.c.l.b16 %v8424
    %v8501 = vunpack.c.l.b16 %v8425
    %v8502 = vunpack.c.l.b16 %v8426
    %v8503 = vunpack.c.l.b16 %v8427
    %v8504 = vunpack.c.l.b16 %v8428
    %v8505 = vunpack.c.l.b16 %v8429
    %v8506 = vunpack.c.l.b16 %v8430
    %v8507 = vunpack.c.l.b16 %v8431
    %v8508 = vunpack.c.l.b16 %v8432
    %v8509 = vunpack.c.l.b16 %v8433
    %v8510 = vunpack.c.l.b16 %v8434
    %v8511 = vpack.c.b16 %v8496, %v8495
    %v8512 = vpack.c.b16 %v8498, %v8497
    %v8513 = vpack.c.b16 %v8500, %v8499
    %v8514 = vpack.c.b16 %v8502, %v8501
    %v8515 = vpack.c.b16 %v8504, %v8503
    %v8516 = vpack.c.b16 %v8506, %v8505
    %v8517 = vpack.c.b16 %v8508, %v8507
    %v8518 = vpack.c.b16 %v8510, %v8509
    %8527 = vmatprep.subr.bf16.mxu0 0
    %8528 = vmatpush1.bf16.msra.mxu0 %v8511
    %8529 = vmatprep.subr.bf16.mxu0 0
    %8530 = vmatpush1.bf16.msra.mxu0 %v8512
    %8531 = vmatprep.subr.bf16.mxu0 0
    %8532 = vmatpush1.bf16.msra.mxu0 %v8513
    %8533 = vmatprep.subr.bf16.mxu0 0
    %8534 = vmatpush1.bf16.msra.mxu0 %v8514
    %8535 = vmatprep.subr.bf16.mxu0 0
    %8536 = vmatpush1.bf16.msra.mxu0 %v8515
    %8537 = vmatprep.subr.bf16.mxu0 0
    %8538 = vmatpush1.bf16.msra.mxu0 %v8516
    %8539 = vmatprep.subr.bf16.mxu0 0
    %8540 = vmatpush1.bf16.msra.mxu0 %v8517
    %8541 = vmatprep.subr.bf16.mxu0 0
    %8542 = vmatpush1.bf16.msra.mxu0 %v8518
    %8543 = vmatprep.subr.bf16.mxu0 0
    %8544 = vmatpush1.bf16.msra.mxu0 0
    %8545 = vmatprep.subr.bf16.mxu0 0
    %8546 = vmatpush1.bf16.msra.mxu0 0
    %8547 = vmatprep.subr.bf16.mxu0 0
    %8548 = vmatpush1.bf16.msra.mxu0 0
    %8549 = vmatprep.subr.bf16.mxu0 0
    %8550 = vmatpush1.bf16.msra.mxu0 0
    %8551 = vmatprep.subr.bf16.mxu0 0
    %8552 = vmatpush1.bf16.msra.mxu0 0
    %8553 = vmatprep.subr.bf16.mxu0 0
    %8554 = vmatpush1.bf16.msra.mxu0 0
    %8555 = vmatprep.subr.bf16.mxu0 0
    %8556 = vmatpush1.bf16.msra.mxu0 0
    %8557 = vmatprep.subr.bf16.mxu0 0
    %8558 = vmatpush1.bf16.msra.mxu0 0
    %8559 = vmatprep.mubr.bf16.mxu0 0
    %8560 = vmatmul.mubr.bf16.gmra.mrb[0].mxu0 %v8478
    %v8561 = vpop.f32.mrb[0].mxu0
    %v8562 = vadd.f32 0.0, %v8561
    %v8563 = vpop.f32.mrb[0].mxu0
    %v8564 = vpop.f32.mrb[0].mxu0
    %v8565 = vpop.f32.mrb[0].mxu0
    %8566 = vdwg.mxu0
    %v8583 = vunpack.c.l.b16 %v8353
    %v8584 = vunpack.c.l.b16 %v8354
    %v8585 = vunpack.c.l.b16 %v8355
    %v8586 = vunpack.c.l.b16 %v8356
    %v8587 = vunpack.c.l.b16 %v8357
    %v8588 = vunpack.c.l.b16 %v8358
    %v8589 = vunpack.c.l.b16 %v8359
    %v8590 = vunpack.c.l.b16 %v8360
    %v8591 = vunpack.c.l.b16 %v8361
    %v8592 = vunpack.c.l.b16 %v8362
    %v8593 = vunpack.c.l.b16 %v8363
    %v8594 = vunpack.c.l.b16 %v8364
    %v8595 = vunpack.c.l.b16 %v8365
    %v8596 = vunpack.c.l.b16 %v8366
    %v8597 = vunpack.c.l.b16 %v8367
    %v8598 = vunpack.c.l.b16 %v8368
    %v8599 = vpack.c.b16 %v8584, %v8583
    %v8600 = vpack.c.b16 %v8586, %v8585
    %v8601 = vpack.c.b16 %v8588, %v8587
    %v8602 = vpack.c.b16 %v8590, %v8589
    %v8603 = vpack.c.b16 %v8592, %v8591
    %v8604 = vpack.c.b16 %v8594, %v8593
    %v8605 = vpack.c.b16 %v8596, %v8595
    %v8606 = vpack.c.b16 %v8598, %v8597
    %8615 = vmatprep.subr.bf16.mxu0 0
    %8616 = vmatpush1.bf16.msra.mxu0 %v8599
    %8617 = vmatprep.subr.bf16.mxu0 0
    %8618 = vmatpush1.bf16.msra.mxu0 %v8600
    %8619 = vmatprep.subr.bf16.mxu0 0
    %8620 = vmatpush1.bf16.msra.mxu0 %v8601
    %8621 = vmatprep.subr.bf16.mxu0 0
    %8622 = vmatpush1.bf16.msra.mxu0 %v8602
    %8623 = vmatprep.subr.bf16.mxu0 0
    %8624 = vmatpush1.bf16.msra.mxu0 %v8603
    %8625 = vmatprep.subr.bf16.mxu0 0
    %8626 = vmatpush1.bf16.msra.mxu0 %v8604
    %8627 = vmatprep.subr.bf16.mxu0 0
    %8628 = vmatpush1.bf16.msra.mxu0 %v8605
    %8629 = vmatprep.subr.bf16.mxu0 0
    %8630 = vmatpush1.bf16.msra.mxu0 %v8606
    %8631 = vmatprep.subr.bf16.mxu0 0
    %8632 = vmatpush1.bf16.msra.mxu0 0
    %8633 = vmatprep.subr.bf16.mxu0 0
    %8634 = vmatpush1.bf16.msra.mxu0 0
    %8635 = vmatprep.subr.bf16.mxu0 0
    %8636 = vmatpush1.bf16.msra.mxu0 0
    %8637 = vmatprep.subr.bf16.mxu0 0
    %8638 = vmatpush1.bf16.msra.mxu0 0
    %8639 = vmatprep.subr.bf16.mxu0 0
    %8640 = vmatpush1.bf16.msra.mxu0 0
    %8641 = vmatprep.subr.bf16.mxu0 0
    %8642 = vmatpush1.bf16.msra.mxu0 0
    %8643 = vmatprep.subr.bf16.mxu0 0
    %8644 = vmatpush1.bf16.msra.mxu0 0
    %8645 = vmatprep.subr.bf16.mxu0 0
    %8646 = vmatpush1.bf16.msra.mxu0 0
    %8647 = vmatprep.mubr.bf16.mxu0 0
    %8648 = vmatmul.mubr.bf16.gmra.mrb[0].mxu0 %v8415
    %v8649 = vpop.f32.mrb[0].mxu0
    %v8650 = vadd.f32 %v8562, %v8649
    %v8651 = vpop.f32.mrb[0].mxu0
    %v8652 = vpop.f32.mrb[0].mxu0
    %v8653 = vpop.f32.mrb[0].mxu0
    %8654 = vdwg.mxu0
    %s8655 = scalar_lea.vmem %s4, 2
    %v8656 = vld [vmem:[%s8655] sm:$0x1]
    %s8657 = scalar_lea.vmem %s8, 128
    %v8658 = vld [vmem:[%s8657] sm:$0xf]
    %v8659 = vld [vmem:[%s8657 + $0x4] sm:$0xf]
    %v8660 = vld [vmem:[%s8657 + $0x8] sm:$0xf]
    %v8661 = vld [vmem:[%s8657 + $0xc] sm:$0xf]
    %v8662 = vld [vmem:[%s8657 + $0x10] sm:$0xf]
    %v8663 = vld [vmem:[%s8657 + $0x14] sm:$0xf]
    %v8664 = vld [vmem:[%s8657 + $0x18] sm:$0xf]
    %v8665 = vld [vmem:[%s8657 + $0x1c] sm:$0xf]
    %v8666 = vld [vmem:[%s8657 + $0x20] sm:$0xf]
    %v8667 = vld [vmem:[%s8657 + $0x24] sm:$0xf]
    %v8668 = vld [vmem:[%s8657 + $0x28] sm:$0xf]
    %v8669 = vld [vmem:[%s8657 + $0x2c] sm:$0xf]
    %v8670 = vld [vmem:[%s8657 + $0x30] sm:$0xf]
    %v8671 = vld [vmem:[%s8657 + $0x34] sm:$0xf]
    %v8672 = vld [vmem:[%s8657 + $0x38] sm:$0xf]
    %v8673 = vld [vmem:[%s8657 + $0x3c] sm:$0xf]
    %v8675 = vsel %vm1085, %v8656, 0
    %8677 = vmatprep.subr.bf16.mxu0 0
    %8678 = vmatpush1.bf16.msra.mxu0 %v8373
    %8679 = vmatprep.subr.bf16.mxu0 0
    %8680 = vmatpush1.bf16.msra.mxu0 0
    %8681 = vmatprep.subr.bf16.mxu0 0
    %8682 = vmatpush1.bf16.msra.mxu0 0
    %8683 = vmatprep.subr.bf16.mxu0 0
    %8684 = vmatpush1.bf16.msra.mxu0 0
    %8685 = vmatprep.subr.bf16.mxu0 0
    %8686 = vmatpush1.bf16.msra.mxu0 0
    %8687 = vmatprep.subr.bf16.mxu0 0
    %8688 = vmatpush1.bf16.msra.mxu0 0
    %8689 = vmatprep.subr.bf16.mxu0 0
    %8690 = vmatpush1.bf16.msra.mxu0 0
    %8691 = vmatprep.subr.bf16.mxu0 0
    %8692 = vmatpush1.bf16.msra.mxu0 0
    %8693 = vmatprep.subr.bf16.mxu0 0
    %8694 = vmatpush1.bf16.msra.mxu0 0
    %8695 = vmatprep.subr.bf16.mxu0 0
    %8696 = vmatpush1.bf16.msra.mxu0 0
    %8697 = vmatprep.subr.bf16.mxu0 0
    %8698 = vmatpush1.bf16.msra.mxu0 0
    %8699 = vmatprep.subr.bf16.mxu0 0
    %8700 = vmatpush1.bf16.msra.mxu0 0
    %8701 = vmatprep.subr.bf16.mxu0 0
    %8702 = vmatpush1.bf16.msra.mxu0 0
    %8703 = vmatprep.subr.bf16.mxu0 0
    %8704 = vmatpush1.bf16.msra.mxu0 0
    %8705 = vmatprep.subr.bf16.mxu0 0
    %8706 = vmatpush1.bf16.msra.mxu0 0
    %8707 = vmatprep.subr.bf16.mxu0 0
    %8708 = vmatpush1.bf16.msra.mxu0 0
    %8709 = vmatprep.mubr.bf16.mxu0 0
    %8710 = vmatmul.mubr.bf16.gmra.mrb[0].mxu0 %v8675
    %v8711 = vpop.f32.mrb[0].mxu0
    %v8712 = vadd.f32 0.0, %v8711
    %v8713 = vpop.f32.mrb[0].mxu0
    %v8714 = vpop.f32.mrb[0].mxu0
    %v8715 = vpop.f32.mrb[0].mxu0
    %8716 = vdwg.mxu0
    %v8717 = vpack.c.bf16 %v8712, %v8712
    %v8734 = vunpack.c.l.b16 %v8658
    %v8735 = vunpack.c.l.b16 %v8659
    %v8736 = vunpack.c.l.b16 %v8660
    %v8737 = vunpack.c.l.b16 %v8661
    %v8738 = vunpack.c.l.b16 %v8662
    %v8739 = vunpack.c.l.b16 %v8663
    %v8740 = vunpack.c.l.b16 %v8664
    %v8741 = vunpack.c.l.b16 %v8665
    %v8742 = vunpack.c.l.b16 %v8666
    %v8743 = vunpack.c.l.b16 %v8667
    %v8744 = vunpack.c.l.b16 %v8668
    %v8745 = vunpack.c.l.b16 %v8669
    %v8746 = vunpack.c.l.b16 %v8670
    %v8747 = vunpack.c.l.b16 %v8671
    %v8748 = vunpack.c.l.b16 %v8672
    %v8749 = vunpack.c.l.b16 %v8673
    %v8750 = vpack.c.b16 %v8735, %v8734
    %v8751 = vpack.c.b16 %v8737, %v8736
    %v8752 = vpack.c.b16 %v8739, %v8738
    %v8753 = vpack.c.b16 %v8741, %v8740
    %v8754 = vpack.c.b16 %v8743, %v8742
    %v8755 = vpack.c.b16 %v8745, %v8744
    %v8756 = vpack.c.b16 %v8747, %v8746
    %v8757 = vpack.c.b16 %v8749, %v8748
    %8766 = vmatprep.subr.bf16.mxu0 0
    %8767 = vmatpush1.bf16.msra.mxu0 %v8750
    %8768 = vmatprep.subr.bf16.mxu0 0
    %8769 = vmatpush1.bf16.msra.mxu0 %v8751
    %8770 = vmatprep.subr.bf16.mxu0 0
    %8771 = vmatpush1.bf16.msra.mxu0 %v8752
    %8772 = vmatprep.subr.bf16.mxu0 0
    %8773 = vmatpush1.bf16.msra.mxu0 %v8753
    %8774 = vmatprep.subr.bf16.mxu0 0
    %8775 = vmatpush1.bf16.msra.mxu0 %v8754
    %8776 = vmatprep.subr.bf16.mxu0 0
    %8777 = vmatpush1.bf16.msra.mxu0 %v8755
    %8778 = vmatprep.subr.bf16.mxu0 0
    %8779 = vmatpush1.bf16.msra.mxu0 %v8756
    %8780 = vmatprep.subr.bf16.mxu0 0
    %8781 = vmatpush1.bf16.msra.mxu0 %v8757
    %8782 = vmatprep.subr.bf16.mxu0 0
    %8783 = vmatpush1.bf16.msra.mxu0 0
    %8784 = vmatprep.subr.bf16.mxu0 0
    %8785 = vmatpush1.bf16.msra.mxu0 0
    %8786 = vmatprep.subr.bf16.mxu0 0
    %8787 = vmatpush1.bf16.msra.mxu0 0
    %8788 = vmatprep.subr.bf16.mxu0 0
    %8789 = vmatpush1.bf16.msra.mxu0 0
    %8790 = vmatprep.subr.bf16.mxu0 0
    %8791 = vmatpush1.bf16.msra.mxu0 0
    %8792 = vmatprep.subr.bf16.mxu0 0
    %8793 = vmatpush1.bf16.msra.mxu0 0
    %8794 = vmatprep.subr.bf16.mxu0 0
    %8795 = vmatpush1.bf16.msra.mxu0 0
    %8796 = vmatprep.subr.bf16.mxu0 0
    %8797 = vmatpush1.bf16.msra.mxu0 0
    %8798 = vmatprep.mubr.bf16.mxu0 0
    %8799 = vmatmul.mubr.bf16.gmra.mrb[0].mxu0 %v8717
    %v8800 = vpop.f32.mrb[0].mxu0
    %v8801 = vadd.f32 0.0, %v8800
    %v8802 = vpop.f32.mrb[0].mxu0
    %v8803 = vpop.f32.mrb[0].mxu0
    %v8804 = vpop.f32.mrb[0].mxu0
    %8805 = vdwg.mxu0
    %v8806 = vadd.f32 %v8650, %v8801
    %s8807 = scalar_lea.vmem %s4, 3
    %v8808 = vld [vmem:[%s8807] sm:$0x1]
    %s8809 = scalar_lea.vmem %s8, 192
    %v8810 = vld [vmem:[%s8809] sm:$0xf]
    %v8811 = vld [vmem:[%s8809 + $0x4] sm:$0xf]
    %v8812 = vld [vmem:[%s8809 + $0x8] sm:$0xf]
    %v8813 = vld [vmem:[%s8809 + $0xc] sm:$0xf]
    %v8814 = vld [vmem:[%s8809 + $0x10] sm:$0xf]
    %v8815 = vld [vmem:[%s8809 + $0x14] sm:$0xf]
    %v8816 = vld [vmem:[%s8809 + $0x18] sm:$0xf]
    %v8817 = vld [vmem:[%s8809 + $0x1c] sm:$0xf]
    %v8818 = vld [vmem:[%s8809 + $0x20] sm:$0xf]
    %v8819 = vld [vmem:[%s8809 + $0x24] sm:$0xf]
    %v8820 = vld [vmem:[%s8809 + $0x28] sm:$0xf]
    %v8821 = vld [vmem:[%s8809 + $0x2c] sm:$0xf]
    %v8822 = vld [vmem:[%s8809 + $0x30] sm:$0xf]
    %v8823 = vld [vmem:[%s8809 + $0x34] sm:$0xf]
    %v8824 = vld [vmem:[%s8809 + $0x38] sm:$0xf]
    %v8825 = vld [vmem:[%s8809 + $0x3c] sm:$0xf]
    %v8827 = vsel %vm1085, %v8808, 0
    %8829 = vmatprep.subr.bf16.mxu0 0
    %8830 = vmatpush1.bf16.msra.mxu0 %v8373
    %8831 = vmatprep.subr.bf16.mxu0 0
    %8832 = vmatpush1.bf16.msra.mxu0 0
    %8833 = vmatprep.subr.bf16.mxu0 0
    %8834 = vmatpush1.bf16.msra.mxu0 0
    %8835 = vmatprep.subr.bf16.mxu0 0
    %8836 = vmatpush1.bf16.msra.mxu0 0
    %8837 = vmatprep.subr.bf16.mxu0 0
    %8838 = vmatpush1.bf16.msra.mxu0 0
    %8839 = vmatprep.subr.bf16.mxu0 0
    %8840 = vmatpush1.bf16.msra.mxu0 0
    %8841 = vmatprep.subr.bf16.mxu0 0
    %8842 = vmatpush1.bf16.msra.mxu0 0
    %8843 = vmatprep.subr.bf16.mxu0 0
    %8844 = vmatpush1.bf16.msra.mxu0 0
    %8845 = vmatprep.subr.bf16.mxu0 0
    %8846 = vmatpush1.bf16.msra.mxu0 0
    %8847 = vmatprep.subr.bf16.mxu0 0
    %8848 = vmatpush1.bf16.msra.mxu0 0
    %8849 = vmatprep.subr.bf16.mxu0 0
    %8850 = vmatpush1.bf16.msra.mxu0 0
    %8851 = vmatprep.subr.bf16.mxu0 0
    %8852 = vmatpush1.bf16.msra.mxu0 0
    %8853 = vmatprep.subr.bf16.mxu0 0
    %8854 = vmatpush1.bf16.msra.mxu0 0
    %8855 = vmatprep.subr.bf16.mxu0 0
    %8856 = vmatpush1.bf16.msra.mxu0 0
    %8857 = vmatprep.subr.bf16.mxu0 0
    %8858 = vmatpush1.bf16.msra.mxu0 0
    %8859 = vmatprep.subr.bf16.mxu0 0
    %8860 = vmatpush1.bf16.msra.mxu0 0
    %8861 = vmatprep.mubr.bf16.mxu0 0
    %8862 = vmatmul.mubr.bf16.gmra.mrb[0].mxu0 %v8827
    %v8863 = vpop.f32.mrb[0].mxu0
    %v8864 = vadd.f32 0.0, %v8863
    %v8865 = vpop.f32.mrb[0].mxu0
    %v8866 = vpop.f32.mrb[0].mxu0
    %v8867 = vpop.f32.mrb[0].mxu0
    %8868 = vdwg.mxu0
    %v8869 = vpack.c.bf16 %v8864, %v8864
    %v8886 = vunpack.c.l.b16 %v8810
    %v8887 = vunpack.c.l.b16 %v8811
    %v8888 = vunpack.c.l.b16 %v8812
    %v8889 = vunpack.c.l.b16 %v8813
    %v8890 = vunpack.c.l.b16 %v8814
    %v8891 = vunpack.c.l.b16 %v8815
    %v8892 = vunpack.c.l.b16 %v8816
    %v8893 = vunpack.c.l.b16 %v8817
    %v8894 = vunpack.c.l.b16 %v8818
    %v8895 = vunpack.c.l.b16 %v8819
    %v8896 = vunpack.c.l.b16 %v8820
    %v8897 = vunpack.c.l.b16 %v8821
    %v8898 = vunpack.c.l.b16 %v8822
    %v8899 = vunpack.c.l.b16 %v8823
    %v8900 = vunpack.c.l.b16 %v8824
    %v8901 = vunpack.c.l.b16 %v8825
    %v8902 = vpack.c.b16 %v8887, %v8886
    %v8903 = vpack.c.b16 %v8889, %v8888
    %v8904 = vpack.c.b16 %v8891, %v8890
    %v8905 = vpack.c.b16 %v8893, %v8892
    %v8906 = vpack.c.b16 %v8895, %v8894
    %v8907 = vpack.c.b16 %v8897, %v8896
    %v8908 = vpack.c.b16 %v8899, %v8898
    %v8909 = vpack.c.b16 %v8901, %v8900
    %8918 = vmatprep.subr.bf16.mxu0 0
    %8919 = vmatpush1.bf16.msra.mxu0 %v8902
    %8920 = vmatprep.subr.bf16.mxu0 0
    %8921 = vmatpush1.bf16.msra.mxu0 %v8903
    %8922 = vmatprep.subr.bf16.mxu0 0
    %8923 = vmatpush1.bf16.msra.mxu0 %v8904
    %8924 = vmatprep.subr.bf16.mxu0 0
    %8925 = vmatpush1.bf16.msra.mxu0 %v8905
    %8926 = vmatprep.subr.bf16.mxu0 0
    %8927 = vmatpush1.bf16.msra.mxu0 %v8906
    %8928 = vmatprep.subr.bf16.mxu0 0
    %8929 = vmatpush1.bf16.msra.mxu0 %v8907
    %8930 = vmatprep.subr.bf16.mxu0 0
    %8931 = vmatpush1.bf16.msra.mxu0 %v8908
    %8932 = vmatprep.subr.bf16.mxu0 0
    %8933 = vmatpush1.bf16.msra.mxu0 %v8909
    %8934 = vmatprep.subr.bf16.mxu0 0
    %8935 = vmatpush1.bf16.msra.mxu0 0
    %8936 = vmatprep.subr.bf16.mxu0 0
    %8937 = vmatpush1.bf16.msra.mxu0 0
    %8938 = vmatprep.subr.bf16.mxu0 0
    %8939 = vmatpush1.bf16.msra.mxu0 0
    %8940 = vmatprep.subr.bf16.mxu0 0
    %8941 = vmatpush1.bf16.msra.mxu0 0
    %8942 = vmatprep.subr.bf16.mxu0 0
    %8943 = vmatpush1.bf16.msra.mxu0 0
    %8944 = vmatprep.subr.bf16.mxu0 0
    %8945 = vmatpush1.bf16.msra.mxu0 0
    %8946 = vmatprep.subr.bf16.mxu0 0
    %8947 = vmatpush1.bf16.msra.mxu0 0
    %8948 = vmatprep.subr.bf16.mxu0 0
    %8949 = vmatpush1.bf16.msra.mxu0 0
    %8950 = vmatprep.mubr.bf16.mxu0 0
    %8951 = vmatmul.mubr.bf16.gmra.mrb[0].mxu0 %v8869
    %v8952 = vpop.f32.mrb[0].mxu0
    %v8953 = vadd.f32 0.0, %v8952
    %v8954 = vpop.f32.mrb[0].mxu0
    %v8955 = vpop.f32.mrb[0].mxu0
    %v8956 = vpop.f32.mrb[0].mxu0
    %8957 = vdwg.mxu0
    %v8958 = vadd.f32 %v8806, %v8953
    %s8959 = scalar_lea.vmem %s4, 4
    %v8960 = vld [vmem:[%s8959] sm:$0x1]
    %s8961 = scalar_lea.vmem %s8, 256
    %v8962 = vld [vmem:[%s8961] sm:$0xf]
    %v8963 = vld [vmem:[%s8961 + $0x4] sm:$0xf]
    %v8964 = vld [vmem:[%s8961 + $0x8] sm:$0xf]
    %v8965 = vld [vmem:[%s8961 + $0xc] sm:$0xf]
    %v8966 = vld [vmem:[%s8961 + $0x10] sm:$0xf]
    %v8967 = vld [vmem:[%s8961 + $0x14] sm:$0xf]
    %v8968 = vld [vmem:[%s8961 + $0x18] sm:$0xf]
    %v8969 = vld [vmem:[%s8961 + $0x1c] sm:$0xf]
    %v8970 = vld [vmem:[%s8961 + $0x20] sm:$0xf]
    %v8971 = vld [vmem:[%s8961 + $0x24] sm:$0xf]
    %v8972 = vld [vmem:[%s8961 + $0x28] sm:$0xf]
    %v8973 = vld [vmem:[%s8961 + $0x2c] sm:$0xf]
    %v8974 = vld [vmem:[%s8961 + $0x30] sm:$0xf]
    %v8975 = vld [vmem:[%s8961 + $0x34] sm:$0xf]
    %v8976 = vld [vmem:[%s8961 + $0x38] sm:$0xf]
    %v8977 = vld [vmem:[%s8961 + $0x3c] sm:$0xf]
    %v8979 = vsel %vm1085, %v8960, 0
    %8981 = vmatprep.subr.bf16.mxu0 0
    %8982 = vmatpush1.bf16.msra.mxu0 %v8373
    %8983 = vmatprep.subr.bf16.mxu0 0
    %8984 = vmatpush1.bf16.msra.mxu0 0
    %8985 = vmatprep.subr.bf16.mxu0 0
    %8986 = vmatpush1.bf16.msra.mxu0 0
    %8987 = vmatprep.subr.bf16.mxu0 0
    %8988 = vmatpush1.bf16.msra.mxu0 0
    %8989 = vmatprep.subr.bf16.mxu0 0
    %8990 = vmatpush1.bf16.msra.mxu0 0
    %8991 = vmatprep.subr.bf16.mxu0 0
    %8992 = vmatpush1.bf16.msra.mxu0 0
    %8993 = vmatprep.subr.bf16.mxu0 0
    %8994 = vmatpush1.bf16.msra.mxu0 0
    %8995 = vmatprep.subr.bf16.mxu0 0
    %8996 = vmatpush1.bf16.msra.mxu0 0
    %8997 = vmatprep.subr.bf16.mxu0 0
    %8998 = vmatpush1.bf16.msra.mxu0 0
    %8999 = vmatprep.subr.bf16.mxu0 0
    %9000 = vmatpush1.bf16.msra.mxu0 0
    %9001 = vmatprep.subr.bf16.mxu0 0
    %9002 = vmatpush1.bf16.msra.mxu0 0
    %9003 = vmatprep.subr.bf16.mxu0 0
    %9004 = vmatpush1.bf16.msra.mxu0 0
    %9005 = vmatprep.subr.bf16.mxu0 0
    %9006 = vmatpush1.bf16.msra.mxu0 0
    %9007 = vmatprep.subr.bf16.mxu0 0
    %9008 = vmatpush1.bf16.msra.mxu0 0
    %9009 = vmatprep.subr.bf16.mxu0 0
    %9010 = vmatpush1.bf16.msra.mxu0 0
    %9011 = vmatprep.subr.bf16.mxu0 0
    %9012 = vmatpush1.bf16.msra.mxu0 0
    %9013 = vmatprep.mubr.bf16.mxu0 0
    %9014 = vmatmul.mubr.bf16.gmra.mrb[0].mxu0 %v8979
    %v9015 = vpop.f32.mrb[0].mxu0
    %v9016 = vadd.f32 0.0, %v9015
    %v9017 = vpop.f32.mrb[0].mxu0
    %v9018 = vpop.f32.mrb[0].mxu0
    %v9019 = vpop.f32.mrb[0].mxu0
    %9020 = vdwg.mxu0
    %v9021 = vpack.c.bf16 %v9016, %v9016
    %v9038 = vunpack.c.l.b16 %v8962
    %v9039 = vunpack.c.l.b16 %v8963
    %v9040 = vunpack.c.l.b16 %v8964
    %v9041 = vunpack.c.l.b16 %v8965
    %v9042 = vunpack.c.l.b16 %v8966
    %v9043 = vunpack.c.l.b16 %v8967
    %v9044 = vunpack.c.l.b16 %v8968
    %v9045 = vunpack.c.l.b16 %v8969
    %v9046 = vunpack.c.l.b16 %v8970
    %v9047 = vunpack.c.l.b16 %v8971
    %v9048 = vunpack.c.l.b16 %v8972
    %v9049 = vunpack.c.l.b16 %v8973
    %v9050 = vunpack.c.l.b16 %v8974
    %v9051 = vunpack.c.l.b16 %v8975
    %v9052 = vunpack.c.l.b16 %v8976
    %v9053 = vunpack.c.l.b16 %v8977
    %v9054 = vpack.c.b16 %v9039, %v9038
    %v9055 = vpack.c.b16 %v9041, %v9040
    %v9056 = vpack.c.b16 %v9043, %v9042
    %v9057 = vpack.c.b16 %v9045, %v9044
    %v9058 = vpack.c.b16 %v9047, %v9046
    %v9059 = vpack.c.b16 %v9049, %v9048
    %v9060 = vpack.c.b16 %v9051, %v9050
    %v9061 = vpack.c.b16 %v9053, %v9052
    %9070 = vmatprep.subr.bf16.mxu0 0
    %9071 = vmatpush1.bf16.msra.mxu0 %v9054
    %9072 = vmatprep.subr.bf16.mxu0 0
    %9073 = vmatpush1.bf16.msra.mxu0 %v9055
    %9074 = vmatprep.subr.bf16.mxu0 0
    %9075 = vmatpush1.bf16.msra.mxu0 %v9056
    %9076 = vmatprep.subr.bf16.mxu0 0
    %9077 = vmatpush1.bf16.msra.mxu0 %v9057
    %9078 = vmatprep.subr.bf16.mxu0 0
    %9079 = vmatpush1.bf16.msra.mxu0 %v9058
    %9080 = vmatprep.subr.bf16.mxu0 0
    %9081 = vmatpush1.bf16.msra.mxu0 %v9059
    %9082 = vmatprep.subr.bf16.mxu0 0
    %9083 = vmatpush1.bf16.msra.mxu0 %v9060
    %9084 = vmatprep.subr.bf16.mxu0 0
    %9085 = vmatpush1.bf16.msra.mxu0 %v9061
    %9086 = vmatprep.subr.bf16.mxu0 0
    %9087 = vmatpush1.bf16.msra.mxu0 0
    %9088 = vmatprep.subr.bf16.mxu0 0
    %9089 = vmatpush1.bf16.msra.mxu0 0
    %9090 = vmatprep.subr.bf16.mxu0 0
    %9091 = vmatpush1.bf16.msra.mxu0 0
    %9092 = vmatprep.subr.bf16.mxu0 0
    %9093 = vmatpush1.bf16.msra.mxu0 0
    %9094 = vmatprep.subr.bf16.mxu0 0
    %9095 = vmatpush1.bf16.msra.mxu0 0
    %9096 = vmatprep.subr.bf16.mxu0 0
    %9097 = vmatpush1.bf16.msra.mxu0 0
    %9098 = vmatprep.subr.bf16.mxu0 0
    %9099 = vmatpush1.bf16.msra.mxu0 0
    %9100 = vmatprep.subr.bf16.mxu0 0
    %9101 = vmatpush1.bf16.msra.mxu0 0
    %9102 = vmatprep.mubr.bf16.mxu0 0
    %9103 = vmatmul.mubr.bf16.gmra.mrb[0].mxu0 %v9021
    %v9104 = vpop.f32.mrb[0].mxu0
    %v9105 = vadd.f32 0.0, %v9104
    %v9106 = vpop.f32.mrb[0].mxu0
    %v9107 = vpop.f32.mrb[0].mxu0
    %v9108 = vpop.f32.mrb[0].mxu0
    %9109 = vdwg.mxu0
    %v9110 = vadd.f32 %v8958, %v9105
    %s9111 = scalar_lea.vmem %s4, 5
    %v9112 = vld [vmem:[%s9111] sm:$0x1]
    %s9113 = scalar_lea.vmem %s8, 320
    %v9114 = vld [vmem:[%s9113] sm:$0xf]
    %v9115 = vld [vmem:[%s9113 + $0x4] sm:$0xf]
    %v9116 = vld [vmem:[%s9113 + $0x8] sm:$0xf]
    %v9117 = vld [vmem:[%s9113 + $0xc] sm:$0xf]
    %v9118 = vld [vmem:[%s9113 + $0x10] sm:$0xf]
    %v9119 = vld [vmem:[%s9113 + $0x14] sm:$0xf]
    %v9120 = vld [vmem:[%s9113 + $0x18] sm:$0xf]
    %v9121 = vld [vmem:[%s9113 + $0x1c] sm:$0xf]
    %v9122 = vld [vmem:[%s9113 + $0x20] sm:$0xf]
    %v9123 = vld [vmem:[%s9113 + $0x24] sm:$0xf]
    %v9124 = vld [vmem:[%s9113 + $0x28] sm:$0xf]
    %v9125 = vld [vmem:[%s9113 + $0x2c] sm:$0xf]
    %v9126 = vld [vmem:[%s9113 + $0x30] sm:$0xf]
    %v9127 = vld [vmem:[%s9113 + $0x34] sm:$0xf]
    %v9128 = vld [vmem:[%s9113 + $0x38] sm:$0xf]
    %v9129 = vld [vmem:[%s9113 + $0x3c] sm:$0xf]
    %v9131 = vsel %vm1085, %v9112, 0
    %9133 = vmatprep.subr.bf16.mxu0 0
    %9134 = vmatpush1.bf16.msra.mxu0 %v8373
    %9135 = vmatprep.subr.bf16.mxu0 0
    %9136 = vmatpush1.bf16.msra.mxu0 0
    %9137 = vmatprep.subr.bf16.mxu0 0
    %9138 = vmatpush1.bf16.msra.mxu0 0
    %9139 = vmatprep.subr.bf16.mxu0 0
    %9140 = vmatpush1.bf16.msra.mxu0 0
    %9141 = vmatprep.subr.bf16.mxu0 0
    %9142 = vmatpush1.bf16.msra.mxu0 0
    %9143 = vmatprep.subr.bf16.mxu0 0
    %9144 = vmatpush1.bf16.msra.mxu0 0
    %9145 = vmatprep.subr.bf16.mxu0 0
    %9146 = vmatpush1.bf16.msra.mxu0 0
    %9147 = vmatprep.subr.bf16.mxu0 0
    %9148 = vmatpush1.bf16.msra.mxu0 0
    %9149 = vmatprep.subr.bf16.mxu0 0
    %9150 = vmatpush1.bf16.msra.mxu0 0
    %9151 = vmatprep.subr.bf16.mxu0 0
    %9152 = vmatpush1.bf16.msra.mxu0 0
    %9153 = vmatprep.subr.bf16.mxu0 0
    %9154 = vmatpush1.bf16.msra.mxu0 0
    %9155 = vmatprep.subr.bf16.mxu0 0
    %9156 = vmatpush1.bf16.msra.mxu0 0
    %9157 = vmatprep.subr.bf16.mxu0 0
    %9158 = vmatpush1.bf16.msra.mxu0 0
    %9159 = vmatprep.subr.bf16.mxu0 0
    %9160 = vmatpush1.bf16.msra.mxu0 0
    %9161 = vmatprep.subr.bf16.mxu0 0
    %9162 = vmatpush1.bf16.msra.mxu0 0
    %9163 = vmatprep.subr.bf16.mxu0 0
    %9164 = vmatpush1.bf16.msra.mxu0 0
    %9165 = vmatprep.mubr.bf16.mxu0 0
    %9166 = vmatmul.mubr.bf16.gmra.mrb[0].mxu0 %v9131
    %v9167 = vpop.f32.mrb[0].mxu0
    %v9168 = vadd.f32 0.0, %v9167
    %v9169 = vpop.f32.mrb[0].mxu0
    %v9170 = vpop.f32.mrb[0].mxu0
    %v9171 = vpop.f32.mrb[0].mxu0
    %9172 = vdwg.mxu0
    %v9173 = vpack.c.bf16 %v9168, %v9168
    %v9190 = vunpack.c.l.b16 %v9114
    %v9191 = vunpack.c.l.b16 %v9115
    %v9192 = vunpack.c.l.b16 %v9116
    %v9193 = vunpack.c.l.b16 %v9117
    %v9194 = vunpack.c.l.b16 %v9118
    %v9195 = vunpack.c.l.b16 %v9119
    %v9196 = vunpack.c.l.b16 %v9120
    %v9197 = vunpack.c.l.b16 %v9121
    %v9198 = vunpack.c.l.b16 %v9122
    %v9199 = vunpack.c.l.b16 %v9123
    %v9200 = vunpack.c.l.b16 %v9124
    %v9201 = vunpack.c.l.b16 %v9125
    %v9202 = vunpack.c.l.b16 %v9126
    %v9203 = vunpack.c.l.b16 %v9127
    %v9204 = vunpack.c.l.b16 %v9128
    %v9205 = vunpack.c.l.b16 %v9129
    %v9206 = vpack.c.b16 %v9191, %v9190
    %v9207 = vpack.c.b16 %v9193, %v9192
    %v9208 = vpack.c.b16 %v9195, %v9194
    %v9209 = vpack.c.b16 %v9197, %v9196
    %v9210 = vpack.c.b16 %v9199, %v9198
    %v9211 = vpack.c.b16 %v9201, %v9200
    %v9212 = vpack.c.b16 %v9203, %v9202
    %v9213 = vpack.c.b16 %v9205, %v9204
    %9222 = vmatprep.subr.bf16.mxu0 0
    %9223 = vmatpush1.bf16.msra.mxu0 %v9206
    %9224 = vmatprep.subr.bf16.mxu0 0
    %9225 = vmatpush1.bf16.msra.mxu0 %v9207
    %9226 = vmatprep.subr.bf16.mxu0 0
    %9227 = vmatpush1.bf16.msra.mxu0 %v9208
    %9228 = vmatprep.subr.bf16.mxu0 0
    %9229 = vmatpush1.bf16.msra.mxu0 %v9209
    %9230 = vmatprep.subr.bf16.mxu0 0
    %9231 = vmatpush1.bf16.msra.mxu0 %v9210
    %9232 = vmatprep.subr.bf16.mxu0 0
    %9233 = vmatpush1.bf16.msra.mxu0 %v9211
    %9234 = vmatprep.subr.bf16.mxu0 0
    %9235 = vmatpush1.bf16.msra.mxu0 %v9212
    %9236 = vmatprep.subr.bf16.mxu0 0
    %9237 = vmatpush1.bf16.msra.mxu0 %v9213
    %9238 = vmatprep.subr.bf16.mxu0 0
    %9239 = vmatpush1.bf16.msra.mxu0 0
    %9240 = vmatprep.subr.bf16.mxu0 0
    %9241 = vmatpush1.bf16.msra.mxu0 0
    %9242 = vmatprep.subr.bf16.mxu0 0
    %9243 = vmatpush1.bf16.msra.mxu0 0
    %9244 = vmatprep.subr.bf16.mxu0 0
    %9245 = vmatpush1.bf16.msra.mxu0 0
    %9246 = vmatprep.subr.bf16.mxu0 0
    %9247 = vmatpush1.bf16.msra.mxu0 0
    %9248 = vmatprep.subr.bf16.mxu0 0
    %9249 = vmatpush1.bf16.msra.mxu0 0
    %9250 = vmatprep.subr.bf16.mxu0 0
    %9251 = vmatpush1.bf16.msra.mxu0 0
    %9252 = vmatprep.subr.bf16.mxu0 0
    %9253 = vmatpush1.bf16.msra.mxu0 0
    %9254 = vmatprep.mubr.bf16.mxu0 0
    %9255 = vmatmul.mubr.bf16.gmra.mrb[0].mxu0 %v9173
    %v9256 = vpop.f32.mrb[0].mxu0
    %v9257 = vadd.f32 0.0, %v9256
    %v9258 = vpop.f32.mrb[0].mxu0
    %v9259 = vpop.f32.mrb[0].mxu0
    %v9260 = vpop.f32.mrb[0].mxu0
    %9261 = vdwg.mxu0
    %v9262 = vadd.f32 %v9110, %v9257
    %s9263 = scalar_lea.vmem %s4, 6
    %v9264 = vld [vmem:[%s9263] sm:$0x1]
    %s9265 = scalar_lea.vmem %s8, 384
    %v9266 = vld [vmem:[%s9265] sm:$0xf]
    %v9267 = vld [vmem:[%s9265 + $0x4] sm:$0xf]
    %v9268 = vld [vmem:[%s9265 + $0x8] sm:$0xf]
    %v9269 = vld [vmem:[%s9265 + $0xc] sm:$0xf]
    %v9270 = vld [vmem:[%s9265 + $0x10] sm:$0xf]
    %v9271 = vld [vmem:[%s9265 + $0x14] sm:$0xf]
    %v9272 = vld [vmem:[%s9265 + $0x18] sm:$0xf]
    %v9273 = vld [vmem:[%s9265 + $0x1c] sm:$0xf]
    %v9274 = vld [vmem:[%s9265 + $0x20] sm:$0xf]
    %v9275 = vld [vmem:[%s9265 + $0x24] sm:$0xf]
    %v9276 = vld [vmem:[%s9265 + $0x28] sm:$0xf]
    %v9277 = vld [vmem:[%s9265 + $0x2c] sm:$0xf]
    %v9278 = vld [vmem:[%s9265 + $0x30] sm:$0xf]
    %v9279 = vld [vmem:[%s9265 + $0x34] sm:$0xf]
    %v9280 = vld [vmem:[%s9265 + $0x38] sm:$0xf]
    %v9281 = vld [vmem:[%s9265 + $0x3c] sm:$0xf]
    %v9283 = vsel %vm1085, %v9264, 0
    %9285 = vmatprep.subr.bf16.mxu0 0
    %9286 = vmatpush1.bf16.msra.mxu0 %v8373
    %9287 = vmatprep.subr.bf16.mxu0 0
    %9288 = vmatpush1.bf16.msra.mxu0 0
    %9289 = vmatprep.subr.bf16.mxu0 0
    %9290 = vmatpush1.bf16.msra.mxu0 0
    %9291 = vmatprep.subr.bf16.mxu0 0
    %9292 = vmatpush1.bf16.msra.mxu0 0
    %9293 = vmatprep.subr.bf16.mxu0 0
    %9294 = vmatpush1.bf16.msra.mxu0 0
    %9295 = vmatprep.subr.bf16.mxu0 0
    %9296 = vmatpush1.bf16.msra.mxu0 0
    %9297 = vmatprep.subr.bf16.mxu0 0
    %9298 = vmatpush1.bf16.msra.mxu0 0
    %9299 = vmatprep.subr.bf16.mxu0 0
    %9300 = vmatpush1.bf16.msra.mxu0 0
    %9301 = vmatprep.subr.bf16.mxu0 0
    %9302 = vmatpush1.bf16.msra.mxu0 0
    %9303 = vmatprep.subr.bf16.mxu0 0
    %9304 = vmatpush1.bf16.msra.mxu0 0
    %9305 = vmatprep.subr.bf16.mxu0 0
    %9306 = vmatpush1.bf16.msra.mxu0 0
    %9307 = vmatprep.subr.bf16.mxu0 0
    %9308 = vmatpush1.bf16.msra.mxu0 0
    %9309 = vmatprep.subr.bf16.mxu0 0
    %9310 = vmatpush1.bf16.msra.mxu0 0
    %9311 = vmatprep.subr.bf16.mxu0 0
    %9312 = vmatpush1.bf16.msra.mxu0 0
    %9313 = vmatprep.subr.bf16.mxu0 0
    %9314 = vmatpush1.bf16.msra.mxu0 0
    %9315 = vmatprep.subr.bf16.mxu0 0
    %9316 = vmatpush1.bf16.msra.mxu0 0
    %9317 = vmatprep.mubr.bf16.mxu0 0
    %9318 = vmatmul.mubr.bf16.gmra.mrb[0].mxu0 %v9283
    %v9319 = vpop.f32.mrb[0].mxu0
    %v9320 = vadd.f32 0.0, %v9319
    %v9321 = vpop.f32.mrb[0].mxu0
    %v9322 = vpop.f32.mrb[0].mxu0
    %v9323 = vpop.f32.mrb[0].mxu0
    %9324 = vdwg.mxu0
    %v9325 = vpack.c.bf16 %v9320, %v9320
    %v9342 = vunpack.c.l.b16 %v9266
    %v9343 = vunpack.c.l.b16 %v9267
    %v9344 = vunpack.c.l.b16 %v9268
    %v9345 = vunpack.c.l.b16 %v9269
    %v9346 = vunpack.c.l.b16 %v9270
    %v9347 = vunpack.c.l.b16 %v9271
    %v9348 = vunpack.c.l.b16 %v9272
    %v9349 = vunpack.c.l.b16 %v9273
    %v9350 = vunpack.c.l.b16 %v9274
    %v9351 = vunpack.c.l.b16 %v9275
    %v9352 = vunpack.c.l.b16 %v9276
    %v9353 = vunpack.c.l.b16 %v9277
    %v9354 = vunpack.c.l.b16 %v9278
    %v9355 = vunpack.c.l.b16 %v9279
    %v9356 = vunpack.c.l.b16 %v9280
    %v9357 = vunpack.c.l.b16 %v9281
    %v9358 = vpack.c.b16 %v9343, %v9342
    %v9359 = vpack.c.b16 %v9345, %v9344
    %v9360 = vpack.c.b16 %v9347, %v9346
    %v9361 = vpack.c.b16 %v9349, %v9348
    %v9362 = vpack.c.b16 %v9351, %v9350
    %v9363 = vpack.c.b16 %v9353, %v9352
    %v9364 = vpack.c.b16 %v9355, %v9354
    %v9365 = vpack.c.b16 %v9357, %v9356
    %9374 = vmatprep.subr.bf16.mxu0 0
    %9375 = vmatpush1.bf16.msra.mxu0 %v9358
    %9376 = vmatprep.subr.bf16.mxu0 0
    %9377 = vmatpush1.bf16.msra.mxu0 %v9359
    %9378 = vmatprep.subr.bf16.mxu0 0
    %9379 = vmatpush1.bf16.msra.mxu0 %v9360
    %9380 = vmatprep.subr.bf16.mxu0 0
    %9381 = vmatpush1.bf16.msra.mxu0 %v9361
    %9382 = vmatprep.subr.bf16.mxu0 0
    %9383 = vmatpush1.bf16.msra.mxu0 %v9362
    %9384 = vmatprep.subr.bf16.mxu0 0
    %9385 = vmatpush1.bf16.msra.mxu0 %v9363
    %9386 = vmatprep.subr.bf16.mxu0 0
    %9387 = vmatpush1.bf16.msra.mxu0 %v9364
    %9388 = vmatprep.subr.bf16.mxu0 0
    %9389 = vmatpush1.bf16.msra.mxu0 %v9365
    %9390 = vmatprep.subr.bf16.mxu0 0
    %9391 = vmatpush1.bf16.msra.mxu0 0
    %9392 = vmatprep.subr.bf16.mxu0 0
    %9393 = vmatpush1.bf16.msra.mxu0 0
    %9394 = vmatprep.subr.bf16.mxu0 0
    %9395 = vmatpush1.bf16.msra.mxu0 0
    %9396 = vmatprep.subr.bf16.mxu0 0
    %9397 = vmatpush1.bf16.msra.mxu0 0
    %9398 = vmatprep.subr.bf16.mxu0 0
    %9399 = vmatpush1.bf16.msra.mxu0 0
    %9400 = vmatprep.subr.bf16.mxu0 0
    %9401 = vmatpush1.bf16.msra.mxu0 0
    %9402 = vmatprep.subr.bf16.mxu0 0
    %9403 = vmatpush1.bf16.msra.mxu0 0
    %9404 = vmatprep.subr.bf16.mxu0 0
    %9405 = vmatpush1.bf16.msra.mxu0 0
    %9406 = vmatprep.mubr.bf16.mxu0 0
    %9407 = vmatmul.mubr.bf16.gmra.mrb[0].mxu0 %v9325
    %v9408 = vpop.f32.mrb[0].mxu0
    %v9409 = vadd.f32 0.0, %v9408
    %v9410 = vpop.f32.mrb[0].mxu0
    %v9411 = vpop.f32.mrb[0].mxu0
    %v9412 = vpop.f32.mrb[0].mxu0
    %9413 = vdwg.mxu0
    %v9414 = vadd.f32 %v9262, %v9409
    %s9415 = scalar_lea.vmem %s4, 7
    %v9416 = vld [vmem:[%s9415] sm:$0x1]
    %s9417 = scalar_lea.vmem %s8, 448
    %v9418 = vld [vmem:[%s9417] sm:$0xf]
    %v9419 = vld [vmem:[%s9417 + $0x4] sm:$0xf]
    %v9420 = vld [vmem:[%s9417 + $0x8] sm:$0xf]
    %v9421 = vld [vmem:[%s9417 + $0xc] sm:$0xf]
    %v9422 = vld [vmem:[%s9417 + $0x10] sm:$0xf]
    %v9423 = vld [vmem:[%s9417 + $0x14] sm:$0xf]
    %v9424 = vld [vmem:[%s9417 + $0x18] sm:$0xf]
    %v9425 = vld [vmem:[%s9417 + $0x1c] sm:$0xf]
    %v9426 = vld [vmem:[%s9417 + $0x20] sm:$0xf]
    %v9427 = vld [vmem:[%s9417 + $0x24] sm:$0xf]
    %v9428 = vld [vmem:[%s9417 + $0x28] sm:$0xf]
    %v9429 = vld [vmem:[%s9417 + $0x2c] sm:$0xf]
    %v9430 = vld [vmem:[%s9417 + $0x30] sm:$0xf]
    %v9431 = vld [vmem:[%s9417 + $0x34] sm:$0xf]
    %v9432 = vld [vmem:[%s9417 + $0x38] sm:$0xf]
    %v9433 = vld [vmem:[%s9417 + $0x3c] sm:$0xf]
    %v9435 = vsel %vm1085, %v9416, 0
    %9437 = vmatprep.subr.bf16.mxu0 0
    %9438 = vmatpush1.bf16.msra.mxu0 %v8373
    %9439 = vmatprep.subr.bf16.mxu0 0
    %9440 = vmatpush1.bf16.msra.mxu0 0
    %9441 = vmatprep.subr.bf16.mxu0 0
    %9442 = vmatpush1.bf16.msra.mxu0 0
    %9443 = vmatprep.subr.bf16.mxu0 0
    %9444 = vmatpush1.bf16.msra.mxu0 0
    %9445 = vmatprep.subr.bf16.mxu0 0
    %9446 = vmatpush1.bf16.msra.mxu0 0
    %9447 = vmatprep.subr.bf16.mxu0 0
    %9448 = vmatpush1.bf16.msra.mxu0 0
    %9449 = vmatprep.subr.bf16.mxu0 0
    %9450 = vmatpush1.bf16.msra.mxu0 0
    %9451 = vmatprep.subr.bf16.mxu0 0
    %9452 = vmatpush1.bf16.msra.mxu0 0
    %9453 = vmatprep.subr.bf16.mxu0 0
    %9454 = vmatpush1.bf16.msra.mxu0 0
    %9455 = vmatprep.subr.bf16.mxu0 0
    %9456 = vmatpush1.bf16.msra.mxu0 0
    %9457 = vmatprep.subr.bf16.mxu0 0
    %9458 = vmatpush1.bf16.msra.mxu0 0
    %9459 = vmatprep.subr.bf16.mxu0 0
    %9460 = vmatpush1.bf16.msra.mxu0 0
    %9461 = vmatprep.subr.bf16.mxu0 0
    %9462 = vmatpush1.bf16.msra.mxu0 0
    %9463 = vmatprep.subr.bf16.mxu0 0
    %9464 = vmatpush1.bf16.msra.mxu0 0
    %9465 = vmatprep.subr.bf16.mxu0 0
    %9466 = vmatpush1.bf16.msra.mxu0 0
    %9467 = vmatprep.subr.bf16.mxu0 0
    %9468 = vmatpush1.bf16.msra.mxu0 0
    %9469 = vmatprep.mubr.bf16.mxu0 0
    %9470 = vmatmul.mubr.bf16.gmra.mrb[0].mxu0 %v9435
    %v9471 = vpop.f32.mrb[0].mxu0
    %v9472 = vadd.f32 0.0, %v9471
    %v9473 = vpop.f32.mrb[0].mxu0
    %v9474 = vpop.f32.mrb[0].mxu0
    %v9475 = vpop.f32.mrb[0].mxu0
    %9476 = vdwg.mxu0
    %v9477 = vpack.c.bf16 %v9472, %v9472
    %v9494 = vunpack.c.l.b16 %v9418
    %v9495 = vunpack.c.l.b16 %v9419
    %v9496 = vunpack.c.l.b16 %v9420
    %v9497 = vunpack.c.l.b16 %v9421
    %v9498 = vunpack.c.l.b16 %v9422
    %v9499 = vunpack.c.l.b16 %v9423
    %v9500 = vunpack.c.l.b16 %v9424
    %v9501 = vunpack.c.l.b16 %v9425
    %v9502 = vunpack.c.l.b16 %v9426
    %v9503 = vunpack.c.l.b16 %v9427
    %v9504 = vunpack.c.l.b16 %v9428
    %v9505 = vunpack.c.l.b16 %v9429
    %v9506 = vunpack.c.l.b16 %v9430
    %v9507 = vunpack.c.l.b16 %v9431
    %v9508 = vunpack.c.l.b16 %v9432
    %v9509 = vunpack.c.l.b16 %v9433
    %v9510 = vpack.c.b16 %v9495, %v9494
    %v9511 = vpack.c.b16 %v9497, %v9496
    %v9512 = vpack.c.b16 %v9499, %v9498
    %v9513 = vpack.c.b16 %v9501, %v9500
    %v9514 = vpack.c.b16 %v9503, %v9502
    %v9515 = vpack.c.b16 %v9505, %v9504
    %v9516 = vpack.c.b16 %v9507, %v9506
    %v9517 = vpack.c.b16 %v9509, %v9508
    %9526 = vmatprep.subr.bf16.mxu0 0
    %9527 = vmatpush1.bf16.msra.mxu0 %v9510
    %9528 = vmatprep.subr.bf16.mxu0 0
    %9529 = vmatpush1.bf16.msra.mxu0 %v9511
    %9530 = vmatprep.subr.bf16.mxu0 0
    %9531 = vmatpush1.bf16.msra.mxu0 %v9512
    %9532 = vmatprep.subr.bf16.mxu0 0
    %9533 = vmatpush1.bf16.msra.mxu0 %v9513
    %9534 = vmatprep.subr.bf16.mxu0 0
    %9535 = vmatpush1.bf16.msra.mxu0 %v9514
    %9536 = vmatprep.subr.bf16.mxu0 0
    %9537 = vmatpush1.bf16.msra.mxu0 %v9515
    %9538 = vmatprep.subr.bf16.mxu0 0
    %9539 = vmatpush1.bf16.msra.mxu0 %v9516
    %9540 = vmatprep.subr.bf16.mxu0 0
    %9541 = vmatpush1.bf16.msra.mxu0 %v9517
    %9542 = vmatprep.subr.bf16.mxu0 0
    %9543 = vmatpush1.bf16.msra.mxu0 0
    %9544 = vmatprep.subr.bf16.mxu0 0
    %9545 = vmatpush1.bf16.msra.mxu0 0
    %9546 = vmatprep.subr.bf16.mxu0 0
    %9547 = vmatpush1.bf16.msra.mxu0 0
    %9548 = vmatprep.subr.bf16.mxu0 0
    %9549 = vmatpush1.bf16.msra.mxu0 0
    %9550 = vmatprep.subr.bf16.mxu0 0
    %9551 = vmatpush1.bf16.msra.mxu0 0
    %9552 = vmatprep.subr.bf16.mxu0 0
    %9553 = vmatpush1.bf16.msra.mxu0 0
    %9554 = vmatprep.subr.bf16.mxu0 0
    %9555 = vmatpush1.bf16.msra.mxu0 0
    %9556 = vmatprep.subr.bf16.mxu0 0
    %9557 = vmatpush1.bf16.msra.mxu0 0
    %9558 = vmatprep.mubr.bf16.mxu0 0
    %9559 = vmatmul.mubr.bf16.gmra.mrb[0].mxu0 %v9477
    %v9560 = vpop.f32.mrb[0].mxu0
    %v9561 = vadd.f32 0.0, %v9560
    %v9562 = vpop.f32.mrb[0].mxu0
    %v9563 = vpop.f32.mrb[0].mxu0
    %v9564 = vpop.f32.mrb[0].mxu0
    %9565 = vdwg.mxu0
    %v9566 = vadd.f32 %v9414, %v9561
    %s9567 = scalar_lea.vmem %s4, 8
    %v9568 = vld [vmem:[%s9567] sm:$0x1]
    %s9569 = scalar_lea.vmem %s8, 512
    %v9570 = vld [vmem:[%s9569] sm:$0xf]
    %v9571 = vld [vmem:[%s9569 + $0x4] sm:$0xf]
    %v9572 = vld [vmem:[%s9569 + $0x8] sm:$0xf]
    %v9573 = vld [vmem:[%s9569 + $0xc] sm:$0xf]
    %v9574 = vld [vmem:[%s9569 + $0x10] sm:$0xf]
    %v9575 = vld [vmem:[%s9569 + $0x14] sm:$0xf]
    %v9576 = vld [vmem:[%s9569 + $0x18] sm:$0xf]
    %v9577 = vld [vmem:[%s9569 + $0x1c] sm:$0xf]
    %v9578 = vld [vmem:[%s9569 + $0x20] sm:$0xf]
    %v9579 = vld [vmem:[%s9569 + $0x24] sm:$0xf]
    %v9580 = vld [vmem:[%s9569 + $0x28] sm:$0xf]
    %v9581 = vld [vmem:[%s9569 + $0x2c] sm:$0xf]
    %v9582 = vld [vmem:[%s9569 + $0x30] sm:$0xf]
    %v9583 = vld [vmem:[%s9569 + $0x34] sm:$0xf]
    %v9584 = vld [vmem:[%s9569 + $0x38] sm:$0xf]
    %v9585 = vld [vmem:[%s9569 + $0x3c] sm:$0xf]
    %v9587 = vsel %vm1085, %v9568, 0
    %9589 = vmatprep.subr.bf16.mxu0 0
    %9590 = vmatpush1.bf16.msra.mxu0 %v8373
    %9591 = vmatprep.subr.bf16.mxu0 0
    %9592 = vmatpush1.bf16.msra.mxu0 0
    %9593 = vmatprep.subr.bf16.mxu0 0
    %9594 = vmatpush1.bf16.msra.mxu0 0
    %9595 = vmatprep.subr.bf16.mxu0 0
    %9596 = vmatpush1.bf16.msra.mxu0 0
    %9597 = vmatprep.subr.bf16.mxu0 0
    %9598 = vmatpush1.bf16.msra.mxu0 0
    %9599 = vmatprep.subr.bf16.mxu0 0
    %9600 = vmatpush1.bf16.msra.mxu0 0
    %9601 = vmatprep.subr.bf16.mxu0 0
    %9602 = vmatpush1.bf16.msra.mxu0 0
    %9603 = vmatprep.subr.bf16.mxu0 0
    %9604 = vmatpush1.bf16.msra.mxu0 0
    %9605 = vmatprep.subr.bf16.mxu0 0
    %9606 = vmatpush1.bf16.msra.mxu0 0
    %9607 = vmatprep.subr.bf16.mxu0 0
    %9608 = vmatpush1.bf16.msra.mxu0 0
    %9609 = vmatprep.subr.bf16.mxu0 0
    %9610 = vmatpush1.bf16.msra.mxu0 0
    %9611 = vmatprep.subr.bf16.mxu0 0
    %9612 = vmatpush1.bf16.msra.mxu0 0
    %9613 = vmatprep.subr.bf16.mxu0 0
    %9614 = vmatpush1.bf16.msra.mxu0 0
    %9615 = vmatprep.subr.bf16.mxu0 0
    %9616 = vmatpush1.bf16.msra.mxu0 0
    %9617 = vmatprep.subr.bf16.mxu0 0
    %9618 = vmatpush1.bf16.msra.mxu0 0
    %9619 = vmatprep.subr.bf16.mxu0 0
    %9620 = vmatpush1.bf16.msra.mxu0 0
    %9621 = vmatprep.mubr.bf16.mxu0 0
    %9622 = vmatmul.mubr.bf16.gmra.mrb[0].mxu0 %v9587
    %v9623 = vpop.f32.mrb[0].mxu0
    %v9624 = vadd.f32 0.0, %v9623
    %v9625 = vpop.f32.mrb[0].mxu0
    %v9626 = vpop.f32.mrb[0].mxu0
    %v9627 = vpop.f32.mrb[0].mxu0
    %9628 = vdwg.mxu0
    %v9629 = vpack.c.bf16 %v9624, %v9624
    %v9646 = vunpack.c.l.b16 %v9570
    %v9647 = vunpack.c.l.b16 %v9571
    %v9648 = vunpack.c.l.b16 %v9572
    %v9649 = vunpack.c.l.b16 %v9573
    %v9650 = vunpack.c.l.b16 %v9574
    %v9651 = vunpack.c.l.b16 %v9575
    %v9652 = vunpack.c.l.b16 %v9576
    %v9653 = vunpack.c.l.b16 %v9577
    %v9654 = vunpack.c.l.b16 %v9578
    %v9655 = vunpack.c.l.b16 %v9579
    %v9656 = vunpack.c.l.b16 %v9580
    %v9657 = vunpack.c.l.b16 %v9581
    %v9658 = vunpack.c.l.b16 %v9582
    %v9659 = vunpack.c.l.b16 %v9583
    %v9660 = vunpack.c.l.b16 %v9584
    %v9661 = vunpack.c.l.b16 %v9585
    %v9662 = vpack.c.b16 %v9647, %v9646
    %v9663 = vpack.c.b16 %v9649, %v9648
    %v9664 = vpack.c.b16 %v9651, %v9650
    %v9665 = vpack.c.b16 %v9653, %v9652
    %v9666 = vpack.c.b16 %v9655, %v9654
    %v9667 = vpack.c.b16 %v9657, %v9656
    %v9668 = vpack.c.b16 %v9659, %v9658
    %v9669 = vpack.c.b16 %v9661, %v9660
    %9678 = vmatprep.subr.bf16.mxu0 0
    %9679 = vmatpush1.bf16.msra.mxu0 %v9662
    %9680 = vmatprep.subr.bf16.mxu0 0
    %9681 = vmatpush1.bf16.msra.mxu0 %v9663
    %9682 = vmatprep.subr.bf16.mxu0 0
    %9683 = vmatpush1.bf16.msra.mxu0 %v9664
    %9684 = vmatprep.subr.bf16.mxu0 0
    %9685 = vmatpush1.bf16.msra.mxu0 %v9665
    %9686 = vmatprep.subr.bf16.mxu0 0
    %9687 = vmatpush1.bf16.msra.mxu0 %v9666
    %9688 = vmatprep.subr.bf16.mxu0 0
    %9689 = vmatpush1.bf16.msra.mxu0 %v9667
    %9690 = vmatprep.subr.bf16.mxu0 0
    %9691 = vmatpush1.bf16.msra.mxu0 %v9668
    %9692 = vmatprep.subr.bf16.mxu0 0
    %9693 = vmatpush1.bf16.msra.mxu0 %v9669
    %9694 = vmatprep.subr.bf16.mxu0 0
    %9695 = vmatpush1.bf16.msra.mxu0 0
    %9696 = vmatprep.subr.bf16.mxu0 0
    %9697 = vmatpush1.bf16.msra.mxu0 0
    %9698 = vmatprep.subr.bf16.mxu0 0
    %9699 = vmatpush1.bf16.msra.mxu0 0
    %9700 = vmatprep.subr.bf16.mxu0 0
    %9701 = vmatpush1.bf16.msra.mxu0 0
    %9702 = vmatprep.subr.bf16.mxu0 0
    %9703 = vmatpush1.bf16.msra.mxu0 0
    %9704 = vmatprep.subr.bf16.mxu0 0
    %9705 = vmatpush1.bf16.msra.mxu0 0
    %9706 = vmatprep.subr.bf16.mxu0 0
    %9707 = vmatpush1.bf16.msra.mxu0 0
    %9708 = vmatprep.subr.bf16.mxu0 0
    %9709 = vmatpush1.bf16.msra.mxu0 0
    %9710 = vmatprep.mubr.bf16.mxu0 0
    %9711 = vmatmul.mubr.bf16.gmra.mrb[0].mxu0 %v9629
    %v9712 = vpop.f32.mrb[0].mxu0
    %v9713 = vadd.f32 0.0, %v9712
    %v9714 = vpop.f32.mrb[0].mxu0
    %v9715 = vpop.f32.mrb[0].mxu0
    %v9716 = vpop.f32.mrb[0].mxu0
    %9717 = vdwg.mxu0
    %v9718 = vadd.f32 %v9566, %v9713
    %s9719 = scalar_lea.vmem %s9, 3
    %v9720 = vld [vmem:[%s9719] sm:$0x1]
    %v9722 = vlaneseq
    %v9723 = vshrl.u32 %v9722, 7
    %v9724 = vsub.s32 0, %v9723
    %v9725 = vrot.slane %v9720, %v9724
    %v9727 = vadd.f32 %v9718, %v9725
    %v9728 = vmax.f32 %v9727, 0.0
    %vm9729 = vcmask 1041408
    %v9730 = vsel %vm9729, %v9728, 0.0
    %v9731 = vrot.slane %v9730, 4
    %v9732 = vadd.f32 %v9730, %v9731
    %v9733 = vrot.slane %v9732, 2
    %v9734 = vadd.f32 %v9732, %v9733
    %v9735 = vrot.slane %v9734, 1
    %v9736 = vadd.f32 %v9734, %v9735
    %v9737 = vmul.f32 %v9736, 0.5
    %v9738 = vmul.f32 %v9728, %v9728
    %v9739 = vsel %vm9729, %v9738, 0.0
    %v9740 = vrot.slane %v9739, 4
    %v9741 = vadd.f32 %v9739, %v9740
    %v9742 = vrot.slane %v9741, 2
    %v9743 = vadd.f32 %v9741, %v9742
    %v9744 = vrot.slane %v9743, 1
    %v9745 = vadd.f32 %v9743, %v9744
    %v9746 = vmul.f32 %v9745, 0.5
    %v9747 = vmul.f32 %v9737, %v9737
    %v9748 = vsub.f32 %v9746, %v9747
    %v9749 = vsub.f32 %v9728, %v9737
    %v9750 = vadd.f32 %v9748, 1e-05
    %v9751 = vrsqrt.pop %v9750
    %v9752 = vmul.f32 %v9749, %v9751
    %9753 = vst [vmem:[#allocation2] sm:$0x3] %v9752
    // Predicated region
    $region42: #{conv_input_model.1} parent=1 // pred_check
      _
    $region43: #{conv_input_model.1} parent=1 // pred_check_branch
      %9755 = sbr.rel (0) target = $region45
    $region44: #{conv_input_model.1} parent=1 // pred_region
      %s9757 = ssub.s32 32, 32
      %9758 = vsyncadd [#allocation3], %s9757
      %s9760 = sshll.u32 [#allocation2], 4
      %s9761 = int_to_ptr.vmem [resolvable:$true] %s9760
      %9763 = dma.vmem_to_hbm [thread:$0]  %s9761, 32, %s10, [#allocation3]
    $region45: #{conv_input_model.1} parent=1 // pred_fallthru
      _
    // Predicated region
    $region46: #{conv_input_model.1} parent=1 // pred_check
      _
    $region47: #{conv_input_model.1} parent=1 // pred_check_branch
      %9765 = sbr.rel (0) target = $region49
    $region48: #{conv_input_model.1} parent=1 // pred_region
      %9766 = dma.done [#allocation3], 32
    $region49: #{conv_input_model.1} parent=1 // pred_fallthru
      _
    %9767 = vsyncpa [#allocation3], 1

</llo_original>
